<compile_context>
chip_gen: v6e
topology: v6e:2x2x1
jax: 0.10.0
libtpu: 0.0.40
codegen_flags: <defaults>
</compile_context>

<pallas_src>
import jax
import jax.numpy as jnp
from jax.experimental import pallas as pl
from jax.experimental.pallas import tpu as pltpu


def _round_up(x, m):
    return (x + m - 1) // m * m


def _pick_tm(m_rows):
    """Largest row tile in {512,256,128} that still yields >= 8 grid steps."""
    assert m_rows % 128 == 0
    for tm in (512, 256, 128):
        if m_rows % tm == 0 and m_rows // tm >= 8:
            return tm
    return 128


def _pick_tk(k_dim, max_tk=2048):
    """Contraction tile: full K if small, else the largest divisor <= max_tk."""
    assert k_dim % 256 == 0
    if k_dim <= max_tk:
        return k_dim
    for tk in range(max_tk, 0, -256):
        if k_dim % tk == 0:
            return tk
    return 256


def _vmem_limit_bytes(tm, tk, n, b_itemsize, out_itemsize, extra_bytes=0):
    work = (2 * tm * tk * 2              # double-buffered bf16 A tiles
            + 2 * tk * n * b_itemsize    # double-buffered B K-blocks
            + 2 * tm * n * out_itemsize  # double-buffered output tiles
            + tm * n * 4                 # f32 accumulator scratch
            + extra_bytes)               # fused-epilogue row blocks
    return int(min(64 << 20, max(16 << 20, 2 * work + (4 << 20))))


# ----------------------- propagation (A @ B) kernel ------------------------ #
def _propagate_kernel(a_ref, b_ref, o_ref, acc_ref):
    @pl.when(pl.program_id(1) == 0)
    def _():
        acc_ref[...] = jnp.zeros_like(acc_ref)

    # bf16 x bf16 MXU matmul with f32 accumulation (B cast is a no-op when the
    # operand is already a bf16 intermediate).
    acc_ref[...] += jnp.dot(a_ref[...], b_ref[...].astype(jnp.bfloat16),
                            preferred_element_type=jnp.float32)

    @pl.when(pl.program_id(1) == pl.num_programs(1) - 1)
    def _():
        o_ref[...] = acc_ref[...].astype(o_ref.dtype)


# --------------- propagation + fused weighted-sum epilogue ----------------- #
def _propagate_combine_kernel(a_ref, b_ref, e_ref, g1_ref, g2_ref,
                              o_ref, acc_ref):
    @pl.when(pl.program_id(1) == 0)
    def _():
        acc_ref[...] = jnp.zeros_like(acc_ref)

    acc_ref[...] += jnp.dot(a_ref[...], b_ref[...].astype(jnp.bfloat16),
                            preferred_element_type=jnp.float32)

    @pl.when(pl.program_id(1) == pl.num_programs(1) - 1)
    def _():
        o_ref[...] = (e_ref[...].astype(jnp.float32)
                      + 0.5 * g1_ref[...].astype(jnp.float32)
                      + (1.0 / 3.0) * g2_ref[...].astype(jnp.float32)
                      + 0.25 * acc_ref[...]).astype(o_ref.dtype)


def pallas_propagate(a, b, *, out_dtype=jnp.bfloat16):
    """A @ B with A (M,K) streamed as bf16 tiles, B (K,N) tiled along K."""
    M, K = a.shape
    K2, N = b.shape
    assert K == K2 and N % 128 == 0
    tm, tk = _pick_tm(M), _pick_tk(K)
    assert M % tm == 0 and K % tk == 0
    b_itemsize = jnp.dtype(b.dtype).itemsize
    out_itemsize = jnp.dtype(out_dtype).itemsize
    cost = pl.CostEstimate(
        flops=2 * M * K * N,
        transcendentals=0,
        bytes_accessed=M * K * 2 + K * N * b_itemsize + M * N * out_itemsize)
    return pl.pallas_call(
        _propagate_kernel,
        out_shape=jax.ShapeDtypeStruct((M, N), out_dtype),
        grid_spec=pltpu.PrefetchScalarGridSpec(
            num_scalar_prefetch=0,
            grid=(M // tm, K // tk),
            in_specs=[
                pl.BlockSpec((tm, tk), lambda i, k: (i, k)),  # stream A tiles
                pl.BlockSpec((tk, N), lambda i, k: (k, 0)),   # B K-blocks
            ],
            out_specs=pl.BlockSpec((tm, N), lambda i, k: (i, 0)),
            scratch_shapes=[pltpu.VMEM((tm, N), jnp.float32)],
        ),
        compiler_params=pltpu.CompilerParams(
            dimension_semantics=("parallel", "arbitrary"),
            vmem_limit_bytes=_vmem_limit_bytes(tm, tk, N, b_itemsize,
                                               out_itemsize)),
        cost_estimate=cost,
    )(a.astype(jnp.bfloat16), b)


def pallas_propagate_combine(a, b, e, g1, g2):
    """e + 1/2 g1 + 1/3 g2 + 1/4 (A @ B), fused into the matmul epilogue."""
    M, K = a.shape
    K2, N = b.shape
    assert K == K2 and N % 128 == 0
    assert e.shape == (M, N) and g1.shape == (M, N) and g2.shape == (M, N)
    tm, tk = _pick_tm(M), _pick_tk(K)
    assert M % tm == 0 and K % tk == 0
    b_itemsize = jnp.dtype(b.dtype).itemsize
    epi_itemsize = (jnp.dtype(e.dtype).itemsize
                    + jnp.dtype(g1.dtype).itemsize
                    + jnp.dtype(g2.dtype).itemsize)
    row_spec = pl.BlockSpec((tm, N), lambda i, k: (i, 0))
    cost = pl.CostEstimate(
        flops=2 * M * K * N,
        transcendentals=0,
        bytes_accessed=(M * K * 2 + K * N * b_itemsize
                        + M * N * (epi_itemsize + 4)))
    return pl.pallas_call(
        _propagate_combine_kernel,
        out_shape=jax.ShapeDtypeStruct((M, N), jnp.float32),
        grid_spec=pltpu.PrefetchScalarGridSpec(
            num_scalar_prefetch=0,
            grid=(M // tm, K // tk),
            in_specs=[
                pl.BlockSpec((tm, tk), lambda i, k: (i, k)),
                pl.BlockSpec((tk, N), lambda i, k: (k, 0)),
                row_spec, row_spec, row_spec,
            ],
            out_specs=row_spec,
            scratch_shapes=[pltpu.VMEM((tm, N), jnp.float32)],
        ),
        compiler_params=pltpu.CompilerParams(
            dimension_semantics=("parallel", "arbitrary"),
            vmem_limit_bytes=_vmem_limit_bytes(
                tm, tk, N, b_itemsize, 4,
                extra_bytes=2 * tm * N * epi_itemsize)),
        cost_estimate=cost,
    )(a.astype(jnp.bfloat16), b, e, g1, g2)


# ------------------------------- BPR forward ------------------------------- #
def bpr_forward(user_item_matrix, item_user_matrix, embed_user, embed_item):
    U, F = embed_user.shape
    I, _ = embed_item.shape
    ALIGN = 256
    Up, Ip, Fp = _round_up(U, ALIGN), _round_up(I, ALIGN), _round_up(F, 128)

    # Zero-pad: rows/cols to the tile alignment, factor dim to lane-dense 128.
    # Adjacency stored/streamed as bf16; embeddings kept f32 (cast per block
    # inside the kernel, which is free at this size).
    ui = jnp.zeros((Up, Ip), jnp.bfloat16).at[:U, :I].set(
        user_item_matrix.astype(jnp.bfloat16))
    iu = jnp.zeros((Ip, Up), jnp.bfloat16).at[:I, :U].set(
        item_user_matrix.astype(jnp.bfloat16))
    eu = jnp.zeros((Up, Fp), jnp.float32).at[:U, :F].set(embed_user)
    ei = jnp.zeros((Ip, Fp), jnp.float32).at[:I, :F].set(embed_item)

    # Intermediates emitted as bf16 directly (no separate cast passes).
    g1u = pallas_propagate(ui, ei)
    g1i = pallas_propagate(iu, eu)
    g2u = pallas_propagate(ui, g1i)
    g2i = pallas_propagate(iu, g1u)
    gcn_u = pallas_propagate_combine(ui, g2i, eu, g1u, g2u)
    gcn_i = pallas_propagate_combine(iu, g2u, ei, g1i, g2i)
    return gcn_u[:U, :F], gcn_i[:I, :F]


if __name__ == "__main__":
    # Small but ragged shapes (exercise the padding path), consistent with the
    # module's semantics (users x items adjacency, 64-dim factors).
    user_num, item_num, factor_num = 500, 1000, 64

    key = jax.random.PRNGKey(0)
    k_ui, k_eu, k_ei = jax.random.split(key, 3)

    # Dense stand-in for the (normalized) sparse interaction matrices.
    ui_dense = jax.random.bernoulli(
        k_ui, p=0.05, shape=(user_num, item_num)).astype(jnp.float32)
    user_item_matrix = ui_dense / (ui_dense.sum(axis=1, keepdims=True) + 1.0)
    iu_dense = ui_dense.T
    item_user_matrix = iu_dense / (iu_dense.sum(axis=1, keepdims=True) + 1.0)

    # nn.init.normal_(std=0.01) equivalents.
    embed_user = 0.01 * jax.random.normal(k_eu, (user_num, factor_num), jnp.float32)
    embed_item = 0.01 * jax.random.normal(k_ei, (item_num, factor_num), jnp.float32)

    fwd = jax.jit(bpr_forward)
    gcn_users, gcn_items = fwd(user_item_matrix, item_user_matrix,
                               embed_user, embed_item)
    jax.block_until_ready((gcn_users, gcn_items))

    assert gcn_users.shape == (user_num, factor_num)
    assert gcn_items.shape == (item_num, factor_num)

    # Reference 1: numerics matched to the kernel (bf16 matmul operands,
    # f32 accumulation, bf16-rounded intermediates) -> tight tolerance.
    bf = lambda x: x.astype(jnp.bfloat16).astype(jnp.float32)
    mm = lambda a, b: jnp.dot(bf(a), bf(b), precision=jax.lax.Precision.HIGHEST)
    mmbf = lambda a, b: bf(mm(a, b))   # intermediates are stored as bf16
    g1u = mmbf(user_item_matrix, embed_item)
    g1i = mmbf(item_user_matrix, embed_user)
    g2u = mmbf(user_item_matrix, g1i)
    g2i = mmbf(item_user_matrix, g1u)
    g3u = mm(user_item_matrix, g2i)
    g3i = mm(item_user_matrix, g2u)
    ref_u = embed_user + 0.5 * g1u + (1.0 / 3.0) * g2u + 0.25 * g3u
    ref_i = embed_item + 0.5 * g1i + (1.0 / 3.0) * g2i + 0.25 * g3i
    assert jnp.allclose(gcn_users, ref_u, atol=5e-5, rtol=5e-3)
    assert jnp.allclose(gcn_items, ref_i, atol=5e-5, rtol=5e-3)

    # Reference 2: exact f32 spec semantics, tolerance loosened for the bf16
    # streaming of the adjacency / operands and bf16 intermediates.
    mm32 = lambda a, b: jnp.dot(a, b, precision=jax.lax.Precision.HIGHEST)
    h1u = mm32(user_item_matrix, embed_item)
    h1i = mm32(item_user_matrix, embed_user)
    h2u = mm32(user_item_matrix, h1i)
    h2i = mm32(item_user_matrix, h1u)
    h3u = mm32(user_item_matrix, h2i)
    h3i = mm32(item_user_matrix, h2u)
    spec_u = embed_user + 0.5 * h1u + (1.0 / 3.0) * h2u + 0.25 * h3u
    spec_i = embed_item + 0.5 * h1i + (1.0 / 3.0) * h2i + 0.25 * h3i
    assert jnp.allclose(gcn_users, spec_u, atol=2e-4, rtol=2e-2)
    assert jnp.allclose(gcn_items, spec_i, atol=2e-4, rtol=2e-2)

    print("KERNEL_OK")
</pallas_src>

<mosaic_0001>
module attributes {stable_mosaic.version = 11 : i64} {
  func.func @_propagate_kernel(%arg0: i32, %arg1: i32, %arg2: memref<128x1024xbf16, #tpu.memory_space<vmem>>, %arg3: memref<1024x128xf32, #tpu.memory_space<vmem>>, %arg4: memref<128x128xbf16, #tpu.memory_space<vmem>>, %arg5: memref<128x128xf32, #tpu.memory_space<vmem>>) attributes {dimension_semantics = [#tpu.dimension_semantics<parallel>, #tpu.dimension_semantics<arbitrary>], iteration_bounds = array<i64: 4, 1>, scalar_prefetch = 0 : i64, scratch_operands = 1 : i64, tpu.core_type = #tpu.core_type<tc>, window_params = [{transform_indices = @transform_0, window_bounds = array<i64: 128, 1024>}, {transform_indices = @transform_1, window_bounds = array<i64: 1024, 128>}, {transform_indices = @transform_2, window_bounds = array<i64: 128, 128>}]} {
    %c0_i32 = arith.constant 0 : i32
    %0 = arith.cmpi eq, %arg1, %c0_i32 : i32
    %1 = arith.extui %0 : i1 to i32
    %c0_i32_0 = arith.constant 0 : i32
    %2 = arith.cmpi ne, %1, %c0_i32_0 : i32
    scf.if %2 {
      %cst_10 = arith.constant 0.000000e+00 : f32
      %13 = vector.broadcast %cst_10 : f32 to vector<128x128xf32>
      %c0_11 = arith.constant 0 : index
      %c0_12 = arith.constant 0 : index
      %14 = vector.load %arg5[%c0_11, %c0_12] : memref<128x128xf32, #tpu.memory_space<vmem>>, vector<128x128xf32>
      tpu.vector_store %arg5[%c0_11, %c0_12], %13 {strides = array<i32>} : memref<128x128xf32, #tpu.memory_space<vmem>>, vector<128x128xf32>,
    } else {
    }
    %c0 = arith.constant 0 : index
    %c0_1 = arith.constant 0 : index
    %3 = vector.load %arg5[%c0, %c0_1] : memref<128x128xf32, #tpu.memory_space<vmem>>, vector<128x128xf32>
    %c0_2 = arith.constant 0 : index
    %c0_3 = arith.constant 0 : index
    %4 = vector.load %arg2[%c0_2, %c0_3] : memref<128x1024xbf16, #tpu.memory_space<vmem>>, vector<128x1024xbf16>
    %c0_4 = arith.constant 0 : index
    %c0_5 = arith.constant 0 : index
    %5 = vector.load %arg3[%c0_4, %c0_5] : memref<1024x128xf32, #tpu.memory_space<vmem>>, vector<1024x128xf32>
    %6 = arith.truncf %5 : vector<1024x128xf32> to vector<1024x128xbf16>
    %cst = arith.constant dense<0.000000e+00> : vector<128x128xf32>
    %7 = tpu.matmul %4, %6, %cst {dimension_numbers = #tpu.dot_dimension_numbers<[1], [0], [0], [1], [0, 0, 1, 1], [], []>} : vector<128x1024xbf16>, vector<1024x128xbf16>, vector<128x128xf32> -> vector<128x128xf32>
    %8 = arith.addf %3, %7 : vector<128x128xf32>
    %c0_6 = arith.constant 0 : index
    %c0_7 = arith.constant 0 : index
    %9 = vector.load %arg5[%c0_6, %c0_7] : memref<128x128xf32, #tpu.memory_space<vmem>>, vector<128x128xf32>
    tpu.vector_store %arg5[%c0_6, %c0_7], %8 {strides = array<i32>} : memref<128x128xf32, #tpu.memory_space<vmem>>, vector<128x128xf32>,
    %c0_i32_8 = arith.constant 0 : i32
    %10 = arith.cmpi eq, %arg1, %c0_i32_8 : i32
    %11 = arith.extui %10 : i1 to i32
    %c0_i32_9 = arith.constant 0 : i32
    %12 = arith.cmpi ne, %11, %c0_i32_9 : i32
    scf.if %12 {
      %c0_10 = arith.constant 0 : index
      %c0_11 = arith.constant 0 : index
      %13 = vector.load %arg5[%c0_10, %c0_11] : memref<128x128xf32, #tpu.memory_space<vmem>>, vector<128x128xf32>
      %14 = arith.truncf %13 : vector<128x128xf32> to vector<128x128xbf16>
      %c0_12 = arith.constant 0 : index
      %c0_13 = arith.constant 0 : index
      %15 = vector.load %arg4[%c0_12, %c0_13] : memref<128x128xbf16, #tpu.memory_space<vmem>>, vector<128x128xbf16>
      tpu.vector_store %arg4[%c0_12, %c0_13], %14 {strides = array<i32>} : memref<128x128xbf16, #tpu.memory_space<vmem>>, vector<128x128xbf16>,
    } else {
    }
    return
  }
  func.func @transform_0(%arg0: i32, %arg1: i32) -> (i32, i32) {
    %c0_i32 = arith.constant 0 : i32
    return %arg0, %arg1 : i32, i32
  }
  func.func @transform_1(%arg0: i32, %arg1: i32) -> (i32, i32) {
    %c0_i32 = arith.constant 0 : i32
    %c0_i32_0 = arith.constant 0 : i32
    return %arg1, %c0_i32 : i32, i32
  }
  func.func @transform_2(%arg0: i32, %arg1: i32) -> (i32, i32) {
    %c0_i32 = arith.constant 0 : i32
    %c0_i32_0 = arith.constant 0 : i32
    return %arg0, %c0_i32 : i32, i32
  }
}

module attributes {stable_mosaic.version = 11 : i64} {
  func.func @_propagate_kernel(%arg0: i32, %arg1: i32, %arg2: memref<128x512xbf16, #tpu.memory_space<vmem>>, %arg3: memref<512x128xbf16, #tpu.memory_space<vmem>>, %arg4: memref<128x128xbf16, #tpu.memory_space<vmem>>, %arg5: memref<128x128xf32, #tpu.memory_space<vmem>>) attributes {dimension_semantics = [#tpu.dimension_semantics<parallel>, #tpu.dimension_semantics<arbitrary>], iteration_bounds = array<i64: 8, 1>, scalar_prefetch = 0 : i64, scratch_operands = 1 : i64, tpu.core_type = #tpu.core_type<tc>, window_params = [{transform_indices = @transform_0, window_bounds = array<i64: 128, 512>}, {transform_indices = @transform_1, window_bounds = array<i64: 512, 128>}, {transform_indices = @transform_2, window_bounds = array<i64: 128, 128>}]} {
    %c0_i32 = arith.constant 0 : i32
    %0 = arith.cmpi eq, %arg1, %c0_i32 : i32
    %1 = arith.extui %0 : i1 to i32
    %c0_i32_0 = arith.constant 0 : i32
    %2 = arith.cmpi ne, %1, %c0_i32_0 : i32
    scf.if %2 {
      %cst_10 = arith.constant 0.000000e+00 : f32
      %12 = vector.broadcast %cst_10 : f32 to vector<128x128xf32>
      %c0_11 = arith.constant 0 : index
      %c0_12 = arith.constant 0 : index
      %13 = vector.load %arg5[%c0_11, %c0_12] : memref<128x128xf32, #tpu.memory_space<vmem>>, vector<128x128xf32>
      tpu.vector_store %arg5[%c0_11, %c0_12], %12 {strides = array<i32>} : memref<128x128xf32, #tpu.memory_space<vmem>>, vector<128x128xf32>,
    } else {
    }
    %c0 = arith.constant 0 : index
    %c0_1 = arith.constant 0 : index
    %3 = vector.load %arg5[%c0, %c0_1] : memref<128x128xf32, #tpu.memory_space<vmem>>, vector<128x128xf32>
    %c0_2 = arith.constant 0 : index
    %c0_3 = arith.constant 0 : index
    %4 = vector.load %arg2[%c0_2, %c0_3] : memref<128x512xbf16, #tpu.memory_space<vmem>>, vector<128x512xbf16>
    %c0_4 = arith.constant 0 : index
    %c0_5 = arith.constant 0 : index
    %5 = vector.load %arg3[%c0_4, %c0_5] : memref<512x128xbf16, #tpu.memory_space<vmem>>, vector<512x128xbf16>
    %cst = arith.constant dense<0.000000e+00> : vector<128x128xf32>
    %6 = tpu.matmul %4, %5, %cst {dimension_numbers = #tpu.dot_dimension_numbers<[1], [0], [0], [1], [0, 0, 1, 1], [], []>} : vector<128x512xbf16>, vector<512x128xbf16>, vector<128x128xf32> -> vector<128x128xf32>
    %7 = arith.addf %3, %6 : vector<128x128xf32>
    %c0_6 = arith.constant 0 : index
    %c0_7 = arith.constant 0 : index
    %8 = vector.load %arg5[%c0_6, %c0_7] : memref<128x128xf32, #tpu.memory_space<vmem>>, vector<128x128xf32>
    tpu.vector_store %arg5[%c0_6, %c0_7], %7 {strides = array<i32>} : memref<128x128xf32, #tpu.memory_space<vmem>>, vector<128x128xf32>,
    %c0_i32_8 = arith.constant 0 : i32
    %9 = arith.cmpi eq, %arg1, %c0_i32_8 : i32
    %10 = arith.extui %9 : i1 to i32
    %c0_i32_9 = arith.constant 0 : i32
    %11 = arith.cmpi ne, %10, %c0_i32_9 : i32
    scf.if %11 {
      %c0_10 = arith.constant 0 : index
      %c0_11 = arith.constant 0 : index
      %12 = vector.load %arg5[%c0_10, %c0_11] : memref<128x128xf32, #tpu.memory_space<vmem>>, vector<128x128xf32>
      %13 = arith.truncf %12 : vector<128x128xf32> to vector<128x128xbf16>
      %c0_12 = arith.constant 0 : index
      %c0_13 = arith.constant 0 : index
      %14 = vector.load %arg4[%c0_12, %c0_13] : memref<128x128xbf16, #tpu.memory_space<vmem>>, vector<128x128xbf16>
      tpu.vector_store %arg4[%c0_12, %c0_13], %13 {strides = array<i32>} : memref<128x128xbf16, #tpu.memory_space<vmem>>, vector<128x128xbf16>,
    } else {
    }
    return
  }
  func.func @transform_0(%arg0: i32, %arg1: i32) -> (i32, i32) {
    %c0_i32 = arith.constant 0 : i32
    return %arg0, %arg1 : i32, i32
  }
  func.func @transform_1(%arg0: i32, %arg1: i32) -> (i32, i32) {
    %c0_i32 = arith.constant 0 : i32
    %c0_i32_0 = arith.constant 0 : i32
    return %arg1, %c0_i32 : i32, i32
  }
  func.func @transform_2(%arg0: i32, %arg1: i32) -> (i32, i32) {
    %c0_i32 = arith.constant 0 : i32
    %c0_i32_0 = arith.constant 0 : i32
    return %arg0, %c0_i32 : i32, i32
  }
}

module attributes {stable_mosaic.version = 11 : i64} {
  func.func @_propagate_kernel(%arg0: i32, %arg1: i32, %arg2: memref<128x512xbf16, #tpu.memory_space<vmem>>, %arg3: memref<512x128xf32, #tpu.memory_space<vmem>>, %arg4: memref<128x128xbf16, #tpu.memory_space<vmem>>, %arg5: memref<128x128xf32, #tpu.memory_space<vmem>>) attributes {dimension_semantics = [#tpu.dimension_semantics<parallel>, #tpu.dimension_semantics<arbitrary>], iteration_bounds = array<i64: 8, 1>, scalar_prefetch = 0 : i64, scratch_operands = 1 : i64, tpu.core_type = #tpu.core_type<tc>, window_params = [{transform_indices = @transform_0, window_bounds = array<i64: 128, 512>}, {transform_indices = @transform_1, window_bounds = array<i64: 512, 128>}, {transform_indices = @transform_2, window_bounds = array<i64: 128, 128>}]} {
    %c0_i32 = arith.constant 0 : i32
    %0 = arith.cmpi eq, %arg1, %c0_i32 : i32
    %1 = arith.extui %0 : i1 to i32
    %c0_i32_0 = arith.constant 0 : i32
    %2 = arith.cmpi ne, %1, %c0_i32_0 : i32
    scf.if %2 {
      %cst_10 = arith.constant 0.000000e+00 : f32
      %13 = vector.broadcast %cst_10 : f32 to vector<128x128xf32>
      %c0_11 = arith.constant 0 : index
      %c0_12 = arith.constant 0 : index
      %14 = vector.load %arg5[%c0_11, %c0_12] : memref<128x128xf32, #tpu.memory_space<vmem>>, vector<128x128xf32>
      tpu.vector_store %arg5[%c0_11, %c0_12], %13 {strides = array<i32>} : memref<128x128xf32, #tpu.memory_space<vmem>>, vector<128x128xf32>,
    } else {
    }
    %c0 = arith.constant 0 : index
    %c0_1 = arith.constant 0 : index
    %3 = vector.load %arg5[%c0, %c0_1] : memref<128x128xf32, #tpu.memory_space<vmem>>, vector<128x128xf32>
    %c0_2 = arith.constant 0 : index
    %c0_3 = arith.constant 0 : index
    %4 = vector.load %arg2[%c0_2, %c0_3] : memref<128x512xbf16, #tpu.memory_space<vmem>>, vector<128x512xbf16>
    %c0_4 = arith.constant 0 : index
    %c0_5 = arith.constant 0 : index
    %5 = vector.load %arg3[%c0_4, %c0_5] : memref<512x128xf32, #tpu.memory_space<vmem>>, vector<512x128xf32>
    %6 = arith.truncf %5 : vector<512x128xf32> to vector<512x128xbf16>
    %cst = arith.constant dense<0.000000e+00> : vector<128x128xf32>
    %7 = tpu.matmul %4, %6, %cst {dimension_numbers = #tpu.dot_dimension_numbers<[1], [0], [0], [1], [0, 0, 1, 1], [], []>} : vector<128x512xbf16>, vector<512x128xbf16>, vector<128x128xf32> -> vector<128x128xf32>
    %8 = arith.addf %3, %7 : vector<128x128xf32>
    %c0_6 = arith.constant 0 : index
    %c0_7 = arith.constant 0 : index
    %9 = vector.load %arg5[%c0_6, %c0_7] : memref<128x128xf32, #tpu.memory_space<vmem>>, vector<128x128xf32>
    tpu.vector_store %arg5[%c0_6, %c0_7], %8 {strides = array<i32>} : memref<128x128xf32, #tpu.memory_space<vmem>>, vector<128x128xf32>,
    %c0_i32_8 = arith.constant 0 : i32
    %10 = arith.cmpi eq, %arg1, %c0_i32_8 : i32
    %11 = arith.extui %10 : i1 to i32
    %c0_i32_9 = arith.constant 0 : i32
    %12 = arith.cmpi ne, %11, %c0_i32_9 : i32
    scf.if %12 {
      %c0_10 = arith.constant 0 : index
      %c0_11 = arith.constant 0 : index
      %13 = vector.load %arg5[%c0_10, %c0_11] : memref<128x128xf32, #tpu.memory_space<vmem>>, vector<128x128xf32>
      %14 = arith.truncf %13 : vector<128x128xf32> to vector<128x128xbf16>
      %c0_12 = arith.constant 0 : index
      %c0_13 = arith.constant 0 : index
      %15 = vector.load %arg4[%c0_12, %c0_13] : memref<128x128xbf16, #tpu.memory_space<vmem>>, vector<128x128xbf16>
      tpu.vector_store %arg4[%c0_12, %c0_13], %14 {strides = array<i32>} : memref<128x128xbf16, #tpu.memory_space<vmem>>, vector<128x128xbf16>,
    } else {
    }
    return
  }
  func.func @transform_0(%arg0: i32, %arg1: i32) -> (i32, i32) {
    %c0_i32 = arith.constant 0 : i32
    return %arg0, %arg1 : i32, i32
  }
  func.func @transform_1(%arg0: i32, %arg1: i32) -> (i32, i32) {
    %c0_i32 = arith.constant 0 : i32
    %c0_i32_0 = arith.constant 0 : i32
    return %arg1, %c0_i32 : i32, i32
  }
  func.func @transform_2(%arg0: i32, %arg1: i32) -> (i32, i32) {
    %c0_i32 = arith.constant 0 : i32
    %c0_i32_0 = arith.constant 0 : i32
    return %arg0, %c0_i32 : i32, i32
  }
}

module attributes {stable_mosaic.version = 11 : i64} {
  func.func @_propagate_kernel(%arg0: i32, %arg1: i32, %arg2: memref<128x1024xbf16, #tpu.memory_space<vmem>>, %arg3: memref<1024x128xbf16, #tpu.memory_space<vmem>>, %arg4: memref<128x128xbf16, #tpu.memory_space<vmem>>, %arg5: memref<128x128xf32, #tpu.memory_space<vmem>>) attributes {dimension_semantics = [#tpu.dimension_semantics<parallel>, #tpu.dimension_semantics<arbitrary>], iteration_bounds = array<i64: 4, 1>, scalar_prefetch = 0 : i64, scratch_operands = 1 : i64, tpu.core_type = #tpu.core_type<tc>, window_params = [{transform_indices = @transform_0, window_bounds = array<i64: 128, 1024>}, {transform_indices = @transform_1, window_bounds = array<i64: 1024, 128>}, {transform_indices = @transform_2, window_bounds = array<i64: 128, 128>}]} {
    %c0_i32 = arith.constant 0 : i32
    %0 = arith.cmpi eq, %arg1, %c0_i32 : i32
    %1 = arith.extui %0 : i1 to i32
    %c0_i32_0 = arith.constant 0 : i32
    %2 = arith.cmpi ne, %1, %c0_i32_0 : i32
    scf.if %2 {
      %cst_10 = arith.constant 0.000000e+00 : f32
      %12 = vector.broadcast %cst_10 : f32 to vector<128x128xf32>
      %c0_11 = arith.constant 0 : index
      %c0_12 = arith.constant 0 : index
      %13 = vector.load %arg5[%c0_11, %c0_12] : memref<128x128xf32, #tpu.memory_space<vmem>>, vector<128x128xf32>
      tpu.vector_store %arg5[%c0_11, %c0_12], %12 {strides = array<i32>} : memref<128x128xf32, #tpu.memory_space<vmem>>, vector<128x128xf32>,
    } else {
    }
    %c0 = arith.constant 0 : index
    %c0_1 = arith.constant 0 : index
    %3 = vector.load %arg5[%c0, %c0_1] : memref<128x128xf32, #tpu.memory_space<vmem>>, vector<128x128xf32>
    %c0_2 = arith.constant 0 : index
    %c0_3 = arith.constant 0 : index
    %4 = vector.load %arg2[%c0_2, %c0_3] : memref<128x1024xbf16, #tpu.memory_space<vmem>>, vector<128x1024xbf16>
    %c0_4 = arith.constant 0 : index
    %c0_5 = arith.constant 0 : index
    %5 = vector.load %arg3[%c0_4, %c0_5] : memref<1024x128xbf16, #tpu.memory_space<vmem>>, vector<1024x128xbf16>
    %cst = arith.constant dense<0.000000e+00> : vector<128x128xf32>
    %6 = tpu.matmul %4, %5, %cst {dimension_numbers = #tpu.dot_dimension_numbers<[1], [0], [0], [1], [0, 0, 1, 1], [], []>} : vector<128x1024xbf16>, vector<1024x128xbf16>, vector<128x128xf32> -> vector<128x128xf32>
    %7 = arith.addf %3, %6 : vector<128x128xf32>
    %c0_6 = arith.constant 0 : index
    %c0_7 = arith.constant 0 : index
    %8 = vector.load %arg5[%c0_6, %c0_7] : memref<128x128xf32, #tpu.memory_space<vmem>>, vector<128x128xf32>
    tpu.vector_store %arg5[%c0_6, %c0_7], %7 {strides = array<i32>} : memref<128x128xf32, #tpu.memory_space<vmem>>, vector<128x128xf32>,
    %c0_i32_8 = arith.constant 0 : i32
    %9 = arith.cmpi eq, %arg1, %c0_i32_8 : i32
    %10 = arith.extui %9 : i1 to i32
    %c0_i32_9 = arith.constant 0 : i32
    %11 = arith.cmpi ne, %10, %c0_i32_9 : i32
    scf.if %11 {
      %c0_10 = arith.constant 0 : index
      %c0_11 = arith.constant 0 : index
      %12 = vector.load %arg5[%c0_10, %c0_11] : memref<128x128xf32, #tpu.memory_space<vmem>>, vector<128x128xf32>
      %13 = arith.truncf %12 : vector<128x128xf32> to vector<128x128xbf16>
      %c0_12 = arith.constant 0 : index
      %c0_13 = arith.constant 0 : index
      %14 = vector.load %arg4[%c0_12, %c0_13] : memref<128x128xbf16, #tpu.memory_space<vmem>>, vector<128x128xbf16>
      tpu.vector_store %arg4[%c0_12, %c0_13], %13 {strides = array<i32>} : memref<128x128xbf16, #tpu.memory_space<vmem>>, vector<128x128xbf16>,
    } else {
    }
    return
  }
  func.func @transform_0(%arg0: i32, %arg1: i32) -> (i32, i32) {
    %c0_i32 = arith.constant 0 : i32
    return %arg0, %arg1 : i32, i32
  }
  func.func @transform_1(%arg0: i32, %arg1: i32) -> (i32, i32) {
    %c0_i32 = arith.constant 0 : i32
    %c0_i32_0 = arith.constant 0 : i32
    return %arg1, %c0_i32 : i32, i32
  }
  func.func @transform_2(%arg0: i32, %arg1: i32) -> (i32, i32) {
    %c0_i32 = arith.constant 0 : i32
    %c0_i32_0 = arith.constant 0 : i32
    return %arg0, %c0_i32 : i32, i32
  }
}

module attributes {stable_mosaic.version = 11 : i64} {
  func.func @_propagate_combine_kernel(%arg0: i32, %arg1: i32, %arg2: memref<128x1024xbf16, #tpu.memory_space<vmem>>, %arg3: memref<1024x128xbf16, #tpu.memory_space<vmem>>, %arg4: memref<128x128xf32, #tpu.memory_space<vmem>>, %arg5: memref<128x128xbf16, #tpu.memory_space<vmem>>, %arg6: memref<128x128xbf16, #tpu.memory_space<vmem>>, %arg7: memref<128x128xf32, #tpu.memory_space<vmem>>, %arg8: memref<128x128xf32, #tpu.memory_space<vmem>>) attributes {dimension_semantics = [#tpu.dimension_semantics<parallel>, #tpu.dimension_semantics<arbitrary>], iteration_bounds = array<i64: 4, 1>, scalar_prefetch = 0 : i64, scratch_operands = 1 : i64, tpu.core_type = #tpu.core_type<tc>, window_params = [{transform_indices = @transform_0, window_bounds = array<i64: 128, 1024>}, {transform_indices = @transform_1, window_bounds = array<i64: 1024, 128>}, {transform_indices = @transform_2, window_bounds = array<i64: 128, 128>}, {transform_indices = @transform_3, window_bounds = array<i64: 128, 128>}, {transform_indices = @transform_4, window_bounds = array<i64: 128, 128>}, {transform_indices = @transform_5, window_bounds = array<i64: 128, 128>}]} {
    %c0_i32 = arith.constant 0 : i32
    %0 = arith.cmpi eq, %arg1, %c0_i32 : i32
    %1 = arith.extui %0 : i1 to i32
    %c0_i32_0 = arith.constant 0 : i32
    %2 = arith.cmpi ne, %1, %c0_i32_0 : i32
    scf.if %2 {
      %cst_10 = arith.constant 0.000000e+00 : f32
      %12 = vector.broadcast %cst_10 : f32 to vector<128x128xf32>
      %c0_11 = arith.constant 0 : index
      %c0_12 = arith.constant 0 : index
      %13 = vector.load %arg8[%c0_11, %c0_12] : memref<128x128xf32, #tpu.memory_space<vmem>>, vector<128x128xf32>
      tpu.vector_store %arg8[%c0_11, %c0_12], %12 {strides = array<i32>} : memref<128x128xf32, #tpu.memory_space<vmem>>, vector<128x128xf32>,
    } else {
    }
    %c0 = arith.constant 0 : index
    %c0_1 = arith.constant 0 : index
    %3 = vector.load %arg8[%c0, %c0_1] : memref<128x128xf32, #tpu.memory_space<vmem>>, vector<128x128xf32>
    %c0_2 = arith.constant 0 : index
    %c0_3 = arith.constant 0 : index
    %4 = vector.load %arg2[%c0_2, %c0_3] : memref<128x1024xbf16, #tpu.memory_space<vmem>>, vector<128x1024xbf16>
    %c0_4 = arith.constant 0 : index
    %c0_5 = arith.constant 0 : index
    %5 = vector.load %arg3[%c0_4, %c0_5] : memref<1024x128xbf16, #tpu.memory_space<vmem>>, vector<1024x128xbf16>
    %cst = arith.constant dense<0.000000e+00> : vector<128x128xf32>
    %6 = tpu.matmul %4, %5, %cst {dimension_numbers = #tpu.dot_dimension_numbers<[1], [0], [0], [1], [0, 0, 1, 1], [], []>} : vector<128x1024xbf16>, vector<1024x128xbf16>, vector<128x128xf32> -> vector<128x128xf32>
    %7 = arith.addf %3, %6 : vector<128x128xf32>
    %c0_6 = arith.constant 0 : index
    %c0_7 = arith.constant 0 : index
    %8 = vector.load %arg8[%c0_6, %c0_7] : memref<128x128xf32, #tpu.memory_space<vmem>>, vector<128x128xf32>
    tpu.vector_store %arg8[%c0_6, %c0_7], %7 {strides = array<i32>} : memref<128x128xf32, #tpu.memory_space<vmem>>, vector<128x128xf32>,
    %c0_i32_8 = arith.constant 0 : i32
    %9 = arith.cmpi eq, %arg1, %c0_i32_8 : i32
    %10 = arith.extui %9 : i1 to i32
    %c0_i32_9 = arith.constant 0 : i32
    %11 = arith.cmpi ne, %10, %c0_i32_9 : i32
    scf.if %11 {
      %c0_10 = arith.constant 0 : index
      %c0_11 = arith.constant 0 : index
      %12 = vector.load %arg4[%c0_10, %c0_11] : memref<128x128xf32, #tpu.memory_space<vmem>>, vector<128x128xf32>
      %c0_12 = arith.constant 0 : index
      %c0_13 = arith.constant 0 : index
      %13 = vector.load %arg5[%c0_12, %c0_13] : memref<128x128xbf16, #tpu.memory_space<vmem>>, vector<128x128xbf16>
      %14 = arith.extf %13 : vector<128x128xbf16> to vector<128x128xf32>
      %cst_14 = arith.constant 5.000000e-01 : f32
      %15 = vector.broadcast %cst_14 : f32 to vector<128x128xf32>
      %16 = arith.mulf %15, %14 : vector<128x128xf32>
      %17 = arith.addf %12, %16 : vector<128x128xf32>
      %c0_15 = arith.constant 0 : index
      %c0_16 = arith.constant 0 : index
      %18 = vector.load %arg6[%c0_15, %c0_16] : memref<128x128xbf16, #tpu.memory_space<vmem>>, vector<128x128xbf16>
      %19 = arith.extf %18 : vector<128x128xbf16> to vector<128x128xf32>
      %cst_17 = arith.constant 0.333333343 : f32
      %20 = vector.broadcast %cst_17 : f32 to vector<128x128xf32>
      %21 = arith.mulf %20, %19 : vector<128x128xf32>
      %22 = arith.addf %17, %21 : vector<128x128xf32>
      %c0_18 = arith.constant 0 : index
      %c0_19 = arith.constant 0 : index
      %23 = vector.load %arg8[%c0_18, %c0_19] : memref<128x128xf32, #tpu.memory_space<vmem>>, vector<128x128xf32>
      %cst_20 = arith.constant 2.500000e-01 : f32
      %24 = vector.broadcast %cst_20 : f32 to vector<128x128xf32>
      %25 = arith.mulf %24, %23 : vector<128x128xf32>
      %26 = arith.addf %22, %25 : vector<128x128xf32>
      %c0_21 = arith.constant 0 : index
      %c0_22 = arith.constant 0 : index
      %27 = vector.load %arg7[%c0_21, %c0_22] : memref<128x128xf32, #tpu.memory_space<vmem>>, vector<128x128xf32>
      tpu.vector_store %arg7[%c0_21, %c0_22], %26 {strides = array<i32>} : memref<128x128xf32, #tpu.memory_space<vmem>>, vector<128x128xf32>,
    } else {
    }
    return
  }
  func.func @transform_0(%arg0: i32, %arg1: i32) -> (i32, i32) {
    %c0_i32 = arith.constant 0 : i32
    return %arg0, %arg1 : i32, i32
  }
  func.func @transform_1(%arg0: i32, %arg1: i32) -> (i32, i32) {
    %c0_i32 = arith.constant 0 : i32
    %c0_i32_0 = arith.constant 0 : i32
    return %arg1, %c0_i32 : i32, i32
  }
  func.func @transform_2(%arg0: i32, %arg1: i32) -> (i32, i32) {
    %c0_i32 = arith.constant 0 : i32
    %c0_i32_0 = arith.constant 0 : i32
    return %arg0, %c0_i32 : i32, i32
  }
  func.func @transform_3(%arg0: i32, %arg1: i32) -> (i32, i32) {
    %c0_i32 = arith.constant 0 : i32
    %c0_i32_0 = arith.constant 0 : i32
    return %arg0, %c0_i32 : i32, i32
  }
  func.func @transform_4(%arg0: i32, %arg1: i32) -> (i32, i32) {
    %c0_i32 = arith.constant 0 : i32
    %c0_i32_0 = arith.constant 0 : i32
    return %arg0, %c0_i32 : i32, i32
  }
  func.func @transform_5(%arg0: i32, %arg1: i32) -> (i32, i32) {
    %c0_i32 = arith.constant 0 : i32
    %c0_i32_0 = arith.constant 0 : i32
    return %arg0, %c0_i32 : i32, i32
  }
}

module attributes {stable_mosaic.version = 11 : i64} {
  func.func @_propagate_combine_kernel(%arg0: i32, %arg1: i32, %arg2: memref<128x512xbf16, #tpu.memory_space<vmem>>, %arg3: memref<512x128xbf16, #tpu.memory_space<vmem>>, %arg4: memref<128x128xf32, #tpu.memory_space<vmem>>, %arg5: memref<128x128xbf16, #tpu.memory_space<vmem>>, %arg6: memref<128x128xbf16, #tpu.memory_space<vmem>>, %arg7: memref<128x128xf32, #tpu.memory_space<vmem>>, %arg8: memref<128x128xf32, #tpu.memory_space<vmem>>) attributes {dimension_semantics = [#tpu.dimension_semantics<parallel>, #tpu.dimension_semantics<arbitrary>], iteration_bounds = array<i64: 8, 1>, scalar_prefetch = 0 : i64, scratch_operands = 1 : i64, tpu.core_type = #tpu.core_type<tc>, window_params = [{transform_indices = @transform_0, window_bounds = array<i64: 128, 512>}, {transform_indices = @transform_1, window_bounds = array<i64: 512, 128>}, {transform_indices = @transform_2, window_bounds = array<i64: 128, 128>}, {transform_indices = @transform_3, window_bounds = array<i64: 128, 128>}, {transform_indices = @transform_4, window_bounds = array<i64: 128, 128>}, {transform_indices = @transform_5, window_bounds = array<i64: 128, 128>}]} {
    %c0_i32 = arith.constant 0 : i32
    %0 = arith.cmpi eq, %arg1, %c0_i32 : i32
    %1 = arith.extui %0 : i1 to i32
    %c0_i32_0 = arith.constant 0 : i32
    %2 = arith.cmpi ne, %1, %c0_i32_0 : i32
    scf.if %2 {
      %cst_10 = arith.constant 0.000000e+00 : f32
      %12 = vector.broadcast %cst_10 : f32 to vector<128x128xf32>
      %c0_11 = arith.constant 0 : index
      %c0_12 = arith.constant 0 : index
      %13 = vector.load %arg8[%c0_11, %c0_12] : memref<128x128xf32, #tpu.memory_space<vmem>>, vector<128x128xf32>
      tpu.vector_store %arg8[%c0_11, %c0_12], %12 {strides = array<i32>} : memref<128x128xf32, #tpu.memory_space<vmem>>, vector<128x128xf32>,
    } else {
    }
    %c0 = arith.constant 0 : index
    %c0_1 = arith.constant 0 : index
    %3 = vector.load %arg8[%c0, %c0_1] : memref<128x128xf32, #tpu.memory_space<vmem>>, vector<128x128xf32>
    %c0_2 = arith.constant 0 : index
    %c0_3 = arith.constant 0 : index
    %4 = vector.load %arg2[%c0_2, %c0_3] : memref<128x512xbf16, #tpu.memory_space<vmem>>, vector<128x512xbf16>
    %c0_4 = arith.constant 0 : index
    %c0_5 = arith.constant 0 : index
    %5 = vector.load %arg3[%c0_4, %c0_5] : memref<512x128xbf16, #tpu.memory_space<vmem>>, vector<512x128xbf16>
    %cst = arith.constant dense<0.000000e+00> : vector<128x128xf32>
    %6 = tpu.matmul %4, %5, %cst {dimension_numbers = #tpu.dot_dimension_numbers<[1], [0], [0], [1], [0, 0, 1, 1], [], []>} : vector<128x512xbf16>, vector<512x128xbf16>, vector<128x128xf32> -> vector<128x128xf32>
    %7 = arith.addf %3, %6 : vector<128x128xf32>
    %c0_6 = arith.constant 0 : index
    %c0_7 = arith.constant 0 : index
    %8 = vector.load %arg8[%c0_6, %c0_7] : memref<128x128xf32, #tpu.memory_space<vmem>>, vector<128x128xf32>
    tpu.vector_store %arg8[%c0_6, %c0_7], %7 {strides = array<i32>} : memref<128x128xf32, #tpu.memory_space<vmem>>, vector<128x128xf32>,
    %c0_i32_8 = arith.constant 0 : i32
    %9 = arith.cmpi eq, %arg1, %c0_i32_8 : i32
    %10 = arith.extui %9 : i1 to i32
    %c0_i32_9 = arith.constant 0 : i32
    %11 = arith.cmpi ne, %10, %c0_i32_9 : i32
    scf.if %11 {
      %c0_10 = arith.constant 0 : index
      %c0_11 = arith.constant 0 : index
      %12 = vector.load %arg4[%c0_10, %c0_11] : memref<128x128xf32, #tpu.memory_space<vmem>>, vector<128x128xf32>
      %c0_12 = arith.constant 0 : index
      %c0_13 = arith.constant 0 : index
      %13 = vector.load %arg5[%c0_12, %c0_13] : memref<128x128xbf16, #tpu.memory_space<vmem>>, vector<128x128xbf16>
      %14 = arith.extf %13 : vector<128x128xbf16> to vector<128x128xf32>
      %cst_14 = arith.constant 5.000000e-01 : f32
      %15 = vector.broadcast %cst_14 : f32 to vector<128x128xf32>
      %16 = arith.mulf %15, %14 : vector<128x128xf32>
      %17 = arith.addf %12, %16 : vector<128x128xf32>
      %c0_15 = arith.constant 0 : index
      %c0_16 = arith.constant 0 : index
      %18 = vector.load %arg6[%c0_15, %c0_16] : memref<128x128xbf16, #tpu.memory_space<vmem>>, vector<128x128xbf16>
      %19 = arith.extf %18 : vector<128x128xbf16> to vector<128x128xf32>
      %cst_17 = arith.constant 0.333333343 : f32
      %20 = vector.broadcast %cst_17 : f32 to vector<128x128xf32>
      %21 = arith.mulf %20, %19 : vector<128x128xf32>
      %22 = arith.addf %17, %21 : vector<128x128xf32>
      %c0_18 = arith.constant 0 : index
      %c0_19 = arith.constant 0 : index
      %23 = vector.load %arg8[%c0_18, %c0_19] : memref<128x128xf32, #tpu.memory_space<vmem>>, vector<128x128xf32>
      %cst_20 = arith.constant 2.500000e-01 : f32
      %24 = vector.broadcast %cst_20 : f32 to vector<128x128xf32>
      %25 = arith.mulf %24, %23 : vector<128x128xf32>
      %26 = arith.addf %22, %25 : vector<128x128xf32>
      %c0_21 = arith.constant 0 : index
      %c0_22 = arith.constant 0 : index
      %27 = vector.load %arg7[%c0_21, %c0_22] : memref<128x128xf32, #tpu.memory_space<vmem>>, vector<128x128xf32>
      tpu.vector_store %arg7[%c0_21, %c0_22], %26 {strides = array<i32>} : memref<128x128xf32, #tpu.memory_space<vmem>>, vector<128x128xf32>,
    } else {
    }
    return
  }
  func.func @transform_0(%arg0: i32, %arg1: i32) -> (i32, i32) {
    %c0_i32 = arith.constant 0 : i32
    return %arg0, %arg1 : i32, i32
  }
  func.func @transform_1(%arg0: i32, %arg1: i32) -> (i32, i32) {
    %c0_i32 = arith.constant 0 : i32
    %c0_i32_0 = arith.constant 0 : i32
    return %arg1, %c0_i32 : i32, i32
  }
  func.func @transform_2(%arg0: i32, %arg1: i32) -> (i32, i32) {
    %c0_i32 = arith.constant 0 : i32
    %c0_i32_0 = arith.constant 0 : i32
    return %arg0, %c0_i32 : i32, i32
  }
  func.func @transform_3(%arg0: i32, %arg1: i32) -> (i32, i32) {
    %c0_i32 = arith.constant 0 : i32
    %c0_i32_0 = arith.constant 0 : i32
    return %arg0, %c0_i32 : i32, i32
  }
  func.func @transform_4(%arg0: i32, %arg1: i32) -> (i32, i32) {
    %c0_i32 = arith.constant 0 : i32
    %c0_i32_0 = arith.constant 0 : i32
    return %arg0, %c0_i32 : i32, i32
  }
  func.func @transform_5(%arg0: i32, %arg1: i32) -> (i32, i32) {
    %c0_i32 = arith.constant 0 : i32
    %c0_i32_0 = arith.constant 0 : i32
    return %arg0, %c0_i32 : i32, i32
  }
}

</mosaic_0001>

<llo_original>
// kernel: bpr_forward.9
$region0: #{bpr_forward.9}
  #allocation0 [shape = 'u32[]', space=smem, size = 0x4, offset = 0x4, fixed_abs, tag = 'smem constant byte address 0x4 - core index']
  #allocation1 [shape = 'u32[144,128]{1,0:T(1,128)}', space=vmem, size = 0x12000, scoped, tag = 'internal scratch']
  #allocation2 [shape = 'f32[128,128]{1,0:T(8,128)}', space=vmem, size = 0x10000, scoped, tag = 'scratch operand']
  %s0 = inlined_call_operand.vmem [shape: bf16[1024,512], index: 0, kind: input, shape index: {}]
  %s1 = inlined_call_operand.vmem [shape: bf16[512,128], index: 1, kind: input, shape index: {}]
  %s2 = inlined_call_operand.vmem [shape: bf16[1024,128], index: 2, kind: output, shape index: {}]
  %s3 = sld [smem:[#allocation0]]
  $region49: #{bpr_forward.9} parent=0
    _
  %s5 = ssub.s32 1, %s3
  %s6 = scalar_select 0, %s5, %s3
  loop: start=0, step=1, limit=10
  $region2: #{bpr_forward.9} parent=0 // loop_pre_header
    _
  $region3: #{bpr_forward.9} parent=0 // loop_header
    %s8 = sphi 0, %s12
    %p9 = scmp.ge.s32.totalorder %s8, 10
    %s15 = sphi 0, %s27
    %s16 = sphi 0, %s23
    %s17 = sphi 0, %s15
    %s18 = sphi 0, %s16
    %s19 = sphi 0, %s17
    %s20 = sphi 0, %s18
    %s32 = sphi 0, %s34
    %s35 = sphi 0, %s32
    %s36 = sphi 0, %s35
    %s52 = sphi 0, %s36
    %s58 = sphi 0, %s60
    %s61 = sphi 0, %s58
    %s62 = sphi 0, %s61
    %s78 = sphi 0, %s62
    %s84 = sphi 0, %s86
    %s87 = sphi 0, %s84
    %s88 = sphi 0, %s87
    %s104 = sphi 0, %s88
  $region4: #{bpr_forward.9} parent=0 // loop_header_branch
    %11 = sbr.rel (%p9) target = $region8
  $region5: #{bpr_forward.9} parent=0 // loop_body
    %s13 = ssub.s32 %s8, 1
    %s14 = ssub.s32 %s8, 2
    %s21 = sadd.s32 1, %s16
    %p22 = scmp.ge.s32.totalorder %s21, 1
    %s23 = scalar_select %p22, 0, %s21
    %s24 = sadd.s32 1, %s15
    %s25 = scalar_select %p22, %s24, %s15
    %p26 = scmp.ge.s32.totalorder %s25, 8
    %s27 = scalar_select %p26, 0, %s25
    %s28 = ssub.s32 %s15, %s27
    %s29 = ssub.s32 %s16, %s23
    %s30 = sor.u32 %s28, %s29
    %p31 = scmp.eq.s32.totalorder %s30, 0
    %s33 = sadd.s32 %s32, 1
    %s34 = scalar_select %p31, %s32, %s33
    %p37 = pneg %p31
    %p38 = scmp.eq.s32.totalorder %s8, 7
    %p39 = por %p37, %p38
    %p40 = scmp.ne.s32.totalorder %s32, %s35
    %p41 = scmp.eq.s32.totalorder %s8, 0
    %p42 = por %p40, %p41
    %p43 = scmp.ne.s32.totalorder %s32, %s35
    %p44 = scmp.eq.s32.totalorder %s13, 7
    %p45 = por %p43, %p44
    %p46 = scmp.ne.s32.totalorder %s35, %s36
    %p47 = scmp.eq.s32.totalorder %s13, 0
    %p48 = por %p46, %p47
    %p49 = scmp.ne.s32.totalorder %s35, %s36
    %p50 = scmp.eq.s32.totalorder %s14, 7
    %p51 = por %p49, %p50
    %p53 = scmp.ne.s32.totalorder %s36, %s52
    %p54 = scmp.eq.s32.totalorder %s14, 0
    %p55 = por %p53, %p54
    %s56 = ssub.s32 %s16, %s23
    %p57 = scmp.eq.s32.totalorder %s56, 0
    %s59 = sadd.s32 %s58, 1
    %s60 = scalar_select %p57, %s58, %s59
    %p63 = pneg %p57
    %p64 = scmp.eq.s32.totalorder %s8, 7
    %p65 = por %p63, %p64
    %p66 = scmp.ne.s32.totalorder %s58, %s61
    %p67 = scmp.eq.s32.totalorder %s8, 0
    %p68 = por %p66, %p67
    %p69 = scmp.ne.s32.totalorder %s58, %s61
    %p70 = scmp.eq.s32.totalorder %s13, 7
    %p71 = por %p69, %p70
    %p72 = scmp.ne.s32.totalorder %s61, %s62
    %p73 = scmp.eq.s32.totalorder %s13, 0
    %p74 = por %p72, %p73
    %p75 = scmp.ne.s32.totalorder %s61, %s62
    %p76 = scmp.eq.s32.totalorder %s14, 7
    %p77 = por %p75, %p76
    %p79 = scmp.ne.s32.totalorder %s62, %s78
    %p80 = scmp.eq.s32.totalorder %s14, 0
    %p81 = por %p79, %p80
    %s82 = ssub.s32 %s15, %s27
    %p83 = scmp.eq.s32.totalorder %s82, 0
    %s85 = sadd.s32 %s84, 1
    %s86 = scalar_select %p83, %s84, %s85
    %p89 = pneg %p83
    %p90 = scmp.eq.s32.totalorder %s8, 7
    %p91 = por %p89, %p90
    %p92 = scmp.ne.s32.totalorder %s84, %s87
    %p93 = scmp.eq.s32.totalorder %s8, 0
    %p94 = por %p92, %p93
    %p95 = scmp.ne.s32.totalorder %s84, %s87
    %p96 = scmp.eq.s32.totalorder %s13, 7
    %p97 = por %p95, %p96
    %p98 = scmp.ne.s32.totalorder %s87, %s88
    %p99 = scmp.eq.s32.totalorder %s13, 0
    %p100 = por %p98, %p99
    %p101 = scmp.ne.s32.totalorder %s87, %s88
    %p102 = scmp.eq.s32.totalorder %s14, 7
    %p103 = por %p101, %p102
    %p105 = scmp.ne.s32.totalorder %s88, %s104
    %p106 = scmp.eq.s32.totalorder %s14, 0
    %p107 = por %p105, %p106
    %p108 = scmp.le.s32.totalorder 1, %s8
    %p109 = scmp.lt.s32.totalorder %s8, 9
    %p110 = pnand %p108, %p109
    %p111 = pneg %p110
    // Predicated region
    $region9: #{bpr_forward.9} parent=5 // pred_check
      _
    $region10: #{bpr_forward.9} parent=5 // pred_check_branch
      %113 = sbr.rel (%p110) target = $region12
    $region11: #{bpr_forward.9} parent=5 // pred_region
      %s114 = ssub.s32 %s8, 1
      // Predicated region
      $region13: #{bpr_forward.9} parent=11 // pred_check
        %p115 = pneg %p74
      $region14: #{bpr_forward.9} parent=11 // pred_check_branch
        %117 = sbr.rel (%p115) target = $region16
      $region15: #{bpr_forward.9} parent=11 // pred_region
        %s118 = smul.u32 64, %s18
        %p119 = scmp.lt.s32.totalorder %s118, 63
        %s120 = scalar_select %p119, %s118, 63
        %s121 = smul.addr %s120, 4
        %s122 = scalar_lea.vmem %s1, %s121
        %s123 = smul.u32 64, %s18
      $region16: #{bpr_forward.9} parent=11 // pred_fallthru
        _
    $region12: #{bpr_forward.9} parent=5 // pred_fallthru
      _
    %p124 = scmp.lt.s32.totalorder %s8, 8
    // Predicated region
    $region17: #{bpr_forward.9} parent=5 // pred_check
      %p125 = pneg %p124
    $region18: #{bpr_forward.9} parent=5 // pred_check_branch
      %127 = sbr.rel (%p125) target = $region20
    $region19: #{bpr_forward.9} parent=5 // pred_region
      // Predicated region
      $region21: #{bpr_forward.9} parent=19 // pred_check
        %p128 = pneg %p42
      $region22: #{bpr_forward.9} parent=19 // pred_check_branch
        %130 = sbr.rel (%p128) target = $region24
      $region23: #{bpr_forward.9} parent=19 // pred_region
        %s131 = smul.u32 16, %s15
        %s132 = smul.u32 4, %s16
        %p133 = scmp.lt.s32.totalorder %s131, 127
        %s134 = scalar_select %p133, %s131, 127
        %p135 = scmp.lt.s32.totalorder %s132, 3
        %s136 = scalar_select %p135, %s132, 3
        %s137 = smul.addr %s134, 4
        %s138 = sadd.s32 %s136, %s137
        %s139 = smul.addr %s138, 4
        %s140 = scalar_lea.vmem %s0, %s139
        %s141 = smul.u32 16, %s15
        %s142 = smul.u32 4, %s16
      $region24: #{bpr_forward.9} parent=19 // pred_fallthru
        _
    $region20: #{bpr_forward.9} parent=5 // pred_fallthru
      _
    %p143 = scmp.le.s32.totalorder 1, %s8
    %p144 = scmp.lt.s32.totalorder %s8, 9
    %p145 = pnand %p143, %p144
    %p146 = pneg %p145
    // Predicated region
    $region25: #{bpr_forward.9} parent=5 // pred_check
      _
    $region26: #{bpr_forward.9} parent=5 // pred_check_branch
      %148 = sbr.rel (%p145) target = $region28
    $region27: #{bpr_forward.9} parent=5 // pred_region
      %s149 = ssub.s32 %s8, 1
      %s150 = smul.u32 16, %s17
      %s151 = smul.u32 4, %s18
      %p152 = scmp.lt.s32.totalorder %s150, 127
      %s153 = scalar_select %p152, %s150, 127
      %p154 = scmp.lt.s32.totalorder %s151, 3
      %s155 = scalar_select %p154, %s151, 3
      %s156 = smul.addr %s153, 4
      %s157 = sadd.s32 %s155, %s156
      %s158 = smul.addr %s157, 4
      %s159 = scalar_lea.vmem %s0, %s158
      %p160 = pneg %p48
      %p161 = pneg %p45
      %s162 = smul.u32 64, %s18
      %p163 = scmp.lt.s32.totalorder %s162, 63
      %s164 = scalar_select %p163, %s162, 63
      %s165 = smul.addr %s164, 4
      %s166 = scalar_lea.vmem %s1, %s165
      %p167 = pneg %p74
      %p168 = pneg %p71
      %p169 = pneg %p100
      %p170 = pneg %p97
      %s171 = smul.u32 16, %s17
      %p172 = scmp.lt.s32.totalorder %s171, 127
      %s173 = scalar_select %p172, %s171, 127
      %s174 = smul.addr %s173, 4
      %s175 = scalar_lea.vmem %s2, %s174
      %s176 = smul.u32 16, %s17
      %s177 = smul.u32 4, %s18
      %p178 = scmp.lt.s32.totalorder %s176, 127
      %s179 = scalar_select %p178, %s176, 127
      %p180 = scmp.lt.s32.totalorder %s177, 3
      %s181 = scalar_select %p180, %s177, 3
      %s182 = smul.addr %s179, 4
      %s183 = sadd.s32 %s181, %s182
      %s184 = smul.addr %s183, 4
      %s185 = scalar_lea.vmem %s0, %s184
      %s186 = smul.u32 16, %s17
      %s187 = smul.u32 4, %s18
      %s188 = smul.u32 64, %s18
      %p189 = scmp.lt.s32.totalorder %s188, 63
      %s190 = scalar_select %p189, %s188, 63
      %s191 = smul.addr %s190, 4
      %s192 = scalar_lea.vmem %s1, %s191
      %s193 = smul.u32 64, %s18
      %s194 = smul.u32 16, %s17
      %p195 = scmp.lt.s32.totalorder %s194, 127
      %s196 = scalar_select %p195, %s194, 127
      %s197 = smul.addr %s196, 4
      %s198 = scalar_lea.vmem %s2, %s197
      %s199 = smul.u32 16, %s17
      %p201 = scmp.eq.s32.totalorder %s18, 0
      // Predicated region
      $region29: #{bpr_forward.9} parent=27 // pred_check
        %p202 = pneg %p201
      $region30: #{bpr_forward.9} parent=27 // pred_check_branch
        %204 = sbr.rel (%p202) target = $region32
      $region31: #{bpr_forward.9} parent=27 // pred_region
        %205 = vst [vmem:[#allocation2] sm:$0xff] 0.0
        %206 = vst [vmem:[#allocation2 + $0x8] sm:$0xff] 0.0
        %207 = vst [vmem:[#allocation2 + $0x10] sm:$0xff] 0.0
        %208 = vst [vmem:[#allocation2 + $0x18] sm:$0xff] 0.0
        %209 = vst [vmem:[#allocation2 + $0x20] sm:$0xff] 0.0
        %210 = vst [vmem:[#allocation2 + $0x28] sm:$0xff] 0.0
        %211 = vst [vmem:[#allocation2 + $0x30] sm:$0xff] 0.0
        %212 = vst [vmem:[#allocation2 + $0x38] sm:$0xff] 0.0
        %213 = vst [vmem:[#allocation2 + $0x40] sm:$0xff] 0.0
        %214 = vst [vmem:[#allocation2 + $0x48] sm:$0xff] 0.0
        %215 = vst [vmem:[#allocation2 + $0x50] sm:$0xff] 0.0
        %216 = vst [vmem:[#allocation2 + $0x58] sm:$0xff] 0.0
        %217 = vst [vmem:[#allocation2 + $0x60] sm:$0xff] 0.0
        %218 = vst [vmem:[#allocation2 + $0x68] sm:$0xff] 0.0
        %219 = vst [vmem:[#allocation2 + $0x70] sm:$0xff] 0.0
        %220 = vst [vmem:[#allocation2 + $0x78] sm:$0xff] 0.0
      $region32: #{bpr_forward.9} parent=27 // pred_fallthru
        _
      %v221 = vld [vmem:[#allocation2] sm:$0xff]
      %v222 = vld [vmem:[#allocation2 + $0x8] sm:$0xff]
      %v223 = vld [vmem:[#allocation2 + $0x10] sm:$0xff]
      %v224 = vld [vmem:[#allocation2 + $0x18] sm:$0xff]
      %v225 = vld [vmem:[#allocation2 + $0x20] sm:$0xff]
      %v226 = vld [vmem:[#allocation2 + $0x28] sm:$0xff]
      %v227 = vld [vmem:[#allocation2 + $0x30] sm:$0xff]
      %v228 = vld [vmem:[#allocation2 + $0x38] sm:$0xff]
      %v229 = vld [vmem:[#allocation2 + $0x40] sm:$0xff]
      %v230 = vld [vmem:[#allocation2 + $0x48] sm:$0xff]
      %v231 = vld [vmem:[#allocation2 + $0x50] sm:$0xff]
      %v232 = vld [vmem:[#allocation2 + $0x58] sm:$0xff]
      %v233 = vld [vmem:[#allocation2 + $0x60] sm:$0xff]
      %v234 = vld [vmem:[#allocation2 + $0x68] sm:$0xff]
      %v235 = vld [vmem:[#allocation2 + $0x70] sm:$0xff]
      %v236 = vld [vmem:[#allocation2 + $0x78] sm:$0xff]
      %v237 = vld [vmem:[%s185] sm:$0xff]
      %v238 = vld [vmem:[%s185 + $0x8] sm:$0xff]
      %v239 = vld [vmem:[%s185 + $0x10] sm:$0xff]
      %v240 = vld [vmem:[%s185 + $0x18] sm:$0xff]
      %v241 = vld [vmem:[%s185 + $0x20] sm:$0xff]
      %v242 = vld [vmem:[%s185 + $0x28] sm:$0xff]
      %v243 = vld [vmem:[%s185 + $0x30] sm:$0xff]
      %v244 = vld [vmem:[%s185 + $0x38] sm:$0xff]
      %v245 = vld [vmem:[%s185 + $0x40] sm:$0xff]
      %v246 = vld [vmem:[%s185 + $0x48] sm:$0xff]
      %v247 = vld [vmem:[%s185 + $0x50] sm:$0xff]
      %v248 = vld [vmem:[%s185 + $0x58] sm:$0xff]
      %v249 = vld [vmem:[%s185 + $0x60] sm:$0xff]
      %v250 = vld [vmem:[%s185 + $0x68] sm:$0xff]
      %v251 = vld [vmem:[%s185 + $0x70] sm:$0xff]
      %v252 = vld [vmem:[%s185 + $0x78] sm:$0xff]
      %v253 = vld [vmem:[%s185 + $0x80] sm:$0xff]
      %v254 = vld [vmem:[%s185 + $0x88] sm:$0xff]
      %v255 = vld [vmem:[%s185 + $0x90] sm:$0xff]
      %v256 = vld [vmem:[%s185 + $0x98] sm:$0xff]
      %v257 = vld [vmem:[%s185 + $0xa0] sm:$0xff]
      %v258 = vld [vmem:[%s185 + $0xa8] sm:$0xff]
      %v259 = vld [vmem:[%s185 + $0xb0] sm:$0xff]
      %v260 = vld [vmem:[%s185 + $0xb8] sm:$0xff]
      %v261 = vld [vmem:[%s185 + $0xc0] sm:$0xff]
      %v262 = vld [vmem:[%s185 + $0xc8] sm:$0xff]
      %v263 = vld [vmem:[%s185 + $0xd0] sm:$0xff]
      %v264 = vld [vmem:[%s185 + $0xd8] sm:$0xff]
      %v265 = vld [vmem:[%s185 + $0xe0] sm:$0xff]
      %v266 = vld [vmem:[%s185 + $0xe8] sm:$0xff]
      %v267 = vld [vmem:[%s185 + $0xf0] sm:$0xff]
      %v268 = vld [vmem:[%s185 + $0xf8] sm:$0xff]
      %v269 = vld [vmem:[%s192] sm:$0xf]
      %v270 = vld [vmem:[%s192 + $0x4] sm:$0xf]
      %v271 = vld [vmem:[%s192 + $0x8] sm:$0xf]
      %v272 = vld [vmem:[%s192 + $0xc] sm:$0xf]
      %v273 = vld [vmem:[%s192 + $0x10] sm:$0xf]
      %v274 = vld [vmem:[%s192 + $0x14] sm:$0xf]
      %v275 = vld [vmem:[%s192 + $0x18] sm:$0xf]
      %v276 = vld [vmem:[%s192 + $0x1c] sm:$0xf]
      %v277 = vld [vmem:[%s192 + $0x20] sm:$0xf]
      %v278 = vld [vmem:[%s192 + $0x24] sm:$0xf]
      %v279 = vld [vmem:[%s192 + $0x28] sm:$0xf]
      %v280 = vld [vmem:[%s192 + $0x2c] sm:$0xf]
      %v281 = vld [vmem:[%s192 + $0x30] sm:$0xf]
      %v282 = vld [vmem:[%s192 + $0x34] sm:$0xf]
      %v283 = vld [vmem:[%s192 + $0x38] sm:$0xf]
      %v284 = vld [vmem:[%s192 + $0x3c] sm:$0xf]
      %v285 = vld [vmem:[%s192 + $0x40] sm:$0xf]
      %v286 = vld [vmem:[%s192 + $0x44] sm:$0xf]
      %v287 = vld [vmem:[%s192 + $0x48] sm:$0xf]
      %v288 = vld [vmem:[%s192 + $0x4c] sm:$0xf]
      %v289 = vld [vmem:[%s192 + $0x50] sm:$0xf]
      %v290 = vld [vmem:[%s192 + $0x54] sm:$0xf]
      %v291 = vld [vmem:[%s192 + $0x58] sm:$0xf]
      %v292 = vld [vmem:[%s192 + $0x5c] sm:$0xf]
      %v293 = vld [vmem:[%s192 + $0x60] sm:$0xf]
      %v294 = vld [vmem:[%s192 + $0x64] sm:$0xf]
      %v295 = vld [vmem:[%s192 + $0x68] sm:$0xf]
      %v296 = vld [vmem:[%s192 + $0x6c] sm:$0xf]
      %v297 = vld [vmem:[%s192 + $0x70] sm:$0xf]
      %v298 = vld [vmem:[%s192 + $0x74] sm:$0xf]
      %v299 = vld [vmem:[%s192 + $0x78] sm:$0xf]
      %v300 = vld [vmem:[%s192 + $0x7c] sm:$0xf]
      %v301 = vld [vmem:[%s192 + $0x80] sm:$0xf]
      %v302 = vld [vmem:[%s192 + $0x84] sm:$0xf]
      %v303 = vld [vmem:[%s192 + $0x88] sm:$0xf]
      %v304 = vld [vmem:[%s192 + $0x8c] sm:$0xf]
      %v305 = vld [vmem:[%s192 + $0x90] sm:$0xf]
      %v306 = vld [vmem:[%s192 + $0x94] sm:$0xf]
      %v307 = vld [vmem:[%s192 + $0x98] sm:$0xf]
      %v308 = vld [vmem:[%s192 + $0x9c] sm:$0xf]
      %v309 = vld [vmem:[%s192 + $0xa0] sm:$0xf]
      %v310 = vld [vmem:[%s192 + $0xa4] sm:$0xf]
      %v311 = vld [vmem:[%s192 + $0xa8] sm:$0xf]
      %v312 = vld [vmem:[%s192 + $0xac] sm:$0xf]
      %v313 = vld [vmem:[%s192 + $0xb0] sm:$0xf]
      %v314 = vld [vmem:[%s192 + $0xb4] sm:$0xf]
      %v315 = vld [vmem:[%s192 + $0xb8] sm:$0xf]
      %v316 = vld [vmem:[%s192 + $0xbc] sm:$0xf]
      %v317 = vld [vmem:[%s192 + $0xc0] sm:$0xf]
      %v318 = vld [vmem:[%s192 + $0xc4] sm:$0xf]
      %v319 = vld [vmem:[%s192 + $0xc8] sm:$0xf]
      %v320 = vld [vmem:[%s192 + $0xcc] sm:$0xf]
      %v321 = vld [vmem:[%s192 + $0xd0] sm:$0xf]
      %v322 = vld [vmem:[%s192 + $0xd4] sm:$0xf]
      %v323 = vld [vmem:[%s192 + $0xd8] sm:$0xf]
      %v324 = vld [vmem:[%s192 + $0xdc] sm:$0xf]
      %v325 = vld [vmem:[%s192 + $0xe0] sm:$0xf]
      %v326 = vld [vmem:[%s192 + $0xe4] sm:$0xf]
      %v327 = vld [vmem:[%s192 + $0xe8] sm:$0xf]
      %v328 = vld [vmem:[%s192 + $0xec] sm:$0xf]
      %v329 = vld [vmem:[%s192 + $0xf0] sm:$0xf]
      %v330 = vld [vmem:[%s192 + $0xf4] sm:$0xf]
      %v331 = vld [vmem:[%s192 + $0xf8] sm:$0xf]
      %v332 = vld [vmem:[%s192 + $0xfc] sm:$0xf]
      %v365 = vunpack.c.l.b16 %v237
      %v366 = vunpack.c.h.b16 %v237
      %v367 = vunpack.c.l.b16 %v238
      %v368 = vunpack.c.h.b16 %v238
      %v369 = vunpack.c.l.b16 %v239
      %v370 = vunpack.c.h.b16 %v239
      %v371 = vunpack.c.l.b16 %v240
      %v372 = vunpack.c.h.b16 %v240
      %v373 = vunpack.c.l.b16 %v241
      %v374 = vunpack.c.h.b16 %v241
      %v375 = vunpack.c.l.b16 %v242
      %v376 = vunpack.c.h.b16 %v242
      %v377 = vunpack.c.l.b16 %v243
      %v378 = vunpack.c.h.b16 %v243
      %v379 = vunpack.c.l.b16 %v244
      %v380 = vunpack.c.h.b16 %v244
      %v381 = vunpack.c.l.b16 %v245
      %v382 = vunpack.c.h.b16 %v245
      %v383 = vunpack.c.l.b16 %v246
      %v384 = vunpack.c.h.b16 %v246
      %v385 = vunpack.c.l.b16 %v247
      %v386 = vunpack.c.h.b16 %v247
      %v387 = vunpack.c.l.b16 %v248
      %v388 = vunpack.c.h.b16 %v248
      %v389 = vunpack.c.l.b16 %v249
      %v390 = vunpack.c.h.b16 %v249
      %v391 = vunpack.c.l.b16 %v250
      %v392 = vunpack.c.h.b16 %v250
      %v393 = vunpack.c.l.b16 %v251
      %v394 = vunpack.c.h.b16 %v251
      %v395 = vunpack.c.l.b16 %v252
      %v396 = vunpack.c.h.b16 %v252
      %v397 = vunpack.c.l.b16 %v253
      %v398 = vunpack.c.h.b16 %v253
      %v399 = vunpack.c.l.b16 %v254
      %v400 = vunpack.c.h.b16 %v254
      %v401 = vunpack.c.l.b16 %v255
      %v402 = vunpack.c.h.b16 %v255
      %v403 = vunpack.c.l.b16 %v256
      %v404 = vunpack.c.h.b16 %v256
      %v405 = vunpack.c.l.b16 %v257
      %v406 = vunpack.c.h.b16 %v257
      %v407 = vunpack.c.l.b16 %v258
      %v408 = vunpack.c.h.b16 %v258
      %v409 = vunpack.c.l.b16 %v259
      %v410 = vunpack.c.h.b16 %v259
      %v411 = vunpack.c.l.b16 %v260
      %v412 = vunpack.c.h.b16 %v260
      %v413 = vunpack.c.l.b16 %v261
      %v414 = vunpack.c.h.b16 %v261
      %v415 = vunpack.c.l.b16 %v262
      %v416 = vunpack.c.h.b16 %v262
      %v417 = vunpack.c.l.b16 %v263
      %v418 = vunpack.c.h.b16 %v263
      %v419 = vunpack.c.l.b16 %v264
      %v420 = vunpack.c.h.b16 %v264
      %v421 = vunpack.c.l.b16 %v265
      %v422 = vunpack.c.h.b16 %v265
      %v423 = vunpack.c.l.b16 %v266
      %v424 = vunpack.c.h.b16 %v266
      %v425 = vunpack.c.l.b16 %v267
      %v426 = vunpack.c.h.b16 %v267
      %v427 = vunpack.c.l.b16 %v268
      %v428 = vunpack.c.h.b16 %v268
      %v429 = vpack.c.b16 %v369, %v365
      %v430 = vpack.c.b16 %v370, %v366
      %v431 = vpack.c.b16 %v371, %v367
      %v432 = vpack.c.b16 %v372, %v368
      %v433 = vpack.c.b16 %v377, %v373
      %v434 = vpack.c.b16 %v378, %v374
      %v435 = vpack.c.b16 %v379, %v375
      %v436 = vpack.c.b16 %v380, %v376
      %v437 = vpack.c.b16 %v385, %v381
      %v438 = vpack.c.b16 %v386, %v382
      %v439 = vpack.c.b16 %v387, %v383
      %v440 = vpack.c.b16 %v388, %v384
      %v441 = vpack.c.b16 %v393, %v389
      %v442 = vpack.c.b16 %v394, %v390
      %v443 = vpack.c.b16 %v395, %v391
      %v444 = vpack.c.b16 %v396, %v392
      %v445 = vpack.c.b16 %v401, %v397
      %v446 = vpack.c.b16 %v402, %v398
      %v447 = vpack.c.b16 %v403, %v399
      %v448 = vpack.c.b16 %v404, %v400
      %v449 = vpack.c.b16 %v409, %v405
      %v450 = vpack.c.b16 %v410, %v406
      %v451 = vpack.c.b16 %v411, %v407
      %v452 = vpack.c.b16 %v412, %v408
      %v453 = vpack.c.b16 %v417, %v413
      %v454 = vpack.c.b16 %v418, %v414
      %v455 = vpack.c.b16 %v419, %v415
      %v456 = vpack.c.b16 %v420, %v416
      %v457 = vpack.c.b16 %v425, %v421
      %v458 = vpack.c.b16 %v426, %v422
      %v459 = vpack.c.b16 %v427, %v423
      %v460 = vpack.c.b16 %v428, %v424
      %v557 = vunpack.c.l.b16 %v269
      %v558 = vunpack.c.l.b16 %v270
      %v559 = vunpack.c.l.b16 %v271
      %v560 = vunpack.c.l.b16 %v272
      %v561 = vunpack.c.l.b16 %v273
      %v562 = vunpack.c.l.b16 %v274
      %v563 = vunpack.c.l.b16 %v275
      %v564 = vunpack.c.l.b16 %v276
      %v565 = vunpack.c.l.b16 %v277
      %v566 = vunpack.c.l.b16 %v278
      %v567 = vunpack.c.l.b16 %v279
      %v568 = vunpack.c.l.b16 %v280
      %v569 = vunpack.c.l.b16 %v281
      %v570 = vunpack.c.l.b16 %v282
      %v571 = vunpack.c.l.b16 %v283
      %v572 = vunpack.c.l.b16 %v284
      %v573 = vunpack.c.l.b16 %v285
      %v574 = vunpack.c.l.b16 %v286
      %v575 = vunpack.c.l.b16 %v287
      %v576 = vunpack.c.l.b16 %v288
      %v577 = vunpack.c.l.b16 %v289
      %v578 = vunpack.c.l.b16 %v290
      %v579 = vunpack.c.l.b16 %v291
      %v580 = vunpack.c.l.b16 %v292
      %v581 = vunpack.c.l.b16 %v293
      %v582 = vunpack.c.l.b16 %v294
      %v583 = vunpack.c.l.b16 %v295
      %v584 = vunpack.c.l.b16 %v296
      %v585 = vunpack.c.l.b16 %v297
      %v586 = vunpack.c.l.b16 %v298
      %v587 = vunpack.c.l.b16 %v299
      %v588 = vunpack.c.l.b16 %v300
      %v589 = vunpack.c.l.b16 %v301
      %v590 = vunpack.c.l.b16 %v302
      %v591 = vunpack.c.l.b16 %v303
      %v592 = vunpack.c.l.b16 %v304
      %v593 = vunpack.c.l.b16 %v305
      %v594 = vunpack.c.l.b16 %v306
      %v595 = vunpack.c.l.b16 %v307
      %v596 = vunpack.c.l.b16 %v308
      %v597 = vunpack.c.l.b16 %v309
      %v598 = vunpack.c.l.b16 %v310
      %v599 = vunpack.c.l.b16 %v311
      %v600 = vunpack.c.l.b16 %v312
      %v601 = vunpack.c.l.b16 %v313
      %v602 = vunpack.c.l.b16 %v314
      %v603 = vunpack.c.l.b16 %v315
      %v604 = vunpack.c.l.b16 %v316
      %v605 = vunpack.c.l.b16 %v317
      %v606 = vunpack.c.l.b16 %v318
      %v607 = vunpack.c.l.b16 %v319
      %v608 = vunpack.c.l.b16 %v320
      %v609 = vunpack.c.l.b16 %v321
      %v610 = vunpack.c.l.b16 %v322
      %v611 = vunpack.c.l.b16 %v323
      %v612 = vunpack.c.l.b16 %v324
      %v613 = vunpack.c.l.b16 %v325
      %v614 = vunpack.c.l.b16 %v326
      %v615 = vunpack.c.l.b16 %v327
      %v616 = vunpack.c.l.b16 %v328
      %v617 = vunpack.c.l.b16 %v329
      %v618 = vunpack.c.l.b16 %v330
      %v619 = vunpack.c.l.b16 %v331
      %v620 = vunpack.c.l.b16 %v332
      %v621 = vpack.c.b16 %v558, %v557
      %v622 = vpack.c.b16 %v560, %v559
      %v623 = vpack.c.b16 %v562, %v561
      %v624 = vpack.c.b16 %v564, %v563
      %v625 = vpack.c.b16 %v566, %v565
      %v626 = vpack.c.b16 %v568, %v567
      %v627 = vpack.c.b16 %v570, %v569
      %v628 = vpack.c.b16 %v572, %v571
      %v629 = vpack.c.b16 %v574, %v573
      %v630 = vpack.c.b16 %v576, %v575
      %v631 = vpack.c.b16 %v578, %v577
      %v632 = vpack.c.b16 %v580, %v579
      %v633 = vpack.c.b16 %v582, %v581
      %v634 = vpack.c.b16 %v584, %v583
      %v635 = vpack.c.b16 %v586, %v585
      %v636 = vpack.c.b16 %v588, %v587
      %v637 = vpack.c.b16 %v590, %v589
      %v638 = vpack.c.b16 %v592, %v591
      %v639 = vpack.c.b16 %v594, %v593
      %v640 = vpack.c.b16 %v596, %v595
      %v641 = vpack.c.b16 %v598, %v597
      %v642 = vpack.c.b16 %v600, %v599
      %v643 = vpack.c.b16 %v602, %v601
      %v644 = vpack.c.b16 %v604, %v603
      %v645 = vpack.c.b16 %v606, %v605
      %v646 = vpack.c.b16 %v608, %v607
      %v647 = vpack.c.b16 %v610, %v609
      %v648 = vpack.c.b16 %v612, %v611
      %v649 = vpack.c.b16 %v614, %v613
      %v650 = vpack.c.b16 %v616, %v615
      %v651 = vpack.c.b16 %v618, %v617
      %v652 = vpack.c.b16 %v620, %v619
      %685 = vmatprep.subr.bf16.mxu0 0
      %686 = vmatpush1.bf16.msra.mxu0 %v628
      %687 = vmatprep.subr.bf16.mxu0 0
      %688 = vmatpush1.bf16.msra.mxu0 %v627
      %689 = vmatprep.subr.bf16.mxu0 0
      %690 = vmatpush1.bf16.msra.mxu0 %v626
      %691 = vmatprep.subr.bf16.mxu0 0
      %692 = vmatpush1.bf16.msra.mxu0 %v625
      %693 = vmatprep.subr.bf16.mxu0 0
      %694 = vmatpush1.bf16.msra.mxu0 %v624
      %695 = vmatprep.subr.bf16.mxu0 0
      %696 = vmatpush1.bf16.msra.mxu0 %v623
      %697 = vmatprep.subr.bf16.mxu0 0
      %698 = vmatpush1.bf16.msra.mxu0 %v622
      %699 = vmatprep.subr.bf16.mxu0 0
      %700 = vmatpush1.bf16.msra.mxu0 %v621
      %701 = vmatprep.subr.bf16.mxu0 0
      %702 = vmatpush2.bf16.msra.mxu0 %v636
      %703 = vmatprep.subr.bf16.mxu0 0
      %704 = vmatpush2.bf16.msra.mxu0 %v635
      %705 = vmatprep.subr.bf16.mxu0 0
      %706 = vmatpush2.bf16.msra.mxu0 %v634
      %707 = vmatprep.subr.bf16.mxu0 0
      %708 = vmatpush2.bf16.msra.mxu0 %v633
      %709 = vmatprep.subr.bf16.mxu0 0
      %710 = vmatpush2.bf16.msra.mxu0 %v632
      %711 = vmatprep.subr.bf16.mxu0 0
      %712 = vmatpush2.bf16.msra.mxu0 %v631
      %713 = vmatprep.subr.bf16.mxu0 0
      %714 = vmatpush2.bf16.msra.mxu0 %v630
      %715 = vmatprep.subr.bf16.mxu0 0
      %716 = vmatpush2.bf16.msra.mxu0 %v629
      %717 = vmatprep.mubr.bf16.mxu0 %v430
      %718 = vmatmul.mubr.bf16.gmra.mxu0 %v429
      %v719 = vpop.f32.mrf.mxu0
      %v720 = vadd.f32 0.0, %v719
      %v721 = vpop.f32.mrf.mxu0
      %v722 = vpop.f32.mrf.mxu0
      %v723 = vadd.f32 0.0, %v722
      %v724 = vpop.f32.mrf.mxu0
      %725 = vmatprep.mubr.bf16.mxu0 %v434
      %726 = vmatmul.mubr.bf16.gmra.mxu0 %v433
      %v727 = vpop.f32.mrf.mxu0
      %v728 = vadd.f32 0.0, %v727
      %v729 = vpop.f32.mrf.mxu0
      %v730 = vpop.f32.mrf.mxu0
      %v731 = vadd.f32 0.0, %v730
      %v732 = vpop.f32.mrf.mxu0
      %733 = vmatprep.mubr.bf16.mxu0 %v438
      %734 = vmatmul.mubr.bf16.gmra.mxu0 %v437
      %v735 = vpop.f32.mrf.mxu0
      %v736 = vadd.f32 0.0, %v735
      %v737 = vpop.f32.mrf.mxu0
      %v738 = vpop.f32.mrf.mxu0
      %v739 = vadd.f32 0.0, %v738
      %v740 = vpop.f32.mrf.mxu0
      %741 = vmatprep.mubr.bf16.mxu0 %v442
      %742 = vmatmul.mubr.bf16.gmra.mxu0 %v441
      %v743 = vpop.f32.mrf.mxu0
      %v744 = vadd.f32 0.0, %v743
      %v745 = vpop.f32.mrf.mxu0
      %v746 = vpop.f32.mrf.mxu0
      %v747 = vadd.f32 0.0, %v746
      %v748 = vpop.f32.mrf.mxu0
      %749 = vmatprep.mubr.bf16.mxu0 %v446
      %750 = vmatmul.mubr.bf16.gmra.mxu0 %v445
      %v751 = vpop.f32.mrf.mxu0
      %v752 = vadd.f32 0.0, %v751
      %v753 = vpop.f32.mrf.mxu0
      %v754 = vpop.f32.mrf.mxu0
      %v755 = vadd.f32 0.0, %v754
      %v756 = vpop.f32.mrf.mxu0
      %757 = vmatprep.mubr.bf16.mxu0 %v450
      %758 = vmatmul.mubr.bf16.gmra.mxu0 %v449
      %v759 = vpop.f32.mrf.mxu0
      %v760 = vadd.f32 0.0, %v759
      %v761 = vpop.f32.mrf.mxu0
      %v762 = vpop.f32.mrf.mxu0
      %v763 = vadd.f32 0.0, %v762
      %v764 = vpop.f32.mrf.mxu0
      %765 = vmatprep.mubr.bf16.mxu0 %v454
      %766 = vmatmul.mubr.bf16.gmra.mxu0 %v453
      %v767 = vpop.f32.mrf.mxu0
      %v768 = vadd.f32 0.0, %v767
      %v769 = vpop.f32.mrf.mxu0
      %v770 = vpop.f32.mrf.mxu0
      %v771 = vadd.f32 0.0, %v770
      %v772 = vpop.f32.mrf.mxu0
      %773 = vmatprep.mubr.bf16.mxu0 %v458
      %774 = vmatmul.mubr.bf16.gmra.mxu0 %v457
      %v775 = vpop.f32.mrf.mxu0
      %v776 = vadd.f32 0.0, %v775
      %v777 = vpop.f32.mrf.mxu0
      %v778 = vpop.f32.mrf.mxu0
      %v779 = vadd.f32 0.0, %v778
      %v780 = vpop.f32.mrf.mxu0
      %781 = vdwg.mxu0
      %782 = vmatprep.subr.bf16.mxu0 0
      %783 = vmatpush1.bf16.msra.mxu0 %v644
      %784 = vmatprep.subr.bf16.mxu0 0
      %785 = vmatpush1.bf16.msra.mxu0 %v643
      %786 = vmatprep.subr.bf16.mxu0 0
      %787 = vmatpush1.bf16.msra.mxu0 %v642
      %788 = vmatprep.subr.bf16.mxu0 0
      %789 = vmatpush1.bf16.msra.mxu0 %v641
      %790 = vmatprep.subr.bf16.mxu0 0
      %791 = vmatpush1.bf16.msra.mxu0 %v640
      %792 = vmatprep.subr.bf16.mxu0 0
      %793 = vmatpush1.bf16.msra.mxu0 %v639
      %794 = vmatprep.subr.bf16.mxu0 0
      %795 = vmatpush1.bf16.msra.mxu0 %v638
      %796 = vmatprep.subr.bf16.mxu0 0
      %797 = vmatpush1.bf16.msra.mxu0 %v637
      %798 = vmatprep.subr.bf16.mxu0 0
      %799 = vmatpush2.bf16.msra.mxu0 %v652
      %800 = vmatprep.subr.bf16.mxu0 0
      %801 = vmatpush2.bf16.msra.mxu0 %v651
      %802 = vmatprep.subr.bf16.mxu0 0
      %803 = vmatpush2.bf16.msra.mxu0 %v650
      %804 = vmatprep.subr.bf16.mxu0 0
      %805 = vmatpush2.bf16.msra.mxu0 %v649
      %806 = vmatprep.subr.bf16.mxu0 0
      %807 = vmatpush2.bf16.msra.mxu0 %v648
      %808 = vmatprep.subr.bf16.mxu0 0
      %809 = vmatpush2.bf16.msra.mxu0 %v647
      %810 = vmatprep.subr.bf16.mxu0 0
      %811 = vmatpush2.bf16.msra.mxu0 %v646
      %812 = vmatprep.subr.bf16.mxu0 0
      %813 = vmatpush2.bf16.msra.mxu0 %v645
      %814 = vmatprep.mubr.bf16.mxu0 %v432
      %815 = vmatmul.mubr.bf16.gmra.mxu0 %v431
      %v816 = vpop.f32.mrf.mxu0
      %v817 = vadd.f32 %v720, %v816
      %v818 = vpop.f32.mrf.mxu0
      %v819 = vpop.f32.mrf.mxu0
      %v820 = vadd.f32 %v723, %v819
      %v821 = vpop.f32.mrf.mxu0
      %822 = vmatprep.mubr.bf16.mxu0 %v436
      %823 = vmatmul.mubr.bf16.gmra.mxu0 %v435
      %v824 = vpop.f32.mrf.mxu0
      %v825 = vadd.f32 %v728, %v824
      %v826 = vpop.f32.mrf.mxu0
      %v827 = vpop.f32.mrf.mxu0
      %v828 = vadd.f32 %v731, %v827
      %v829 = vpop.f32.mrf.mxu0
      %830 = vmatprep.mubr.bf16.mxu0 %v440
      %831 = vmatmul.mubr.bf16.gmra.mxu0 %v439
      %v832 = vpop.f32.mrf.mxu0
      %v833 = vadd.f32 %v736, %v832
      %v834 = vpop.f32.mrf.mxu0
      %v835 = vpop.f32.mrf.mxu0
      %v836 = vadd.f32 %v739, %v835
      %v837 = vpop.f32.mrf.mxu0
      %838 = vmatprep.mubr.bf16.mxu0 %v444
      %839 = vmatmul.mubr.bf16.gmra.mxu0 %v443
      %v840 = vpop.f32.mrf.mxu0
      %v841 = vadd.f32 %v744, %v840
      %v842 = vpop.f32.mrf.mxu0
      %v843 = vpop.f32.mrf.mxu0
      %v844 = vadd.f32 %v747, %v843
      %v845 = vpop.f32.mrf.mxu0
      %846 = vmatprep.mubr.bf16.mxu0 %v448
      %847 = vmatmul.mubr.bf16.gmra.mxu0 %v447
      %v848 = vpop.f32.mrf.mxu0
      %v849 = vadd.f32 %v752, %v848
      %v850 = vpop.f32.mrf.mxu0
      %v851 = vpop.f32.mrf.mxu0
      %v852 = vadd.f32 %v755, %v851
      %v853 = vpop.f32.mrf.mxu0
      %854 = vmatprep.mubr.bf16.mxu0 %v452
      %855 = vmatmul.mubr.bf16.gmra.mxu0 %v451
      %v856 = vpop.f32.mrf.mxu0
      %v857 = vadd.f32 %v760, %v856
      %v858 = vpop.f32.mrf.mxu0
      %v859 = vpop.f32.mrf.mxu0
      %v860 = vadd.f32 %v763, %v859
      %v861 = vpop.f32.mrf.mxu0
      %862 = vmatprep.mubr.bf16.mxu0 %v456
      %863 = vmatmul.mubr.bf16.gmra.mxu0 %v455
      %v864 = vpop.f32.mrf.mxu0
      %v865 = vadd.f32 %v768, %v864
      %v866 = vpop.f32.mrf.mxu0
      %v867 = vpop.f32.mrf.mxu0
      %v868 = vadd.f32 %v771, %v867
      %v869 = vpop.f32.mrf.mxu0
      %870 = vmatprep.mubr.bf16.mxu0 %v460
      %871 = vmatmul.mubr.bf16.gmra.mxu0 %v459
      %v872 = vpop.f32.mrf.mxu0
      %v873 = vadd.f32 %v776, %v872
      %v874 = vpop.f32.mrf.mxu0
      %v875 = vpop.f32.mrf.mxu0
      %v876 = vadd.f32 %v779, %v875
      %v877 = vpop.f32.mrf.mxu0
      %878 = vdwg.mxu0
      %v879 = vadd.f32 %v221, %v817
      %v880 = vadd.f32 %v222, %v820
      %v881 = vadd.f32 %v223, %v825
      %v882 = vadd.f32 %v224, %v828
      %v883 = vadd.f32 %v225, %v833
      %v884 = vadd.f32 %v226, %v836
      %v885 = vadd.f32 %v227, %v841
      %v886 = vadd.f32 %v228, %v844
      %v887 = vadd.f32 %v229, %v849
      %v888 = vadd.f32 %v230, %v852
      %v889 = vadd.f32 %v231, %v857
      %v890 = vadd.f32 %v232, %v860
      %v891 = vadd.f32 %v233, %v865
      %v892 = vadd.f32 %v234, %v868
      %v893 = vadd.f32 %v235, %v873
      %v894 = vadd.f32 %v236, %v876
      %895 = vst [vmem:[#allocation2] sm:$0xff] %v879
      %896 = vst [vmem:[#allocation2 + $0x8] sm:$0xff] %v880
      %897 = vst [vmem:[#allocation2 + $0x10] sm:$0xff] %v881
      %898 = vst [vmem:[#allocation2 + $0x18] sm:$0xff] %v882
      %899 = vst [vmem:[#allocation2 + $0x20] sm:$0xff] %v883
      %900 = vst [vmem:[#allocation2 + $0x28] sm:$0xff] %v884
      %901 = vst [vmem:[#allocation2 + $0x30] sm:$0xff] %v885
      %902 = vst [vmem:[#allocation2 + $0x38] sm:$0xff] %v886
      %903 = vst [vmem:[#allocation2 + $0x40] sm:$0xff] %v887
      %904 = vst [vmem:[#allocation2 + $0x48] sm:$0xff] %v888
      %905 = vst [vmem:[#allocation2 + $0x50] sm:$0xff] %v889
      %906 = vst [vmem:[#allocation2 + $0x58] sm:$0xff] %v890
      %907 = vst [vmem:[#allocation2 + $0x60] sm:$0xff] %v891
      %908 = vst [vmem:[#allocation2 + $0x68] sm:$0xff] %v892
      %909 = vst [vmem:[#allocation2 + $0x70] sm:$0xff] %v893
      %910 = vst [vmem:[#allocation2 + $0x78] sm:$0xff] %v894
      // Predicated region
      $region33: #{bpr_forward.9} parent=27 // pred_check
        %p911 = pneg %p201
      $region34: #{bpr_forward.9} parent=27 // pred_check_branch
        %913 = sbr.rel (%p911) target = $region36
      $region35: #{bpr_forward.9} parent=27 // pred_region
        %v914 = vld [vmem:[#allocation2] sm:$0xff]
        %v915 = vld [vmem:[#allocation2 + $0x8] sm:$0xff]
        %v916 = vld [vmem:[#allocation2 + $0x10] sm:$0xff]
        %v917 = vld [vmem:[#allocation2 + $0x18] sm:$0xff]
        %v918 = vld [vmem:[#allocation2 + $0x20] sm:$0xff]
        %v919 = vld [vmem:[#allocation2 + $0x28] sm:$0xff]
        %v920 = vld [vmem:[#allocation2 + $0x30] sm:$0xff]
        %v921 = vld [vmem:[#allocation2 + $0x38] sm:$0xff]
        %v922 = vld [vmem:[#allocation2 + $0x40] sm:$0xff]
        %v923 = vld [vmem:[#allocation2 + $0x48] sm:$0xff]
        %v924 = vld [vmem:[#allocation2 + $0x50] sm:$0xff]
        %v925 = vld [vmem:[#allocation2 + $0x58] sm:$0xff]
        %v926 = vld [vmem:[#allocation2 + $0x60] sm:$0xff]
        %v927 = vld [vmem:[#allocation2 + $0x68] sm:$0xff]
        %v928 = vld [vmem:[#allocation2 + $0x70] sm:$0xff]
        %v929 = vld [vmem:[#allocation2 + $0x78] sm:$0xff]
        %v930 = vpack.c.bf16 %v915, %v914
        %v931 = vpack.c.bf16 %v917, %v916
        %v932 = vpack.c.bf16 %v919, %v918
        %v933 = vpack.c.bf16 %v921, %v920
        %v934 = vpack.c.bf16 %v923, %v922
        %v935 = vpack.c.bf16 %v925, %v924
        %v936 = vpack.c.bf16 %v927, %v926
        %v937 = vpack.c.bf16 %v929, %v928
        %v946 = vunpack.c.l.b16 %v930
        %v947 = vunpack.c.h.b16 %v930
        %v948 = vunpack.c.l.b16 %v931
        %v949 = vunpack.c.h.b16 %v931
        %v950 = vunpack.c.l.b16 %v932
        %v951 = vunpack.c.h.b16 %v932
        %v952 = vunpack.c.l.b16 %v933
        %v953 = vunpack.c.h.b16 %v933
        %v954 = vunpack.c.l.b16 %v934
        %v955 = vunpack.c.h.b16 %v934
        %v956 = vunpack.c.l.b16 %v935
        %v957 = vunpack.c.h.b16 %v935
        %v958 = vunpack.c.l.b16 %v936
        %v959 = vunpack.c.h.b16 %v936
        %v960 = vunpack.c.l.b16 %v937
        %v961 = vunpack.c.h.b16 %v937
        %v962 = vpack.c.b16 %v946, %v946
        %v963 = vpack.c.b16 %v947, %v947
        %v964 = vpack.c.b16 %v948, %v948
        %v965 = vpack.c.b16 %v949, %v949
        %v966 = vpack.c.b16 %v950, %v950
        %v967 = vpack.c.b16 %v951, %v951
        %v968 = vpack.c.b16 %v952, %v952
        %v969 = vpack.c.b16 %v953, %v953
        %v970 = vpack.c.b16 %v954, %v954
        %v971 = vpack.c.b16 %v955, %v955
        %v972 = vpack.c.b16 %v956, %v956
        %v973 = vpack.c.b16 %v957, %v957
        %v974 = vpack.c.b16 %v958, %v958
        %v975 = vpack.c.b16 %v959, %v959
        %v976 = vpack.c.b16 %v960, %v960
        %v977 = vpack.c.b16 %v961, %v961
        %994 = vst [vmem:[%s198] sm:$0xf] %v962
        %995 = vst [vmem:[%s198 + $0x4] sm:$0xf] %v963
        %996 = vst [vmem:[%s198 + $0x8] sm:$0xf] %v964
        %997 = vst [vmem:[%s198 + $0xc] sm:$0xf] %v965
        %998 = vst [vmem:[%s198 + $0x10] sm:$0xf] %v966
        %999 = vst [vmem:[%s198 + $0x14] sm:$0xf] %v967
        %1000 = vst [vmem:[%s198 + $0x18] sm:$0xf] %v968
        %1001 = vst [vmem:[%s198 + $0x1c] sm:$0xf] %v969
        %1002 = vst [vmem:[%s198 + $0x20] sm:$0xf] %v970
        %1003 = vst [vmem:[%s198 + $0x24] sm:$0xf] %v971
        %1004 = vst [vmem:[%s198 + $0x28] sm:$0xf] %v972
        %1005 = vst [vmem:[%s198 + $0x2c] sm:$0xf] %v973
        %1006 = vst [vmem:[%s198 + $0x30] sm:$0xf] %v974
        %1007 = vst [vmem:[%s198 + $0x34] sm:$0xf] %v975
        %1008 = vst [vmem:[%s198 + $0x38] sm:$0xf] %v976
        %1009 = vst [vmem:[%s198 + $0x3c] sm:$0xf] %v977
      $region36: #{bpr_forward.9} parent=27 // pred_fallthru
        _
      %s1010 = smul.u32 16, %s17
      %p1011 = scmp.lt.s32.totalorder %s1010, 127
      %s1012 = scalar_select %p1011, %s1010, 127
      %s1013 = smul.addr %s1012, 4
      %s1014 = scalar_lea.vmem %s2, %s1013
      // Predicated region
      $region37: #{bpr_forward.9} parent=27 // pred_check
        %p1015 = pneg %p97
      $region38: #{bpr_forward.9} parent=27 // pred_check_branch
        %1017 = sbr.rel (%p1015) target = $region40
      $region39: #{bpr_forward.9} parent=27 // pred_region
        %s1018 = smul.u32 16, %s17
      $region40: #{bpr_forward.9} parent=27 // pred_fallthru
        _
    $region28: #{bpr_forward.9} parent=5 // pred_fallthru
      _
    %p1019 = scmp.le.s32.totalorder 2, %s8
    // Predicated region
    $region41: #{bpr_forward.9} parent=5 // pred_check
      %p1020 = pneg %p1019
    $region42: #{bpr_forward.9} parent=5 // pred_check_branch
      %1022 = sbr.rel (%p1020) target = $region44
    $region43: #{bpr_forward.9} parent=5 // pred_region
      %s1023 = ssub.s32 %s8, 2
      // Predicated region
      $region45: #{bpr_forward.9} parent=43 // pred_check
        %p1024 = pneg %p103
      $region46: #{bpr_forward.9} parent=43 // pred_check_branch
        %1026 = sbr.rel (%p1024) target = $region48
      $region47: #{bpr_forward.9} parent=43 // pred_region
        %s1027 = smul.u32 16, %s19
        %p1028 = scmp.lt.s32.totalorder %s1027, 127
        %s1029 = scalar_select %p1028, %s1027, 127
        %s1030 = smul.addr %s1029, 4
        %s1031 = scalar_lea.vmem %s2, %s1030
      $region48: #{bpr_forward.9} parent=43 // pred_fallthru
        _
    $region44: #{bpr_forward.9} parent=5 // pred_fallthru
      _
  $region6: #{bpr_forward.9} parent=0 // loop_footer
    %s12 = sadd.s32 1, %s8
  $region7: #{bpr_forward.9} parent=0 // loop_footer_branch
    %7 = sbr.rel target = $region3
  $region8: #{bpr_forward.9} parent=0 // loop_exit
    _

// kernel: bpr_forward.7
$region0: #{bpr_forward.7}
  #allocation0 [shape = 'u32[]', space=smem, size = 0x4, offset = 0x4, fixed_abs, tag = 'smem constant byte address 0x4 - core index']
  #allocation1 [shape = 'u32[144,128]{1,0:T(1,128)}', space=vmem, size = 0x12000, scoped, tag = 'internal scratch']
  #allocation2 [shape = 'f32[128,128]{1,0:T(8,128)}', space=vmem, size = 0x10000, scoped, tag = 'scratch operand']
  %s0 = inlined_call_operand.vmem [shape: bf16[1024,512], index: 0, kind: input, shape index: {}]
  %s1 = inlined_call_operand.vmem [shape: f32[512,128], index: 1, kind: input, shape index: {}]
  %s2 = inlined_call_operand.vmem [shape: bf16[1024,128], index: 2, kind: output, shape index: {}]
  %s3 = sld [smem:[#allocation0]]
  $region49: #{bpr_forward.7} parent=0
    _
  %s5 = ssub.s32 1, %s3
  %s6 = scalar_select 0, %s5, %s3
  loop: start=0, step=1, limit=10
  $region2: #{bpr_forward.7} parent=0 // loop_pre_header
    _
  $region3: #{bpr_forward.7} parent=0 // loop_header
    %s8 = sphi 0, %s12
    %p9 = scmp.ge.s32.totalorder %s8, 10
    %s15 = sphi 0, %s27
    %s16 = sphi 0, %s23
    %s17 = sphi 0, %s15
    %s18 = sphi 0, %s16
    %s19 = sphi 0, %s17
    %s20 = sphi 0, %s18
    %s32 = sphi 0, %s34
    %s35 = sphi 0, %s32
    %s36 = sphi 0, %s35
    %s52 = sphi 0, %s36
    %s58 = sphi 0, %s60
    %s61 = sphi 0, %s58
    %s62 = sphi 0, %s61
    %s78 = sphi 0, %s62
    %s84 = sphi 0, %s86
    %s87 = sphi 0, %s84
    %s88 = sphi 0, %s87
    %s104 = sphi 0, %s88
  $region4: #{bpr_forward.7} parent=0 // loop_header_branch
    %11 = sbr.rel (%p9) target = $region8
  $region5: #{bpr_forward.7} parent=0 // loop_body
    %s13 = ssub.s32 %s8, 1
    %s14 = ssub.s32 %s8, 2
    %s21 = sadd.s32 1, %s16
    %p22 = scmp.ge.s32.totalorder %s21, 1
    %s23 = scalar_select %p22, 0, %s21
    %s24 = sadd.s32 1, %s15
    %s25 = scalar_select %p22, %s24, %s15
    %p26 = scmp.ge.s32.totalorder %s25, 8
    %s27 = scalar_select %p26, 0, %s25
    %s28 = ssub.s32 %s15, %s27
    %s29 = ssub.s32 %s16, %s23
    %s30 = sor.u32 %s28, %s29
    %p31 = scmp.eq.s32.totalorder %s30, 0
    %s33 = sadd.s32 %s32, 1
    %s34 = scalar_select %p31, %s32, %s33
    %p37 = pneg %p31
    %p38 = scmp.eq.s32.totalorder %s8, 7
    %p39 = por %p37, %p38
    %p40 = scmp.ne.s32.totalorder %s32, %s35
    %p41 = scmp.eq.s32.totalorder %s8, 0
    %p42 = por %p40, %p41
    %p43 = scmp.ne.s32.totalorder %s32, %s35
    %p44 = scmp.eq.s32.totalorder %s13, 7
    %p45 = por %p43, %p44
    %p46 = scmp.ne.s32.totalorder %s35, %s36
    %p47 = scmp.eq.s32.totalorder %s13, 0
    %p48 = por %p46, %p47
    %p49 = scmp.ne.s32.totalorder %s35, %s36
    %p50 = scmp.eq.s32.totalorder %s14, 7
    %p51 = por %p49, %p50
    %p53 = scmp.ne.s32.totalorder %s36, %s52
    %p54 = scmp.eq.s32.totalorder %s14, 0
    %p55 = por %p53, %p54
    %s56 = ssub.s32 %s16, %s23
    %p57 = scmp.eq.s32.totalorder %s56, 0
    %s59 = sadd.s32 %s58, 1
    %s60 = scalar_select %p57, %s58, %s59
    %p63 = pneg %p57
    %p64 = scmp.eq.s32.totalorder %s8, 7
    %p65 = por %p63, %p64
    %p66 = scmp.ne.s32.totalorder %s58, %s61
    %p67 = scmp.eq.s32.totalorder %s8, 0
    %p68 = por %p66, %p67
    %p69 = scmp.ne.s32.totalorder %s58, %s61
    %p70 = scmp.eq.s32.totalorder %s13, 7
    %p71 = por %p69, %p70
    %p72 = scmp.ne.s32.totalorder %s61, %s62
    %p73 = scmp.eq.s32.totalorder %s13, 0
    %p74 = por %p72, %p73
    %p75 = scmp.ne.s32.totalorder %s61, %s62
    %p76 = scmp.eq.s32.totalorder %s14, 7
    %p77 = por %p75, %p76
    %p79 = scmp.ne.s32.totalorder %s62, %s78
    %p80 = scmp.eq.s32.totalorder %s14, 0
    %p81 = por %p79, %p80
    %s82 = ssub.s32 %s15, %s27
    %p83 = scmp.eq.s32.totalorder %s82, 0
    %s85 = sadd.s32 %s84, 1
    %s86 = scalar_select %p83, %s84, %s85
    %p89 = pneg %p83
    %p90 = scmp.eq.s32.totalorder %s8, 7
    %p91 = por %p89, %p90
    %p92 = scmp.ne.s32.totalorder %s84, %s87
    %p93 = scmp.eq.s32.totalorder %s8, 0
    %p94 = por %p92, %p93
    %p95 = scmp.ne.s32.totalorder %s84, %s87
    %p96 = scmp.eq.s32.totalorder %s13, 7
    %p97 = por %p95, %p96
    %p98 = scmp.ne.s32.totalorder %s87, %s88
    %p99 = scmp.eq.s32.totalorder %s13, 0
    %p100 = por %p98, %p99
    %p101 = scmp.ne.s32.totalorder %s87, %s88
    %p102 = scmp.eq.s32.totalorder %s14, 7
    %p103 = por %p101, %p102
    %p105 = scmp.ne.s32.totalorder %s88, %s104
    %p106 = scmp.eq.s32.totalorder %s14, 0
    %p107 = por %p105, %p106
    %p108 = scmp.le.s32.totalorder 1, %s8
    %p109 = scmp.lt.s32.totalorder %s8, 9
    %p110 = pnand %p108, %p109
    %p111 = pneg %p110
    // Predicated region
    $region9: #{bpr_forward.7} parent=5 // pred_check
      _
    $region10: #{bpr_forward.7} parent=5 // pred_check_branch
      %113 = sbr.rel (%p110) target = $region12
    $region11: #{bpr_forward.7} parent=5 // pred_region
      %s114 = ssub.s32 %s8, 1
      // Predicated region
      $region13: #{bpr_forward.7} parent=11 // pred_check
        %p115 = pneg %p74
      $region14: #{bpr_forward.7} parent=11 // pred_check_branch
        %117 = sbr.rel (%p115) target = $region16
      $region15: #{bpr_forward.7} parent=11 // pred_region
        %s118 = smul.u32 64, %s18
        %p119 = scmp.lt.s32.totalorder %s118, 63
        %s120 = scalar_select %p119, %s118, 63
        %s121 = smul.addr %s120, 8
        %s122 = scalar_lea.vmem %s1, %s121
        %s123 = smul.u32 64, %s18
      $region16: #{bpr_forward.7} parent=11 // pred_fallthru
        _
    $region12: #{bpr_forward.7} parent=5 // pred_fallthru
      _
    %p124 = scmp.lt.s32.totalorder %s8, 8
    // Predicated region
    $region17: #{bpr_forward.7} parent=5 // pred_check
      %p125 = pneg %p124
    $region18: #{bpr_forward.7} parent=5 // pred_check_branch
      %127 = sbr.rel (%p125) target = $region20
    $region19: #{bpr_forward.7} parent=5 // pred_region
      // Predicated region
      $region21: #{bpr_forward.7} parent=19 // pred_check
        %p128 = pneg %p42
      $region22: #{bpr_forward.7} parent=19 // pred_check_branch
        %130 = sbr.rel (%p128) target = $region24
      $region23: #{bpr_forward.7} parent=19 // pred_region
        %s131 = smul.u32 16, %s15
        %s132 = smul.u32 4, %s16
        %p133 = scmp.lt.s32.totalorder %s131, 127
        %s134 = scalar_select %p133, %s131, 127
        %p135 = scmp.lt.s32.totalorder %s132, 3
        %s136 = scalar_select %p135, %s132, 3
        %s137 = smul.addr %s134, 4
        %s138 = sadd.s32 %s136, %s137
        %s139 = smul.addr %s138, 4
        %s140 = scalar_lea.vmem %s0, %s139
        %s141 = smul.u32 16, %s15
        %s142 = smul.u32 4, %s16
      $region24: #{bpr_forward.7} parent=19 // pred_fallthru
        _
    $region20: #{bpr_forward.7} parent=5 // pred_fallthru
      _
    %p143 = scmp.le.s32.totalorder 1, %s8
    %p144 = scmp.lt.s32.totalorder %s8, 9
    %p145 = pnand %p143, %p144
    %p146 = pneg %p145
    // Predicated region
    $region25: #{bpr_forward.7} parent=5 // pred_check
      _
    $region26: #{bpr_forward.7} parent=5 // pred_check_branch
      %148 = sbr.rel (%p145) target = $region28
    $region27: #{bpr_forward.7} parent=5 // pred_region
      %s149 = ssub.s32 %s8, 1
      %s150 = smul.u32 16, %s17
      %s151 = smul.u32 4, %s18
      %p152 = scmp.lt.s32.totalorder %s150, 127
      %s153 = scalar_select %p152, %s150, 127
      %p154 = scmp.lt.s32.totalorder %s151, 3
      %s155 = scalar_select %p154, %s151, 3
      %s156 = smul.addr %s153, 4
      %s157 = sadd.s32 %s155, %s156
      %s158 = smul.addr %s157, 4
      %s159 = scalar_lea.vmem %s0, %s158
      %p160 = pneg %p48
      %p161 = pneg %p45
      %s162 = smul.u32 64, %s18
      %p163 = scmp.lt.s32.totalorder %s162, 63
      %s164 = scalar_select %p163, %s162, 63
      %s165 = smul.addr %s164, 8
      %s166 = scalar_lea.vmem %s1, %s165
      %p167 = pneg %p74
      %p168 = pneg %p71
      %p169 = pneg %p100
      %p170 = pneg %p97
      %s171 = smul.u32 16, %s17
      %p172 = scmp.lt.s32.totalorder %s171, 127
      %s173 = scalar_select %p172, %s171, 127
      %s174 = smul.addr %s173, 4
      %s175 = scalar_lea.vmem %s2, %s174
      %s176 = smul.u32 16, %s17
      %s177 = smul.u32 4, %s18
      %p178 = scmp.lt.s32.totalorder %s176, 127
      %s179 = scalar_select %p178, %s176, 127
      %p180 = scmp.lt.s32.totalorder %s177, 3
      %s181 = scalar_select %p180, %s177, 3
      %s182 = smul.addr %s179, 4
      %s183 = sadd.s32 %s181, %s182
      %s184 = smul.addr %s183, 4
      %s185 = scalar_lea.vmem %s0, %s184
      %s186 = smul.u32 16, %s17
      %s187 = smul.u32 4, %s18
      %s188 = smul.u32 64, %s18
      %p189 = scmp.lt.s32.totalorder %s188, 63
      %s190 = scalar_select %p189, %s188, 63
      %s191 = smul.addr %s190, 8
      %s192 = scalar_lea.vmem %s1, %s191
      %s193 = smul.u32 64, %s18
      %s194 = smul.u32 16, %s17
      %p195 = scmp.lt.s32.totalorder %s194, 127
      %s196 = scalar_select %p195, %s194, 127
      %s197 = smul.addr %s196, 4
      %s198 = scalar_lea.vmem %s2, %s197
      %s199 = smul.u32 16, %s17
      %p201 = scmp.eq.s32.totalorder %s18, 0
      // Predicated region
      $region29: #{bpr_forward.7} parent=27 // pred_check
        %p202 = pneg %p201
      $region30: #{bpr_forward.7} parent=27 // pred_check_branch
        %204 = sbr.rel (%p202) target = $region32
      $region31: #{bpr_forward.7} parent=27 // pred_region
        %205 = vst [vmem:[#allocation2] sm:$0xff] 0.0
        %206 = vst [vmem:[#allocation2 + $0x8] sm:$0xff] 0.0
        %207 = vst [vmem:[#allocation2 + $0x10] sm:$0xff] 0.0
        %208 = vst [vmem:[#allocation2 + $0x18] sm:$0xff] 0.0
        %209 = vst [vmem:[#allocation2 + $0x20] sm:$0xff] 0.0
        %210 = vst [vmem:[#allocation2 + $0x28] sm:$0xff] 0.0
        %211 = vst [vmem:[#allocation2 + $0x30] sm:$0xff] 0.0
        %212 = vst [vmem:[#allocation2 + $0x38] sm:$0xff] 0.0
        %213 = vst [vmem:[#allocation2 + $0x40] sm:$0xff] 0.0
        %214 = vst [vmem:[#allocation2 + $0x48] sm:$0xff] 0.0
        %215 = vst [vmem:[#allocation2 + $0x50] sm:$0xff] 0.0
        %216 = vst [vmem:[#allocation2 + $0x58] sm:$0xff] 0.0
        %217 = vst [vmem:[#allocation2 + $0x60] sm:$0xff] 0.0
        %218 = vst [vmem:[#allocation2 + $0x68] sm:$0xff] 0.0
        %219 = vst [vmem:[#allocation2 + $0x70] sm:$0xff] 0.0
        %220 = vst [vmem:[#allocation2 + $0x78] sm:$0xff] 0.0
      $region32: #{bpr_forward.7} parent=27 // pred_fallthru
        _
      %v221 = vld [vmem:[#allocation2] sm:$0xff]
      %v222 = vld [vmem:[#allocation2 + $0x8] sm:$0xff]
      %v223 = vld [vmem:[#allocation2 + $0x10] sm:$0xff]
      %v224 = vld [vmem:[#allocation2 + $0x18] sm:$0xff]
      %v225 = vld [vmem:[#allocation2 + $0x20] sm:$0xff]
      %v226 = vld [vmem:[#allocation2 + $0x28] sm:$0xff]
      %v227 = vld [vmem:[#allocation2 + $0x30] sm:$0xff]
      %v228 = vld [vmem:[#allocation2 + $0x38] sm:$0xff]
      %v229 = vld [vmem:[#allocation2 + $0x40] sm:$0xff]
      %v230 = vld [vmem:[#allocation2 + $0x48] sm:$0xff]
      %v231 = vld [vmem:[#allocation2 + $0x50] sm:$0xff]
      %v232 = vld [vmem:[#allocation2 + $0x58] sm:$0xff]
      %v233 = vld [vmem:[#allocation2 + $0x60] sm:$0xff]
      %v234 = vld [vmem:[#allocation2 + $0x68] sm:$0xff]
      %v235 = vld [vmem:[#allocation2 + $0x70] sm:$0xff]
      %v236 = vld [vmem:[#allocation2 + $0x78] sm:$0xff]
      %v237 = vld [vmem:[%s185] sm:$0xff]
      %v238 = vld [vmem:[%s185 + $0x8] sm:$0xff]
      %v239 = vld [vmem:[%s185 + $0x10] sm:$0xff]
      %v240 = vld [vmem:[%s185 + $0x18] sm:$0xff]
      %v241 = vld [vmem:[%s185 + $0x20] sm:$0xff]
      %v242 = vld [vmem:[%s185 + $0x28] sm:$0xff]
      %v243 = vld [vmem:[%s185 + $0x30] sm:$0xff]
      %v244 = vld [vmem:[%s185 + $0x38] sm:$0xff]
      %v245 = vld [vmem:[%s185 + $0x40] sm:$0xff]
      %v246 = vld [vmem:[%s185 + $0x48] sm:$0xff]
      %v247 = vld [vmem:[%s185 + $0x50] sm:$0xff]
      %v248 = vld [vmem:[%s185 + $0x58] sm:$0xff]
      %v249 = vld [vmem:[%s185 + $0x60] sm:$0xff]
      %v250 = vld [vmem:[%s185 + $0x68] sm:$0xff]
      %v251 = vld [vmem:[%s185 + $0x70] sm:$0xff]
      %v252 = vld [vmem:[%s185 + $0x78] sm:$0xff]
      %v253 = vld [vmem:[%s185 + $0x80] sm:$0xff]
      %v254 = vld [vmem:[%s185 + $0x88] sm:$0xff]
      %v255 = vld [vmem:[%s185 + $0x90] sm:$0xff]
      %v256 = vld [vmem:[%s185 + $0x98] sm:$0xff]
      %v257 = vld [vmem:[%s185 + $0xa0] sm:$0xff]
      %v258 = vld [vmem:[%s185 + $0xa8] sm:$0xff]
      %v259 = vld [vmem:[%s185 + $0xb0] sm:$0xff]
      %v260 = vld [vmem:[%s185 + $0xb8] sm:$0xff]
      %v261 = vld [vmem:[%s185 + $0xc0] sm:$0xff]
      %v262 = vld [vmem:[%s185 + $0xc8] sm:$0xff]
      %v263 = vld [vmem:[%s185 + $0xd0] sm:$0xff]
      %v264 = vld [vmem:[%s185 + $0xd8] sm:$0xff]
      %v265 = vld [vmem:[%s185 + $0xe0] sm:$0xff]
      %v266 = vld [vmem:[%s185 + $0xe8] sm:$0xff]
      %v267 = vld [vmem:[%s185 + $0xf0] sm:$0xff]
      %v268 = vld [vmem:[%s185 + $0xf8] sm:$0xff]
      %v269 = vld [vmem:[%s192] sm:$0xff]
      %v270 = vld [vmem:[%s192 + $0x8] sm:$0xff]
      %v271 = vld [vmem:[%s192 + $0x10] sm:$0xff]
      %v272 = vld [vmem:[%s192 + $0x18] sm:$0xff]
      %v273 = vld [vmem:[%s192 + $0x20] sm:$0xff]
      %v274 = vld [vmem:[%s192 + $0x28] sm:$0xff]
      %v275 = vld [vmem:[%s192 + $0x30] sm:$0xff]
      %v276 = vld [vmem:[%s192 + $0x38] sm:$0xff]
      %v277 = vld [vmem:[%s192 + $0x40] sm:$0xff]
      %v278 = vld [vmem:[%s192 + $0x48] sm:$0xff]
      %v279 = vld [vmem:[%s192 + $0x50] sm:$0xff]
      %v280 = vld [vmem:[%s192 + $0x58] sm:$0xff]
      %v281 = vld [vmem:[%s192 + $0x60] sm:$0xff]
      %v282 = vld [vmem:[%s192 + $0x68] sm:$0xff]
      %v283 = vld [vmem:[%s192 + $0x70] sm:$0xff]
      %v284 = vld [vmem:[%s192 + $0x78] sm:$0xff]
      %v285 = vld [vmem:[%s192 + $0x80] sm:$0xff]
      %v286 = vld [vmem:[%s192 + $0x88] sm:$0xff]
      %v287 = vld [vmem:[%s192 + $0x90] sm:$0xff]
      %v288 = vld [vmem:[%s192 + $0x98] sm:$0xff]
      %v289 = vld [vmem:[%s192 + $0xa0] sm:$0xff]
      %v290 = vld [vmem:[%s192 + $0xa8] sm:$0xff]
      %v291 = vld [vmem:[%s192 + $0xb0] sm:$0xff]
      %v292 = vld [vmem:[%s192 + $0xb8] sm:$0xff]
      %v293 = vld [vmem:[%s192 + $0xc0] sm:$0xff]
      %v294 = vld [vmem:[%s192 + $0xc8] sm:$0xff]
      %v295 = vld [vmem:[%s192 + $0xd0] sm:$0xff]
      %v296 = vld [vmem:[%s192 + $0xd8] sm:$0xff]
      %v297 = vld [vmem:[%s192 + $0xe0] sm:$0xff]
      %v298 = vld [vmem:[%s192 + $0xe8] sm:$0xff]
      %v299 = vld [vmem:[%s192 + $0xf0] sm:$0xff]
      %v300 = vld [vmem:[%s192 + $0xf8] sm:$0xff]
      %v301 = vld [vmem:[%s192 + $0x100] sm:$0xff]
      %v302 = vld [vmem:[%s192 + $0x108] sm:$0xff]
      %v303 = vld [vmem:[%s192 + $0x110] sm:$0xff]
      %v304 = vld [vmem:[%s192 + $0x118] sm:$0xff]
      %v305 = vld [vmem:[%s192 + $0x120] sm:$0xff]
      %v306 = vld [vmem:[%s192 + $0x128] sm:$0xff]
      %v307 = vld [vmem:[%s192 + $0x130] sm:$0xff]
      %v308 = vld [vmem:[%s192 + $0x138] sm:$0xff]
      %v309 = vld [vmem:[%s192 + $0x140] sm:$0xff]
      %v310 = vld [vmem:[%s192 + $0x148] sm:$0xff]
      %v311 = vld [vmem:[%s192 + $0x150] sm:$0xff]
      %v312 = vld [vmem:[%s192 + $0x158] sm:$0xff]
      %v313 = vld [vmem:[%s192 + $0x160] sm:$0xff]
      %v314 = vld [vmem:[%s192 + $0x168] sm:$0xff]
      %v315 = vld [vmem:[%s192 + $0x170] sm:$0xff]
      %v316 = vld [vmem:[%s192 + $0x178] sm:$0xff]
      %v317 = vld [vmem:[%s192 + $0x180] sm:$0xff]
      %v318 = vld [vmem:[%s192 + $0x188] sm:$0xff]
      %v319 = vld [vmem:[%s192 + $0x190] sm:$0xff]
      %v320 = vld [vmem:[%s192 + $0x198] sm:$0xff]
      %v321 = vld [vmem:[%s192 + $0x1a0] sm:$0xff]
      %v322 = vld [vmem:[%s192 + $0x1a8] sm:$0xff]
      %v323 = vld [vmem:[%s192 + $0x1b0] sm:$0xff]
      %v324 = vld [vmem:[%s192 + $0x1b8] sm:$0xff]
      %v325 = vld [vmem:[%s192 + $0x1c0] sm:$0xff]
      %v326 = vld [vmem:[%s192 + $0x1c8] sm:$0xff]
      %v327 = vld [vmem:[%s192 + $0x1d0] sm:$0xff]
      %v328 = vld [vmem:[%s192 + $0x1d8] sm:$0xff]
      %v329 = vld [vmem:[%s192 + $0x1e0] sm:$0xff]
      %v330 = vld [vmem:[%s192 + $0x1e8] sm:$0xff]
      %v331 = vld [vmem:[%s192 + $0x1f0] sm:$0xff]
      %v332 = vld [vmem:[%s192 + $0x1f8] sm:$0xff]
      %v333 = vpack.c.bf16 %v270, %v269
      %v334 = vpack.c.bf16 %v272, %v271
      %v335 = vpack.c.bf16 %v274, %v273
      %v336 = vpack.c.bf16 %v276, %v275
      %v337 = vpack.c.bf16 %v278, %v277
      %v338 = vpack.c.bf16 %v280, %v279
      %v339 = vpack.c.bf16 %v282, %v281
      %v340 = vpack.c.bf16 %v284, %v283
      %v341 = vpack.c.bf16 %v286, %v285
      %v342 = vpack.c.bf16 %v288, %v287
      %v343 = vpack.c.bf16 %v290, %v289
      %v344 = vpack.c.bf16 %v292, %v291
      %v345 = vpack.c.bf16 %v294, %v293
      %v346 = vpack.c.bf16 %v296, %v295
      %v347 = vpack.c.bf16 %v298, %v297
      %v348 = vpack.c.bf16 %v300, %v299
      %v349 = vpack.c.bf16 %v302, %v301
      %v350 = vpack.c.bf16 %v304, %v303
      %v351 = vpack.c.bf16 %v306, %v305
      %v352 = vpack.c.bf16 %v308, %v307
      %v353 = vpack.c.bf16 %v310, %v309
      %v354 = vpack.c.bf16 %v312, %v311
      %v355 = vpack.c.bf16 %v314, %v313
      %v356 = vpack.c.bf16 %v316, %v315
      %v357 = vpack.c.bf16 %v318, %v317
      %v358 = vpack.c.bf16 %v320, %v319
      %v359 = vpack.c.bf16 %v322, %v321
      %v360 = vpack.c.bf16 %v324, %v323
      %v361 = vpack.c.bf16 %v326, %v325
      %v362 = vpack.c.bf16 %v328, %v327
      %v363 = vpack.c.bf16 %v330, %v329
      %v364 = vpack.c.bf16 %v332, %v331
      %v397 = vunpack.c.l.b16 %v237
      %v398 = vunpack.c.h.b16 %v237
      %v399 = vunpack.c.l.b16 %v238
      %v400 = vunpack.c.h.b16 %v238
      %v401 = vunpack.c.l.b16 %v239
      %v402 = vunpack.c.h.b16 %v239
      %v403 = vunpack.c.l.b16 %v240
      %v404 = vunpack.c.h.b16 %v240
      %v405 = vunpack.c.l.b16 %v241
      %v406 = vunpack.c.h.b16 %v241
      %v407 = vunpack.c.l.b16 %v242
      %v408 = vunpack.c.h.b16 %v242
      %v409 = vunpack.c.l.b16 %v243
      %v410 = vunpack.c.h.b16 %v243
      %v411 = vunpack.c.l.b16 %v244
      %v412 = vunpack.c.h.b16 %v244
      %v413 = vunpack.c.l.b16 %v245
      %v414 = vunpack.c.h.b16 %v245
      %v415 = vunpack.c.l.b16 %v246
      %v416 = vunpack.c.h.b16 %v246
      %v417 = vunpack.c.l.b16 %v247
      %v418 = vunpack.c.h.b16 %v247
      %v419 = vunpack.c.l.b16 %v248
      %v420 = vunpack.c.h.b16 %v248
      %v421 = vunpack.c.l.b16 %v249
      %v422 = vunpack.c.h.b16 %v249
      %v423 = vunpack.c.l.b16 %v250
      %v424 = vunpack.c.h.b16 %v250
      %v425 = vunpack.c.l.b16 %v251
      %v426 = vunpack.c.h.b16 %v251
      %v427 = vunpack.c.l.b16 %v252
      %v428 = vunpack.c.h.b16 %v252
      %v429 = vunpack.c.l.b16 %v253
      %v430 = vunpack.c.h.b16 %v253
      %v431 = vunpack.c.l.b16 %v254
      %v432 = vunpack.c.h.b16 %v254
      %v433 = vunpack.c.l.b16 %v255
      %v434 = vunpack.c.h.b16 %v255
      %v435 = vunpack.c.l.b16 %v256
      %v436 = vunpack.c.h.b16 %v256
      %v437 = vunpack.c.l.b16 %v257
      %v438 = vunpack.c.h.b16 %v257
      %v439 = vunpack.c.l.b16 %v258
      %v440 = vunpack.c.h.b16 %v258
      %v441 = vunpack.c.l.b16 %v259
      %v442 = vunpack.c.h.b16 %v259
      %v443 = vunpack.c.l.b16 %v260
      %v444 = vunpack.c.h.b16 %v260
      %v445 = vunpack.c.l.b16 %v261
      %v446 = vunpack.c.h.b16 %v261
      %v447 = vunpack.c.l.b16 %v262
      %v448 = vunpack.c.h.b16 %v262
      %v449 = vunpack.c.l.b16 %v263
      %v450 = vunpack.c.h.b16 %v263
      %v451 = vunpack.c.l.b16 %v264
      %v452 = vunpack.c.h.b16 %v264
      %v453 = vunpack.c.l.b16 %v265
      %v454 = vunpack.c.h.b16 %v265
      %v455 = vunpack.c.l.b16 %v266
      %v456 = vunpack.c.h.b16 %v266
      %v457 = vunpack.c.l.b16 %v267
      %v458 = vunpack.c.h.b16 %v267
      %v459 = vunpack.c.l.b16 %v268
      %v460 = vunpack.c.h.b16 %v268
      %v461 = vpack.c.b16 %v401, %v397
      %v462 = vpack.c.b16 %v402, %v398
      %v463 = vpack.c.b16 %v403, %v399
      %v464 = vpack.c.b16 %v404, %v400
      %v465 = vpack.c.b16 %v409, %v405
      %v466 = vpack.c.b16 %v410, %v406
      %v467 = vpack.c.b16 %v411, %v407
      %v468 = vpack.c.b16 %v412, %v408
      %v469 = vpack.c.b16 %v417, %v413
      %v470 = vpack.c.b16 %v418, %v414
      %v471 = vpack.c.b16 %v419, %v415
      %v472 = vpack.c.b16 %v420, %v416
      %v473 = vpack.c.b16 %v425, %v421
      %v474 = vpack.c.b16 %v426, %v422
      %v475 = vpack.c.b16 %v427, %v423
      %v476 = vpack.c.b16 %v428, %v424
      %v477 = vpack.c.b16 %v433, %v429
      %v478 = vpack.c.b16 %v434, %v430
      %v479 = vpack.c.b16 %v435, %v431
      %v480 = vpack.c.b16 %v436, %v432
      %v481 = vpack.c.b16 %v441, %v437
      %v482 = vpack.c.b16 %v442, %v438
      %v483 = vpack.c.b16 %v443, %v439
      %v484 = vpack.c.b16 %v444, %v440
      %v485 = vpack.c.b16 %v449, %v445
      %v486 = vpack.c.b16 %v450, %v446
      %v487 = vpack.c.b16 %v451, %v447
      %v488 = vpack.c.b16 %v452, %v448
      %v489 = vpack.c.b16 %v457, %v453
      %v490 = vpack.c.b16 %v458, %v454
      %v491 = vpack.c.b16 %v459, %v455
      %v492 = vpack.c.b16 %v460, %v456
      %525 = vmatprep.subr.bf16.mxu0 0
      %526 = vmatpush1.bf16.msra.mxu0 %v340
      %527 = vmatprep.subr.bf16.mxu0 0
      %528 = vmatpush1.bf16.msra.mxu0 %v339
      %529 = vmatprep.subr.bf16.mxu0 0
      %530 = vmatpush1.bf16.msra.mxu0 %v338
      %531 = vmatprep.subr.bf16.mxu0 0
      %532 = vmatpush1.bf16.msra.mxu0 %v337
      %533 = vmatprep.subr.bf16.mxu0 0
      %534 = vmatpush1.bf16.msra.mxu0 %v336
      %535 = vmatprep.subr.bf16.mxu0 0
      %536 = vmatpush1.bf16.msra.mxu0 %v335
      %537 = vmatprep.subr.bf16.mxu0 0
      %538 = vmatpush1.bf16.msra.mxu0 %v334
      %539 = vmatprep.subr.bf16.mxu0 0
      %540 = vmatpush1.bf16.msra.mxu0 %v333
      %541 = vmatprep.subr.bf16.mxu0 0
      %542 = vmatpush2.bf16.msra.mxu0 %v348
      %543 = vmatprep.subr.bf16.mxu0 0
      %544 = vmatpush2.bf16.msra.mxu0 %v347
      %545 = vmatprep.subr.bf16.mxu0 0
      %546 = vmatpush2.bf16.msra.mxu0 %v346
      %547 = vmatprep.subr.bf16.mxu0 0
      %548 = vmatpush2.bf16.msra.mxu0 %v345
      %549 = vmatprep.subr.bf16.mxu0 0
      %550 = vmatpush2.bf16.msra.mxu0 %v344
      %551 = vmatprep.subr.bf16.mxu0 0
      %552 = vmatpush2.bf16.msra.mxu0 %v343
      %553 = vmatprep.subr.bf16.mxu0 0
      %554 = vmatpush2.bf16.msra.mxu0 %v342
      %555 = vmatprep.subr.bf16.mxu0 0
      %556 = vmatpush2.bf16.msra.mxu0 %v341
      %557 = vmatprep.mubr.bf16.mxu0 %v462
      %558 = vmatmul.mubr.bf16.gmra.mxu0 %v461
      %v559 = vpop.f32.mrf.mxu0
      %v560 = vadd.f32 0.0, %v559
      %v561 = vpop.f32.mrf.mxu0
      %v562 = vpop.f32.mrf.mxu0
      %v563 = vadd.f32 0.0, %v562
      %v564 = vpop.f32.mrf.mxu0
      %565 = vmatprep.mubr.bf16.mxu0 %v466
      %566 = vmatmul.mubr.bf16.gmra.mxu0 %v465
      %v567 = vpop.f32.mrf.mxu0
      %v568 = vadd.f32 0.0, %v567
      %v569 = vpop.f32.mrf.mxu0
      %v570 = vpop.f32.mrf.mxu0
      %v571 = vadd.f32 0.0, %v570
      %v572 = vpop.f32.mrf.mxu0
      %573 = vmatprep.mubr.bf16.mxu0 %v470
      %574 = vmatmul.mubr.bf16.gmra.mxu0 %v469
      %v575 = vpop.f32.mrf.mxu0
      %v576 = vadd.f32 0.0, %v575
      %v577 = vpop.f32.mrf.mxu0
      %v578 = vpop.f32.mrf.mxu0
      %v579 = vadd.f32 0.0, %v578
      %v580 = vpop.f32.mrf.mxu0
      %581 = vmatprep.mubr.bf16.mxu0 %v474
      %582 = vmatmul.mubr.bf16.gmra.mxu0 %v473
      %v583 = vpop.f32.mrf.mxu0
      %v584 = vadd.f32 0.0, %v583
      %v585 = vpop.f32.mrf.mxu0
      %v586 = vpop.f32.mrf.mxu0
      %v587 = vadd.f32 0.0, %v586
      %v588 = vpop.f32.mrf.mxu0
      %589 = vmatprep.mubr.bf16.mxu0 %v478
      %590 = vmatmul.mubr.bf16.gmra.mxu0 %v477
      %v591 = vpop.f32.mrf.mxu0
      %v592 = vadd.f32 0.0, %v591
      %v593 = vpop.f32.mrf.mxu0
      %v594 = vpop.f32.mrf.mxu0
      %v595 = vadd.f32 0.0, %v594
      %v596 = vpop.f32.mrf.mxu0
      %597 = vmatprep.mubr.bf16.mxu0 %v482
      %598 = vmatmul.mubr.bf16.gmra.mxu0 %v481
      %v599 = vpop.f32.mrf.mxu0
      %v600 = vadd.f32 0.0, %v599
      %v601 = vpop.f32.mrf.mxu0
      %v602 = vpop.f32.mrf.mxu0
      %v603 = vadd.f32 0.0, %v602
      %v604 = vpop.f32.mrf.mxu0
      %605 = vmatprep.mubr.bf16.mxu0 %v486
      %606 = vmatmul.mubr.bf16.gmra.mxu0 %v485
      %v607 = vpop.f32.mrf.mxu0
      %v608 = vadd.f32 0.0, %v607
      %v609 = vpop.f32.mrf.mxu0
      %v610 = vpop.f32.mrf.mxu0
      %v611 = vadd.f32 0.0, %v610
      %v612 = vpop.f32.mrf.mxu0
      %613 = vmatprep.mubr.bf16.mxu0 %v490
      %614 = vmatmul.mubr.bf16.gmra.mxu0 %v489
      %v615 = vpop.f32.mrf.mxu0
      %v616 = vadd.f32 0.0, %v615
      %v617 = vpop.f32.mrf.mxu0
      %v618 = vpop.f32.mrf.mxu0
      %v619 = vadd.f32 0.0, %v618
      %v620 = vpop.f32.mrf.mxu0
      %621 = vdwg.mxu0
      %622 = vmatprep.subr.bf16.mxu0 0
      %623 = vmatpush1.bf16.msra.mxu0 %v356
      %624 = vmatprep.subr.bf16.mxu0 0
      %625 = vmatpush1.bf16.msra.mxu0 %v355
      %626 = vmatprep.subr.bf16.mxu0 0
      %627 = vmatpush1.bf16.msra.mxu0 %v354
      %628 = vmatprep.subr.bf16.mxu0 0
      %629 = vmatpush1.bf16.msra.mxu0 %v353
      %630 = vmatprep.subr.bf16.mxu0 0
      %631 = vmatpush1.bf16.msra.mxu0 %v352
      %632 = vmatprep.subr.bf16.mxu0 0
      %633 = vmatpush1.bf16.msra.mxu0 %v351
      %634 = vmatprep.subr.bf16.mxu0 0
      %635 = vmatpush1.bf16.msra.mxu0 %v350
      %636 = vmatprep.subr.bf16.mxu0 0
      %637 = vmatpush1.bf16.msra.mxu0 %v349
      %638 = vmatprep.subr.bf16.mxu0 0
      %639 = vmatpush2.bf16.msra.mxu0 %v364
      %640 = vmatprep.subr.bf16.mxu0 0
      %641 = vmatpush2.bf16.msra.mxu0 %v363
      %642 = vmatprep.subr.bf16.mxu0 0
      %643 = vmatpush2.bf16.msra.mxu0 %v362
      %644 = vmatprep.subr.bf16.mxu0 0
      %645 = vmatpush2.bf16.msra.mxu0 %v361
      %646 = vmatprep.subr.bf16.mxu0 0
      %647 = vmatpush2.bf16.msra.mxu0 %v360
      %648 = vmatprep.subr.bf16.mxu0 0
      %649 = vmatpush2.bf16.msra.mxu0 %v359
      %650 = vmatprep.subr.bf16.mxu0 0
      %651 = vmatpush2.bf16.msra.mxu0 %v358
      %652 = vmatprep.subr.bf16.mxu0 0
      %653 = vmatpush2.bf16.msra.mxu0 %v357
      %654 = vmatprep.mubr.bf16.mxu0 %v464
      %655 = vmatmul.mubr.bf16.gmra.mxu0 %v463
      %v656 = vpop.f32.mrf.mxu0
      %v657 = vadd.f32 %v560, %v656
      %v658 = vpop.f32.mrf.mxu0
      %v659 = vpop.f32.mrf.mxu0
      %v660 = vadd.f32 %v563, %v659
      %v661 = vpop.f32.mrf.mxu0
      %662 = vmatprep.mubr.bf16.mxu0 %v468
      %663 = vmatmul.mubr.bf16.gmra.mxu0 %v467
      %v664 = vpop.f32.mrf.mxu0
      %v665 = vadd.f32 %v568, %v664
      %v666 = vpop.f32.mrf.mxu0
      %v667 = vpop.f32.mrf.mxu0
      %v668 = vadd.f32 %v571, %v667
      %v669 = vpop.f32.mrf.mxu0
      %670 = vmatprep.mubr.bf16.mxu0 %v472
      %671 = vmatmul.mubr.bf16.gmra.mxu0 %v471
      %v672 = vpop.f32.mrf.mxu0
      %v673 = vadd.f32 %v576, %v672
      %v674 = vpop.f32.mrf.mxu0
      %v675 = vpop.f32.mrf.mxu0
      %v676 = vadd.f32 %v579, %v675
      %v677 = vpop.f32.mrf.mxu0
      %678 = vmatprep.mubr.bf16.mxu0 %v476
      %679 = vmatmul.mubr.bf16.gmra.mxu0 %v475
      %v680 = vpop.f32.mrf.mxu0
      %v681 = vadd.f32 %v584, %v680
      %v682 = vpop.f32.mrf.mxu0
      %v683 = vpop.f32.mrf.mxu0
      %v684 = vadd.f32 %v587, %v683
      %v685 = vpop.f32.mrf.mxu0
      %686 = vmatprep.mubr.bf16.mxu0 %v480
      %687 = vmatmul.mubr.bf16.gmra.mxu0 %v479
      %v688 = vpop.f32.mrf.mxu0
      %v689 = vadd.f32 %v592, %v688
      %v690 = vpop.f32.mrf.mxu0
      %v691 = vpop.f32.mrf.mxu0
      %v692 = vadd.f32 %v595, %v691
      %v693 = vpop.f32.mrf.mxu0
      %694 = vmatprep.mubr.bf16.mxu0 %v484
      %695 = vmatmul.mubr.bf16.gmra.mxu0 %v483
      %v696 = vpop.f32.mrf.mxu0
      %v697 = vadd.f32 %v600, %v696
      %v698 = vpop.f32.mrf.mxu0
      %v699 = vpop.f32.mrf.mxu0
      %v700 = vadd.f32 %v603, %v699
      %v701 = vpop.f32.mrf.mxu0
      %702 = vmatprep.mubr.bf16.mxu0 %v488
      %703 = vmatmul.mubr.bf16.gmra.mxu0 %v487
      %v704 = vpop.f32.mrf.mxu0
      %v705 = vadd.f32 %v608, %v704
      %v706 = vpop.f32.mrf.mxu0
      %v707 = vpop.f32.mrf.mxu0
      %v708 = vadd.f32 %v611, %v707
      %v709 = vpop.f32.mrf.mxu0
      %710 = vmatprep.mubr.bf16.mxu0 %v492
      %711 = vmatmul.mubr.bf16.gmra.mxu0 %v491
      %v712 = vpop.f32.mrf.mxu0
      %v713 = vadd.f32 %v616, %v712
      %v714 = vpop.f32.mrf.mxu0
      %v715 = vpop.f32.mrf.mxu0
      %v716 = vadd.f32 %v619, %v715
      %v717 = vpop.f32.mrf.mxu0
      %718 = vdwg.mxu0
      %v719 = vadd.f32 %v221, %v657
      %v720 = vadd.f32 %v222, %v660
      %v721 = vadd.f32 %v223, %v665
      %v722 = vadd.f32 %v224, %v668
      %v723 = vadd.f32 %v225, %v673
      %v724 = vadd.f32 %v226, %v676
      %v725 = vadd.f32 %v227, %v681
      %v726 = vadd.f32 %v228, %v684
      %v727 = vadd.f32 %v229, %v689
      %v728 = vadd.f32 %v230, %v692
      %v729 = vadd.f32 %v231, %v697
      %v730 = vadd.f32 %v232, %v700
      %v731 = vadd.f32 %v233, %v705
      %v732 = vadd.f32 %v234, %v708
      %v733 = vadd.f32 %v235, %v713
      %v734 = vadd.f32 %v236, %v716
      %735 = vst [vmem:[#allocation2] sm:$0xff] %v719
      %736 = vst [vmem:[#allocation2 + $0x8] sm:$0xff] %v720
      %737 = vst [vmem:[#allocation2 + $0x10] sm:$0xff] %v721
      %738 = vst [vmem:[#allocation2 + $0x18] sm:$0xff] %v722
      %739 = vst [vmem:[#allocation2 + $0x20] sm:$0xff] %v723
      %740 = vst [vmem:[#allocation2 + $0x28] sm:$0xff] %v724
      %741 = vst [vmem:[#allocation2 + $0x30] sm:$0xff] %v725
      %742 = vst [vmem:[#allocation2 + $0x38] sm:$0xff] %v726
      %743 = vst [vmem:[#allocation2 + $0x40] sm:$0xff] %v727
      %744 = vst [vmem:[#allocation2 + $0x48] sm:$0xff] %v728
      %745 = vst [vmem:[#allocation2 + $0x50] sm:$0xff] %v729
      %746 = vst [vmem:[#allocation2 + $0x58] sm:$0xff] %v730
      %747 = vst [vmem:[#allocation2 + $0x60] sm:$0xff] %v731
      %748 = vst [vmem:[#allocation2 + $0x68] sm:$0xff] %v732
      %749 = vst [vmem:[#allocation2 + $0x70] sm:$0xff] %v733
      %750 = vst [vmem:[#allocation2 + $0x78] sm:$0xff] %v734
      // Predicated region
      $region33: #{bpr_forward.7} parent=27 // pred_check
        %p751 = pneg %p201
      $region34: #{bpr_forward.7} parent=27 // pred_check_branch
        %753 = sbr.rel (%p751) target = $region36
      $region35: #{bpr_forward.7} parent=27 // pred_region
        %v754 = vld [vmem:[#allocation2] sm:$0xff]
        %v755 = vld [vmem:[#allocation2 + $0x8] sm:$0xff]
        %v756 = vld [vmem:[#allocation2 + $0x10] sm:$0xff]
        %v757 = vld [vmem:[#allocation2 + $0x18] sm:$0xff]
        %v758 = vld [vmem:[#allocation2 + $0x20] sm:$0xff]
        %v759 = vld [vmem:[#allocation2 + $0x28] sm:$0xff]
        %v760 = vld [vmem:[#allocation2 + $0x30] sm:$0xff]
        %v761 = vld [vmem:[#allocation2 + $0x38] sm:$0xff]
        %v762 = vld [vmem:[#allocation2 + $0x40] sm:$0xff]
        %v763 = vld [vmem:[#allocation2 + $0x48] sm:$0xff]
        %v764 = vld [vmem:[#allocation2 + $0x50] sm:$0xff]
        %v765 = vld [vmem:[#allocation2 + $0x58] sm:$0xff]
        %v766 = vld [vmem:[#allocation2 + $0x60] sm:$0xff]
        %v767 = vld [vmem:[#allocation2 + $0x68] sm:$0xff]
        %v768 = vld [vmem:[#allocation2 + $0x70] sm:$0xff]
        %v769 = vld [vmem:[#allocation2 + $0x78] sm:$0xff]
        %v770 = vpack.c.bf16 %v755, %v754
        %v771 = vpack.c.bf16 %v757, %v756
        %v772 = vpack.c.bf16 %v759, %v758
        %v773 = vpack.c.bf16 %v761, %v760
        %v774 = vpack.c.bf16 %v763, %v762
        %v775 = vpack.c.bf16 %v765, %v764
        %v776 = vpack.c.bf16 %v767, %v766
        %v777 = vpack.c.bf16 %v769, %v768
        %v786 = vunpack.c.l.b16 %v770
        %v787 = vunpack.c.h.b16 %v770
        %v788 = vunpack.c.l.b16 %v771
        %v789 = vunpack.c.h.b16 %v771
        %v790 = vunpack.c.l.b16 %v772
        %v791 = vunpack.c.h.b16 %v772
        %v792 = vunpack.c.l.b16 %v773
        %v793 = vunpack.c.h.b16 %v773
        %v794 = vunpack.c.l.b16 %v774
        %v795 = vunpack.c.h.b16 %v774
        %v796 = vunpack.c.l.b16 %v775
        %v797 = vunpack.c.h.b16 %v775
        %v798 = vunpack.c.l.b16 %v776
        %v799 = vunpack.c.h.b16 %v776
        %v800 = vunpack.c.l.b16 %v777
        %v801 = vunpack.c.h.b16 %v777
        %v802 = vpack.c.b16 %v786, %v786
        %v803 = vpack.c.b16 %v787, %v787
        %v804 = vpack.c.b16 %v788, %v788
        %v805 = vpack.c.b16 %v789, %v789
        %v806 = vpack.c.b16 %v790, %v790
        %v807 = vpack.c.b16 %v791, %v791
        %v808 = vpack.c.b16 %v792, %v792
        %v809 = vpack.c.b16 %v793, %v793
        %v810 = vpack.c.b16 %v794, %v794
        %v811 = vpack.c.b16 %v795, %v795
        %v812 = vpack.c.b16 %v796, %v796
        %v813 = vpack.c.b16 %v797, %v797
        %v814 = vpack.c.b16 %v798, %v798
        %v815 = vpack.c.b16 %v799, %v799
        %v816 = vpack.c.b16 %v800, %v800
        %v817 = vpack.c.b16 %v801, %v801
        %834 = vst [vmem:[%s198] sm:$0xf] %v802
        %835 = vst [vmem:[%s198 + $0x4] sm:$0xf] %v803
        %836 = vst [vmem:[%s198 + $0x8] sm:$0xf] %v804
        %837 = vst [vmem:[%s198 + $0xc] sm:$0xf] %v805
        %838 = vst [vmem:[%s198 + $0x10] sm:$0xf] %v806
        %839 = vst [vmem:[%s198 + $0x14] sm:$0xf] %v807
        %840 = vst [vmem:[%s198 + $0x18] sm:$0xf] %v808
        %841 = vst [vmem:[%s198 + $0x1c] sm:$0xf] %v809
        %842 = vst [vmem:[%s198 + $0x20] sm:$0xf] %v810
        %843 = vst [vmem:[%s198 + $0x24] sm:$0xf] %v811
        %844 = vst [vmem:[%s198 + $0x28] sm:$0xf] %v812
        %845 = vst [vmem:[%s198 + $0x2c] sm:$0xf] %v813
        %846 = vst [vmem:[%s198 + $0x30] sm:$0xf] %v814
        %847 = vst [vmem:[%s198 + $0x34] sm:$0xf] %v815
        %848 = vst [vmem:[%s198 + $0x38] sm:$0xf] %v816
        %849 = vst [vmem:[%s198 + $0x3c] sm:$0xf] %v817
      $region36: #{bpr_forward.7} parent=27 // pred_fallthru
        _
      %s850 = smul.u32 16, %s17
      %p851 = scmp.lt.s32.totalorder %s850, 127
      %s852 = scalar_select %p851, %s850, 127
      %s853 = smul.addr %s852, 4
      %s854 = scalar_lea.vmem %s2, %s853
      // Predicated region
      $region37: #{bpr_forward.7} parent=27 // pred_check
        %p855 = pneg %p97
      $region38: #{bpr_forward.7} parent=27 // pred_check_branch
        %857 = sbr.rel (%p855) target = $region40
      $region39: #{bpr_forward.7} parent=27 // pred_region
        %s858 = smul.u32 16, %s17
      $region40: #{bpr_forward.7} parent=27 // pred_fallthru
        _
    $region28: #{bpr_forward.7} parent=5 // pred_fallthru
      _
    %p859 = scmp.le.s32.totalorder 2, %s8
    // Predicated region
    $region41: #{bpr_forward.7} parent=5 // pred_check
      %p860 = pneg %p859
    $region42: #{bpr_forward.7} parent=5 // pred_check_branch
      %862 = sbr.rel (%p860) target = $region44
    $region43: #{bpr_forward.7} parent=5 // pred_region
      %s863 = ssub.s32 %s8, 2
      // Predicated region
      $region45: #{bpr_forward.7} parent=43 // pred_check
        %p864 = pneg %p103
      $region46: #{bpr_forward.7} parent=43 // pred_check_branch
        %866 = sbr.rel (%p864) target = $region48
      $region47: #{bpr_forward.7} parent=43 // pred_region
        %s867 = smul.u32 16, %s19
        %p868 = scmp.lt.s32.totalorder %s867, 127
        %s869 = scalar_select %p868, %s867, 127
        %s870 = smul.addr %s869, 4
        %s871 = scalar_lea.vmem %s2, %s870
      $region48: #{bpr_forward.7} parent=43 // pred_fallthru
        _
    $region44: #{bpr_forward.7} parent=5 // pred_fallthru
      _
  $region6: #{bpr_forward.7} parent=0 // loop_footer
    %s12 = sadd.s32 1, %s8
  $region7: #{bpr_forward.7} parent=0 // loop_footer_branch
    %7 = sbr.rel target = $region3
  $region8: #{bpr_forward.7} parent=0 // loop_exit
    _

// kernel: bpr_forward.6
$region0: #{bpr_forward.6}
  #allocation0 [shape = 'u32[]', space=smem, size = 0x4, offset = 0x4, fixed_abs, tag = 'smem constant byte address 0x4 - core index']
  #allocation1 [shape = 'u32[144,128]{1,0:T(1,128)}', space=vmem, size = 0x12000, scoped, tag = 'internal scratch']
  #allocation2 [shape = 'f32[128,128]{1,0:T(8,128)}', space=vmem, size = 0x10000, scoped, tag = 'scratch operand']
  %s0 = inlined_call_operand.vmem [shape: bf16[512,1024], index: 0, kind: input, shape index: {}]
  %s1 = inlined_call_operand.vmem [shape: f32[1024,128], index: 1, kind: input, shape index: {}]
  %s2 = inlined_call_operand.vmem [shape: bf16[512,128], index: 2, kind: output, shape index: {}]
  %s3 = sld [smem:[#allocation0]]
  $region49: #{bpr_forward.6} parent=0
    _
  %s5 = ssub.s32 1, %s3
  %s6 = scalar_select 0, %s5, %s3
  loop: start=0, step=1, limit=6
  $region2: #{bpr_forward.6} parent=0 // loop_pre_header
    _
  $region3: #{bpr_forward.6} parent=0 // loop_header
    %s8 = sphi 0, %s12
    %p9 = scmp.ge.s32.totalorder %s8, 6
    %s15 = sphi 0, %s27
    %s16 = sphi 0, %s23
    %s17 = sphi 0, %s15
    %s18 = sphi 0, %s16
    %s19 = sphi 0, %s17
    %s20 = sphi 0, %s18
    %s32 = sphi 0, %s34
    %s35 = sphi 0, %s32
    %s36 = sphi 0, %s35
    %s52 = sphi 0, %s36
    %s58 = sphi 0, %s60
    %s61 = sphi 0, %s58
    %s62 = sphi 0, %s61
    %s78 = sphi 0, %s62
    %s84 = sphi 0, %s86
    %s87 = sphi 0, %s84
    %s88 = sphi 0, %s87
    %s104 = sphi 0, %s88
  $region4: #{bpr_forward.6} parent=0 // loop_header_branch
    %11 = sbr.rel (%p9) target = $region8
  $region5: #{bpr_forward.6} parent=0 // loop_body
    %s13 = ssub.s32 %s8, 1
    %s14 = ssub.s32 %s8, 2
    %s21 = sadd.s32 1, %s16
    %p22 = scmp.ge.s32.totalorder %s21, 1
    %s23 = scalar_select %p22, 0, %s21
    %s24 = sadd.s32 1, %s15
    %s25 = scalar_select %p22, %s24, %s15
    %p26 = scmp.ge.s32.totalorder %s25, 4
    %s27 = scalar_select %p26, 0, %s25
    %s28 = ssub.s32 %s15, %s27
    %s29 = ssub.s32 %s16, %s23
    %s30 = sor.u32 %s28, %s29
    %p31 = scmp.eq.s32.totalorder %s30, 0
    %s33 = sadd.s32 %s32, 1
    %s34 = scalar_select %p31, %s32, %s33
    %p37 = pneg %p31
    %p38 = scmp.eq.s32.totalorder %s8, 3
    %p39 = por %p37, %p38
    %p40 = scmp.ne.s32.totalorder %s32, %s35
    %p41 = scmp.eq.s32.totalorder %s8, 0
    %p42 = por %p40, %p41
    %p43 = scmp.ne.s32.totalorder %s32, %s35
    %p44 = scmp.eq.s32.totalorder %s13, 3
    %p45 = por %p43, %p44
    %p46 = scmp.ne.s32.totalorder %s35, %s36
    %p47 = scmp.eq.s32.totalorder %s13, 0
    %p48 = por %p46, %p47
    %p49 = scmp.ne.s32.totalorder %s35, %s36
    %p50 = scmp.eq.s32.totalorder %s14, 3
    %p51 = por %p49, %p50
    %p53 = scmp.ne.s32.totalorder %s36, %s52
    %p54 = scmp.eq.s32.totalorder %s14, 0
    %p55 = por %p53, %p54
    %s56 = ssub.s32 %s16, %s23
    %p57 = scmp.eq.s32.totalorder %s56, 0
    %s59 = sadd.s32 %s58, 1
    %s60 = scalar_select %p57, %s58, %s59
    %p63 = pneg %p57
    %p64 = scmp.eq.s32.totalorder %s8, 3
    %p65 = por %p63, %p64
    %p66 = scmp.ne.s32.totalorder %s58, %s61
    %p67 = scmp.eq.s32.totalorder %s8, 0
    %p68 = por %p66, %p67
    %p69 = scmp.ne.s32.totalorder %s58, %s61
    %p70 = scmp.eq.s32.totalorder %s13, 3
    %p71 = por %p69, %p70
    %p72 = scmp.ne.s32.totalorder %s61, %s62
    %p73 = scmp.eq.s32.totalorder %s13, 0
    %p74 = por %p72, %p73
    %p75 = scmp.ne.s32.totalorder %s61, %s62
    %p76 = scmp.eq.s32.totalorder %s14, 3
    %p77 = por %p75, %p76
    %p79 = scmp.ne.s32.totalorder %s62, %s78
    %p80 = scmp.eq.s32.totalorder %s14, 0
    %p81 = por %p79, %p80
    %s82 = ssub.s32 %s15, %s27
    %p83 = scmp.eq.s32.totalorder %s82, 0
    %s85 = sadd.s32 %s84, 1
    %s86 = scalar_select %p83, %s84, %s85
    %p89 = pneg %p83
    %p90 = scmp.eq.s32.totalorder %s8, 3
    %p91 = por %p89, %p90
    %p92 = scmp.ne.s32.totalorder %s84, %s87
    %p93 = scmp.eq.s32.totalorder %s8, 0
    %p94 = por %p92, %p93
    %p95 = scmp.ne.s32.totalorder %s84, %s87
    %p96 = scmp.eq.s32.totalorder %s13, 3
    %p97 = por %p95, %p96
    %p98 = scmp.ne.s32.totalorder %s87, %s88
    %p99 = scmp.eq.s32.totalorder %s13, 0
    %p100 = por %p98, %p99
    %p101 = scmp.ne.s32.totalorder %s87, %s88
    %p102 = scmp.eq.s32.totalorder %s14, 3
    %p103 = por %p101, %p102
    %p105 = scmp.ne.s32.totalorder %s88, %s104
    %p106 = scmp.eq.s32.totalorder %s14, 0
    %p107 = por %p105, %p106
    %p108 = scmp.le.s32.totalorder 1, %s8
    %p109 = scmp.lt.s32.totalorder %s8, 5
    %p110 = pnand %p108, %p109
    %p111 = pneg %p110
    // Predicated region
    $region9: #{bpr_forward.6} parent=5 // pred_check
      _
    $region10: #{bpr_forward.6} parent=5 // pred_check_branch
      %113 = sbr.rel (%p110) target = $region12
    $region11: #{bpr_forward.6} parent=5 // pred_region
      %s114 = ssub.s32 %s8, 1
      // Predicated region
      $region13: #{bpr_forward.6} parent=11 // pred_check
        %p115 = pneg %p74
      $region14: #{bpr_forward.6} parent=11 // pred_check_branch
        %117 = sbr.rel (%p115) target = $region16
      $region15: #{bpr_forward.6} parent=11 // pred_region
        %s118 = smul.u32 128, %s18
        %p119 = scmp.lt.s32.totalorder %s118, 127
        %s120 = scalar_select %p119, %s118, 127
        %s121 = smul.addr %s120, 8
        %s122 = scalar_lea.vmem %s1, %s121
        %s123 = smul.u32 128, %s18
      $region16: #{bpr_forward.6} parent=11 // pred_fallthru
        _
    $region12: #{bpr_forward.6} parent=5 // pred_fallthru
      _
    %p124 = scmp.lt.s32.totalorder %s8, 4
    // Predicated region
    $region17: #{bpr_forward.6} parent=5 // pred_check
      %p125 = pneg %p124
    $region18: #{bpr_forward.6} parent=5 // pred_check_branch
      %127 = sbr.rel (%p125) target = $region20
    $region19: #{bpr_forward.6} parent=5 // pred_region
      // Predicated region
      $region21: #{bpr_forward.6} parent=19 // pred_check
        %p128 = pneg %p42
      $region22: #{bpr_forward.6} parent=19 // pred_check_branch
        %130 = sbr.rel (%p128) target = $region24
      $region23: #{bpr_forward.6} parent=19 // pred_region
        %s131 = smul.u32 16, %s15
        %s132 = smul.u32 8, %s16
        %p133 = scmp.lt.s32.totalorder %s131, 63
        %s134 = scalar_select %p133, %s131, 63
        %p135 = scmp.lt.s32.totalorder %s132, 7
        %s136 = scalar_select %p135, %s132, 7
        %s137 = smul.addr %s134, 8
        %s138 = sadd.s32 %s136, %s137
        %s139 = smul.addr %s138, 4
        %s140 = scalar_lea.vmem %s0, %s139
        %s141 = smul.u32 16, %s15
        %s142 = smul.u32 8, %s16
      $region24: #{bpr_forward.6} parent=19 // pred_fallthru
        _
    $region20: #{bpr_forward.6} parent=5 // pred_fallthru
      _
    %p143 = scmp.le.s32.totalorder 1, %s8
    %p144 = scmp.lt.s32.totalorder %s8, 5
    %p145 = pnand %p143, %p144
    %p146 = pneg %p145
    // Predicated region
    $region25: #{bpr_forward.6} parent=5 // pred_check
      _
    $region26: #{bpr_forward.6} parent=5 // pred_check_branch
      %148 = sbr.rel (%p145) target = $region28
    $region27: #{bpr_forward.6} parent=5 // pred_region
      %s149 = ssub.s32 %s8, 1
      %s150 = smul.u32 16, %s17
      %s151 = smul.u32 8, %s18
      %p152 = scmp.lt.s32.totalorder %s150, 63
      %s153 = scalar_select %p152, %s150, 63
      %p154 = scmp.lt.s32.totalorder %s151, 7
      %s155 = scalar_select %p154, %s151, 7
      %s156 = smul.addr %s153, 8
      %s157 = sadd.s32 %s155, %s156
      %s158 = smul.addr %s157, 4
      %s159 = scalar_lea.vmem %s0, %s158
      %p160 = pneg %p48
      %p161 = pneg %p45
      %s162 = smul.u32 128, %s18
      %p163 = scmp.lt.s32.totalorder %s162, 127
      %s164 = scalar_select %p163, %s162, 127
      %s165 = smul.addr %s164, 8
      %s166 = scalar_lea.vmem %s1, %s165
      %p167 = pneg %p74
      %p168 = pneg %p71
      %p169 = pneg %p100
      %p170 = pneg %p97
      %s171 = smul.u32 16, %s17
      %p172 = scmp.lt.s32.totalorder %s171, 63
      %s173 = scalar_select %p172, %s171, 63
      %s174 = smul.addr %s173, 4
      %s175 = scalar_lea.vmem %s2, %s174
      %s176 = smul.u32 16, %s17
      %s177 = smul.u32 8, %s18
      %p178 = scmp.lt.s32.totalorder %s176, 63
      %s179 = scalar_select %p178, %s176, 63
      %p180 = scmp.lt.s32.totalorder %s177, 7
      %s181 = scalar_select %p180, %s177, 7
      %s182 = smul.addr %s179, 8
      %s183 = sadd.s32 %s181, %s182
      %s184 = smul.addr %s183, 4
      %s185 = scalar_lea.vmem %s0, %s184
      %s186 = smul.u32 16, %s17
      %s187 = smul.u32 8, %s18
      %s188 = smul.u32 128, %s18
      %p189 = scmp.lt.s32.totalorder %s188, 127
      %s190 = scalar_select %p189, %s188, 127
      %s191 = smul.addr %s190, 8
      %s192 = scalar_lea.vmem %s1, %s191
      %s193 = smul.u32 128, %s18
      %s194 = smul.u32 16, %s17
      %p195 = scmp.lt.s32.totalorder %s194, 63
      %s196 = scalar_select %p195, %s194, 63
      %s197 = smul.addr %s196, 4
      %s198 = scalar_lea.vmem %s2, %s197
      %s199 = smul.u32 16, %s17
      %p201 = scmp.eq.s32.totalorder %s18, 0
      // Predicated region
      $region29: #{bpr_forward.6} parent=27 // pred_check
        %p202 = pneg %p201
      $region30: #{bpr_forward.6} parent=27 // pred_check_branch
        %204 = sbr.rel (%p202) target = $region32
      $region31: #{bpr_forward.6} parent=27 // pred_region
        %205 = vst [vmem:[#allocation2] sm:$0xff] 0.0
        %206 = vst [vmem:[#allocation2 + $0x8] sm:$0xff] 0.0
        %207 = vst [vmem:[#allocation2 + $0x10] sm:$0xff] 0.0
        %208 = vst [vmem:[#allocation2 + $0x18] sm:$0xff] 0.0
        %209 = vst [vmem:[#allocation2 + $0x20] sm:$0xff] 0.0
        %210 = vst [vmem:[#allocation2 + $0x28] sm:$0xff] 0.0
        %211 = vst [vmem:[#allocation2 + $0x30] sm:$0xff] 0.0
        %212 = vst [vmem:[#allocation2 + $0x38] sm:$0xff] 0.0
        %213 = vst [vmem:[#allocation2 + $0x40] sm:$0xff] 0.0
        %214 = vst [vmem:[#allocation2 + $0x48] sm:$0xff] 0.0
        %215 = vst [vmem:[#allocation2 + $0x50] sm:$0xff] 0.0
        %216 = vst [vmem:[#allocation2 + $0x58] sm:$0xff] 0.0
        %217 = vst [vmem:[#allocation2 + $0x60] sm:$0xff] 0.0
        %218 = vst [vmem:[#allocation2 + $0x68] sm:$0xff] 0.0
        %219 = vst [vmem:[#allocation2 + $0x70] sm:$0xff] 0.0
        %220 = vst [vmem:[#allocation2 + $0x78] sm:$0xff] 0.0
      $region32: #{bpr_forward.6} parent=27 // pred_fallthru
        _
      %v221 = vld [vmem:[#allocation2] sm:$0xff]
      %v222 = vld [vmem:[#allocation2 + $0x8] sm:$0xff]
      %v223 = vld [vmem:[#allocation2 + $0x10] sm:$0xff]
      %v224 = vld [vmem:[#allocation2 + $0x18] sm:$0xff]
      %v225 = vld [vmem:[#allocation2 + $0x20] sm:$0xff]
      %v226 = vld [vmem:[#allocation2 + $0x28] sm:$0xff]
      %v227 = vld [vmem:[#allocation2 + $0x30] sm:$0xff]
      %v228 = vld [vmem:[#allocation2 + $0x38] sm:$0xff]
      %v229 = vld [vmem:[#allocation2 + $0x40] sm:$0xff]
      %v230 = vld [vmem:[#allocation2 + $0x48] sm:$0xff]
      %v231 = vld [vmem:[#allocation2 + $0x50] sm:$0xff]
      %v232 = vld [vmem:[#allocation2 + $0x58] sm:$0xff]
      %v233 = vld [vmem:[#allocation2 + $0x60] sm:$0xff]
      %v234 = vld [vmem:[#allocation2 + $0x68] sm:$0xff]
      %v235 = vld [vmem:[#allocation2 + $0x70] sm:$0xff]
      %v236 = vld [vmem:[#allocation2 + $0x78] sm:$0xff]
      %v237 = vld [vmem:[%s185] sm:$0xff]
      %v238 = vld [vmem:[%s185 + $0x8] sm:$0xff]
      %v239 = vld [vmem:[%s185 + $0x10] sm:$0xff]
      %v240 = vld [vmem:[%s185 + $0x18] sm:$0xff]
      %v241 = vld [vmem:[%s185 + $0x20] sm:$0xff]
      %v242 = vld [vmem:[%s185 + $0x28] sm:$0xff]
      %v243 = vld [vmem:[%s185 + $0x30] sm:$0xff]
      %v244 = vld [vmem:[%s185 + $0x38] sm:$0xff]
      %v245 = vld [vmem:[%s185 + $0x40] sm:$0xff]
      %v246 = vld [vmem:[%s185 + $0x48] sm:$0xff]
      %v247 = vld [vmem:[%s185 + $0x50] sm:$0xff]
      %v248 = vld [vmem:[%s185 + $0x58] sm:$0xff]
      %v249 = vld [vmem:[%s185 + $0x60] sm:$0xff]
      %v250 = vld [vmem:[%s185 + $0x68] sm:$0xff]
      %v251 = vld [vmem:[%s185 + $0x70] sm:$0xff]
      %v252 = vld [vmem:[%s185 + $0x78] sm:$0xff]
      %v253 = vld [vmem:[%s185 + $0x80] sm:$0xff]
      %v254 = vld [vmem:[%s185 + $0x88] sm:$0xff]
      %v255 = vld [vmem:[%s185 + $0x90] sm:$0xff]
      %v256 = vld [vmem:[%s185 + $0x98] sm:$0xff]
      %v257 = vld [vmem:[%s185 + $0xa0] sm:$0xff]
      %v258 = vld [vmem:[%s185 + $0xa8] sm:$0xff]
      %v259 = vld [vmem:[%s185 + $0xb0] sm:$0xff]
      %v260 = vld [vmem:[%s185 + $0xb8] sm:$0xff]
      %v261 = vld [vmem:[%s185 + $0xc0] sm:$0xff]
      %v262 = vld [vmem:[%s185 + $0xc8] sm:$0xff]
      %v263 = vld [vmem:[%s185 + $0xd0] sm:$0xff]
      %v264 = vld [vmem:[%s185 + $0xd8] sm:$0xff]
      %v265 = vld [vmem:[%s185 + $0xe0] sm:$0xff]
      %v266 = vld [vmem:[%s185 + $0xe8] sm:$0xff]
      %v267 = vld [vmem:[%s185 + $0xf0] sm:$0xff]
      %v268 = vld [vmem:[%s185 + $0xf8] sm:$0xff]
      %v269 = vld [vmem:[%s185 + $0x100] sm:$0xff]
      %v270 = vld [vmem:[%s185 + $0x108] sm:$0xff]
      %v271 = vld [vmem:[%s185 + $0x110] sm:$0xff]
      %v272 = vld [vmem:[%s185 + $0x118] sm:$0xff]
      %v273 = vld [vmem:[%s185 + $0x120] sm:$0xff]
      %v274 = vld [vmem:[%s185 + $0x128] sm:$0xff]
      %v275 = vld [vmem:[%s185 + $0x130] sm:$0xff]
      %v276 = vld [vmem:[%s185 + $0x138] sm:$0xff]
      %v277 = vld [vmem:[%s185 + $0x140] sm:$0xff]
      %v278 = vld [vmem:[%s185 + $0x148] sm:$0xff]
      %v279 = vld [vmem:[%s185 + $0x150] sm:$0xff]
      %v280 = vld [vmem:[%s185 + $0x158] sm:$0xff]
      %v281 = vld [vmem:[%s185 + $0x160] sm:$0xff]
      %v282 = vld [vmem:[%s185 + $0x168] sm:$0xff]
      %v283 = vld [vmem:[%s185 + $0x170] sm:$0xff]
      %v284 = vld [vmem:[%s185 + $0x178] sm:$0xff]
      %v285 = vld [vmem:[%s185 + $0x180] sm:$0xff]
      %v286 = vld [vmem:[%s185 + $0x188] sm:$0xff]
      %v287 = vld [vmem:[%s185 + $0x190] sm:$0xff]
      %v288 = vld [vmem:[%s185 + $0x198] sm:$0xff]
      %v289 = vld [vmem:[%s185 + $0x1a0] sm:$0xff]
      %v290 = vld [vmem:[%s185 + $0x1a8] sm:$0xff]
      %v291 = vld [vmem:[%s185 + $0x1b0] sm:$0xff]
      %v292 = vld [vmem:[%s185 + $0x1b8] sm:$0xff]
      %v293 = vld [vmem:[%s185 + $0x1c0] sm:$0xff]
      %v294 = vld [vmem:[%s185 + $0x1c8] sm:$0xff]
      %v295 = vld [vmem:[%s185 + $0x1d0] sm:$0xff]
      %v296 = vld [vmem:[%s185 + $0x1d8] sm:$0xff]
      %v297 = vld [vmem:[%s185 + $0x1e0] sm:$0xff]
      %v298 = vld [vmem:[%s185 + $0x1e8] sm:$0xff]
      %v299 = vld [vmem:[%s185 + $0x1f0] sm:$0xff]
      %v300 = vld [vmem:[%s185 + $0x1f8] sm:$0xff]
      %v301 = vld [vmem:[%s192] sm:$0xff]
      %v302 = vld [vmem:[%s192 + $0x8] sm:$0xff]
      %v303 = vld [vmem:[%s192 + $0x10] sm:$0xff]
      %v304 = vld [vmem:[%s192 + $0x18] sm:$0xff]
      %v305 = vld [vmem:[%s192 + $0x20] sm:$0xff]
      %v306 = vld [vmem:[%s192 + $0x28] sm:$0xff]
      %v307 = vld [vmem:[%s192 + $0x30] sm:$0xff]
      %v308 = vld [vmem:[%s192 + $0x38] sm:$0xff]
      %v309 = vld [vmem:[%s192 + $0x40] sm:$0xff]
      %v310 = vld [vmem:[%s192 + $0x48] sm:$0xff]
      %v311 = vld [vmem:[%s192 + $0x50] sm:$0xff]
      %v312 = vld [vmem:[%s192 + $0x58] sm:$0xff]
      %v313 = vld [vmem:[%s192 + $0x60] sm:$0xff]
      %v314 = vld [vmem:[%s192 + $0x68] sm:$0xff]
      %v315 = vld [vmem:[%s192 + $0x70] sm:$0xff]
      %v316 = vld [vmem:[%s192 + $0x78] sm:$0xff]
      %v317 = vld [vmem:[%s192 + $0x80] sm:$0xff]
      %v318 = vld [vmem:[%s192 + $0x88] sm:$0xff]
      %v319 = vld [vmem:[%s192 + $0x90] sm:$0xff]
      %v320 = vld [vmem:[%s192 + $0x98] sm:$0xff]
      %v321 = vld [vmem:[%s192 + $0xa0] sm:$0xff]
      %v322 = vld [vmem:[%s192 + $0xa8] sm:$0xff]
      %v323 = vld [vmem:[%s192 + $0xb0] sm:$0xff]
      %v324 = vld [vmem:[%s192 + $0xb8] sm:$0xff]
      %v325 = vld [vmem:[%s192 + $0xc0] sm:$0xff]
      %v326 = vld [vmem:[%s192 + $0xc8] sm:$0xff]
      %v327 = vld [vmem:[%s192 + $0xd0] sm:$0xff]
      %v328 = vld [vmem:[%s192 + $0xd8] sm:$0xff]
      %v329 = vld [vmem:[%s192 + $0xe0] sm:$0xff]
      %v330 = vld [vmem:[%s192 + $0xe8] sm:$0xff]
      %v331 = vld [vmem:[%s192 + $0xf0] sm:$0xff]
      %v332 = vld [vmem:[%s192 + $0xf8] sm:$0xff]
      %v333 = vld [vmem:[%s192 + $0x100] sm:$0xff]
      %v334 = vld [vmem:[%s192 + $0x108] sm:$0xff]
      %v335 = vld [vmem:[%s192 + $0x110] sm:$0xff]
      %v336 = vld [vmem:[%s192 + $0x118] sm:$0xff]
      %v337 = vld [vmem:[%s192 + $0x120] sm:$0xff]
      %v338 = vld [vmem:[%s192 + $0x128] sm:$0xff]
      %v339 = vld [vmem:[%s192 + $0x130] sm:$0xff]
      %v340 = vld [vmem:[%s192 + $0x138] sm:$0xff]
      %v341 = vld [vmem:[%s192 + $0x140] sm:$0xff]
      %v342 = vld [vmem:[%s192 + $0x148] sm:$0xff]
      %v343 = vld [vmem:[%s192 + $0x150] sm:$0xff]
      %v344 = vld [vmem:[%s192 + $0x158] sm:$0xff]
      %v345 = vld [vmem:[%s192 + $0x160] sm:$0xff]
      %v346 = vld [vmem:[%s192 + $0x168] sm:$0xff]
      %v347 = vld [vmem:[%s192 + $0x170] sm:$0xff]
      %v348 = vld [vmem:[%s192 + $0x178] sm:$0xff]
      %v349 = vld [vmem:[%s192 + $0x180] sm:$0xff]
      %v350 = vld [vmem:[%s192 + $0x188] sm:$0xff]
      %v351 = vld [vmem:[%s192 + $0x190] sm:$0xff]
      %v352 = vld [vmem:[%s192 + $0x198] sm:$0xff]
      %v353 = vld [vmem:[%s192 + $0x1a0] sm:$0xff]
      %v354 = vld [vmem:[%s192 + $0x1a8] sm:$0xff]
      %v355 = vld [vmem:[%s192 + $0x1b0] sm:$0xff]
      %v356 = vld [vmem:[%s192 + $0x1b8] sm:$0xff]
      %v357 = vld [vmem:[%s192 + $0x1c0] sm:$0xff]
      %v358 = vld [vmem:[%s192 + $0x1c8] sm:$0xff]
      %v359 = vld [vmem:[%s192 + $0x1d0] sm:$0xff]
      %v360 = vld [vmem:[%s192 + $0x1d8] sm:$0xff]
      %v361 = vld [vmem:[%s192 + $0x1e0] sm:$0xff]
      %v362 = vld [vmem:[%s192 + $0x1e8] sm:$0xff]
      %v363 = vld [vmem:[%s192 + $0x1f0] sm:$0xff]
      %v364 = vld [vmem:[%s192 + $0x1f8] sm:$0xff]
      %v365 = vld [vmem:[%s192 + $0x200] sm:$0xff]
      %v366 = vld [vmem:[%s192 + $0x208] sm:$0xff]
      %v367 = vld [vmem:[%s192 + $0x210] sm:$0xff]
      %v368 = vld [vmem:[%s192 + $0x218] sm:$0xff]
      %v369 = vld [vmem:[%s192 + $0x220] sm:$0xff]
      %v370 = vld [vmem:[%s192 + $0x228] sm:$0xff]
      %v371 = vld [vmem:[%s192 + $0x230] sm:$0xff]
      %v372 = vld [vmem:[%s192 + $0x238] sm:$0xff]
      %v373 = vld [vmem:[%s192 + $0x240] sm:$0xff]
      %v374 = vld [vmem:[%s192 + $0x248] sm:$0xff]
      %v375 = vld [vmem:[%s192 + $0x250] sm:$0xff]
      %v376 = vld [vmem:[%s192 + $0x258] sm:$0xff]
      %v377 = vld [vmem:[%s192 + $0x260] sm:$0xff]
      %v378 = vld [vmem:[%s192 + $0x268] sm:$0xff]
      %v379 = vld [vmem:[%s192 + $0x270] sm:$0xff]
      %v380 = vld [vmem:[%s192 + $0x278] sm:$0xff]
      %v381 = vld [vmem:[%s192 + $0x280] sm:$0xff]
      %v382 = vld [vmem:[%s192 + $0x288] sm:$0xff]
      %v383 = vld [vmem:[%s192 + $0x290] sm:$0xff]
      %v384 = vld [vmem:[%s192 + $0x298] sm:$0xff]
      %v385 = vld [vmem:[%s192 + $0x2a0] sm:$0xff]
      %v386 = vld [vmem:[%s192 + $0x2a8] sm:$0xff]
      %v387 = vld [vmem:[%s192 + $0x2b0] sm:$0xff]
      %v388 = vld [vmem:[%s192 + $0x2b8] sm:$0xff]
      %v389 = vld [vmem:[%s192 + $0x2c0] sm:$0xff]
      %v390 = vld [vmem:[%s192 + $0x2c8] sm:$0xff]
      %v391 = vld [vmem:[%s192 + $0x2d0] sm:$0xff]
      %v392 = vld [vmem:[%s192 + $0x2d8] sm:$0xff]
      %v393 = vld [vmem:[%s192 + $0x2e0] sm:$0xff]
      %v394 = vld [vmem:[%s192 + $0x2e8] sm:$0xff]
      %v395 = vld [vmem:[%s192 + $0x2f0] sm:$0xff]
      %v396 = vld [vmem:[%s192 + $0x2f8] sm:$0xff]
      %v397 = vld [vmem:[%s192 + $0x300] sm:$0xff]
      %v398 = vld [vmem:[%s192 + $0x308] sm:$0xff]
      %v399 = vld [vmem:[%s192 + $0x310] sm:$0xff]
      %v400 = vld [vmem:[%s192 + $0x318] sm:$0xff]
      %v401 = vld [vmem:[%s192 + $0x320] sm:$0xff]
      %v402 = vld [vmem:[%s192 + $0x328] sm:$0xff]
      %v403 = vld [vmem:[%s192 + $0x330] sm:$0xff]
      %v404 = vld [vmem:[%s192 + $0x338] sm:$0xff]
      %v405 = vld [vmem:[%s192 + $0x340] sm:$0xff]
      %v406 = vld [vmem:[%s192 + $0x348] sm:$0xff]
      %v407 = vld [vmem:[%s192 + $0x350] sm:$0xff]
      %v408 = vld [vmem:[%s192 + $0x358] sm:$0xff]
      %v409 = vld [vmem:[%s192 + $0x360] sm:$0xff]
      %v410 = vld [vmem:[%s192 + $0x368] sm:$0xff]
      %v411 = vld [vmem:[%s192 + $0x370] sm:$0xff]
      %v412 = vld [vmem:[%s192 + $0x378] sm:$0xff]
      %v413 = vld [vmem:[%s192 + $0x380] sm:$0xff]
      %v414 = vld [vmem:[%s192 + $0x388] sm:$0xff]
      %v415 = vld [vmem:[%s192 + $0x390] sm:$0xff]
      %v416 = vld [vmem:[%s192 + $0x398] sm:$0xff]
      %v417 = vld [vmem:[%s192 + $0x3a0] sm:$0xff]
      %v418 = vld [vmem:[%s192 + $0x3a8] sm:$0xff]
      %v419 = vld [vmem:[%s192 + $0x3b0] sm:$0xff]
      %v420 = vld [vmem:[%s192 + $0x3b8] sm:$0xff]
      %v421 = vld [vmem:[%s192 + $0x3c0] sm:$0xff]
      %v422 = vld [vmem:[%s192 + $0x3c8] sm:$0xff]
      %v423 = vld [vmem:[%s192 + $0x3d0] sm:$0xff]
      %v424 = vld [vmem:[%s192 + $0x3d8] sm:$0xff]
      %v425 = vld [vmem:[%s192 + $0x3e0] sm:$0xff]
      %v426 = vld [vmem:[%s192 + $0x3e8] sm:$0xff]
      %v427 = vld [vmem:[%s192 + $0x3f0] sm:$0xff]
      %v428 = vld [vmem:[%s192 + $0x3f8] sm:$0xff]
      %v429 = vpack.c.bf16 %v302, %v301
      %v430 = vpack.c.bf16 %v304, %v303
      %v431 = vpack.c.bf16 %v306, %v305
      %v432 = vpack.c.bf16 %v308, %v307
      %v433 = vpack.c.bf16 %v310, %v309
      %v434 = vpack.c.bf16 %v312, %v311
      %v435 = vpack.c.bf16 %v314, %v313
      %v436 = vpack.c.bf16 %v316, %v315
      %v437 = vpack.c.bf16 %v318, %v317
      %v438 = vpack.c.bf16 %v320, %v319
      %v439 = vpack.c.bf16 %v322, %v321
      %v440 = vpack.c.bf16 %v324, %v323
      %v441 = vpack.c.bf16 %v326, %v325
      %v442 = vpack.c.bf16 %v328, %v327
      %v443 = vpack.c.bf16 %v330, %v329
      %v444 = vpack.c.bf16 %v332, %v331
      %v445 = vpack.c.bf16 %v334, %v333
      %v446 = vpack.c.bf16 %v336, %v335
      %v447 = vpack.c.bf16 %v338, %v337
      %v448 = vpack.c.bf16 %v340, %v339
      %v449 = vpack.c.bf16 %v342, %v341
      %v450 = vpack.c.bf16 %v344, %v343
      %v451 = vpack.c.bf16 %v346, %v345
      %v452 = vpack.c.bf16 %v348, %v347
      %v453 = vpack.c.bf16 %v350, %v349
      %v454 = vpack.c.bf16 %v352, %v351
      %v455 = vpack.c.bf16 %v354, %v353
      %v456 = vpack.c.bf16 %v356, %v355
      %v457 = vpack.c.bf16 %v358, %v357
      %v458 = vpack.c.bf16 %v360, %v359
      %v459 = vpack.c.bf16 %v362, %v361
      %v460 = vpack.c.bf16 %v364, %v363
      %v461 = vpack.c.bf16 %v366, %v365
      %v462 = vpack.c.bf16 %v368, %v367
      %v463 = vpack.c.bf16 %v370, %v369
      %v464 = vpack.c.bf16 %v372, %v371
      %v465 = vpack.c.bf16 %v374, %v373
      %v466 = vpack.c.bf16 %v376, %v375
      %v467 = vpack.c.bf16 %v378, %v377
      %v468 = vpack.c.bf16 %v380, %v379
      %v469 = vpack.c.bf16 %v382, %v381
      %v470 = vpack.c.bf16 %v384, %v383
      %v471 = vpack.c.bf16 %v386, %v385
      %v472 = vpack.c.bf16 %v388, %v387
      %v473 = vpack.c.bf16 %v390, %v389
      %v474 = vpack.c.bf16 %v392, %v391
      %v475 = vpack.c.bf16 %v394, %v393
      %v476 = vpack.c.bf16 %v396, %v395
      %v477 = vpack.c.bf16 %v398, %v397
      %v478 = vpack.c.bf16 %v400, %v399
      %v479 = vpack.c.bf16 %v402, %v401
      %v480 = vpack.c.bf16 %v404, %v403
      %v481 = vpack.c.bf16 %v406, %v405
      %v482 = vpack.c.bf16 %v408, %v407
      %v483 = vpack.c.bf16 %v410, %v409
      %v484 = vpack.c.bf16 %v412, %v411
      %v485 = vpack.c.bf16 %v414, %v413
      %v486 = vpack.c.bf16 %v416, %v415
      %v487 = vpack.c.bf16 %v418, %v417
      %v488 = vpack.c.bf16 %v420, %v419
      %v489 = vpack.c.bf16 %v422, %v421
      %v490 = vpack.c.bf16 %v424, %v423
      %v491 = vpack.c.bf16 %v426, %v425
      %v492 = vpack.c.bf16 %v428, %v427
      %v557 = vunpack.c.l.b16 %v237
      %v558 = vunpack.c.h.b16 %v237
      %v559 = vunpack.c.l.b16 %v238
      %v560 = vunpack.c.h.b16 %v238
      %v561 = vunpack.c.l.b16 %v239
      %v562 = vunpack.c.h.b16 %v239
      %v563 = vunpack.c.l.b16 %v240
      %v564 = vunpack.c.h.b16 %v240
      %v565 = vunpack.c.l.b16 %v241
      %v566 = vunpack.c.h.b16 %v241
      %v567 = vunpack.c.l.b16 %v242
      %v568 = vunpack.c.h.b16 %v242
      %v569 = vunpack.c.l.b16 %v243
      %v570 = vunpack.c.h.b16 %v243
      %v571 = vunpack.c.l.b16 %v244
      %v572 = vunpack.c.h.b16 %v244
      %v573 = vunpack.c.l.b16 %v245
      %v574 = vunpack.c.h.b16 %v245
      %v575 = vunpack.c.l.b16 %v246
      %v576 = vunpack.c.h.b16 %v246
      %v577 = vunpack.c.l.b16 %v247
      %v578 = vunpack.c.h.b16 %v247
      %v579 = vunpack.c.l.b16 %v248
      %v580 = vunpack.c.h.b16 %v248
      %v581 = vunpack.c.l.b16 %v249
      %v582 = vunpack.c.h.b16 %v249
      %v583 = vunpack.c.l.b16 %v250
      %v584 = vunpack.c.h.b16 %v250
      %v585 = vunpack.c.l.b16 %v251
      %v586 = vunpack.c.h.b16 %v251
      %v587 = vunpack.c.l.b16 %v252
      %v588 = vunpack.c.h.b16 %v252
      %v589 = vunpack.c.l.b16 %v253
      %v590 = vunpack.c.h.b16 %v253
      %v591 = vunpack.c.l.b16 %v254
      %v592 = vunpack.c.h.b16 %v254
      %v593 = vunpack.c.l.b16 %v255
      %v594 = vunpack.c.h.b16 %v255
      %v595 = vunpack.c.l.b16 %v256
      %v596 = vunpack.c.h.b16 %v256
      %v597 = vunpack.c.l.b16 %v257
      %v598 = vunpack.c.h.b16 %v257
      %v599 = vunpack.c.l.b16 %v258
      %v600 = vunpack.c.h.b16 %v258
      %v601 = vunpack.c.l.b16 %v259
      %v602 = vunpack.c.h.b16 %v259
      %v603 = vunpack.c.l.b16 %v260
      %v604 = vunpack.c.h.b16 %v260
      %v605 = vunpack.c.l.b16 %v261
      %v606 = vunpack.c.h.b16 %v261
      %v607 = vunpack.c.l.b16 %v262
      %v608 = vunpack.c.h.b16 %v262
      %v609 = vunpack.c.l.b16 %v263
      %v610 = vunpack.c.h.b16 %v263
      %v611 = vunpack.c.l.b16 %v264
      %v612 = vunpack.c.h.b16 %v264
      %v613 = vunpack.c.l.b16 %v265
      %v614 = vunpack.c.h.b16 %v265
      %v615 = vunpack.c.l.b16 %v266
      %v616 = vunpack.c.h.b16 %v266
      %v617 = vunpack.c.l.b16 %v267
      %v618 = vunpack.c.h.b16 %v267
      %v619 = vunpack.c.l.b16 %v268
      %v620 = vunpack.c.h.b16 %v268
      %v621 = vunpack.c.l.b16 %v269
      %v622 = vunpack.c.h.b16 %v269
      %v623 = vunpack.c.l.b16 %v270
      %v624 = vunpack.c.h.b16 %v270
      %v625 = vunpack.c.l.b16 %v271
      %v626 = vunpack.c.h.b16 %v271
      %v627 = vunpack.c.l.b16 %v272
      %v628 = vunpack.c.h.b16 %v272
      %v629 = vunpack.c.l.b16 %v273
      %v630 = vunpack.c.h.b16 %v273
      %v631 = vunpack.c.l.b16 %v274
      %v632 = vunpack.c.h.b16 %v274
      %v633 = vunpack.c.l.b16 %v275
      %v634 = vunpack.c.h.b16 %v275
      %v635 = vunpack.c.l.b16 %v276
      %v636 = vunpack.c.h.b16 %v276
      %v637 = vunpack.c.l.b16 %v277
      %v638 = vunpack.c.h.b16 %v277
      %v639 = vunpack.c.l.b16 %v278
      %v640 = vunpack.c.h.b16 %v278
      %v641 = vunpack.c.l.b16 %v279
      %v642 = vunpack.c.h.b16 %v279
      %v643 = vunpack.c.l.b16 %v280
      %v644 = vunpack.c.h.b16 %v280
      %v645 = vunpack.c.l.b16 %v281
      %v646 = vunpack.c.h.b16 %v281
      %v647 = vunpack.c.l.b16 %v282
      %v648 = vunpack.c.h.b16 %v282
      %v649 = vunpack.c.l.b16 %v283
      %v650 = vunpack.c.h.b16 %v283
      %v651 = vunpack.c.l.b16 %v284
      %v652 = vunpack.c.h.b16 %v284
      %v653 = vunpack.c.l.b16 %v285
      %v654 = vunpack.c.h.b16 %v285
      %v655 = vunpack.c.l.b16 %v286
      %v656 = vunpack.c.h.b16 %v286
      %v657 = vunpack.c.l.b16 %v287
      %v658 = vunpack.c.h.b16 %v287
      %v659 = vunpack.c.l.b16 %v288
      %v660 = vunpack.c.h.b16 %v288
      %v661 = vunpack.c.l.b16 %v289
      %v662 = vunpack.c.h.b16 %v289
      %v663 = vunpack.c.l.b16 %v290
      %v664 = vunpack.c.h.b16 %v290
      %v665 = vunpack.c.l.b16 %v291
      %v666 = vunpack.c.h.b16 %v291
      %v667 = vunpack.c.l.b16 %v292
      %v668 = vunpack.c.h.b16 %v292
      %v669 = vunpack.c.l.b16 %v293
      %v670 = vunpack.c.h.b16 %v293
      %v671 = vunpack.c.l.b16 %v294
      %v672 = vunpack.c.h.b16 %v294
      %v673 = vunpack.c.l.b16 %v295
      %v674 = vunpack.c.h.b16 %v295
      %v675 = vunpack.c.l.b16 %v296
      %v676 = vunpack.c.h.b16 %v296
      %v677 = vunpack.c.l.b16 %v297
      %v678 = vunpack.c.h.b16 %v297
      %v679 = vunpack.c.l.b16 %v298
      %v680 = vunpack.c.h.b16 %v298
      %v681 = vunpack.c.l.b16 %v299
      %v682 = vunpack.c.h.b16 %v299
      %v683 = vunpack.c.l.b16 %v300
      %v684 = vunpack.c.h.b16 %v300
      %v685 = vpack.c.b16 %v565, %v557
      %v686 = vpack.c.b16 %v566, %v558
      %v687 = vpack.c.b16 %v567, %v559
      %v688 = vpack.c.b16 %v568, %v560
      %v689 = vpack.c.b16 %v569, %v561
      %v690 = vpack.c.b16 %v570, %v562
      %v691 = vpack.c.b16 %v571, %v563
      %v692 = vpack.c.b16 %v572, %v564
      %v693 = vpack.c.b16 %v581, %v573
      %v694 = vpack.c.b16 %v582, %v574
      %v695 = vpack.c.b16 %v583, %v575
      %v696 = vpack.c.b16 %v584, %v576
      %v697 = vpack.c.b16 %v585, %v577
      %v698 = vpack.c.b16 %v586, %v578
      %v699 = vpack.c.b16 %v587, %v579
      %v700 = vpack.c.b16 %v588, %v580
      %v701 = vpack.c.b16 %v597, %v589
      %v702 = vpack.c.b16 %v598, %v590
      %v703 = vpack.c.b16 %v599, %v591
      %v704 = vpack.c.b16 %v600, %v592
      %v705 = vpack.c.b16 %v601, %v593
      %v706 = vpack.c.b16 %v602, %v594
      %v707 = vpack.c.b16 %v603, %v595
      %v708 = vpack.c.b16 %v604, %v596
      %v709 = vpack.c.b16 %v613, %v605
      %v710 = vpack.c.b16 %v614, %v606
      %v711 = vpack.c.b16 %v615, %v607
      %v712 = vpack.c.b16 %v616, %v608
      %v713 = vpack.c.b16 %v617, %v609
      %v714 = vpack.c.b16 %v618, %v610
      %v715 = vpack.c.b16 %v619, %v611
      %v716 = vpack.c.b16 %v620, %v612
      %v717 = vpack.c.b16 %v629, %v621
      %v718 = vpack.c.b16 %v630, %v622
      %v719 = vpack.c.b16 %v631, %v623
      %v720 = vpack.c.b16 %v632, %v624
      %v721 = vpack.c.b16 %v633, %v625
      %v722 = vpack.c.b16 %v634, %v626
      %v723 = vpack.c.b16 %v635, %v627
      %v724 = vpack.c.b16 %v636, %v628
      %v725 = vpack.c.b16 %v645, %v637
      %v726 = vpack.c.b16 %v646, %v638
      %v727 = vpack.c.b16 %v647, %v639
      %v728 = vpack.c.b16 %v648, %v640
      %v729 = vpack.c.b16 %v649, %v641
      %v730 = vpack.c.b16 %v650, %v642
      %v731 = vpack.c.b16 %v651, %v643
      %v732 = vpack.c.b16 %v652, %v644
      %v733 = vpack.c.b16 %v661, %v653
      %v734 = vpack.c.b16 %v662, %v654
      %v735 = vpack.c.b16 %v663, %v655
      %v736 = vpack.c.b16 %v664, %v656
      %v737 = vpack.c.b16 %v665, %v657
      %v738 = vpack.c.b16 %v666, %v658
      %v739 = vpack.c.b16 %v667, %v659
      %v740 = vpack.c.b16 %v668, %v660
      %v741 = vpack.c.b16 %v677, %v669
      %v742 = vpack.c.b16 %v678, %v670
      %v743 = vpack.c.b16 %v679, %v671
      %v744 = vpack.c.b16 %v680, %v672
      %v745 = vpack.c.b16 %v681, %v673
      %v746 = vpack.c.b16 %v682, %v674
      %v747 = vpack.c.b16 %v683, %v675
      %v748 = vpack.c.b16 %v684, %v676
      %813 = vmatprep.subr.bf16.mxu0 0
      %814 = vmatpush1.bf16.msra.mxu0 %v436
      %815 = vmatprep.subr.bf16.mxu0 0
      %816 = vmatpush1.bf16.msra.mxu0 %v435
      %817 = vmatprep.subr.bf16.mxu0 0
      %818 = vmatpush1.bf16.msra.mxu0 %v434
      %819 = vmatprep.subr.bf16.mxu0 0
      %820 = vmatpush1.bf16.msra.mxu0 %v433
      %821 = vmatprep.subr.bf16.mxu0 0
      %822 = vmatpush1.bf16.msra.mxu0 %v432
      %823 = vmatprep.subr.bf16.mxu0 0
      %824 = vmatpush1.bf16.msra.mxu0 %v431
      %825 = vmatprep.subr.bf16.mxu0 0
      %826 = vmatpush1.bf16.msra.mxu0 %v430
      %827 = vmatprep.subr.bf16.mxu0 0
      %828 = vmatpush1.bf16.msra.mxu0 %v429
      %829 = vmatprep.subr.bf16.mxu0 0
      %830 = vmatpush2.bf16.msra.mxu0 %v444
      %831 = vmatprep.subr.bf16.mxu0 0
      %832 = vmatpush2.bf16.msra.mxu0 %v443
      %833 = vmatprep.subr.bf16.mxu0 0
      %834 = vmatpush2.bf16.msra.mxu0 %v442
      %835 = vmatprep.subr.bf16.mxu0 0
      %836 = vmatpush2.bf16.msra.mxu0 %v441
      %837 = vmatprep.subr.bf16.mxu0 0
      %838 = vmatpush2.bf16.msra.mxu0 %v440
      %839 = vmatprep.subr.bf16.mxu0 0
      %840 = vmatpush2.bf16.msra.mxu0 %v439
      %841 = vmatprep.subr.bf16.mxu0 0
      %842 = vmatpush2.bf16.msra.mxu0 %v438
      %843 = vmatprep.subr.bf16.mxu0 0
      %844 = vmatpush2.bf16.msra.mxu0 %v437
      %845 = vmatprep.mubr.bf16.mxu0 %v686
      %846 = vmatmul.mubr.bf16.gmra.mxu0 %v685
      %v847 = vpop.f32.mrf.mxu0
      %v848 = vadd.f32 0.0, %v847
      %v849 = vpop.f32.mrf.mxu0
      %v850 = vpop.f32.mrf.mxu0
      %v851 = vadd.f32 0.0, %v850
      %v852 = vpop.f32.mrf.mxu0
      %853 = vmatprep.mubr.bf16.mxu0 %v694
      %854 = vmatmul.mubr.bf16.gmra.mxu0 %v693
      %v855 = vpop.f32.mrf.mxu0
      %v856 = vadd.f32 0.0, %v855
      %v857 = vpop.f32.mrf.mxu0
      %v858 = vpop.f32.mrf.mxu0
      %v859 = vadd.f32 0.0, %v858
      %v860 = vpop.f32.mrf.mxu0
      %861 = vmatprep.mubr.bf16.mxu0 %v702
      %862 = vmatmul.mubr.bf16.gmra.mxu0 %v701
      %v863 = vpop.f32.mrf.mxu0
      %v864 = vadd.f32 0.0, %v863
      %v865 = vpop.f32.mrf.mxu0
      %v866 = vpop.f32.mrf.mxu0
      %v867 = vadd.f32 0.0, %v866
      %v868 = vpop.f32.mrf.mxu0
      %869 = vmatprep.mubr.bf16.mxu0 %v710
      %870 = vmatmul.mubr.bf16.gmra.mxu0 %v709
      %v871 = vpop.f32.mrf.mxu0
      %v872 = vadd.f32 0.0, %v871
      %v873 = vpop.f32.mrf.mxu0
      %v874 = vpop.f32.mrf.mxu0
      %v875 = vadd.f32 0.0, %v874
      %v876 = vpop.f32.mrf.mxu0
      %877 = vmatprep.mubr.bf16.mxu0 %v718
      %878 = vmatmul.mubr.bf16.gmra.mxu0 %v717
      %v879 = vpop.f32.mrf.mxu0
      %v880 = vadd.f32 0.0, %v879
      %v881 = vpop.f32.mrf.mxu0
      %v882 = vpop.f32.mrf.mxu0
      %v883 = vadd.f32 0.0, %v882
      %v884 = vpop.f32.mrf.mxu0
      %885 = vmatprep.mubr.bf16.mxu0 %v726
      %886 = vmatmul.mubr.bf16.gmra.mxu0 %v725
      %v887 = vpop.f32.mrf.mxu0
      %v888 = vadd.f32 0.0, %v887
      %v889 = vpop.f32.mrf.mxu0
      %v890 = vpop.f32.mrf.mxu0
      %v891 = vadd.f32 0.0, %v890
      %v892 = vpop.f32.mrf.mxu0
      %893 = vmatprep.mubr.bf16.mxu0 %v734
      %894 = vmatmul.mubr.bf16.gmra.mxu0 %v733
      %v895 = vpop.f32.mrf.mxu0
      %v896 = vadd.f32 0.0, %v895
      %v897 = vpop.f32.mrf.mxu0
      %v898 = vpop.f32.mrf.mxu0
      %v899 = vadd.f32 0.0, %v898
      %v900 = vpop.f32.mrf.mxu0
      %901 = vmatprep.mubr.bf16.mxu0 %v742
      %902 = vmatmul.mubr.bf16.gmra.mxu0 %v741
      %v903 = vpop.f32.mrf.mxu0
      %v904 = vadd.f32 0.0, %v903
      %v905 = vpop.f32.mrf.mxu0
      %v906 = vpop.f32.mrf.mxu0
      %v907 = vadd.f32 0.0, %v906
      %v908 = vpop.f32.mrf.mxu0
      %909 = vdwg.mxu0
      %910 = vmatprep.subr.bf16.mxu0 0
      %911 = vmatpush1.bf16.msra.mxu0 %v452
      %912 = vmatprep.subr.bf16.mxu0 0
      %913 = vmatpush1.bf16.msra.mxu0 %v451
      %914 = vmatprep.subr.bf16.mxu0 0
      %915 = vmatpush1.bf16.msra.mxu0 %v450
      %916 = vmatprep.subr.bf16.mxu0 0
      %917 = vmatpush1.bf16.msra.mxu0 %v449
      %918 = vmatprep.subr.bf16.mxu0 0
      %919 = vmatpush1.bf16.msra.mxu0 %v448
      %920 = vmatprep.subr.bf16.mxu0 0
      %921 = vmatpush1.bf16.msra.mxu0 %v447
      %922 = vmatprep.subr.bf16.mxu0 0
      %923 = vmatpush1.bf16.msra.mxu0 %v446
      %924 = vmatprep.subr.bf16.mxu0 0
      %925 = vmatpush1.bf16.msra.mxu0 %v445
      %926 = vmatprep.subr.bf16.mxu0 0
      %927 = vmatpush2.bf16.msra.mxu0 %v460
      %928 = vmatprep.subr.bf16.mxu0 0
      %929 = vmatpush2.bf16.msra.mxu0 %v459
      %930 = vmatprep.subr.bf16.mxu0 0
      %931 = vmatpush2.bf16.msra.mxu0 %v458
      %932 = vmatprep.subr.bf16.mxu0 0
      %933 = vmatpush2.bf16.msra.mxu0 %v457
      %934 = vmatprep.subr.bf16.mxu0 0
      %935 = vmatpush2.bf16.msra.mxu0 %v456
      %936 = vmatprep.subr.bf16.mxu0 0
      %937 = vmatpush2.bf16.msra.mxu0 %v455
      %938 = vmatprep.subr.bf16.mxu0 0
      %939 = vmatpush2.bf16.msra.mxu0 %v454
      %940 = vmatprep.subr.bf16.mxu0 0
      %941 = vmatpush2.bf16.msra.mxu0 %v453
      %942 = vmatprep.mubr.bf16.mxu0 %v688
      %943 = vmatmul.mubr.bf16.gmra.mxu0 %v687
      %v944 = vpop.f32.mrf.mxu0
      %v945 = vadd.f32 %v848, %v944
      %v946 = vpop.f32.mrf.mxu0
      %v947 = vpop.f32.mrf.mxu0
      %v948 = vadd.f32 %v851, %v947
      %v949 = vpop.f32.mrf.mxu0
      %950 = vmatprep.mubr.bf16.mxu0 %v696
      %951 = vmatmul.mubr.bf16.gmra.mxu0 %v695
      %v952 = vpop.f32.mrf.mxu0
      %v953 = vadd.f32 %v856, %v952
      %v954 = vpop.f32.mrf.mxu0
      %v955 = vpop.f32.mrf.mxu0
      %v956 = vadd.f32 %v859, %v955
      %v957 = vpop.f32.mrf.mxu0
      %958 = vmatprep.mubr.bf16.mxu0 %v704
      %959 = vmatmul.mubr.bf16.gmra.mxu0 %v703
      %v960 = vpop.f32.mrf.mxu0
      %v961 = vadd.f32 %v864, %v960
      %v962 = vpop.f32.mrf.mxu0
      %v963 = vpop.f32.mrf.mxu0
      %v964 = vadd.f32 %v867, %v963
      %v965 = vpop.f32.mrf.mxu0
      %966 = vmatprep.mubr.bf16.mxu0 %v712
      %967 = vmatmul.mubr.bf16.gmra.mxu0 %v711
      %v968 = vpop.f32.mrf.mxu0
      %v969 = vadd.f32 %v872, %v968
      %v970 = vpop.f32.mrf.mxu0
      %v971 = vpop.f32.mrf.mxu0
      %v972 = vadd.f32 %v875, %v971
      %v973 = vpop.f32.mrf.mxu0
      %974 = vmatprep.mubr.bf16.mxu0 %v720
      %975 = vmatmul.mubr.bf16.gmra.mxu0 %v719
      %v976 = vpop.f32.mrf.mxu0
      %v977 = vadd.f32 %v880, %v976
      %v978 = vpop.f32.mrf.mxu0
      %v979 = vpop.f32.mrf.mxu0
      %v980 = vadd.f32 %v883, %v979
      %v981 = vpop.f32.mrf.mxu0
      %982 = vmatprep.mubr.bf16.mxu0 %v728
      %983 = vmatmul.mubr.bf16.gmra.mxu0 %v727
      %v984 = vpop.f32.mrf.mxu0
      %v985 = vadd.f32 %v888, %v984
      %v986 = vpop.f32.mrf.mxu0
      %v987 = vpop.f32.mrf.mxu0
      %v988 = vadd.f32 %v891, %v987
      %v989 = vpop.f32.mrf.mxu0
      %990 = vmatprep.mubr.bf16.mxu0 %v736
      %991 = vmatmul.mubr.bf16.gmra.mxu0 %v735
      %v992 = vpop.f32.mrf.mxu0
      %v993 = vadd.f32 %v896, %v992
      %v994 = vpop.f32.mrf.mxu0
      %v995 = vpop.f32.mrf.mxu0
      %v996 = vadd.f32 %v899, %v995
      %v997 = vpop.f32.mrf.mxu0
      %998 = vmatprep.mubr.bf16.mxu0 %v744
      %999 = vmatmul.mubr.bf16.gmra.mxu0 %v743
      %v1000 = vpop.f32.mrf.mxu0
      %v1001 = vadd.f32 %v904, %v1000
      %v1002 = vpop.f32.mrf.mxu0
      %v1003 = vpop.f32.mrf.mxu0
      %v1004 = vadd.f32 %v907, %v1003
      %v1005 = vpop.f32.mrf.mxu0
      %1006 = vdwg.mxu0
      %1007 = vmatprep.subr.bf16.mxu0 0
      %1008 = vmatpush1.bf16.msra.mxu0 %v468
      %1009 = vmatprep.subr.bf16.mxu0 0
      %1010 = vmatpush1.bf16.msra.mxu0 %v467
      %1011 = vmatprep.subr.bf16.mxu0 0
      %1012 = vmatpush1.bf16.msra.mxu0 %v466
      %1013 = vmatprep.subr.bf16.mxu0 0
      %1014 = vmatpush1.bf16.msra.mxu0 %v465
      %1015 = vmatprep.subr.bf16.mxu0 0
      %1016 = vmatpush1.bf16.msra.mxu0 %v464
      %1017 = vmatprep.subr.bf16.mxu0 0
      %1018 = vmatpush1.bf16.msra.mxu0 %v463
      %1019 = vmatprep.subr.bf16.mxu0 0
      %1020 = vmatpush1.bf16.msra.mxu0 %v462
      %1021 = vmatprep.subr.bf16.mxu0 0
      %1022 = vmatpush1.bf16.msra.mxu0 %v461
      %1023 = vmatprep.subr.bf16.mxu0 0
      %1024 = vmatpush2.bf16.msra.mxu0 %v476
      %1025 = vmatprep.subr.bf16.mxu0 0
      %1026 = vmatpush2.bf16.msra.mxu0 %v475
      %1027 = vmatprep.subr.bf16.mxu0 0
      %1028 = vmatpush2.bf16.msra.mxu0 %v474
      %1029 = vmatprep.subr.bf16.mxu0 0
      %1030 = vmatpush2.bf16.msra.mxu0 %v473
      %1031 = vmatprep.subr.bf16.mxu0 0
      %1032 = vmatpush2.bf16.msra.mxu0 %v472
      %1033 = vmatprep.subr.bf16.mxu0 0
      %1034 = vmatpush2.bf16.msra.mxu0 %v471
      %1035 = vmatprep.subr.bf16.mxu0 0
      %1036 = vmatpush2.bf16.msra.mxu0 %v470
      %1037 = vmatprep.subr.bf16.mxu0 0
      %1038 = vmatpush2.bf16.msra.mxu0 %v469
      %1039 = vmatprep.mubr.bf16.mxu0 %v690
      %1040 = vmatmul.mubr.bf16.gmra.mxu0 %v689
      %v1041 = vpop.f32.mrf.mxu0
      %v1042 = vadd.f32 %v945, %v1041
      %v1043 = vpop.f32.mrf.mxu0
      %v1044 = vpop.f32.mrf.mxu0
      %v1045 = vadd.f32 %v948, %v1044
      %v1046 = vpop.f32.mrf.mxu0
      %1047 = vmatprep.mubr.bf16.mxu0 %v698
      %1048 = vmatmul.mubr.bf16.gmra.mxu0 %v697
      %v1049 = vpop.f32.mrf.mxu0
      %v1050 = vadd.f32 %v953, %v1049
      %v1051 = vpop.f32.mrf.mxu0
      %v1052 = vpop.f32.mrf.mxu0
      %v1053 = vadd.f32 %v956, %v1052
      %v1054 = vpop.f32.mrf.mxu0
      %1055 = vmatprep.mubr.bf16.mxu0 %v706
      %1056 = vmatmul.mubr.bf16.gmra.mxu0 %v705
      %v1057 = vpop.f32.mrf.mxu0
      %v1058 = vadd.f32 %v961, %v1057
      %v1059 = vpop.f32.mrf.mxu0
      %v1060 = vpop.f32.mrf.mxu0
      %v1061 = vadd.f32 %v964, %v1060
      %v1062 = vpop.f32.mrf.mxu0
      %1063 = vmatprep.mubr.bf16.mxu0 %v714
      %1064 = vmatmul.mubr.bf16.gmra.mxu0 %v713
      %v1065 = vpop.f32.mrf.mxu0
      %v1066 = vadd.f32 %v969, %v1065
      %v1067 = vpop.f32.mrf.mxu0
      %v1068 = vpop.f32.mrf.mxu0
      %v1069 = vadd.f32 %v972, %v1068
      %v1070 = vpop.f32.mrf.mxu0
      %1071 = vmatprep.mubr.bf16.mxu0 %v722
      %1072 = vmatmul.mubr.bf16.gmra.mxu0 %v721
      %v1073 = vpop.f32.mrf.mxu0
      %v1074 = vadd.f32 %v977, %v1073
      %v1075 = vpop.f32.mrf.mxu0
      %v1076 = vpop.f32.mrf.mxu0
      %v1077 = vadd.f32 %v980, %v1076
      %v1078 = vpop.f32.mrf.mxu0
      %1079 = vmatprep.mubr.bf16.mxu0 %v730
      %1080 = vmatmul.mubr.bf16.gmra.mxu0 %v729
      %v1081 = vpop.f32.mrf.mxu0
      %v1082 = vadd.f32 %v985, %v1081
      %v1083 = vpop.f32.mrf.mxu0
      %v1084 = vpop.f32.mrf.mxu0
      %v1085 = vadd.f32 %v988, %v1084
      %v1086 = vpop.f32.mrf.mxu0
      %1087 = vmatprep.mubr.bf16.mxu0 %v738
      %1088 = vmatmul.mubr.bf16.gmra.mxu0 %v737
      %v1089 = vpop.f32.mrf.mxu0
      %v1090 = vadd.f32 %v993, %v1089
      %v1091 = vpop.f32.mrf.mxu0
      %v1092 = vpop.f32.mrf.mxu0
      %v1093 = vadd.f32 %v996, %v1092
      %v1094 = vpop.f32.mrf.mxu0
      %1095 = vmatprep.mubr.bf16.mxu0 %v746
      %1096 = vmatmul.mubr.bf16.gmra.mxu0 %v745
      %v1097 = vpop.f32.mrf.mxu0
      %v1098 = vadd.f32 %v1001, %v1097
      %v1099 = vpop.f32.mrf.mxu0
      %v1100 = vpop.f32.mrf.mxu0
      %v1101 = vadd.f32 %v1004, %v1100
      %v1102 = vpop.f32.mrf.mxu0
      %1103 = vdwg.mxu0
      %1104 = vmatprep.subr.bf16.mxu0 0
      %1105 = vmatpush1.bf16.msra.mxu0 %v484
      %1106 = vmatprep.subr.bf16.mxu0 0
      %1107 = vmatpush1.bf16.msra.mxu0 %v483
      %1108 = vmatprep.subr.bf16.mxu0 0
      %1109 = vmatpush1.bf16.msra.mxu0 %v482
      %1110 = vmatprep.subr.bf16.mxu0 0
      %1111 = vmatpush1.bf16.msra.mxu0 %v481
      %1112 = vmatprep.subr.bf16.mxu0 0
      %1113 = vmatpush1.bf16.msra.mxu0 %v480
      %1114 = vmatprep.subr.bf16.mxu0 0
      %1115 = vmatpush1.bf16.msra.mxu0 %v479
      %1116 = vmatprep.subr.bf16.mxu0 0
      %1117 = vmatpush1.bf16.msra.mxu0 %v478
      %1118 = vmatprep.subr.bf16.mxu0 0
      %1119 = vmatpush1.bf16.msra.mxu0 %v477
      %1120 = vmatprep.subr.bf16.mxu0 0
      %1121 = vmatpush2.bf16.msra.mxu0 %v492
      %1122 = vmatprep.subr.bf16.mxu0 0
      %1123 = vmatpush2.bf16.msra.mxu0 %v491
      %1124 = vmatprep.subr.bf16.mxu0 0
      %1125 = vmatpush2.bf16.msra.mxu0 %v490
      %1126 = vmatprep.subr.bf16.mxu0 0
      %1127 = vmatpush2.bf16.msra.mxu0 %v489
      %1128 = vmatprep.subr.bf16.mxu0 0
      %1129 = vmatpush2.bf16.msra.mxu0 %v488
      %1130 = vmatprep.subr.bf16.mxu0 0
      %1131 = vmatpush2.bf16.msra.mxu0 %v487
      %1132 = vmatprep.subr.bf16.mxu0 0
      %1133 = vmatpush2.bf16.msra.mxu0 %v486
      %1134 = vmatprep.subr.bf16.mxu0 0
      %1135 = vmatpush2.bf16.msra.mxu0 %v485
      %1136 = vmatprep.mubr.bf16.mxu0 %v692
      %1137 = vmatmul.mubr.bf16.gmra.mxu0 %v691
      %v1138 = vpop.f32.mrf.mxu0
      %v1139 = vadd.f32 %v1042, %v1138
      %v1140 = vpop.f32.mrf.mxu0
      %v1141 = vpop.f32.mrf.mxu0
      %v1142 = vadd.f32 %v1045, %v1141
      %v1143 = vpop.f32.mrf.mxu0
      %1144 = vmatprep.mubr.bf16.mxu0 %v700
      %1145 = vmatmul.mubr.bf16.gmra.mxu0 %v699
      %v1146 = vpop.f32.mrf.mxu0
      %v1147 = vadd.f32 %v1050, %v1146
      %v1148 = vpop.f32.mrf.mxu0
      %v1149 = vpop.f32.mrf.mxu0
      %v1150 = vadd.f32 %v1053, %v1149
      %v1151 = vpop.f32.mrf.mxu0
      %1152 = vmatprep.mubr.bf16.mxu0 %v708
      %1153 = vmatmul.mubr.bf16.gmra.mxu0 %v707
      %v1154 = vpop.f32.mrf.mxu0
      %v1155 = vadd.f32 %v1058, %v1154
      %v1156 = vpop.f32.mrf.mxu0
      %v1157 = vpop.f32.mrf.mxu0
      %v1158 = vadd.f32 %v1061, %v1157
      %v1159 = vpop.f32.mrf.mxu0
      %1160 = vmatprep.mubr.bf16.mxu0 %v716
      %1161 = vmatmul.mubr.bf16.gmra.mxu0 %v715
      %v1162 = vpop.f32.mrf.mxu0
      %v1163 = vadd.f32 %v1066, %v1162
      %v1164 = vpop.f32.mrf.mxu0
      %v1165 = vpop.f32.mrf.mxu0
      %v1166 = vadd.f32 %v1069, %v1165
      %v1167 = vpop.f32.mrf.mxu0
      %1168 = vmatprep.mubr.bf16.mxu0 %v724
      %1169 = vmatmul.mubr.bf16.gmra.mxu0 %v723
      %v1170 = vpop.f32.mrf.mxu0
      %v1171 = vadd.f32 %v1074, %v1170
      %v1172 = vpop.f32.mrf.mxu0
      %v1173 = vpop.f32.mrf.mxu0
      %v1174 = vadd.f32 %v1077, %v1173
      %v1175 = vpop.f32.mrf.mxu0
      %1176 = vmatprep.mubr.bf16.mxu0 %v732
      %1177 = vmatmul.mubr.bf16.gmra.mxu0 %v731
      %v1178 = vpop.f32.mrf.mxu0
      %v1179 = vadd.f32 %v1082, %v1178
      %v1180 = vpop.f32.mrf.mxu0
      %v1181 = vpop.f32.mrf.mxu0
      %v1182 = vadd.f32 %v1085, %v1181
      %v1183 = vpop.f32.mrf.mxu0
      %1184 = vmatprep.mubr.bf16.mxu0 %v740
      %1185 = vmatmul.mubr.bf16.gmra.mxu0 %v739
      %v1186 = vpop.f32.mrf.mxu0
      %v1187 = vadd.f32 %v1090, %v1186
      %v1188 = vpop.f32.mrf.mxu0
      %v1189 = vpop.f32.mrf.mxu0
      %v1190 = vadd.f32 %v1093, %v1189
      %v1191 = vpop.f32.mrf.mxu0
      %1192 = vmatprep.mubr.bf16.mxu0 %v748
      %1193 = vmatmul.mubr.bf16.gmra.mxu0 %v747
      %v1194 = vpop.f32.mrf.mxu0
      %v1195 = vadd.f32 %v1098, %v1194
      %v1196 = vpop.f32.mrf.mxu0
      %v1197 = vpop.f32.mrf.mxu0
      %v1198 = vadd.f32 %v1101, %v1197
      %v1199 = vpop.f32.mrf.mxu0
      %1200 = vdwg.mxu0
      %v1201 = vadd.f32 %v221, %v1139
      %v1202 = vadd.f32 %v222, %v1142
      %v1203 = vadd.f32 %v223, %v1147
      %v1204 = vadd.f32 %v224, %v1150
      %v1205 = vadd.f32 %v225, %v1155
      %v1206 = vadd.f32 %v226, %v1158
      %v1207 = vadd.f32 %v227, %v1163
      %v1208 = vadd.f32 %v228, %v1166
      %v1209 = vadd.f32 %v229, %v1171
      %v1210 = vadd.f32 %v230, %v1174
      %v1211 = vadd.f32 %v231, %v1179
      %v1212 = vadd.f32 %v232, %v1182
      %v1213 = vadd.f32 %v233, %v1187
      %v1214 = vadd.f32 %v234, %v1190
      %v1215 = vadd.f32 %v235, %v1195
      %v1216 = vadd.f32 %v236, %v1198
      %1217 = vst [vmem:[#allocation2] sm:$0xff] %v1201
      %1218 = vst [vmem:[#allocation2 + $0x8] sm:$0xff] %v1202
      %1219 = vst [vmem:[#allocation2 + $0x10] sm:$0xff] %v1203
      %1220 = vst [vmem:[#allocation2 + $0x18] sm:$0xff] %v1204
      %1221 = vst [vmem:[#allocation2 + $0x20] sm:$0xff] %v1205
      %1222 = vst [vmem:[#allocation2 + $0x28] sm:$0xff] %v1206
      %1223 = vst [vmem:[#allocation2 + $0x30] sm:$0xff] %v1207
      %1224 = vst [vmem:[#allocation2 + $0x38] sm:$0xff] %v1208
      %1225 = vst [vmem:[#allocation2 + $0x40] sm:$0xff] %v1209
      %1226 = vst [vmem:[#allocation2 + $0x48] sm:$0xff] %v1210
      %1227 = vst [vmem:[#allocation2 + $0x50] sm:$0xff] %v1211
      %1228 = vst [vmem:[#allocation2 + $0x58] sm:$0xff] %v1212
      %1229 = vst [vmem:[#allocation2 + $0x60] sm:$0xff] %v1213
      %1230 = vst [vmem:[#allocation2 + $0x68] sm:$0xff] %v1214
      %1231 = vst [vmem:[#allocation2 + $0x70] sm:$0xff] %v1215
      %1232 = vst [vmem:[#allocation2 + $0x78] sm:$0xff] %v1216
      // Predicated region
      $region33: #{bpr_forward.6} parent=27 // pred_check
        %p1233 = pneg %p201
      $region34: #{bpr_forward.6} parent=27 // pred_check_branch
        %1235 = sbr.rel (%p1233) target = $region36
      $region35: #{bpr_forward.6} parent=27 // pred_region
        %v1236 = vld [vmem:[#allocation2] sm:$0xff]
        %v1237 = vld [vmem:[#allocation2 + $0x8] sm:$0xff]
        %v1238 = vld [vmem:[#allocation2 + $0x10] sm:$0xff]
        %v1239 = vld [vmem:[#allocation2 + $0x18] sm:$0xff]
        %v1240 = vld [vmem:[#allocation2 + $0x20] sm:$0xff]
        %v1241 = vld [vmem:[#allocation2 + $0x28] sm:$0xff]
        %v1242 = vld [vmem:[#allocation2 + $0x30] sm:$0xff]
        %v1243 = vld [vmem:[#allocation2 + $0x38] sm:$0xff]
        %v1244 = vld [vmem:[#allocation2 + $0x40] sm:$0xff]
        %v1245 = vld [vmem:[#allocation2 + $0x48] sm:$0xff]
        %v1246 = vld [vmem:[#allocation2 + $0x50] sm:$0xff]
        %v1247 = vld [vmem:[#allocation2 + $0x58] sm:$0xff]
        %v1248 = vld [vmem:[#allocation2 + $0x60] sm:$0xff]
        %v1249 = vld [vmem:[#allocation2 + $0x68] sm:$0xff]
        %v1250 = vld [vmem:[#allocation2 + $0x70] sm:$0xff]
        %v1251 = vld [vmem:[#allocation2 + $0x78] sm:$0xff]
        %v1252 = vpack.c.bf16 %v1237, %v1236
        %v1253 = vpack.c.bf16 %v1239, %v1238
        %v1254 = vpack.c.bf16 %v1241, %v1240
        %v1255 = vpack.c.bf16 %v1243, %v1242
        %v1256 = vpack.c.bf16 %v1245, %v1244
        %v1257 = vpack.c.bf16 %v1247, %v1246
        %v1258 = vpack.c.bf16 %v1249, %v1248
        %v1259 = vpack.c.bf16 %v1251, %v1250
        %v1268 = vunpack.c.l.b16 %v1252
        %v1269 = vunpack.c.h.b16 %v1252
        %v1270 = vunpack.c.l.b16 %v1253
        %v1271 = vunpack.c.h.b16 %v1253
        %v1272 = vunpack.c.l.b16 %v1254
        %v1273 = vunpack.c.h.b16 %v1254
        %v1274 = vunpack.c.l.b16 %v1255
        %v1275 = vunpack.c.h.b16 %v1255
        %v1276 = vunpack.c.l.b16 %v1256
        %v1277 = vunpack.c.h.b16 %v1256
        %v1278 = vunpack.c.l.b16 %v1257
        %v1279 = vunpack.c.h.b16 %v1257
        %v1280 = vunpack.c.l.b16 %v1258
        %v1281 = vunpack.c.h.b16 %v1258
        %v1282 = vunpack.c.l.b16 %v1259
        %v1283 = vunpack.c.h.b16 %v1259
        %v1284 = vpack.c.b16 %v1268, %v1268
        %v1285 = vpack.c.b16 %v1269, %v1269
        %v1286 = vpack.c.b16 %v1270, %v1270
        %v1287 = vpack.c.b16 %v1271, %v1271
        %v1288 = vpack.c.b16 %v1272, %v1272
        %v1289 = vpack.c.b16 %v1273, %v1273
        %v1290 = vpack.c.b16 %v1274, %v1274
        %v1291 = vpack.c.b16 %v1275, %v1275
        %v1292 = vpack.c.b16 %v1276, %v1276
        %v1293 = vpack.c.b16 %v1277, %v1277
        %v1294 = vpack.c.b16 %v1278, %v1278
        %v1295 = vpack.c.b16 %v1279, %v1279
        %v1296 = vpack.c.b16 %v1280, %v1280
        %v1297 = vpack.c.b16 %v1281, %v1281
        %v1298 = vpack.c.b16 %v1282, %v1282
        %v1299 = vpack.c.b16 %v1283, %v1283
        %1316 = vst [vmem:[%s198] sm:$0xf] %v1284
        %1317 = vst [vmem:[%s198 + $0x4] sm:$0xf] %v1285
        %1318 = vst [vmem:[%s198 + $0x8] sm:$0xf] %v1286
        %1319 = vst [vmem:[%s198 + $0xc] sm:$0xf] %v1287
        %1320 = vst [vmem:[%s198 + $0x10] sm:$0xf] %v1288
        %1321 = vst [vmem:[%s198 + $0x14] sm:$0xf] %v1289
        %1322 = vst [vmem:[%s198 + $0x18] sm:$0xf] %v1290
        %1323 = vst [vmem:[%s198 + $0x1c] sm:$0xf] %v1291
        %1324 = vst [vmem:[%s198 + $0x20] sm:$0xf] %v1292
        %1325 = vst [vmem:[%s198 + $0x24] sm:$0xf] %v1293
        %1326 = vst [vmem:[%s198 + $0x28] sm:$0xf] %v1294
        %1327 = vst [vmem:[%s198 + $0x2c] sm:$0xf] %v1295
        %1328 = vst [vmem:[%s198 + $0x30] sm:$0xf] %v1296
        %1329 = vst [vmem:[%s198 + $0x34] sm:$0xf] %v1297
        %1330 = vst [vmem:[%s198 + $0x38] sm:$0xf] %v1298
        %1331 = vst [vmem:[%s198 + $0x3c] sm:$0xf] %v1299
      $region36: #{bpr_forward.6} parent=27 // pred_fallthru
        _
      %s1332 = smul.u32 16, %s17
      %p1333 = scmp.lt.s32.totalorder %s1332, 63
      %s1334 = scalar_select %p1333, %s1332, 63
      %s1335 = smul.addr %s1334, 4
      %s1336 = scalar_lea.vmem %s2, %s1335
      // Predicated region
      $region37: #{bpr_forward.6} parent=27 // pred_check
        %p1337 = pneg %p97
      $region38: #{bpr_forward.6} parent=27 // pred_check_branch
        %1339 = sbr.rel (%p1337) target = $region40
      $region39: #{bpr_forward.6} parent=27 // pred_region
        %s1340 = smul.u32 16, %s17
      $region40: #{bpr_forward.6} parent=27 // pred_fallthru
        _
    $region28: #{bpr_forward.6} parent=5 // pred_fallthru
      _
    %p1341 = scmp.le.s32.totalorder 2, %s8
    // Predicated region
    $region41: #{bpr_forward.6} parent=5 // pred_check
      %p1342 = pneg %p1341
    $region42: #{bpr_forward.6} parent=5 // pred_check_branch
      %1344 = sbr.rel (%p1342) target = $region44
    $region43: #{bpr_forward.6} parent=5 // pred_region
      %s1345 = ssub.s32 %s8, 2
      // Predicated region
      $region45: #{bpr_forward.6} parent=43 // pred_check
        %p1346 = pneg %p103
      $region46: #{bpr_forward.6} parent=43 // pred_check_branch
        %1348 = sbr.rel (%p1346) target = $region48
      $region47: #{bpr_forward.6} parent=43 // pred_region
        %s1349 = smul.u32 16, %s19
        %p1350 = scmp.lt.s32.totalorder %s1349, 63
        %s1351 = scalar_select %p1350, %s1349, 63
        %s1352 = smul.addr %s1351, 4
        %s1353 = scalar_lea.vmem %s2, %s1352
      $region48: #{bpr_forward.6} parent=43 // pred_fallthru
        _
    $region44: #{bpr_forward.6} parent=5 // pred_fallthru
      _
  $region6: #{bpr_forward.6} parent=0 // loop_footer
    %s12 = sadd.s32 1, %s8
  $region7: #{bpr_forward.6} parent=0 // loop_footer_branch
    %7 = sbr.rel target = $region3
  $region8: #{bpr_forward.6} parent=0 // loop_exit
    _

// kernel: bpr_forward.8
$region0: #{bpr_forward.8}
  #allocation0 [shape = 'u32[]', space=smem, size = 0x4, offset = 0x4, fixed_abs, tag = 'smem constant byte address 0x4 - core index']
  #allocation1 [shape = 'u32[144,128]{1,0:T(1,128)}', space=vmem, size = 0x12000, scoped, tag = 'internal scratch']
  #allocation2 [shape = 'f32[128,128]{1,0:T(8,128)}', space=vmem, size = 0x10000, scoped, tag = 'scratch operand']
  %s0 = inlined_call_operand.vmem [shape: bf16[512,1024], index: 0, kind: input, shape index: {}]
  %s1 = inlined_call_operand.vmem [shape: bf16[1024,128], index: 1, kind: input, shape index: {}]
  %s2 = inlined_call_operand.vmem [shape: bf16[512,128], index: 2, kind: output, shape index: {}]
  %s3 = sld [smem:[#allocation0]]
  $region49: #{bpr_forward.8} parent=0
    _
  %s5 = ssub.s32 1, %s3
  %s6 = scalar_select 0, %s5, %s3
  loop: start=0, step=1, limit=6
  $region2: #{bpr_forward.8} parent=0 // loop_pre_header
    _
  $region3: #{bpr_forward.8} parent=0 // loop_header
    %s8 = sphi 0, %s12
    %p9 = scmp.ge.s32.totalorder %s8, 6
    %s15 = sphi 0, %s27
    %s16 = sphi 0, %s23
    %s17 = sphi 0, %s15
    %s18 = sphi 0, %s16
    %s19 = sphi 0, %s17
    %s20 = sphi 0, %s18
    %s32 = sphi 0, %s34
    %s35 = sphi 0, %s32
    %s36 = sphi 0, %s35
    %s52 = sphi 0, %s36
    %s58 = sphi 0, %s60
    %s61 = sphi 0, %s58
    %s62 = sphi 0, %s61
    %s78 = sphi 0, %s62
    %s84 = sphi 0, %s86
    %s87 = sphi 0, %s84
    %s88 = sphi 0, %s87
    %s104 = sphi 0, %s88
  $region4: #{bpr_forward.8} parent=0 // loop_header_branch
    %11 = sbr.rel (%p9) target = $region8
  $region5: #{bpr_forward.8} parent=0 // loop_body
    %s13 = ssub.s32 %s8, 1
    %s14 = ssub.s32 %s8, 2
    %s21 = sadd.s32 1, %s16
    %p22 = scmp.ge.s32.totalorder %s21, 1
    %s23 = scalar_select %p22, 0, %s21
    %s24 = sadd.s32 1, %s15
    %s25 = scalar_select %p22, %s24, %s15
    %p26 = scmp.ge.s32.totalorder %s25, 4
    %s27 = scalar_select %p26, 0, %s25
    %s28 = ssub.s32 %s15, %s27
    %s29 = ssub.s32 %s16, %s23
    %s30 = sor.u32 %s28, %s29
    %p31 = scmp.eq.s32.totalorder %s30, 0
    %s33 = sadd.s32 %s32, 1
    %s34 = scalar_select %p31, %s32, %s33
    %p37 = pneg %p31
    %p38 = scmp.eq.s32.totalorder %s8, 3
    %p39 = por %p37, %p38
    %p40 = scmp.ne.s32.totalorder %s32, %s35
    %p41 = scmp.eq.s32.totalorder %s8, 0
    %p42 = por %p40, %p41
    %p43 = scmp.ne.s32.totalorder %s32, %s35
    %p44 = scmp.eq.s32.totalorder %s13, 3
    %p45 = por %p43, %p44
    %p46 = scmp.ne.s32.totalorder %s35, %s36
    %p47 = scmp.eq.s32.totalorder %s13, 0
    %p48 = por %p46, %p47
    %p49 = scmp.ne.s32.totalorder %s35, %s36
    %p50 = scmp.eq.s32.totalorder %s14, 3
    %p51 = por %p49, %p50
    %p53 = scmp.ne.s32.totalorder %s36, %s52
    %p54 = scmp.eq.s32.totalorder %s14, 0
    %p55 = por %p53, %p54
    %s56 = ssub.s32 %s16, %s23
    %p57 = scmp.eq.s32.totalorder %s56, 0
    %s59 = sadd.s32 %s58, 1
    %s60 = scalar_select %p57, %s58, %s59
    %p63 = pneg %p57
    %p64 = scmp.eq.s32.totalorder %s8, 3
    %p65 = por %p63, %p64
    %p66 = scmp.ne.s32.totalorder %s58, %s61
    %p67 = scmp.eq.s32.totalorder %s8, 0
    %p68 = por %p66, %p67
    %p69 = scmp.ne.s32.totalorder %s58, %s61
    %p70 = scmp.eq.s32.totalorder %s13, 3
    %p71 = por %p69, %p70
    %p72 = scmp.ne.s32.totalorder %s61, %s62
    %p73 = scmp.eq.s32.totalorder %s13, 0
    %p74 = por %p72, %p73
    %p75 = scmp.ne.s32.totalorder %s61, %s62
    %p76 = scmp.eq.s32.totalorder %s14, 3
    %p77 = por %p75, %p76
    %p79 = scmp.ne.s32.totalorder %s62, %s78
    %p80 = scmp.eq.s32.totalorder %s14, 0
    %p81 = por %p79, %p80
    %s82 = ssub.s32 %s15, %s27
    %p83 = scmp.eq.s32.totalorder %s82, 0
    %s85 = sadd.s32 %s84, 1
    %s86 = scalar_select %p83, %s84, %s85
    %p89 = pneg %p83
    %p90 = scmp.eq.s32.totalorder %s8, 3
    %p91 = por %p89, %p90
    %p92 = scmp.ne.s32.totalorder %s84, %s87
    %p93 = scmp.eq.s32.totalorder %s8, 0
    %p94 = por %p92, %p93
    %p95 = scmp.ne.s32.totalorder %s84, %s87
    %p96 = scmp.eq.s32.totalorder %s13, 3
    %p97 = por %p95, %p96
    %p98 = scmp.ne.s32.totalorder %s87, %s88
    %p99 = scmp.eq.s32.totalorder %s13, 0
    %p100 = por %p98, %p99
    %p101 = scmp.ne.s32.totalorder %s87, %s88
    %p102 = scmp.eq.s32.totalorder %s14, 3
    %p103 = por %p101, %p102
    %p105 = scmp.ne.s32.totalorder %s88, %s104
    %p106 = scmp.eq.s32.totalorder %s14, 0
    %p107 = por %p105, %p106
    %p108 = scmp.le.s32.totalorder 1, %s8
    %p109 = scmp.lt.s32.totalorder %s8, 5
    %p110 = pnand %p108, %p109
    %p111 = pneg %p110
    // Predicated region
    $region9: #{bpr_forward.8} parent=5 // pred_check
      _
    $region10: #{bpr_forward.8} parent=5 // pred_check_branch
      %113 = sbr.rel (%p110) target = $region12
    $region11: #{bpr_forward.8} parent=5 // pred_region
      %s114 = ssub.s32 %s8, 1
      // Predicated region
      $region13: #{bpr_forward.8} parent=11 // pred_check
        %p115 = pneg %p74
      $region14: #{bpr_forward.8} parent=11 // pred_check_branch
        %117 = sbr.rel (%p115) target = $region16
      $region15: #{bpr_forward.8} parent=11 // pred_region
        %s118 = smul.u32 128, %s18
        %p119 = scmp.lt.s32.totalorder %s118, 127
        %s120 = scalar_select %p119, %s118, 127
        %s121 = smul.addr %s120, 4
        %s122 = scalar_lea.vmem %s1, %s121
        %s123 = smul.u32 128, %s18
      $region16: #{bpr_forward.8} parent=11 // pred_fallthru
        _
    $region12: #{bpr_forward.8} parent=5 // pred_fallthru
      _
    %p124 = scmp.lt.s32.totalorder %s8, 4
    // Predicated region
    $region17: #{bpr_forward.8} parent=5 // pred_check
      %p125 = pneg %p124
    $region18: #{bpr_forward.8} parent=5 // pred_check_branch
      %127 = sbr.rel (%p125) target = $region20
    $region19: #{bpr_forward.8} parent=5 // pred_region
      // Predicated region
      $region21: #{bpr_forward.8} parent=19 // pred_check
        %p128 = pneg %p42
      $region22: #{bpr_forward.8} parent=19 // pred_check_branch
        %130 = sbr.rel (%p128) target = $region24
      $region23: #{bpr_forward.8} parent=19 // pred_region
        %s131 = smul.u32 16, %s15
        %s132 = smul.u32 8, %s16
        %p133 = scmp.lt.s32.totalorder %s131, 63
        %s134 = scalar_select %p133, %s131, 63
        %p135 = scmp.lt.s32.totalorder %s132, 7
        %s136 = scalar_select %p135, %s132, 7
        %s137 = smul.addr %s134, 8
        %s138 = sadd.s32 %s136, %s137
        %s139 = smul.addr %s138, 4
        %s140 = scalar_lea.vmem %s0, %s139
        %s141 = smul.u32 16, %s15
        %s142 = smul.u32 8, %s16
      $region24: #{bpr_forward.8} parent=19 // pred_fallthru
        _
    $region20: #{bpr_forward.8} parent=5 // pred_fallthru
      _
    %p143 = scmp.le.s32.totalorder 1, %s8
    %p144 = scmp.lt.s32.totalorder %s8, 5
    %p145 = pnand %p143, %p144
    %p146 = pneg %p145
    // Predicated region
    $region25: #{bpr_forward.8} parent=5 // pred_check
      _
    $region26: #{bpr_forward.8} parent=5 // pred_check_branch
      %148 = sbr.rel (%p145) target = $region28
    $region27: #{bpr_forward.8} parent=5 // pred_region
      %s149 = ssub.s32 %s8, 1
      %s150 = smul.u32 16, %s17
      %s151 = smul.u32 8, %s18
      %p152 = scmp.lt.s32.totalorder %s150, 63
      %s153 = scalar_select %p152, %s150, 63
      %p154 = scmp.lt.s32.totalorder %s151, 7
      %s155 = scalar_select %p154, %s151, 7
      %s156 = smul.addr %s153, 8
      %s157 = sadd.s32 %s155, %s156
      %s158 = smul.addr %s157, 4
      %s159 = scalar_lea.vmem %s0, %s158
      %p160 = pneg %p48
      %p161 = pneg %p45
      %s162 = smul.u32 128, %s18
      %p163 = scmp.lt.s32.totalorder %s162, 127
      %s164 = scalar_select %p163, %s162, 127
      %s165 = smul.addr %s164, 4
      %s166 = scalar_lea.vmem %s1, %s165
      %p167 = pneg %p74
      %p168 = pneg %p71
      %p169 = pneg %p100
      %p170 = pneg %p97
      %s171 = smul.u32 16, %s17
      %p172 = scmp.lt.s32.totalorder %s171, 63
      %s173 = scalar_select %p172, %s171, 63
      %s174 = smul.addr %s173, 4
      %s175 = scalar_lea.vmem %s2, %s174
      %s176 = smul.u32 16, %s17
      %s177 = smul.u32 8, %s18
      %p178 = scmp.lt.s32.totalorder %s176, 63
      %s179 = scalar_select %p178, %s176, 63
      %p180 = scmp.lt.s32.totalorder %s177, 7
      %s181 = scalar_select %p180, %s177, 7
      %s182 = smul.addr %s179, 8
      %s183 = sadd.s32 %s181, %s182
      %s184 = smul.addr %s183, 4
      %s185 = scalar_lea.vmem %s0, %s184
      %s186 = smul.u32 16, %s17
      %s187 = smul.u32 8, %s18
      %s188 = smul.u32 128, %s18
      %p189 = scmp.lt.s32.totalorder %s188, 127
      %s190 = scalar_select %p189, %s188, 127
      %s191 = smul.addr %s190, 4
      %s192 = scalar_lea.vmem %s1, %s191
      %s193 = smul.u32 128, %s18
      %s194 = smul.u32 16, %s17
      %p195 = scmp.lt.s32.totalorder %s194, 63
      %s196 = scalar_select %p195, %s194, 63
      %s197 = smul.addr %s196, 4
      %s198 = scalar_lea.vmem %s2, %s197
      %s199 = smul.u32 16, %s17
      %p201 = scmp.eq.s32.totalorder %s18, 0
      // Predicated region
      $region29: #{bpr_forward.8} parent=27 // pred_check
        %p202 = pneg %p201
      $region30: #{bpr_forward.8} parent=27 // pred_check_branch
        %204 = sbr.rel (%p202) target = $region32
      $region31: #{bpr_forward.8} parent=27 // pred_region
        %205 = vst [vmem:[#allocation2] sm:$0xff] 0.0
        %206 = vst [vmem:[#allocation2 + $0x8] sm:$0xff] 0.0
        %207 = vst [vmem:[#allocation2 + $0x10] sm:$0xff] 0.0
        %208 = vst [vmem:[#allocation2 + $0x18] sm:$0xff] 0.0
        %209 = vst [vmem:[#allocation2 + $0x20] sm:$0xff] 0.0
        %210 = vst [vmem:[#allocation2 + $0x28] sm:$0xff] 0.0
        %211 = vst [vmem:[#allocation2 + $0x30] sm:$0xff] 0.0
        %212 = vst [vmem:[#allocation2 + $0x38] sm:$0xff] 0.0
        %213 = vst [vmem:[#allocation2 + $0x40] sm:$0xff] 0.0
        %214 = vst [vmem:[#allocation2 + $0x48] sm:$0xff] 0.0
        %215 = vst [vmem:[#allocation2 + $0x50] sm:$0xff] 0.0
        %216 = vst [vmem:[#allocation2 + $0x58] sm:$0xff] 0.0
        %217 = vst [vmem:[#allocation2 + $0x60] sm:$0xff] 0.0
        %218 = vst [vmem:[#allocation2 + $0x68] sm:$0xff] 0.0
        %219 = vst [vmem:[#allocation2 + $0x70] sm:$0xff] 0.0
        %220 = vst [vmem:[#allocation2 + $0x78] sm:$0xff] 0.0
      $region32: #{bpr_forward.8} parent=27 // pred_fallthru
        _
      %v221 = vld [vmem:[#allocation2] sm:$0xff]
      %v222 = vld [vmem:[#allocation2 + $0x8] sm:$0xff]
      %v223 = vld [vmem:[#allocation2 + $0x10] sm:$0xff]
      %v224 = vld [vmem:[#allocation2 + $0x18] sm:$0xff]
      %v225 = vld [vmem:[#allocation2 + $0x20] sm:$0xff]
      %v226 = vld [vmem:[#allocation2 + $0x28] sm:$0xff]
      %v227 = vld [vmem:[#allocation2 + $0x30] sm:$0xff]
      %v228 = vld [vmem:[#allocation2 + $0x38] sm:$0xff]
      %v229 = vld [vmem:[#allocation2 + $0x40] sm:$0xff]
      %v230 = vld [vmem:[#allocation2 + $0x48] sm:$0xff]
      %v231 = vld [vmem:[#allocation2 + $0x50] sm:$0xff]
      %v232 = vld [vmem:[#allocation2 + $0x58] sm:$0xff]
      %v233 = vld [vmem:[#allocation2 + $0x60] sm:$0xff]
      %v234 = vld [vmem:[#allocation2 + $0x68] sm:$0xff]
      %v235 = vld [vmem:[#allocation2 + $0x70] sm:$0xff]
      %v236 = vld [vmem:[#allocation2 + $0x78] sm:$0xff]
      %v237 = vld [vmem:[%s185] sm:$0xff]
      %v238 = vld [vmem:[%s185 + $0x8] sm:$0xff]
      %v239 = vld [vmem:[%s185 + $0x10] sm:$0xff]
      %v240 = vld [vmem:[%s185 + $0x18] sm:$0xff]
      %v241 = vld [vmem:[%s185 + $0x20] sm:$0xff]
      %v242 = vld [vmem:[%s185 + $0x28] sm:$0xff]
      %v243 = vld [vmem:[%s185 + $0x30] sm:$0xff]
      %v244 = vld [vmem:[%s185 + $0x38] sm:$0xff]
      %v245 = vld [vmem:[%s185 + $0x40] sm:$0xff]
      %v246 = vld [vmem:[%s185 + $0x48] sm:$0xff]
      %v247 = vld [vmem:[%s185 + $0x50] sm:$0xff]
      %v248 = vld [vmem:[%s185 + $0x58] sm:$0xff]
      %v249 = vld [vmem:[%s185 + $0x60] sm:$0xff]
      %v250 = vld [vmem:[%s185 + $0x68] sm:$0xff]
      %v251 = vld [vmem:[%s185 + $0x70] sm:$0xff]
      %v252 = vld [vmem:[%s185 + $0x78] sm:$0xff]
      %v253 = vld [vmem:[%s185 + $0x80] sm:$0xff]
      %v254 = vld [vmem:[%s185 + $0x88] sm:$0xff]
      %v255 = vld [vmem:[%s185 + $0x90] sm:$0xff]
      %v256 = vld [vmem:[%s185 + $0x98] sm:$0xff]
      %v257 = vld [vmem:[%s185 + $0xa0] sm:$0xff]
      %v258 = vld [vmem:[%s185 + $0xa8] sm:$0xff]
      %v259 = vld [vmem:[%s185 + $0xb0] sm:$0xff]
      %v260 = vld [vmem:[%s185 + $0xb8] sm:$0xff]
      %v261 = vld [vmem:[%s185 + $0xc0] sm:$0xff]
      %v262 = vld [vmem:[%s185 + $0xc8] sm:$0xff]
      %v263 = vld [vmem:[%s185 + $0xd0] sm:$0xff]
      %v264 = vld [vmem:[%s185 + $0xd8] sm:$0xff]
      %v265 = vld [vmem:[%s185 + $0xe0] sm:$0xff]
      %v266 = vld [vmem:[%s185 + $0xe8] sm:$0xff]
      %v267 = vld [vmem:[%s185 + $0xf0] sm:$0xff]
      %v268 = vld [vmem:[%s185 + $0xf8] sm:$0xff]
      %v269 = vld [vmem:[%s185 + $0x100] sm:$0xff]
      %v270 = vld [vmem:[%s185 + $0x108] sm:$0xff]
      %v271 = vld [vmem:[%s185 + $0x110] sm:$0xff]
      %v272 = vld [vmem:[%s185 + $0x118] sm:$0xff]
      %v273 = vld [vmem:[%s185 + $0x120] sm:$0xff]
      %v274 = vld [vmem:[%s185 + $0x128] sm:$0xff]
      %v275 = vld [vmem:[%s185 + $0x130] sm:$0xff]
      %v276 = vld [vmem:[%s185 + $0x138] sm:$0xff]
      %v277 = vld [vmem:[%s185 + $0x140] sm:$0xff]
      %v278 = vld [vmem:[%s185 + $0x148] sm:$0xff]
      %v279 = vld [vmem:[%s185 + $0x150] sm:$0xff]
      %v280 = vld [vmem:[%s185 + $0x158] sm:$0xff]
      %v281 = vld [vmem:[%s185 + $0x160] sm:$0xff]
      %v282 = vld [vmem:[%s185 + $0x168] sm:$0xff]
      %v283 = vld [vmem:[%s185 + $0x170] sm:$0xff]
      %v284 = vld [vmem:[%s185 + $0x178] sm:$0xff]
      %v285 = vld [vmem:[%s185 + $0x180] sm:$0xff]
      %v286 = vld [vmem:[%s185 + $0x188] sm:$0xff]
      %v287 = vld [vmem:[%s185 + $0x190] sm:$0xff]
      %v288 = vld [vmem:[%s185 + $0x198] sm:$0xff]
      %v289 = vld [vmem:[%s185 + $0x1a0] sm:$0xff]
      %v290 = vld [vmem:[%s185 + $0x1a8] sm:$0xff]
      %v291 = vld [vmem:[%s185 + $0x1b0] sm:$0xff]
      %v292 = vld [vmem:[%s185 + $0x1b8] sm:$0xff]
      %v293 = vld [vmem:[%s185 + $0x1c0] sm:$0xff]
      %v294 = vld [vmem:[%s185 + $0x1c8] sm:$0xff]
      %v295 = vld [vmem:[%s185 + $0x1d0] sm:$0xff]
      %v296 = vld [vmem:[%s185 + $0x1d8] sm:$0xff]
      %v297 = vld [vmem:[%s185 + $0x1e0] sm:$0xff]
      %v298 = vld [vmem:[%s185 + $0x1e8] sm:$0xff]
      %v299 = vld [vmem:[%s185 + $0x1f0] sm:$0xff]
      %v300 = vld [vmem:[%s185 + $0x1f8] sm:$0xff]
      %v301 = vld [vmem:[%s192] sm:$0xf]
      %v302 = vld [vmem:[%s192 + $0x4] sm:$0xf]
      %v303 = vld [vmem:[%s192 + $0x8] sm:$0xf]
      %v304 = vld [vmem:[%s192 + $0xc] sm:$0xf]
      %v305 = vld [vmem:[%s192 + $0x10] sm:$0xf]
      %v306 = vld [vmem:[%s192 + $0x14] sm:$0xf]
      %v307 = vld [vmem:[%s192 + $0x18] sm:$0xf]
      %v308 = vld [vmem:[%s192 + $0x1c] sm:$0xf]
      %v309 = vld [vmem:[%s192 + $0x20] sm:$0xf]
      %v310 = vld [vmem:[%s192 + $0x24] sm:$0xf]
      %v311 = vld [vmem:[%s192 + $0x28] sm:$0xf]
      %v312 = vld [vmem:[%s192 + $0x2c] sm:$0xf]
      %v313 = vld [vmem:[%s192 + $0x30] sm:$0xf]
      %v314 = vld [vmem:[%s192 + $0x34] sm:$0xf]
      %v315 = vld [vmem:[%s192 + $0x38] sm:$0xf]
      %v316 = vld [vmem:[%s192 + $0x3c] sm:$0xf]
      %v317 = vld [vmem:[%s192 + $0x40] sm:$0xf]
      %v318 = vld [vmem:[%s192 + $0x44] sm:$0xf]
      %v319 = vld [vmem:[%s192 + $0x48] sm:$0xf]
      %v320 = vld [vmem:[%s192 + $0x4c] sm:$0xf]
      %v321 = vld [vmem:[%s192 + $0x50] sm:$0xf]
      %v322 = vld [vmem:[%s192 + $0x54] sm:$0xf]
      %v323 = vld [vmem:[%s192 + $0x58] sm:$0xf]
      %v324 = vld [vmem:[%s192 + $0x5c] sm:$0xf]
      %v325 = vld [vmem:[%s192 + $0x60] sm:$0xf]
      %v326 = vld [vmem:[%s192 + $0x64] sm:$0xf]
      %v327 = vld [vmem:[%s192 + $0x68] sm:$0xf]
      %v328 = vld [vmem:[%s192 + $0x6c] sm:$0xf]
      %v329 = vld [vmem:[%s192 + $0x70] sm:$0xf]
      %v330 = vld [vmem:[%s192 + $0x74] sm:$0xf]
      %v331 = vld [vmem:[%s192 + $0x78] sm:$0xf]
      %v332 = vld [vmem:[%s192 + $0x7c] sm:$0xf]
      %v333 = vld [vmem:[%s192 + $0x80] sm:$0xf]
      %v334 = vld [vmem:[%s192 + $0x84] sm:$0xf]
      %v335 = vld [vmem:[%s192 + $0x88] sm:$0xf]
      %v336 = vld [vmem:[%s192 + $0x8c] sm:$0xf]
      %v337 = vld [vmem:[%s192 + $0x90] sm:$0xf]
      %v338 = vld [vmem:[%s192 + $0x94] sm:$0xf]
      %v339 = vld [vmem:[%s192 + $0x98] sm:$0xf]
      %v340 = vld [vmem:[%s192 + $0x9c] sm:$0xf]
      %v341 = vld [vmem:[%s192 + $0xa0] sm:$0xf]
      %v342 = vld [vmem:[%s192 + $0xa4] sm:$0xf]
      %v343 = vld [vmem:[%s192 + $0xa8] sm:$0xf]
      %v344 = vld [vmem:[%s192 + $0xac] sm:$0xf]
      %v345 = vld [vmem:[%s192 + $0xb0] sm:$0xf]
      %v346 = vld [vmem:[%s192 + $0xb4] sm:$0xf]
      %v347 = vld [vmem:[%s192 + $0xb8] sm:$0xf]
      %v348 = vld [vmem:[%s192 + $0xbc] sm:$0xf]
      %v349 = vld [vmem:[%s192 + $0xc0] sm:$0xf]
      %v350 = vld [vmem:[%s192 + $0xc4] sm:$0xf]
      %v351 = vld [vmem:[%s192 + $0xc8] sm:$0xf]
      %v352 = vld [vmem:[%s192 + $0xcc] sm:$0xf]
      %v353 = vld [vmem:[%s192 + $0xd0] sm:$0xf]
      %v354 = vld [vmem:[%s192 + $0xd4] sm:$0xf]
      %v355 = vld [vmem:[%s192 + $0xd8] sm:$0xf]
      %v356 = vld [vmem:[%s192 + $0xdc] sm:$0xf]
      %v357 = vld [vmem:[%s192 + $0xe0] sm:$0xf]
      %v358 = vld [vmem:[%s192 + $0xe4] sm:$0xf]
      %v359 = vld [vmem:[%s192 + $0xe8] sm:$0xf]
      %v360 = vld [vmem:[%s192 + $0xec] sm:$0xf]
      %v361 = vld [vmem:[%s192 + $0xf0] sm:$0xf]
      %v362 = vld [vmem:[%s192 + $0xf4] sm:$0xf]
      %v363 = vld [vmem:[%s192 + $0xf8] sm:$0xf]
      %v364 = vld [vmem:[%s192 + $0xfc] sm:$0xf]
      %v365 = vld [vmem:[%s192 + $0x100] sm:$0xf]
      %v366 = vld [vmem:[%s192 + $0x104] sm:$0xf]
      %v367 = vld [vmem:[%s192 + $0x108] sm:$0xf]
      %v368 = vld [vmem:[%s192 + $0x10c] sm:$0xf]
      %v369 = vld [vmem:[%s192 + $0x110] sm:$0xf]
      %v370 = vld [vmem:[%s192 + $0x114] sm:$0xf]
      %v371 = vld [vmem:[%s192 + $0x118] sm:$0xf]
      %v372 = vld [vmem:[%s192 + $0x11c] sm:$0xf]
      %v373 = vld [vmem:[%s192 + $0x120] sm:$0xf]
      %v374 = vld [vmem:[%s192 + $0x124] sm:$0xf]
      %v375 = vld [vmem:[%s192 + $0x128] sm:$0xf]
      %v376 = vld [vmem:[%s192 + $0x12c] sm:$0xf]
      %v377 = vld [vmem:[%s192 + $0x130] sm:$0xf]
      %v378 = vld [vmem:[%s192 + $0x134] sm:$0xf]
      %v379 = vld [vmem:[%s192 + $0x138] sm:$0xf]
      %v380 = vld [vmem:[%s192 + $0x13c] sm:$0xf]
      %v381 = vld [vmem:[%s192 + $0x140] sm:$0xf]
      %v382 = vld [vmem:[%s192 + $0x144] sm:$0xf]
      %v383 = vld [vmem:[%s192 + $0x148] sm:$0xf]
      %v384 = vld [vmem:[%s192 + $0x14c] sm:$0xf]
      %v385 = vld [vmem:[%s192 + $0x150] sm:$0xf]
      %v386 = vld [vmem:[%s192 + $0x154] sm:$0xf]
      %v387 = vld [vmem:[%s192 + $0x158] sm:$0xf]
      %v388 = vld [vmem:[%s192 + $0x15c] sm:$0xf]
      %v389 = vld [vmem:[%s192 + $0x160] sm:$0xf]
      %v390 = vld [vmem:[%s192 + $0x164] sm:$0xf]
      %v391 = vld [vmem:[%s192 + $0x168] sm:$0xf]
      %v392 = vld [vmem:[%s192 + $0x16c] sm:$0xf]
      %v393 = vld [vmem:[%s192 + $0x170] sm:$0xf]
      %v394 = vld [vmem:[%s192 + $0x174] sm:$0xf]
      %v395 = vld [vmem:[%s192 + $0x178] sm:$0xf]
      %v396 = vld [vmem:[%s192 + $0x17c] sm:$0xf]
      %v397 = vld [vmem:[%s192 + $0x180] sm:$0xf]
      %v398 = vld [vmem:[%s192 + $0x184] sm:$0xf]
      %v399 = vld [vmem:[%s192 + $0x188] sm:$0xf]
      %v400 = vld [vmem:[%s192 + $0x18c] sm:$0xf]
      %v401 = vld [vmem:[%s192 + $0x190] sm:$0xf]
      %v402 = vld [vmem:[%s192 + $0x194] sm:$0xf]
      %v403 = vld [vmem:[%s192 + $0x198] sm:$0xf]
      %v404 = vld [vmem:[%s192 + $0x19c] sm:$0xf]
      %v405 = vld [vmem:[%s192 + $0x1a0] sm:$0xf]
      %v406 = vld [vmem:[%s192 + $0x1a4] sm:$0xf]
      %v407 = vld [vmem:[%s192 + $0x1a8] sm:$0xf]
      %v408 = vld [vmem:[%s192 + $0x1ac] sm:$0xf]
      %v409 = vld [vmem:[%s192 + $0x1b0] sm:$0xf]
      %v410 = vld [vmem:[%s192 + $0x1b4] sm:$0xf]
      %v411 = vld [vmem:[%s192 + $0x1b8] sm:$0xf]
      %v412 = vld [vmem:[%s192 + $0x1bc] sm:$0xf]
      %v413 = vld [vmem:[%s192 + $0x1c0] sm:$0xf]
      %v414 = vld [vmem:[%s192 + $0x1c4] sm:$0xf]
      %v415 = vld [vmem:[%s192 + $0x1c8] sm:$0xf]
      %v416 = vld [vmem:[%s192 + $0x1cc] sm:$0xf]
      %v417 = vld [vmem:[%s192 + $0x1d0] sm:$0xf]
      %v418 = vld [vmem:[%s192 + $0x1d4] sm:$0xf]
      %v419 = vld [vmem:[%s192 + $0x1d8] sm:$0xf]
      %v420 = vld [vmem:[%s192 + $0x1dc] sm:$0xf]
      %v421 = vld [vmem:[%s192 + $0x1e0] sm:$0xf]
      %v422 = vld [vmem:[%s192 + $0x1e4] sm:$0xf]
      %v423 = vld [vmem:[%s192 + $0x1e8] sm:$0xf]
      %v424 = vld [vmem:[%s192 + $0x1ec] sm:$0xf]
      %v425 = vld [vmem:[%s192 + $0x1f0] sm:$0xf]
      %v426 = vld [vmem:[%s192 + $0x1f4] sm:$0xf]
      %v427 = vld [vmem:[%s192 + $0x1f8] sm:$0xf]
      %v428 = vld [vmem:[%s192 + $0x1fc] sm:$0xf]
      %v493 = vunpack.c.l.b16 %v237
      %v494 = vunpack.c.h.b16 %v237
      %v495 = vunpack.c.l.b16 %v238
      %v496 = vunpack.c.h.b16 %v238
      %v497 = vunpack.c.l.b16 %v239
      %v498 = vunpack.c.h.b16 %v239
      %v499 = vunpack.c.l.b16 %v240
      %v500 = vunpack.c.h.b16 %v240
      %v501 = vunpack.c.l.b16 %v241
      %v502 = vunpack.c.h.b16 %v241
      %v503 = vunpack.c.l.b16 %v242
      %v504 = vunpack.c.h.b16 %v242
      %v505 = vunpack.c.l.b16 %v243
      %v506 = vunpack.c.h.b16 %v243
      %v507 = vunpack.c.l.b16 %v244
      %v508 = vunpack.c.h.b16 %v244
      %v509 = vunpack.c.l.b16 %v245
      %v510 = vunpack.c.h.b16 %v245
      %v511 = vunpack.c.l.b16 %v246
      %v512 = vunpack.c.h.b16 %v246
      %v513 = vunpack.c.l.b16 %v247
      %v514 = vunpack.c.h.b16 %v247
      %v515 = vunpack.c.l.b16 %v248
      %v516 = vunpack.c.h.b16 %v248
      %v517 = vunpack.c.l.b16 %v249
      %v518 = vunpack.c.h.b16 %v249
      %v519 = vunpack.c.l.b16 %v250
      %v520 = vunpack.c.h.b16 %v250
      %v521 = vunpack.c.l.b16 %v251
      %v522 = vunpack.c.h.b16 %v251
      %v523 = vunpack.c.l.b16 %v252
      %v524 = vunpack.c.h.b16 %v252
      %v525 = vunpack.c.l.b16 %v253
      %v526 = vunpack.c.h.b16 %v253
      %v527 = vunpack.c.l.b16 %v254
      %v528 = vunpack.c.h.b16 %v254
      %v529 = vunpack.c.l.b16 %v255
      %v530 = vunpack.c.h.b16 %v255
      %v531 = vunpack.c.l.b16 %v256
      %v532 = vunpack.c.h.b16 %v256
      %v533 = vunpack.c.l.b16 %v257
      %v534 = vunpack.c.h.b16 %v257
      %v535 = vunpack.c.l.b16 %v258
      %v536 = vunpack.c.h.b16 %v258
      %v537 = vunpack.c.l.b16 %v259
      %v538 = vunpack.c.h.b16 %v259
      %v539 = vunpack.c.l.b16 %v260
      %v540 = vunpack.c.h.b16 %v260
      %v541 = vunpack.c.l.b16 %v261
      %v542 = vunpack.c.h.b16 %v261
      %v543 = vunpack.c.l.b16 %v262
      %v544 = vunpack.c.h.b16 %v262
      %v545 = vunpack.c.l.b16 %v263
      %v546 = vunpack.c.h.b16 %v263
      %v547 = vunpack.c.l.b16 %v264
      %v548 = vunpack.c.h.b16 %v264
      %v549 = vunpack.c.l.b16 %v265
      %v550 = vunpack.c.h.b16 %v265
      %v551 = vunpack.c.l.b16 %v266
      %v552 = vunpack.c.h.b16 %v266
      %v553 = vunpack.c.l.b16 %v267
      %v554 = vunpack.c.h.b16 %v267
      %v555 = vunpack.c.l.b16 %v268
      %v556 = vunpack.c.h.b16 %v268
      %v557 = vunpack.c.l.b16 %v269
      %v558 = vunpack.c.h.b16 %v269
      %v559 = vunpack.c.l.b16 %v270
      %v560 = vunpack.c.h.b16 %v270
      %v561 = vunpack.c.l.b16 %v271
      %v562 = vunpack.c.h.b16 %v271
      %v563 = vunpack.c.l.b16 %v272
      %v564 = vunpack.c.h.b16 %v272
      %v565 = vunpack.c.l.b16 %v273
      %v566 = vunpack.c.h.b16 %v273
      %v567 = vunpack.c.l.b16 %v274
      %v568 = vunpack.c.h.b16 %v274
      %v569 = vunpack.c.l.b16 %v275
      %v570 = vunpack.c.h.b16 %v275
      %v571 = vunpack.c.l.b16 %v276
      %v572 = vunpack.c.h.b16 %v276
      %v573 = vunpack.c.l.b16 %v277
      %v574 = vunpack.c.h.b16 %v277
      %v575 = vunpack.c.l.b16 %v278
      %v576 = vunpack.c.h.b16 %v278
      %v577 = vunpack.c.l.b16 %v279
      %v578 = vunpack.c.h.b16 %v279
      %v579 = vunpack.c.l.b16 %v280
      %v580 = vunpack.c.h.b16 %v280
      %v581 = vunpack.c.l.b16 %v281
      %v582 = vunpack.c.h.b16 %v281
      %v583 = vunpack.c.l.b16 %v282
      %v584 = vunpack.c.h.b16 %v282
      %v585 = vunpack.c.l.b16 %v283
      %v586 = vunpack.c.h.b16 %v283
      %v587 = vunpack.c.l.b16 %v284
      %v588 = vunpack.c.h.b16 %v284
      %v589 = vunpack.c.l.b16 %v285
      %v590 = vunpack.c.h.b16 %v285
      %v591 = vunpack.c.l.b16 %v286
      %v592 = vunpack.c.h.b16 %v286
      %v593 = vunpack.c.l.b16 %v287
      %v594 = vunpack.c.h.b16 %v287
      %v595 = vunpack.c.l.b16 %v288
      %v596 = vunpack.c.h.b16 %v288
      %v597 = vunpack.c.l.b16 %v289
      %v598 = vunpack.c.h.b16 %v289
      %v599 = vunpack.c.l.b16 %v290
      %v600 = vunpack.c.h.b16 %v290
      %v601 = vunpack.c.l.b16 %v291
      %v602 = vunpack.c.h.b16 %v291
      %v603 = vunpack.c.l.b16 %v292
      %v604 = vunpack.c.h.b16 %v292
      %v605 = vunpack.c.l.b16 %v293
      %v606 = vunpack.c.h.b16 %v293
      %v607 = vunpack.c.l.b16 %v294
      %v608 = vunpack.c.h.b16 %v294
      %v609 = vunpack.c.l.b16 %v295
      %v610 = vunpack.c.h.b16 %v295
      %v611 = vunpack.c.l.b16 %v296
      %v612 = vunpack.c.h.b16 %v296
      %v613 = vunpack.c.l.b16 %v297
      %v614 = vunpack.c.h.b16 %v297
      %v615 = vunpack.c.l.b16 %v298
      %v616 = vunpack.c.h.b16 %v298
      %v617 = vunpack.c.l.b16 %v299
      %v618 = vunpack.c.h.b16 %v299
      %v619 = vunpack.c.l.b16 %v300
      %v620 = vunpack.c.h.b16 %v300
      %v621 = vpack.c.b16 %v501, %v493
      %v622 = vpack.c.b16 %v502, %v494
      %v623 = vpack.c.b16 %v503, %v495
      %v624 = vpack.c.b16 %v504, %v496
      %v625 = vpack.c.b16 %v505, %v497
      %v626 = vpack.c.b16 %v506, %v498
      %v627 = vpack.c.b16 %v507, %v499
      %v628 = vpack.c.b16 %v508, %v500
      %v629 = vpack.c.b16 %v517, %v509
      %v630 = vpack.c.b16 %v518, %v510
      %v631 = vpack.c.b16 %v519, %v511
      %v632 = vpack.c.b16 %v520, %v512
      %v633 = vpack.c.b16 %v521, %v513
      %v634 = vpack.c.b16 %v522, %v514
      %v635 = vpack.c.b16 %v523, %v515
      %v636 = vpack.c.b16 %v524, %v516
      %v637 = vpack.c.b16 %v533, %v525
      %v638 = vpack.c.b16 %v534, %v526
      %v639 = vpack.c.b16 %v535, %v527
      %v640 = vpack.c.b16 %v536, %v528
      %v641 = vpack.c.b16 %v537, %v529
      %v642 = vpack.c.b16 %v538, %v530
      %v643 = vpack.c.b16 %v539, %v531
      %v644 = vpack.c.b16 %v540, %v532
      %v645 = vpack.c.b16 %v549, %v541
      %v646 = vpack.c.b16 %v550, %v542
      %v647 = vpack.c.b16 %v551, %v543
      %v648 = vpack.c.b16 %v552, %v544
      %v649 = vpack.c.b16 %v553, %v545
      %v650 = vpack.c.b16 %v554, %v546
      %v651 = vpack.c.b16 %v555, %v547
      %v652 = vpack.c.b16 %v556, %v548
      %v653 = vpack.c.b16 %v565, %v557
      %v654 = vpack.c.b16 %v566, %v558
      %v655 = vpack.c.b16 %v567, %v559
      %v656 = vpack.c.b16 %v568, %v560
      %v657 = vpack.c.b16 %v569, %v561
      %v658 = vpack.c.b16 %v570, %v562
      %v659 = vpack.c.b16 %v571, %v563
      %v660 = vpack.c.b16 %v572, %v564
      %v661 = vpack.c.b16 %v581, %v573
      %v662 = vpack.c.b16 %v582, %v574
      %v663 = vpack.c.b16 %v583, %v575
      %v664 = vpack.c.b16 %v584, %v576
      %v665 = vpack.c.b16 %v585, %v577
      %v666 = vpack.c.b16 %v586, %v578
      %v667 = vpack.c.b16 %v587, %v579
      %v668 = vpack.c.b16 %v588, %v580
      %v669 = vpack.c.b16 %v597, %v589
      %v670 = vpack.c.b16 %v598, %v590
      %v671 = vpack.c.b16 %v599, %v591
      %v672 = vpack.c.b16 %v600, %v592
      %v673 = vpack.c.b16 %v601, %v593
      %v674 = vpack.c.b16 %v602, %v594
      %v675 = vpack.c.b16 %v603, %v595
      %v676 = vpack.c.b16 %v604, %v596
      %v677 = vpack.c.b16 %v613, %v605
      %v678 = vpack.c.b16 %v614, %v606
      %v679 = vpack.c.b16 %v615, %v607
      %v680 = vpack.c.b16 %v616, %v608
      %v681 = vpack.c.b16 %v617, %v609
      %v682 = vpack.c.b16 %v618, %v610
      %v683 = vpack.c.b16 %v619, %v611
      %v684 = vpack.c.b16 %v620, %v612
      %v877 = vunpack.c.l.b16 %v301
      %v878 = vunpack.c.l.b16 %v302
      %v879 = vunpack.c.l.b16 %v303
      %v880 = vunpack.c.l.b16 %v304
      %v881 = vunpack.c.l.b16 %v305
      %v882 = vunpack.c.l.b16 %v306
      %v883 = vunpack.c.l.b16 %v307
      %v884 = vunpack.c.l.b16 %v308
      %v885 = vunpack.c.l.b16 %v309
      %v886 = vunpack.c.l.b16 %v310
      %v887 = vunpack.c.l.b16 %v311
      %v888 = vunpack.c.l.b16 %v312
      %v889 = vunpack.c.l.b16 %v313
      %v890 = vunpack.c.l.b16 %v314
      %v891 = vunpack.c.l.b16 %v315
      %v892 = vunpack.c.l.b16 %v316
      %v893 = vunpack.c.l.b16 %v317
      %v894 = vunpack.c.l.b16 %v318
      %v895 = vunpack.c.l.b16 %v319
      %v896 = vunpack.c.l.b16 %v320
      %v897 = vunpack.c.l.b16 %v321
      %v898 = vunpack.c.l.b16 %v322
      %v899 = vunpack.c.l.b16 %v323
      %v900 = vunpack.c.l.b16 %v324
      %v901 = vunpack.c.l.b16 %v325
      %v902 = vunpack.c.l.b16 %v326
      %v903 = vunpack.c.l.b16 %v327
      %v904 = vunpack.c.l.b16 %v328
      %v905 = vunpack.c.l.b16 %v329
      %v906 = vunpack.c.l.b16 %v330
      %v907 = vunpack.c.l.b16 %v331
      %v908 = vunpack.c.l.b16 %v332
      %v909 = vunpack.c.l.b16 %v333
      %v910 = vunpack.c.l.b16 %v334
      %v911 = vunpack.c.l.b16 %v335
      %v912 = vunpack.c.l.b16 %v336
      %v913 = vunpack.c.l.b16 %v337
      %v914 = vunpack.c.l.b16 %v338
      %v915 = vunpack.c.l.b16 %v339
      %v916 = vunpack.c.l.b16 %v340
      %v917 = vunpack.c.l.b16 %v341
      %v918 = vunpack.c.l.b16 %v342
      %v919 = vunpack.c.l.b16 %v343
      %v920 = vunpack.c.l.b16 %v344
      %v921 = vunpack.c.l.b16 %v345
      %v922 = vunpack.c.l.b16 %v346
      %v923 = vunpack.c.l.b16 %v347
      %v924 = vunpack.c.l.b16 %v348
      %v925 = vunpack.c.l.b16 %v349
      %v926 = vunpack.c.l.b16 %v350
      %v927 = vunpack.c.l.b16 %v351
      %v928 = vunpack.c.l.b16 %v352
      %v929 = vunpack.c.l.b16 %v353
      %v930 = vunpack.c.l.b16 %v354
      %v931 = vunpack.c.l.b16 %v355
      %v932 = vunpack.c.l.b16 %v356
      %v933 = vunpack.c.l.b16 %v357
      %v934 = vunpack.c.l.b16 %v358
      %v935 = vunpack.c.l.b16 %v359
      %v936 = vunpack.c.l.b16 %v360
      %v937 = vunpack.c.l.b16 %v361
      %v938 = vunpack.c.l.b16 %v362
      %v939 = vunpack.c.l.b16 %v363
      %v940 = vunpack.c.l.b16 %v364
      %v941 = vunpack.c.l.b16 %v365
      %v942 = vunpack.c.l.b16 %v366
      %v943 = vunpack.c.l.b16 %v367
      %v944 = vunpack.c.l.b16 %v368
      %v945 = vunpack.c.l.b16 %v369
      %v946 = vunpack.c.l.b16 %v370
      %v947 = vunpack.c.l.b16 %v371
      %v948 = vunpack.c.l.b16 %v372
      %v949 = vunpack.c.l.b16 %v373
      %v950 = vunpack.c.l.b16 %v374
      %v951 = vunpack.c.l.b16 %v375
      %v952 = vunpack.c.l.b16 %v376
      %v953 = vunpack.c.l.b16 %v377
      %v954 = vunpack.c.l.b16 %v378
      %v955 = vunpack.c.l.b16 %v379
      %v956 = vunpack.c.l.b16 %v380
      %v957 = vunpack.c.l.b16 %v381
      %v958 = vunpack.c.l.b16 %v382
      %v959 = vunpack.c.l.b16 %v383
      %v960 = vunpack.c.l.b16 %v384
      %v961 = vunpack.c.l.b16 %v385
      %v962 = vunpack.c.l.b16 %v386
      %v963 = vunpack.c.l.b16 %v387
      %v964 = vunpack.c.l.b16 %v388
      %v965 = vunpack.c.l.b16 %v389
      %v966 = vunpack.c.l.b16 %v390
      %v967 = vunpack.c.l.b16 %v391
      %v968 = vunpack.c.l.b16 %v392
      %v969 = vunpack.c.l.b16 %v393
      %v970 = vunpack.c.l.b16 %v394
      %v971 = vunpack.c.l.b16 %v395
      %v972 = vunpack.c.l.b16 %v396
      %v973 = vunpack.c.l.b16 %v397
      %v974 = vunpack.c.l.b16 %v398
      %v975 = vunpack.c.l.b16 %v399
      %v976 = vunpack.c.l.b16 %v400
      %v977 = vunpack.c.l.b16 %v401
      %v978 = vunpack.c.l.b16 %v402
      %v979 = vunpack.c.l.b16 %v403
      %v980 = vunpack.c.l.b16 %v404
      %v981 = vunpack.c.l.b16 %v405
      %v982 = vunpack.c.l.b16 %v406
      %v983 = vunpack.c.l.b16 %v407
      %v984 = vunpack.c.l.b16 %v408
      %v985 = vunpack.c.l.b16 %v409
      %v986 = vunpack.c.l.b16 %v410
      %v987 = vunpack.c.l.b16 %v411
      %v988 = vunpack.c.l.b16 %v412
      %v989 = vunpack.c.l.b16 %v413
      %v990 = vunpack.c.l.b16 %v414
      %v991 = vunpack.c.l.b16 %v415
      %v992 = vunpack.c.l.b16 %v416
      %v993 = vunpack.c.l.b16 %v417
      %v994 = vunpack.c.l.b16 %v418
      %v995 = vunpack.c.l.b16 %v419
      %v996 = vunpack.c.l.b16 %v420
      %v997 = vunpack.c.l.b16 %v421
      %v998 = vunpack.c.l.b16 %v422
      %v999 = vunpack.c.l.b16 %v423
      %v1000 = vunpack.c.l.b16 %v424
      %v1001 = vunpack.c.l.b16 %v425
      %v1002 = vunpack.c.l.b16 %v426
      %v1003 = vunpack.c.l.b16 %v427
      %v1004 = vunpack.c.l.b16 %v428
      %v1005 = vpack.c.b16 %v878, %v877
      %v1006 = vpack.c.b16 %v880, %v879
      %v1007 = vpack.c.b16 %v882, %v881
      %v1008 = vpack.c.b16 %v884, %v883
      %v1009 = vpack.c.b16 %v886, %v885
      %v1010 = vpack.c.b16 %v888, %v887
      %v1011 = vpack.c.b16 %v890, %v889
      %v1012 = vpack.c.b16 %v892, %v891
      %v1013 = vpack.c.b16 %v894, %v893
      %v1014 = vpack.c.b16 %v896, %v895
      %v1015 = vpack.c.b16 %v898, %v897
      %v1016 = vpack.c.b16 %v900, %v899
      %v1017 = vpack.c.b16 %v902, %v901
      %v1018 = vpack.c.b16 %v904, %v903
      %v1019 = vpack.c.b16 %v906, %v905
      %v1020 = vpack.c.b16 %v908, %v907
      %v1021 = vpack.c.b16 %v910, %v909
      %v1022 = vpack.c.b16 %v912, %v911
      %v1023 = vpack.c.b16 %v914, %v913
      %v1024 = vpack.c.b16 %v916, %v915
      %v1025 = vpack.c.b16 %v918, %v917
      %v1026 = vpack.c.b16 %v920, %v919
      %v1027 = vpack.c.b16 %v922, %v921
      %v1028 = vpack.c.b16 %v924, %v923
      %v1029 = vpack.c.b16 %v926, %v925
      %v1030 = vpack.c.b16 %v928, %v927
      %v1031 = vpack.c.b16 %v930, %v929
      %v1032 = vpack.c.b16 %v932, %v931
      %v1033 = vpack.c.b16 %v934, %v933
      %v1034 = vpack.c.b16 %v936, %v935
      %v1035 = vpack.c.b16 %v938, %v937
      %v1036 = vpack.c.b16 %v940, %v939
      %v1037 = vpack.c.b16 %v942, %v941
      %v1038 = vpack.c.b16 %v944, %v943
      %v1039 = vpack.c.b16 %v946, %v945
      %v1040 = vpack.c.b16 %v948, %v947
      %v1041 = vpack.c.b16 %v950, %v949
      %v1042 = vpack.c.b16 %v952, %v951
      %v1043 = vpack.c.b16 %v954, %v953
      %v1044 = vpack.c.b16 %v956, %v955
      %v1045 = vpack.c.b16 %v958, %v957
      %v1046 = vpack.c.b16 %v960, %v959
      %v1047 = vpack.c.b16 %v962, %v961
      %v1048 = vpack.c.b16 %v964, %v963
      %v1049 = vpack.c.b16 %v966, %v965
      %v1050 = vpack.c.b16 %v968, %v967
      %v1051 = vpack.c.b16 %v970, %v969
      %v1052 = vpack.c.b16 %v972, %v971
      %v1053 = vpack.c.b16 %v974, %v973
      %v1054 = vpack.c.b16 %v976, %v975
      %v1055 = vpack.c.b16 %v978, %v977
      %v1056 = vpack.c.b16 %v980, %v979
      %v1057 = vpack.c.b16 %v982, %v981
      %v1058 = vpack.c.b16 %v984, %v983
      %v1059 = vpack.c.b16 %v986, %v985
      %v1060 = vpack.c.b16 %v988, %v987
      %v1061 = vpack.c.b16 %v990, %v989
      %v1062 = vpack.c.b16 %v992, %v991
      %v1063 = vpack.c.b16 %v994, %v993
      %v1064 = vpack.c.b16 %v996, %v995
      %v1065 = vpack.c.b16 %v998, %v997
      %v1066 = vpack.c.b16 %v1000, %v999
      %v1067 = vpack.c.b16 %v1002, %v1001
      %v1068 = vpack.c.b16 %v1004, %v1003
      %1133 = vmatprep.subr.bf16.mxu0 0
      %1134 = vmatpush1.bf16.msra.mxu0 %v1012
      %1135 = vmatprep.subr.bf16.mxu0 0
      %1136 = vmatpush1.bf16.msra.mxu0 %v1011
      %1137 = vmatprep.subr.bf16.mxu0 0
      %1138 = vmatpush1.bf16.msra.mxu0 %v1010
      %1139 = vmatprep.subr.bf16.mxu0 0
      %1140 = vmatpush1.bf16.msra.mxu0 %v1009
      %1141 = vmatprep.subr.bf16.mxu0 0
      %1142 = vmatpush1.bf16.msra.mxu0 %v1008
      %1143 = vmatprep.subr.bf16.mxu0 0
      %1144 = vmatpush1.bf16.msra.mxu0 %v1007
      %1145 = vmatprep.subr.bf16.mxu0 0
      %1146 = vmatpush1.bf16.msra.mxu0 %v1006
      %1147 = vmatprep.subr.bf16.mxu0 0
      %1148 = vmatpush1.bf16.msra.mxu0 %v1005
      %1149 = vmatprep.subr.bf16.mxu0 0
      %1150 = vmatpush2.bf16.msra.mxu0 %v1020
      %1151 = vmatprep.subr.bf16.mxu0 0
      %1152 = vmatpush2.bf16.msra.mxu0 %v1019
      %1153 = vmatprep.subr.bf16.mxu0 0
      %1154 = vmatpush2.bf16.msra.mxu0 %v1018
      %1155 = vmatprep.subr.bf16.mxu0 0
      %1156 = vmatpush2.bf16.msra.mxu0 %v1017
      %1157 = vmatprep.subr.bf16.mxu0 0
      %1158 = vmatpush2.bf16.msra.mxu0 %v1016
      %1159 = vmatprep.subr.bf16.mxu0 0
      %1160 = vmatpush2.bf16.msra.mxu0 %v1015
      %1161 = vmatprep.subr.bf16.mxu0 0
      %1162 = vmatpush2.bf16.msra.mxu0 %v1014
      %1163 = vmatprep.subr.bf16.mxu0 0
      %1164 = vmatpush2.bf16.msra.mxu0 %v1013
      %1165 = vmatprep.mubr.bf16.mxu0 %v622
      %1166 = vmatmul.mubr.bf16.gmra.mxu0 %v621
      %v1167 = vpop.f32.mrf.mxu0
      %v1168 = vadd.f32 0.0, %v1167
      %v1169 = vpop.f32.mrf.mxu0
      %v1170 = vpop.f32.mrf.mxu0
      %v1171 = vadd.f32 0.0, %v1170
      %v1172 = vpop.f32.mrf.mxu0
      %1173 = vmatprep.mubr.bf16.mxu0 %v630
      %1174 = vmatmul.mubr.bf16.gmra.mxu0 %v629
      %v1175 = vpop.f32.mrf.mxu0
      %v1176 = vadd.f32 0.0, %v1175
      %v1177 = vpop.f32.mrf.mxu0
      %v1178 = vpop.f32.mrf.mxu0
      %v1179 = vadd.f32 0.0, %v1178
      %v1180 = vpop.f32.mrf.mxu0
      %1181 = vmatprep.mubr.bf16.mxu0 %v638
      %1182 = vmatmul.mubr.bf16.gmra.mxu0 %v637
      %v1183 = vpop.f32.mrf.mxu0
      %v1184 = vadd.f32 0.0, %v1183
      %v1185 = vpop.f32.mrf.mxu0
      %v1186 = vpop.f32.mrf.mxu0
      %v1187 = vadd.f32 0.0, %v1186
      %v1188 = vpop.f32.mrf.mxu0
      %1189 = vmatprep.mubr.bf16.mxu0 %v646
      %1190 = vmatmul.mubr.bf16.gmra.mxu0 %v645
      %v1191 = vpop.f32.mrf.mxu0
      %v1192 = vadd.f32 0.0, %v1191
      %v1193 = vpop.f32.mrf.mxu0
      %v1194 = vpop.f32.mrf.mxu0
      %v1195 = vadd.f32 0.0, %v1194
      %v1196 = vpop.f32.mrf.mxu0
      %1197 = vmatprep.mubr.bf16.mxu0 %v654
      %1198 = vmatmul.mubr.bf16.gmra.mxu0 %v653
      %v1199 = vpop.f32.mrf.mxu0
      %v1200 = vadd.f32 0.0, %v1199
      %v1201 = vpop.f32.mrf.mxu0
      %v1202 = vpop.f32.mrf.mxu0
      %v1203 = vadd.f32 0.0, %v1202
      %v1204 = vpop.f32.mrf.mxu0
      %1205 = vmatprep.mubr.bf16.mxu0 %v662
      %1206 = vmatmul.mubr.bf16.gmra.mxu0 %v661
      %v1207 = vpop.f32.mrf.mxu0
      %v1208 = vadd.f32 0.0, %v1207
      %v1209 = vpop.f32.mrf.mxu0
      %v1210 = vpop.f32.mrf.mxu0
      %v1211 = vadd.f32 0.0, %v1210
      %v1212 = vpop.f32.mrf.mxu0
      %1213 = vmatprep.mubr.bf16.mxu0 %v670
      %1214 = vmatmul.mubr.bf16.gmra.mxu0 %v669
      %v1215 = vpop.f32.mrf.mxu0
      %v1216 = vadd.f32 0.0, %v1215
      %v1217 = vpop.f32.mrf.mxu0
      %v1218 = vpop.f32.mrf.mxu0
      %v1219 = vadd.f32 0.0, %v1218
      %v1220 = vpop.f32.mrf.mxu0
      %1221 = vmatprep.mubr.bf16.mxu0 %v678
      %1222 = vmatmul.mubr.bf16.gmra.mxu0 %v677
      %v1223 = vpop.f32.mrf.mxu0
      %v1224 = vadd.f32 0.0, %v1223
      %v1225 = vpop.f32.mrf.mxu0
      %v1226 = vpop.f32.mrf.mxu0
      %v1227 = vadd.f32 0.0, %v1226
      %v1228 = vpop.f32.mrf.mxu0
      %1229 = vdwg.mxu0
      %1230 = vmatprep.subr.bf16.mxu0 0
      %1231 = vmatpush1.bf16.msra.mxu0 %v1028
      %1232 = vmatprep.subr.bf16.mxu0 0
      %1233 = vmatpush1.bf16.msra.mxu0 %v1027
      %1234 = vmatprep.subr.bf16.mxu0 0
      %1235 = vmatpush1.bf16.msra.mxu0 %v1026
      %1236 = vmatprep.subr.bf16.mxu0 0
      %1237 = vmatpush1.bf16.msra.mxu0 %v1025
      %1238 = vmatprep.subr.bf16.mxu0 0
      %1239 = vmatpush1.bf16.msra.mxu0 %v1024
      %1240 = vmatprep.subr.bf16.mxu0 0
      %1241 = vmatpush1.bf16.msra.mxu0 %v1023
      %1242 = vmatprep.subr.bf16.mxu0 0
      %1243 = vmatpush1.bf16.msra.mxu0 %v1022
      %1244 = vmatprep.subr.bf16.mxu0 0
      %1245 = vmatpush1.bf16.msra.mxu0 %v1021
      %1246 = vmatprep.subr.bf16.mxu0 0
      %1247 = vmatpush2.bf16.msra.mxu0 %v1036
      %1248 = vmatprep.subr.bf16.mxu0 0
      %1249 = vmatpush2.bf16.msra.mxu0 %v1035
      %1250 = vmatprep.subr.bf16.mxu0 0
      %1251 = vmatpush2.bf16.msra.mxu0 %v1034
      %1252 = vmatprep.subr.bf16.mxu0 0
      %1253 = vmatpush2.bf16.msra.mxu0 %v1033
      %1254 = vmatprep.subr.bf16.mxu0 0
      %1255 = vmatpush2.bf16.msra.mxu0 %v1032
      %1256 = vmatprep.subr.bf16.mxu0 0
      %1257 = vmatpush2.bf16.msra.mxu0 %v1031
      %1258 = vmatprep.subr.bf16.mxu0 0
      %1259 = vmatpush2.bf16.msra.mxu0 %v1030
      %1260 = vmatprep.subr.bf16.mxu0 0
      %1261 = vmatpush2.bf16.msra.mxu0 %v1029
      %1262 = vmatprep.mubr.bf16.mxu0 %v624
      %1263 = vmatmul.mubr.bf16.gmra.mxu0 %v623
      %v1264 = vpop.f32.mrf.mxu0
      %v1265 = vadd.f32 %v1168, %v1264
      %v1266 = vpop.f32.mrf.mxu0
      %v1267 = vpop.f32.mrf.mxu0
      %v1268 = vadd.f32 %v1171, %v1267
      %v1269 = vpop.f32.mrf.mxu0
      %1270 = vmatprep.mubr.bf16.mxu0 %v632
      %1271 = vmatmul.mubr.bf16.gmra.mxu0 %v631
      %v1272 = vpop.f32.mrf.mxu0
      %v1273 = vadd.f32 %v1176, %v1272
      %v1274 = vpop.f32.mrf.mxu0
      %v1275 = vpop.f32.mrf.mxu0
      %v1276 = vadd.f32 %v1179, %v1275
      %v1277 = vpop.f32.mrf.mxu0
      %1278 = vmatprep.mubr.bf16.mxu0 %v640
      %1279 = vmatmul.mubr.bf16.gmra.mxu0 %v639
      %v1280 = vpop.f32.mrf.mxu0
      %v1281 = vadd.f32 %v1184, %v1280
      %v1282 = vpop.f32.mrf.mxu0
      %v1283 = vpop.f32.mrf.mxu0
      %v1284 = vadd.f32 %v1187, %v1283
      %v1285 = vpop.f32.mrf.mxu0
      %1286 = vmatprep.mubr.bf16.mxu0 %v648
      %1287 = vmatmul.mubr.bf16.gmra.mxu0 %v647
      %v1288 = vpop.f32.mrf.mxu0
      %v1289 = vadd.f32 %v1192, %v1288
      %v1290 = vpop.f32.mrf.mxu0
      %v1291 = vpop.f32.mrf.mxu0
      %v1292 = vadd.f32 %v1195, %v1291
      %v1293 = vpop.f32.mrf.mxu0
      %1294 = vmatprep.mubr.bf16.mxu0 %v656
      %1295 = vmatmul.mubr.bf16.gmra.mxu0 %v655
      %v1296 = vpop.f32.mrf.mxu0
      %v1297 = vadd.f32 %v1200, %v1296
      %v1298 = vpop.f32.mrf.mxu0
      %v1299 = vpop.f32.mrf.mxu0
      %v1300 = vadd.f32 %v1203, %v1299
      %v1301 = vpop.f32.mrf.mxu0
      %1302 = vmatprep.mubr.bf16.mxu0 %v664
      %1303 = vmatmul.mubr.bf16.gmra.mxu0 %v663
      %v1304 = vpop.f32.mrf.mxu0
      %v1305 = vadd.f32 %v1208, %v1304
      %v1306 = vpop.f32.mrf.mxu0
      %v1307 = vpop.f32.mrf.mxu0
      %v1308 = vadd.f32 %v1211, %v1307
      %v1309 = vpop.f32.mrf.mxu0
      %1310 = vmatprep.mubr.bf16.mxu0 %v672
      %1311 = vmatmul.mubr.bf16.gmra.mxu0 %v671
      %v1312 = vpop.f32.mrf.mxu0
      %v1313 = vadd.f32 %v1216, %v1312
      %v1314 = vpop.f32.mrf.mxu0
      %v1315 = vpop.f32.mrf.mxu0
      %v1316 = vadd.f32 %v1219, %v1315
      %v1317 = vpop.f32.mrf.mxu0
      %1318 = vmatprep.mubr.bf16.mxu0 %v680
      %1319 = vmatmul.mubr.bf16.gmra.mxu0 %v679
      %v1320 = vpop.f32.mrf.mxu0
      %v1321 = vadd.f32 %v1224, %v1320
      %v1322 = vpop.f32.mrf.mxu0
      %v1323 = vpop.f32.mrf.mxu0
      %v1324 = vadd.f32 %v1227, %v1323
      %v1325 = vpop.f32.mrf.mxu0
      %1326 = vdwg.mxu0
      %1327 = vmatprep.subr.bf16.mxu0 0
      %1328 = vmatpush1.bf16.msra.mxu0 %v1044
      %1329 = vmatprep.subr.bf16.mxu0 0
      %1330 = vmatpush1.bf16.msra.mxu0 %v1043
      %1331 = vmatprep.subr.bf16.mxu0 0
      %1332 = vmatpush1.bf16.msra.mxu0 %v1042
      %1333 = vmatprep.subr.bf16.mxu0 0
      %1334 = vmatpush1.bf16.msra.mxu0 %v1041
      %1335 = vmatprep.subr.bf16.mxu0 0
      %1336 = vmatpush1.bf16.msra.mxu0 %v1040
      %1337 = vmatprep.subr.bf16.mxu0 0
      %1338 = vmatpush1.bf16.msra.mxu0 %v1039
      %1339 = vmatprep.subr.bf16.mxu0 0
      %1340 = vmatpush1.bf16.msra.mxu0 %v1038
      %1341 = vmatprep.subr.bf16.mxu0 0
      %1342 = vmatpush1.bf16.msra.mxu0 %v1037
      %1343 = vmatprep.subr.bf16.mxu0 0
      %1344 = vmatpush2.bf16.msra.mxu0 %v1052
      %1345 = vmatprep.subr.bf16.mxu0 0
      %1346 = vmatpush2.bf16.msra.mxu0 %v1051
      %1347 = vmatprep.subr.bf16.mxu0 0
      %1348 = vmatpush2.bf16.msra.mxu0 %v1050
      %1349 = vmatprep.subr.bf16.mxu0 0
      %1350 = vmatpush2.bf16.msra.mxu0 %v1049
      %1351 = vmatprep.subr.bf16.mxu0 0
      %1352 = vmatpush2.bf16.msra.mxu0 %v1048
      %1353 = vmatprep.subr.bf16.mxu0 0
      %1354 = vmatpush2.bf16.msra.mxu0 %v1047
      %1355 = vmatprep.subr.bf16.mxu0 0
      %1356 = vmatpush2.bf16.msra.mxu0 %v1046
      %1357 = vmatprep.subr.bf16.mxu0 0
      %1358 = vmatpush2.bf16.msra.mxu0 %v1045
      %1359 = vmatprep.mubr.bf16.mxu0 %v626
      %1360 = vmatmul.mubr.bf16.gmra.mxu0 %v625
      %v1361 = vpop.f32.mrf.mxu0
      %v1362 = vadd.f32 %v1265, %v1361
      %v1363 = vpop.f32.mrf.mxu0
      %v1364 = vpop.f32.mrf.mxu0
      %v1365 = vadd.f32 %v1268, %v1364
      %v1366 = vpop.f32.mrf.mxu0
      %1367 = vmatprep.mubr.bf16.mxu0 %v634
      %1368 = vmatmul.mubr.bf16.gmra.mxu0 %v633
      %v1369 = vpop.f32.mrf.mxu0
      %v1370 = vadd.f32 %v1273, %v1369
      %v1371 = vpop.f32.mrf.mxu0
      %v1372 = vpop.f32.mrf.mxu0
      %v1373 = vadd.f32 %v1276, %v1372
      %v1374 = vpop.f32.mrf.mxu0
      %1375 = vmatprep.mubr.bf16.mxu0 %v642
      %1376 = vmatmul.mubr.bf16.gmra.mxu0 %v641
      %v1377 = vpop.f32.mrf.mxu0
      %v1378 = vadd.f32 %v1281, %v1377
      %v1379 = vpop.f32.mrf.mxu0
      %v1380 = vpop.f32.mrf.mxu0
      %v1381 = vadd.f32 %v1284, %v1380
      %v1382 = vpop.f32.mrf.mxu0
      %1383 = vmatprep.mubr.bf16.mxu0 %v650
      %1384 = vmatmul.mubr.bf16.gmra.mxu0 %v649
      %v1385 = vpop.f32.mrf.mxu0
      %v1386 = vadd.f32 %v1289, %v1385
      %v1387 = vpop.f32.mrf.mxu0
      %v1388 = vpop.f32.mrf.mxu0
      %v1389 = vadd.f32 %v1292, %v1388
      %v1390 = vpop.f32.mrf.mxu0
      %1391 = vmatprep.mubr.bf16.mxu0 %v658
      %1392 = vmatmul.mubr.bf16.gmra.mxu0 %v657
      %v1393 = vpop.f32.mrf.mxu0
      %v1394 = vadd.f32 %v1297, %v1393
      %v1395 = vpop.f32.mrf.mxu0
      %v1396 = vpop.f32.mrf.mxu0
      %v1397 = vadd.f32 %v1300, %v1396
      %v1398 = vpop.f32.mrf.mxu0
      %1399 = vmatprep.mubr.bf16.mxu0 %v666
      %1400 = vmatmul.mubr.bf16.gmra.mxu0 %v665
      %v1401 = vpop.f32.mrf.mxu0
      %v1402 = vadd.f32 %v1305, %v1401
      %v1403 = vpop.f32.mrf.mxu0
      %v1404 = vpop.f32.mrf.mxu0
      %v1405 = vadd.f32 %v1308, %v1404
      %v1406 = vpop.f32.mrf.mxu0
      %1407 = vmatprep.mubr.bf16.mxu0 %v674
      %1408 = vmatmul.mubr.bf16.gmra.mxu0 %v673
      %v1409 = vpop.f32.mrf.mxu0
      %v1410 = vadd.f32 %v1313, %v1409
      %v1411 = vpop.f32.mrf.mxu0
      %v1412 = vpop.f32.mrf.mxu0
      %v1413 = vadd.f32 %v1316, %v1412
      %v1414 = vpop.f32.mrf.mxu0
      %1415 = vmatprep.mubr.bf16.mxu0 %v682
      %1416 = vmatmul.mubr.bf16.gmra.mxu0 %v681
      %v1417 = vpop.f32.mrf.mxu0
      %v1418 = vadd.f32 %v1321, %v1417
      %v1419 = vpop.f32.mrf.mxu0
      %v1420 = vpop.f32.mrf.mxu0
      %v1421 = vadd.f32 %v1324, %v1420
      %v1422 = vpop.f32.mrf.mxu0
      %1423 = vdwg.mxu0
      %1424 = vmatprep.subr.bf16.mxu0 0
      %1425 = vmatpush1.bf16.msra.mxu0 %v1060
      %1426 = vmatprep.subr.bf16.mxu0 0
      %1427 = vmatpush1.bf16.msra.mxu0 %v1059
      %1428 = vmatprep.subr.bf16.mxu0 0
      %1429 = vmatpush1.bf16.msra.mxu0 %v1058
      %1430 = vmatprep.subr.bf16.mxu0 0
      %1431 = vmatpush1.bf16.msra.mxu0 %v1057
      %1432 = vmatprep.subr.bf16.mxu0 0
      %1433 = vmatpush1.bf16.msra.mxu0 %v1056
      %1434 = vmatprep.subr.bf16.mxu0 0
      %1435 = vmatpush1.bf16.msra.mxu0 %v1055
      %1436 = vmatprep.subr.bf16.mxu0 0
      %1437 = vmatpush1.bf16.msra.mxu0 %v1054
      %1438 = vmatprep.subr.bf16.mxu0 0
      %1439 = vmatpush1.bf16.msra.mxu0 %v1053
      %1440 = vmatprep.subr.bf16.mxu0 0
      %1441 = vmatpush2.bf16.msra.mxu0 %v1068
      %1442 = vmatprep.subr.bf16.mxu0 0
      %1443 = vmatpush2.bf16.msra.mxu0 %v1067
      %1444 = vmatprep.subr.bf16.mxu0 0
      %1445 = vmatpush2.bf16.msra.mxu0 %v1066
      %1446 = vmatprep.subr.bf16.mxu0 0
      %1447 = vmatpush2.bf16.msra.mxu0 %v1065
      %1448 = vmatprep.subr.bf16.mxu0 0
      %1449 = vmatpush2.bf16.msra.mxu0 %v1064
      %1450 = vmatprep.subr.bf16.mxu0 0
      %1451 = vmatpush2.bf16.msra.mxu0 %v1063
      %1452 = vmatprep.subr.bf16.mxu0 0
      %1453 = vmatpush2.bf16.msra.mxu0 %v1062
      %1454 = vmatprep.subr.bf16.mxu0 0
      %1455 = vmatpush2.bf16.msra.mxu0 %v1061
      %1456 = vmatprep.mubr.bf16.mxu0 %v628
      %1457 = vmatmul.mubr.bf16.gmra.mxu0 %v627
      %v1458 = vpop.f32.mrf.mxu0
      %v1459 = vadd.f32 %v1362, %v1458
      %v1460 = vpop.f32.mrf.mxu0
      %v1461 = vpop.f32.mrf.mxu0
      %v1462 = vadd.f32 %v1365, %v1461
      %v1463 = vpop.f32.mrf.mxu0
      %1464 = vmatprep.mubr.bf16.mxu0 %v636
      %1465 = vmatmul.mubr.bf16.gmra.mxu0 %v635
      %v1466 = vpop.f32.mrf.mxu0
      %v1467 = vadd.f32 %v1370, %v1466
      %v1468 = vpop.f32.mrf.mxu0
      %v1469 = vpop.f32.mrf.mxu0
      %v1470 = vadd.f32 %v1373, %v1469
      %v1471 = vpop.f32.mrf.mxu0
      %1472 = vmatprep.mubr.bf16.mxu0 %v644
      %1473 = vmatmul.mubr.bf16.gmra.mxu0 %v643
      %v1474 = vpop.f32.mrf.mxu0
      %v1475 = vadd.f32 %v1378, %v1474
      %v1476 = vpop.f32.mrf.mxu0
      %v1477 = vpop.f32.mrf.mxu0
      %v1478 = vadd.f32 %v1381, %v1477
      %v1479 = vpop.f32.mrf.mxu0
      %1480 = vmatprep.mubr.bf16.mxu0 %v652
      %1481 = vmatmul.mubr.bf16.gmra.mxu0 %v651
      %v1482 = vpop.f32.mrf.mxu0
      %v1483 = vadd.f32 %v1386, %v1482
      %v1484 = vpop.f32.mrf.mxu0
      %v1485 = vpop.f32.mrf.mxu0
      %v1486 = vadd.f32 %v1389, %v1485
      %v1487 = vpop.f32.mrf.mxu0
      %1488 = vmatprep.mubr.bf16.mxu0 %v660
      %1489 = vmatmul.mubr.bf16.gmra.mxu0 %v659
      %v1490 = vpop.f32.mrf.mxu0
      %v1491 = vadd.f32 %v1394, %v1490
      %v1492 = vpop.f32.mrf.mxu0
      %v1493 = vpop.f32.mrf.mxu0
      %v1494 = vadd.f32 %v1397, %v1493
      %v1495 = vpop.f32.mrf.mxu0
      %1496 = vmatprep.mubr.bf16.mxu0 %v668
      %1497 = vmatmul.mubr.bf16.gmra.mxu0 %v667
      %v1498 = vpop.f32.mrf.mxu0
      %v1499 = vadd.f32 %v1402, %v1498
      %v1500 = vpop.f32.mrf.mxu0
      %v1501 = vpop.f32.mrf.mxu0
      %v1502 = vadd.f32 %v1405, %v1501
      %v1503 = vpop.f32.mrf.mxu0
      %1504 = vmatprep.mubr.bf16.mxu0 %v676
      %1505 = vmatmul.mubr.bf16.gmra.mxu0 %v675
      %v1506 = vpop.f32.mrf.mxu0
      %v1507 = vadd.f32 %v1410, %v1506
      %v1508 = vpop.f32.mrf.mxu0
      %v1509 = vpop.f32.mrf.mxu0
      %v1510 = vadd.f32 %v1413, %v1509
      %v1511 = vpop.f32.mrf.mxu0
      %1512 = vmatprep.mubr.bf16.mxu0 %v684
      %1513 = vmatmul.mubr.bf16.gmra.mxu0 %v683
      %v1514 = vpop.f32.mrf.mxu0
      %v1515 = vadd.f32 %v1418, %v1514
      %v1516 = vpop.f32.mrf.mxu0
      %v1517 = vpop.f32.mrf.mxu0
      %v1518 = vadd.f32 %v1421, %v1517
      %v1519 = vpop.f32.mrf.mxu0
      %1520 = vdwg.mxu0
      %v1521 = vadd.f32 %v221, %v1459
      %v1522 = vadd.f32 %v222, %v1462
      %v1523 = vadd.f32 %v223, %v1467
      %v1524 = vadd.f32 %v224, %v1470
      %v1525 = vadd.f32 %v225, %v1475
      %v1526 = vadd.f32 %v226, %v1478
      %v1527 = vadd.f32 %v227, %v1483
      %v1528 = vadd.f32 %v228, %v1486
      %v1529 = vadd.f32 %v229, %v1491
      %v1530 = vadd.f32 %v230, %v1494
      %v1531 = vadd.f32 %v231, %v1499
      %v1532 = vadd.f32 %v232, %v1502
      %v1533 = vadd.f32 %v233, %v1507
      %v1534 = vadd.f32 %v234, %v1510
      %v1535 = vadd.f32 %v235, %v1515
      %v1536 = vadd.f32 %v236, %v1518
      %1537 = vst [vmem:[#allocation2] sm:$0xff] %v1521
      %1538 = vst [vmem:[#allocation2 + $0x8] sm:$0xff] %v1522
      %1539 = vst [vmem:[#allocation2 + $0x10] sm:$0xff] %v1523
      %1540 = vst [vmem:[#allocation2 + $0x18] sm:$0xff] %v1524
      %1541 = vst [vmem:[#allocation2 + $0x20] sm:$0xff] %v1525
      %1542 = vst [vmem:[#allocation2 + $0x28] sm:$0xff] %v1526
      %1543 = vst [vmem:[#allocation2 + $0x30] sm:$0xff] %v1527
      %1544 = vst [vmem:[#allocation2 + $0x38] sm:$0xff] %v1528
      %1545 = vst [vmem:[#allocation2 + $0x40] sm:$0xff] %v1529
      %1546 = vst [vmem:[#allocation2 + $0x48] sm:$0xff] %v1530
      %1547 = vst [vmem:[#allocation2 + $0x50] sm:$0xff] %v1531
      %1548 = vst [vmem:[#allocation2 + $0x58] sm:$0xff] %v1532
      %1549 = vst [vmem:[#allocation2 + $0x60] sm:$0xff] %v1533
      %1550 = vst [vmem:[#allocation2 + $0x68] sm:$0xff] %v1534
      %1551 = vst [vmem:[#allocation2 + $0x70] sm:$0xff] %v1535
      %1552 = vst [vmem:[#allocation2 + $0x78] sm:$0xff] %v1536
      // Predicated region
      $region33: #{bpr_forward.8} parent=27 // pred_check
        %p1553 = pneg %p201
      $region34: #{bpr_forward.8} parent=27 // pred_check_branch
        %1555 = sbr.rel (%p1553) target = $region36
      $region35: #{bpr_forward.8} parent=27 // pred_region
        %v1556 = vld [vmem:[#allocation2] sm:$0xff]
        %v1557 = vld [vmem:[#allocation2 + $0x8] sm:$0xff]
        %v1558 = vld [vmem:[#allocation2 + $0x10] sm:$0xff]
        %v1559 = vld [vmem:[#allocation2 + $0x18] sm:$0xff]
        %v1560 = vld [vmem:[#allocation2 + $0x20] sm:$0xff]
        %v1561 = vld [vmem:[#allocation2 + $0x28] sm:$0xff]
        %v1562 = vld [vmem:[#allocation2 + $0x30] sm:$0xff]
        %v1563 = vld [vmem:[#allocation2 + $0x38] sm:$0xff]
        %v1564 = vld [vmem:[#allocation2 + $0x40] sm:$0xff]
        %v1565 = vld [vmem:[#allocation2 + $0x48] sm:$0xff]
        %v1566 = vld [vmem:[#allocation2 + $0x50] sm:$0xff]
        %v1567 = vld [vmem:[#allocation2 + $0x58] sm:$0xff]
        %v1568 = vld [vmem:[#allocation2 + $0x60] sm:$0xff]
        %v1569 = vld [vmem:[#allocation2 + $0x68] sm:$0xff]
        %v1570 = vld [vmem:[#allocation2 + $0x70] sm:$0xff]
        %v1571 = vld [vmem:[#allocation2 + $0x78] sm:$0xff]
        %v1572 = vpack.c.bf16 %v1557, %v1556
        %v1573 = vpack.c.bf16 %v1559, %v1558
        %v1574 = vpack.c.bf16 %v1561, %v1560
        %v1575 = vpack.c.bf16 %v1563, %v1562
        %v1576 = vpack.c.bf16 %v1565, %v1564
        %v1577 = vpack.c.bf16 %v1567, %v1566
        %v1578 = vpack.c.bf16 %v1569, %v1568
        %v1579 = vpack.c.bf16 %v1571, %v1570
        %v1588 = vunpack.c.l.b16 %v1572
        %v1589 = vunpack.c.h.b16 %v1572
        %v1590 = vunpack.c.l.b16 %v1573
        %v1591 = vunpack.c.h.b16 %v1573
        %v1592 = vunpack.c.l.b16 %v1574
        %v1593 = vunpack.c.h.b16 %v1574
        %v1594 = vunpack.c.l.b16 %v1575
        %v1595 = vunpack.c.h.b16 %v1575
        %v1596 = vunpack.c.l.b16 %v1576
        %v1597 = vunpack.c.h.b16 %v1576
        %v1598 = vunpack.c.l.b16 %v1577
        %v1599 = vunpack.c.h.b16 %v1577
        %v1600 = vunpack.c.l.b16 %v1578
        %v1601 = vunpack.c.h.b16 %v1578
        %v1602 = vunpack.c.l.b16 %v1579
        %v1603 = vunpack.c.h.b16 %v1579
        %v1604 = vpack.c.b16 %v1588, %v1588
        %v1605 = vpack.c.b16 %v1589, %v1589
        %v1606 = vpack.c.b16 %v1590, %v1590
        %v1607 = vpack.c.b16 %v1591, %v1591
        %v1608 = vpack.c.b16 %v1592, %v1592
        %v1609 = vpack.c.b16 %v1593, %v1593
        %v1610 = vpack.c.b16 %v1594, %v1594
        %v1611 = vpack.c.b16 %v1595, %v1595
        %v1612 = vpack.c.b16 %v1596, %v1596
        %v1613 = vpack.c.b16 %v1597, %v1597
        %v1614 = vpack.c.b16 %v1598, %v1598
        %v1615 = vpack.c.b16 %v1599, %v1599
        %v1616 = vpack.c.b16 %v1600, %v1600
        %v1617 = vpack.c.b16 %v1601, %v1601
        %v1618 = vpack.c.b16 %v1602, %v1602
        %v1619 = vpack.c.b16 %v1603, %v1603
        %1636 = vst [vmem:[%s198] sm:$0xf] %v1604
        %1637 = vst [vmem:[%s198 + $0x4] sm:$0xf] %v1605
        %1638 = vst [vmem:[%s198 + $0x8] sm:$0xf] %v1606
        %1639 = vst [vmem:[%s198 + $0xc] sm:$0xf] %v1607
        %1640 = vst [vmem:[%s198 + $0x10] sm:$0xf] %v1608
        %1641 = vst [vmem:[%s198 + $0x14] sm:$0xf] %v1609
        %1642 = vst [vmem:[%s198 + $0x18] sm:$0xf] %v1610
        %1643 = vst [vmem:[%s198 + $0x1c] sm:$0xf] %v1611
        %1644 = vst [vmem:[%s198 + $0x20] sm:$0xf] %v1612
        %1645 = vst [vmem:[%s198 + $0x24] sm:$0xf] %v1613
        %1646 = vst [vmem:[%s198 + $0x28] sm:$0xf] %v1614
        %1647 = vst [vmem:[%s198 + $0x2c] sm:$0xf] %v1615
        %1648 = vst [vmem:[%s198 + $0x30] sm:$0xf] %v1616
        %1649 = vst [vmem:[%s198 + $0x34] sm:$0xf] %v1617
        %1650 = vst [vmem:[%s198 + $0x38] sm:$0xf] %v1618
        %1651 = vst [vmem:[%s198 + $0x3c] sm:$0xf] %v1619
      $region36: #{bpr_forward.8} parent=27 // pred_fallthru
        _
      %s1652 = smul.u32 16, %s17
      %p1653 = scmp.lt.s32.totalorder %s1652, 63
      %s1654 = scalar_select %p1653, %s1652, 63
      %s1655 = smul.addr %s1654, 4
      %s1656 = scalar_lea.vmem %s2, %s1655
      // Predicated region
      $region37: #{bpr_forward.8} parent=27 // pred_check
        %p1657 = pneg %p97
      $region38: #{bpr_forward.8} parent=27 // pred_check_branch
        %1659 = sbr.rel (%p1657) target = $region40
      $region39: #{bpr_forward.8} parent=27 // pred_region
        %s1660 = smul.u32 16, %s17
      $region40: #{bpr_forward.8} parent=27 // pred_fallthru
        _
    $region28: #{bpr_forward.8} parent=5 // pred_fallthru
      _
    %p1661 = scmp.le.s32.totalorder 2, %s8
    // Predicated region
    $region41: #{bpr_forward.8} parent=5 // pred_check
      %p1662 = pneg %p1661
    $region42: #{bpr_forward.8} parent=5 // pred_check_branch
      %1664 = sbr.rel (%p1662) target = $region44
    $region43: #{bpr_forward.8} parent=5 // pred_region
      %s1665 = ssub.s32 %s8, 2
      // Predicated region
      $region45: #{bpr_forward.8} parent=43 // pred_check
        %p1666 = pneg %p103
      $region46: #{bpr_forward.8} parent=43 // pred_check_branch
        %1668 = sbr.rel (%p1666) target = $region48
      $region47: #{bpr_forward.8} parent=43 // pred_region
        %s1669 = smul.u32 16, %s19
        %p1670 = scmp.lt.s32.totalorder %s1669, 63
        %s1671 = scalar_select %p1670, %s1669, 63
        %s1672 = smul.addr %s1671, 4
        %s1673 = scalar_lea.vmem %s2, %s1672
      $region48: #{bpr_forward.8} parent=43 // pred_fallthru
        _
    $region44: #{bpr_forward.8} parent=5 // pred_fallthru
      _
  $region6: #{bpr_forward.8} parent=0 // loop_footer
    %s12 = sadd.s32 1, %s8
  $region7: #{bpr_forward.8} parent=0 // loop_footer_branch
    %7 = sbr.rel target = $region3
  $region8: #{bpr_forward.8} parent=0 // loop_exit
    _

// kernel: bpr_forward.11
$region0: #{bpr_forward.11}
  #allocation0 [shape = 'u32[]', space=smem, size = 0x4, offset = 0x4, fixed_abs, tag = 'smem constant byte address 0x4 - core index']
  #allocation1 [shape = 'u32[144,128]{1,0:T(1,128)}', space=vmem, size = 0x12000, scoped, tag = 'internal scratch']
  #allocation2 [shape = 'f32[128,128]{1,0:T(8,128)}', space=vmem, size = 0x10000, scoped, tag = 'scratch operand']
  %s0 = inlined_call_operand.vmem [shape: bf16[1024,512], index: 0, kind: input, shape index: {}]
  %s1 = inlined_call_operand.vmem [shape: bf16[512,128], index: 1, kind: input, shape index: {}]
  %s2 = inlined_call_operand.vmem [shape: f32[1024,128], index: 2, kind: input, shape index: {}]
  %s3 = inlined_call_operand.vmem [shape: bf16[1024,128], index: 3, kind: input, shape index: {}]
  %s4 = inlined_call_operand.vmem [shape: bf16[1024,128], index: 4, kind: input, shape index: {}]
  %s5 = inlined_call_operand.vmem [shape: f32[1024,128], index: 5, kind: output, shape index: {}]
  %s6 = sld [smem:[#allocation0]]
  $region61: #{bpr_forward.11} parent=0
    _
  %s8 = ssub.s32 1, %s6
  %s9 = scalar_select 0, %s8, %s6
  loop: start=0, step=1, limit=10
  $region2: #{bpr_forward.11} parent=0 // loop_pre_header
    _
  $region3: #{bpr_forward.11} parent=0 // loop_header
    %s11 = sphi 0, %s15
    %p12 = scmp.ge.s32.totalorder %s11, 10
    %s18 = sphi 0, %s30
    %s19 = sphi 0, %s26
    %s20 = sphi 0, %s18
    %s21 = sphi 0, %s19
    %s22 = sphi 0, %s20
    %s23 = sphi 0, %s21
    %s35 = sphi 0, %s37
    %s38 = sphi 0, %s35
    %s39 = sphi 0, %s38
    %s55 = sphi 0, %s39
    %s61 = sphi 0, %s63
    %s64 = sphi 0, %s61
    %s65 = sphi 0, %s64
    %s81 = sphi 0, %s65
    %s87 = sphi 0, %s89
    %s90 = sphi 0, %s87
    %s91 = sphi 0, %s90
    %s107 = sphi 0, %s91
    %s113 = sphi 0, %s115
    %s116 = sphi 0, %s113
    %s117 = sphi 0, %s116
    %s133 = sphi 0, %s117
    %s139 = sphi 0, %s141
    %s142 = sphi 0, %s139
    %s143 = sphi 0, %s142
    %s159 = sphi 0, %s143
    %s165 = sphi 0, %s167
    %s168 = sphi 0, %s165
    %s169 = sphi 0, %s168
    %s185 = sphi 0, %s169
  $region4: #{bpr_forward.11} parent=0 // loop_header_branch
    %14 = sbr.rel (%p12) target = $region8
  $region5: #{bpr_forward.11} parent=0 // loop_body
    %s16 = ssub.s32 %s11, 1
    %s17 = ssub.s32 %s11, 2
    %s24 = sadd.s32 1, %s19
    %p25 = scmp.ge.s32.totalorder %s24, 1
    %s26 = scalar_select %p25, 0, %s24
    %s27 = sadd.s32 1, %s18
    %s28 = scalar_select %p25, %s27, %s18
    %p29 = scmp.ge.s32.totalorder %s28, 8
    %s30 = scalar_select %p29, 0, %s28
    %s31 = ssub.s32 %s18, %s30
    %s32 = ssub.s32 %s19, %s26
    %s33 = sor.u32 %s31, %s32
    %p34 = scmp.eq.s32.totalorder %s33, 0
    %s36 = sadd.s32 %s35, 1
    %s37 = scalar_select %p34, %s35, %s36
    %p40 = pneg %p34
    %p41 = scmp.eq.s32.totalorder %s11, 7
    %p42 = por %p40, %p41
    %p43 = scmp.ne.s32.totalorder %s35, %s38
    %p44 = scmp.eq.s32.totalorder %s11, 0
    %p45 = por %p43, %p44
    %p46 = scmp.ne.s32.totalorder %s35, %s38
    %p47 = scmp.eq.s32.totalorder %s16, 7
    %p48 = por %p46, %p47
    %p49 = scmp.ne.s32.totalorder %s38, %s39
    %p50 = scmp.eq.s32.totalorder %s16, 0
    %p51 = por %p49, %p50
    %p52 = scmp.ne.s32.totalorder %s38, %s39
    %p53 = scmp.eq.s32.totalorder %s17, 7
    %p54 = por %p52, %p53
    %p56 = scmp.ne.s32.totalorder %s39, %s55
    %p57 = scmp.eq.s32.totalorder %s17, 0
    %p58 = por %p56, %p57
    %s59 = ssub.s32 %s19, %s26
    %p60 = scmp.eq.s32.totalorder %s59, 0
    %s62 = sadd.s32 %s61, 1
    %s63 = scalar_select %p60, %s61, %s62
    %p66 = pneg %p60
    %p67 = scmp.eq.s32.totalorder %s11, 7
    %p68 = por %p66, %p67
    %p69 = scmp.ne.s32.totalorder %s61, %s64
    %p70 = scmp.eq.s32.totalorder %s11, 0
    %p71 = por %p69, %p70
    %p72 = scmp.ne.s32.totalorder %s61, %s64
    %p73 = scmp.eq.s32.totalorder %s16, 7
    %p74 = por %p72, %p73
    %p75 = scmp.ne.s32.totalorder %s64, %s65
    %p76 = scmp.eq.s32.totalorder %s16, 0
    %p77 = por %p75, %p76
    %p78 = scmp.ne.s32.totalorder %s64, %s65
    %p79 = scmp.eq.s32.totalorder %s17, 7
    %p80 = por %p78, %p79
    %p82 = scmp.ne.s32.totalorder %s65, %s81
    %p83 = scmp.eq.s32.totalorder %s17, 0
    %p84 = por %p82, %p83
    %s85 = ssub.s32 %s18, %s30
    %p86 = scmp.eq.s32.totalorder %s85, 0
    %s88 = sadd.s32 %s87, 1
    %s89 = scalar_select %p86, %s87, %s88
    %p92 = pneg %p86
    %p93 = scmp.eq.s32.totalorder %s11, 7
    %p94 = por %p92, %p93
    %p95 = scmp.ne.s32.totalorder %s87, %s90
    %p96 = scmp.eq.s32.totalorder %s11, 0
    %p97 = por %p95, %p96
    %p98 = scmp.ne.s32.totalorder %s87, %s90
    %p99 = scmp.eq.s32.totalorder %s16, 7
    %p100 = por %p98, %p99
    %p101 = scmp.ne.s32.totalorder %s90, %s91
    %p102 = scmp.eq.s32.totalorder %s16, 0
    %p103 = por %p101, %p102
    %p104 = scmp.ne.s32.totalorder %s90, %s91
    %p105 = scmp.eq.s32.totalorder %s17, 7
    %p106 = por %p104, %p105
    %p108 = scmp.ne.s32.totalorder %s91, %s107
    %p109 = scmp.eq.s32.totalorder %s17, 0
    %p110 = por %p108, %p109
    %s111 = ssub.s32 %s18, %s30
    %p112 = scmp.eq.s32.totalorder %s111, 0
    %s114 = sadd.s32 %s113, 1
    %s115 = scalar_select %p112, %s113, %s114
    %p118 = pneg %p112
    %p119 = scmp.eq.s32.totalorder %s11, 7
    %p120 = por %p118, %p119
    %p121 = scmp.ne.s32.totalorder %s113, %s116
    %p122 = scmp.eq.s32.totalorder %s11, 0
    %p123 = por %p121, %p122
    %p124 = scmp.ne.s32.totalorder %s113, %s116
    %p125 = scmp.eq.s32.totalorder %s16, 7
    %p126 = por %p124, %p125
    %p127 = scmp.ne.s32.totalorder %s116, %s117
    %p128 = scmp.eq.s32.totalorder %s16, 0
    %p129 = por %p127, %p128
    %p130 = scmp.ne.s32.totalorder %s116, %s117
    %p131 = scmp.eq.s32.totalorder %s17, 7
    %p132 = por %p130, %p131
    %p134 = scmp.ne.s32.totalorder %s117, %s133
    %p135 = scmp.eq.s32.totalorder %s17, 0
    %p136 = por %p134, %p135
    %s137 = ssub.s32 %s18, %s30
    %p138 = scmp.eq.s32.totalorder %s137, 0
    %s140 = sadd.s32 %s139, 1
    %s141 = scalar_select %p138, %s139, %s140
    %p144 = pneg %p138
    %p145 = scmp.eq.s32.totalorder %s11, 7
    %p146 = por %p144, %p145
    %p147 = scmp.ne.s32.totalorder %s139, %s142
    %p148 = scmp.eq.s32.totalorder %s11, 0
    %p149 = por %p147, %p148
    %p150 = scmp.ne.s32.totalorder %s139, %s142
    %p151 = scmp.eq.s32.totalorder %s16, 7
    %p152 = por %p150, %p151
    %p153 = scmp.ne.s32.totalorder %s142, %s143
    %p154 = scmp.eq.s32.totalorder %s16, 0
    %p155 = por %p153, %p154
    %p156 = scmp.ne.s32.totalorder %s142, %s143
    %p157 = scmp.eq.s32.totalorder %s17, 7
    %p158 = por %p156, %p157
    %p160 = scmp.ne.s32.totalorder %s143, %s159
    %p161 = scmp.eq.s32.totalorder %s17, 0
    %p162 = por %p160, %p161
    %s163 = ssub.s32 %s18, %s30
    %p164 = scmp.eq.s32.totalorder %s163, 0
    %s166 = sadd.s32 %s165, 1
    %s167 = scalar_select %p164, %s165, %s166
    %p170 = pneg %p164
    %p171 = scmp.eq.s32.totalorder %s11, 7
    %p172 = por %p170, %p171
    %p173 = scmp.ne.s32.totalorder %s165, %s168
    %p174 = scmp.eq.s32.totalorder %s11, 0
    %p175 = por %p173, %p174
    %p176 = scmp.ne.s32.totalorder %s165, %s168
    %p177 = scmp.eq.s32.totalorder %s16, 7
    %p178 = por %p176, %p177
    %p179 = scmp.ne.s32.totalorder %s168, %s169
    %p180 = scmp.eq.s32.totalorder %s16, 0
    %p181 = por %p179, %p180
    %p182 = scmp.ne.s32.totalorder %s168, %s169
    %p183 = scmp.eq.s32.totalorder %s17, 7
    %p184 = por %p182, %p183
    %p186 = scmp.ne.s32.totalorder %s169, %s185
    %p187 = scmp.eq.s32.totalorder %s17, 0
    %p188 = por %p186, %p187
    %p189 = scmp.le.s32.totalorder 1, %s11
    %p190 = scmp.lt.s32.totalorder %s11, 9
    %p191 = pnand %p189, %p190
    %p192 = pneg %p191
    // Predicated region
    $region9: #{bpr_forward.11} parent=5 // pred_check
      _
    $region10: #{bpr_forward.11} parent=5 // pred_check_branch
      %194 = sbr.rel (%p191) target = $region12
    $region11: #{bpr_forward.11} parent=5 // pred_region
      %s195 = ssub.s32 %s11, 1
      // Predicated region
      $region13: #{bpr_forward.11} parent=11 // pred_check
        %p196 = pneg %p77
      $region14: #{bpr_forward.11} parent=11 // pred_check_branch
        %198 = sbr.rel (%p196) target = $region16
      $region15: #{bpr_forward.11} parent=11 // pred_region
        %s199 = smul.u32 64, %s21
        %p200 = scmp.lt.s32.totalorder %s199, 63
        %s201 = scalar_select %p200, %s199, 63
        %s202 = smul.addr %s201, 4
        %s203 = scalar_lea.vmem %s1, %s202
        %s204 = smul.u32 64, %s21
      $region16: #{bpr_forward.11} parent=11 // pred_fallthru
        _
    $region12: #{bpr_forward.11} parent=5 // pred_fallthru
      _
    %p205 = scmp.lt.s32.totalorder %s11, 8
    // Predicated region
    $region17: #{bpr_forward.11} parent=5 // pred_check
      %p206 = pneg %p205
    $region18: #{bpr_forward.11} parent=5 // pred_check_branch
      %208 = sbr.rel (%p206) target = $region20
    $region19: #{bpr_forward.11} parent=5 // pred_region
      // Predicated region
      $region21: #{bpr_forward.11} parent=19 // pred_check
        %p209 = pneg %p45
      $region22: #{bpr_forward.11} parent=19 // pred_check_branch
        %211 = sbr.rel (%p209) target = $region24
      $region23: #{bpr_forward.11} parent=19 // pred_region
        %s212 = smul.u32 16, %s18
        %s213 = smul.u32 4, %s19
        %p214 = scmp.lt.s32.totalorder %s212, 127
        %s215 = scalar_select %p214, %s212, 127
        %p216 = scmp.lt.s32.totalorder %s213, 3
        %s217 = scalar_select %p216, %s213, 3
        %s218 = smul.addr %s215, 4
        %s219 = sadd.s32 %s217, %s218
        %s220 = smul.addr %s219, 4
        %s221 = scalar_lea.vmem %s0, %s220
        %s222 = smul.u32 16, %s18
        %s223 = smul.u32 4, %s19
      $region24: #{bpr_forward.11} parent=19 // pred_fallthru
        _
      // Predicated region
      $region25: #{bpr_forward.11} parent=19 // pred_check
        %p224 = pneg %p97
      $region26: #{bpr_forward.11} parent=19 // pred_check_branch
        %226 = sbr.rel (%p224) target = $region28
      $region27: #{bpr_forward.11} parent=19 // pred_region
        %s227 = smul.u32 16, %s18
        %p228 = scmp.lt.s32.totalorder %s227, 127
        %s229 = scalar_select %p228, %s227, 127
        %s230 = smul.addr %s229, 8
        %s231 = scalar_lea.vmem %s2, %s230
        %s232 = smul.u32 16, %s18
      $region28: #{bpr_forward.11} parent=19 // pred_fallthru
        _
      // Predicated region
      $region29: #{bpr_forward.11} parent=19 // pred_check
        %p233 = pneg %p123
      $region30: #{bpr_forward.11} parent=19 // pred_check_branch
        %235 = sbr.rel (%p233) target = $region32
      $region31: #{bpr_forward.11} parent=19 // pred_region
        %s236 = smul.u32 16, %s18
        %p237 = scmp.lt.s32.totalorder %s236, 127
        %s238 = scalar_select %p237, %s236, 127
        %s239 = smul.addr %s238, 4
        %s240 = scalar_lea.vmem %s3, %s239
        %s241 = smul.u32 16, %s18
      $region32: #{bpr_forward.11} parent=19 // pred_fallthru
        _
      // Predicated region
      $region33: #{bpr_forward.11} parent=19 // pred_check
        %p242 = pneg %p149
      $region34: #{bpr_forward.11} parent=19 // pred_check_branch
        %244 = sbr.rel (%p242) target = $region36
      $region35: #{bpr_forward.11} parent=19 // pred_region
        %s245 = smul.u32 16, %s18
        %p246 = scmp.lt.s32.totalorder %s245, 127
        %s247 = scalar_select %p246, %s245, 127
        %s248 = smul.addr %s247, 4
        %s249 = scalar_lea.vmem %s4, %s248
        %s250 = smul.u32 16, %s18
      $region36: #{bpr_forward.11} parent=19 // pred_fallthru
        _
    $region20: #{bpr_forward.11} parent=5 // pred_fallthru
      _
    %p251 = scmp.le.s32.totalorder 1, %s11
    %p252 = scmp.lt.s32.totalorder %s11, 9
    %p253 = pnand %p251, %p252
    %p254 = pneg %p253
    // Predicated region
    $region37: #{bpr_forward.11} parent=5 // pred_check
      _
    $region38: #{bpr_forward.11} parent=5 // pred_check_branch
      %256 = sbr.rel (%p253) target = $region40
    $region39: #{bpr_forward.11} parent=5 // pred_region
      %s257 = ssub.s32 %s11, 1
      %s258 = smul.u32 16, %s20
      %s259 = smul.u32 4, %s21
      %p260 = scmp.lt.s32.totalorder %s258, 127
      %s261 = scalar_select %p260, %s258, 127
      %p262 = scmp.lt.s32.totalorder %s259, 3
      %s263 = scalar_select %p262, %s259, 3
      %s264 = smul.addr %s261, 4
      %s265 = sadd.s32 %s263, %s264
      %s266 = smul.addr %s265, 4
      %s267 = scalar_lea.vmem %s0, %s266
      %p268 = pneg %p51
      %p269 = pneg %p48
      %s270 = smul.u32 64, %s21
      %p271 = scmp.lt.s32.totalorder %s270, 63
      %s272 = scalar_select %p271, %s270, 63
      %s273 = smul.addr %s272, 4
      %s274 = scalar_lea.vmem %s1, %s273
      %p275 = pneg %p77
      %p276 = pneg %p74
      %s277 = smul.u32 16, %s20
      %p278 = scmp.lt.s32.totalorder %s277, 127
      %s279 = scalar_select %p278, %s277, 127
      %s280 = smul.addr %s279, 8
      %s281 = scalar_lea.vmem %s2, %s280
      %p282 = pneg %p103
      %p283 = pneg %p100
      %s284 = smul.u32 16, %s20
      %p285 = scmp.lt.s32.totalorder %s284, 127
      %s286 = scalar_select %p285, %s284, 127
      %s287 = smul.addr %s286, 4
      %s288 = scalar_lea.vmem %s3, %s287
      %p289 = pneg %p129
      %p290 = pneg %p126
      %s291 = smul.u32 16, %s20
      %p292 = scmp.lt.s32.totalorder %s291, 127
      %s293 = scalar_select %p292, %s291, 127
      %s294 = smul.addr %s293, 4
      %s295 = scalar_lea.vmem %s4, %s294
      %p296 = pneg %p155
      %p297 = pneg %p152
      %p298 = pneg %p181
      %p299 = pneg %p178
      %s300 = smul.u32 16, %s20
      %p301 = scmp.lt.s32.totalorder %s300, 127
      %s302 = scalar_select %p301, %s300, 127
      %s303 = smul.addr %s302, 8
      %s304 = scalar_lea.vmem %s5, %s303
      %s305 = smul.u32 16, %s20
      %s306 = smul.u32 4, %s21
      %p307 = scmp.lt.s32.totalorder %s305, 127
      %s308 = scalar_select %p307, %s305, 127
      %p309 = scmp.lt.s32.totalorder %s306, 3
      %s310 = scalar_select %p309, %s306, 3
      %s311 = smul.addr %s308, 4
      %s312 = sadd.s32 %s310, %s311
      %s313 = smul.addr %s312, 4
      %s314 = scalar_lea.vmem %s0, %s313
      %s315 = smul.u32 16, %s20
      %s316 = smul.u32 4, %s21
      %s317 = smul.u32 64, %s21
      %p318 = scmp.lt.s32.totalorder %s317, 63
      %s319 = scalar_select %p318, %s317, 63
      %s320 = smul.addr %s319, 4
      %s321 = scalar_lea.vmem %s1, %s320
      %s322 = smul.u32 64, %s21
      %s323 = smul.u32 16, %s20
      %p324 = scmp.lt.s32.totalorder %s323, 127
      %s325 = scalar_select %p324, %s323, 127
      %s326 = smul.addr %s325, 8
      %s327 = scalar_lea.vmem %s2, %s326
      %s328 = smul.u32 16, %s20
      %s329 = smul.u32 16, %s20
      %p330 = scmp.lt.s32.totalorder %s329, 127
      %s331 = scalar_select %p330, %s329, 127
      %s332 = smul.addr %s331, 4
      %s333 = scalar_lea.vmem %s3, %s332
      %s334 = smul.u32 16, %s20
      %s335 = smul.u32 16, %s20
      %p336 = scmp.lt.s32.totalorder %s335, 127
      %s337 = scalar_select %p336, %s335, 127
      %s338 = smul.addr %s337, 4
      %s339 = scalar_lea.vmem %s4, %s338
      %s340 = smul.u32 16, %s20
      %s341 = smul.u32 16, %s20
      %p342 = scmp.lt.s32.totalorder %s341, 127
      %s343 = scalar_select %p342, %s341, 127
      %s344 = smul.addr %s343, 8
      %s345 = scalar_lea.vmem %s5, %s344
      %s346 = smul.u32 16, %s20
      %p348 = scmp.eq.s32.totalorder %s21, 0
      // Predicated region
      $region41: #{bpr_forward.11} parent=39 // pred_check
        %p349 = pneg %p348
      $region42: #{bpr_forward.11} parent=39 // pred_check_branch
        %351 = sbr.rel (%p349) target = $region44
      $region43: #{bpr_forward.11} parent=39 // pred_region
        %352 = vst [vmem:[#allocation2] sm:$0xff] 0.0
        %353 = vst [vmem:[#allocation2 + $0x8] sm:$0xff] 0.0
        %354 = vst [vmem:[#allocation2 + $0x10] sm:$0xff] 0.0
        %355 = vst [vmem:[#allocation2 + $0x18] sm:$0xff] 0.0
        %356 = vst [vmem:[#allocation2 + $0x20] sm:$0xff] 0.0
        %357 = vst [vmem:[#allocation2 + $0x28] sm:$0xff] 0.0
        %358 = vst [vmem:[#allocation2 + $0x30] sm:$0xff] 0.0
        %359 = vst [vmem:[#allocation2 + $0x38] sm:$0xff] 0.0
        %360 = vst [vmem:[#allocation2 + $0x40] sm:$0xff] 0.0
        %361 = vst [vmem:[#allocation2 + $0x48] sm:$0xff] 0.0
        %362 = vst [vmem:[#allocation2 + $0x50] sm:$0xff] 0.0
        %363 = vst [vmem:[#allocation2 + $0x58] sm:$0xff] 0.0
        %364 = vst [vmem:[#allocation2 + $0x60] sm:$0xff] 0.0
        %365 = vst [vmem:[#allocation2 + $0x68] sm:$0xff] 0.0
        %366 = vst [vmem:[#allocation2 + $0x70] sm:$0xff] 0.0
        %367 = vst [vmem:[#allocation2 + $0x78] sm:$0xff] 0.0
      $region44: #{bpr_forward.11} parent=39 // pred_fallthru
        _
      %v368 = vld [vmem:[#allocation2] sm:$0xff]
      %v369 = vld [vmem:[#allocation2 + $0x8] sm:$0xff]
      %v370 = vld [vmem:[#allocation2 + $0x10] sm:$0xff]
      %v371 = vld [vmem:[#allocation2 + $0x18] sm:$0xff]
      %v372 = vld [vmem:[#allocation2 + $0x20] sm:$0xff]
      %v373 = vld [vmem:[#allocation2 + $0x28] sm:$0xff]
      %v374 = vld [vmem:[#allocation2 + $0x30] sm:$0xff]
      %v375 = vld [vmem:[#allocation2 + $0x38] sm:$0xff]
      %v376 = vld [vmem:[#allocation2 + $0x40] sm:$0xff]
      %v377 = vld [vmem:[#allocation2 + $0x48] sm:$0xff]
      %v378 = vld [vmem:[#allocation2 + $0x50] sm:$0xff]
      %v379 = vld [vmem:[#allocation2 + $0x58] sm:$0xff]
      %v380 = vld [vmem:[#allocation2 + $0x60] sm:$0xff]
      %v381 = vld [vmem:[#allocation2 + $0x68] sm:$0xff]
      %v382 = vld [vmem:[#allocation2 + $0x70] sm:$0xff]
      %v383 = vld [vmem:[#allocation2 + $0x78] sm:$0xff]
      %v384 = vld [vmem:[%s314] sm:$0xff]
      %v385 = vld [vmem:[%s314 + $0x8] sm:$0xff]
      %v386 = vld [vmem:[%s314 + $0x10] sm:$0xff]
      %v387 = vld [vmem:[%s314 + $0x18] sm:$0xff]
      %v388 = vld [vmem:[%s314 + $0x20] sm:$0xff]
      %v389 = vld [vmem:[%s314 + $0x28] sm:$0xff]
      %v390 = vld [vmem:[%s314 + $0x30] sm:$0xff]
      %v391 = vld [vmem:[%s314 + $0x38] sm:$0xff]
      %v392 = vld [vmem:[%s314 + $0x40] sm:$0xff]
      %v393 = vld [vmem:[%s314 + $0x48] sm:$0xff]
      %v394 = vld [vmem:[%s314 + $0x50] sm:$0xff]
      %v395 = vld [vmem:[%s314 + $0x58] sm:$0xff]
      %v396 = vld [vmem:[%s314 + $0x60] sm:$0xff]
      %v397 = vld [vmem:[%s314 + $0x68] sm:$0xff]
      %v398 = vld [vmem:[%s314 + $0x70] sm:$0xff]
      %v399 = vld [vmem:[%s314 + $0x78] sm:$0xff]
      %v400 = vld [vmem:[%s314 + $0x80] sm:$0xff]
      %v401 = vld [vmem:[%s314 + $0x88] sm:$0xff]
      %v402 = vld [vmem:[%s314 + $0x90] sm:$0xff]
      %v403 = vld [vmem:[%s314 + $0x98] sm:$0xff]
      %v404 = vld [vmem:[%s314 + $0xa0] sm:$0xff]
      %v405 = vld [vmem:[%s314 + $0xa8] sm:$0xff]
      %v406 = vld [vmem:[%s314 + $0xb0] sm:$0xff]
      %v407 = vld [vmem:[%s314 + $0xb8] sm:$0xff]
      %v408 = vld [vmem:[%s314 + $0xc0] sm:$0xff]
      %v409 = vld [vmem:[%s314 + $0xc8] sm:$0xff]
      %v410 = vld [vmem:[%s314 + $0xd0] sm:$0xff]
      %v411 = vld [vmem:[%s314 + $0xd8] sm:$0xff]
      %v412 = vld [vmem:[%s314 + $0xe0] sm:$0xff]
      %v413 = vld [vmem:[%s314 + $0xe8] sm:$0xff]
      %v414 = vld [vmem:[%s314 + $0xf0] sm:$0xff]
      %v415 = vld [vmem:[%s314 + $0xf8] sm:$0xff]
      %v416 = vld [vmem:[%s321] sm:$0xf]
      %v417 = vld [vmem:[%s321 + $0x4] sm:$0xf]
      %v418 = vld [vmem:[%s321 + $0x8] sm:$0xf]
      %v419 = vld [vmem:[%s321 + $0xc] sm:$0xf]
      %v420 = vld [vmem:[%s321 + $0x10] sm:$0xf]
      %v421 = vld [vmem:[%s321 + $0x14] sm:$0xf]
      %v422 = vld [vmem:[%s321 + $0x18] sm:$0xf]
      %v423 = vld [vmem:[%s321 + $0x1c] sm:$0xf]
      %v424 = vld [vmem:[%s321 + $0x20] sm:$0xf]
      %v425 = vld [vmem:[%s321 + $0x24] sm:$0xf]
      %v426 = vld [vmem:[%s321 + $0x28] sm:$0xf]
      %v427 = vld [vmem:[%s321 + $0x2c] sm:$0xf]
      %v428 = vld [vmem:[%s321 + $0x30] sm:$0xf]
      %v429 = vld [vmem:[%s321 + $0x34] sm:$0xf]
      %v430 = vld [vmem:[%s321 + $0x38] sm:$0xf]
      %v431 = vld [vmem:[%s321 + $0x3c] sm:$0xf]
      %v432 = vld [vmem:[%s321 + $0x40] sm:$0xf]
      %v433 = vld [vmem:[%s321 + $0x44] sm:$0xf]
      %v434 = vld [vmem:[%s321 + $0x48] sm:$0xf]
      %v435 = vld [vmem:[%s321 + $0x4c] sm:$0xf]
      %v436 = vld [vmem:[%s321 + $0x50] sm:$0xf]
      %v437 = vld [vmem:[%s321 + $0x54] sm:$0xf]
      %v438 = vld [vmem:[%s321 + $0x58] sm:$0xf]
      %v439 = vld [vmem:[%s321 + $0x5c] sm:$0xf]
      %v440 = vld [vmem:[%s321 + $0x60] sm:$0xf]
      %v441 = vld [vmem:[%s321 + $0x64] sm:$0xf]
      %v442 = vld [vmem:[%s321 + $0x68] sm:$0xf]
      %v443 = vld [vmem:[%s321 + $0x6c] sm:$0xf]
      %v444 = vld [vmem:[%s321 + $0x70] sm:$0xf]
      %v445 = vld [vmem:[%s321 + $0x74] sm:$0xf]
      %v446 = vld [vmem:[%s321 + $0x78] sm:$0xf]
      %v447 = vld [vmem:[%s321 + $0x7c] sm:$0xf]
      %v448 = vld [vmem:[%s321 + $0x80] sm:$0xf]
      %v449 = vld [vmem:[%s321 + $0x84] sm:$0xf]
      %v450 = vld [vmem:[%s321 + $0x88] sm:$0xf]
      %v451 = vld [vmem:[%s321 + $0x8c] sm:$0xf]
      %v452 = vld [vmem:[%s321 + $0x90] sm:$0xf]
      %v453 = vld [vmem:[%s321 + $0x94] sm:$0xf]
      %v454 = vld [vmem:[%s321 + $0x98] sm:$0xf]
      %v455 = vld [vmem:[%s321 + $0x9c] sm:$0xf]
      %v456 = vld [vmem:[%s321 + $0xa0] sm:$0xf]
      %v457 = vld [vmem:[%s321 + $0xa4] sm:$0xf]
      %v458 = vld [vmem:[%s321 + $0xa8] sm:$0xf]
      %v459 = vld [vmem:[%s321 + $0xac] sm:$0xf]
      %v460 = vld [vmem:[%s321 + $0xb0] sm:$0xf]
      %v461 = vld [vmem:[%s321 + $0xb4] sm:$0xf]
      %v462 = vld [vmem:[%s321 + $0xb8] sm:$0xf]
      %v463 = vld [vmem:[%s321 + $0xbc] sm:$0xf]
      %v464 = vld [vmem:[%s321 + $0xc0] sm:$0xf]
      %v465 = vld [vmem:[%s321 + $0xc4] sm:$0xf]
      %v466 = vld [vmem:[%s321 + $0xc8] sm:$0xf]
      %v467 = vld [vmem:[%s321 + $0xcc] sm:$0xf]
      %v468 = vld [vmem:[%s321 + $0xd0] sm:$0xf]
      %v469 = vld [vmem:[%s321 + $0xd4] sm:$0xf]
      %v470 = vld [vmem:[%s321 + $0xd8] sm:$0xf]
      %v471 = vld [vmem:[%s321 + $0xdc] sm:$0xf]
      %v472 = vld [vmem:[%s321 + $0xe0] sm:$0xf]
      %v473 = vld [vmem:[%s321 + $0xe4] sm:$0xf]
      %v474 = vld [vmem:[%s321 + $0xe8] sm:$0xf]
      %v475 = vld [vmem:[%s321 + $0xec] sm:$0xf]
      %v476 = vld [vmem:[%s321 + $0xf0] sm:$0xf]
      %v477 = vld [vmem:[%s321 + $0xf4] sm:$0xf]
      %v478 = vld [vmem:[%s321 + $0xf8] sm:$0xf]
      %v479 = vld [vmem:[%s321 + $0xfc] sm:$0xf]
      %v512 = vunpack.c.l.b16 %v384
      %v513 = vunpack.c.h.b16 %v384
      %v514 = vunpack.c.l.b16 %v385
      %v515 = vunpack.c.h.b16 %v385
      %v516 = vunpack.c.l.b16 %v386
      %v517 = vunpack.c.h.b16 %v386
      %v518 = vunpack.c.l.b16 %v387
      %v519 = vunpack.c.h.b16 %v387
      %v520 = vunpack.c.l.b16 %v388
      %v521 = vunpack.c.h.b16 %v388
      %v522 = vunpack.c.l.b16 %v389
      %v523 = vunpack.c.h.b16 %v389
      %v524 = vunpack.c.l.b16 %v390
      %v525 = vunpack.c.h.b16 %v390
      %v526 = vunpack.c.l.b16 %v391
      %v527 = vunpack.c.h.b16 %v391
      %v528 = vunpack.c.l.b16 %v392
      %v529 = vunpack.c.h.b16 %v392
      %v530 = vunpack.c.l.b16 %v393
      %v531 = vunpack.c.h.b16 %v393
      %v532 = vunpack.c.l.b16 %v394
      %v533 = vunpack.c.h.b16 %v394
      %v534 = vunpack.c.l.b16 %v395
      %v535 = vunpack.c.h.b16 %v395
      %v536 = vunpack.c.l.b16 %v396
      %v537 = vunpack.c.h.b16 %v396
      %v538 = vunpack.c.l.b16 %v397
      %v539 = vunpack.c.h.b16 %v397
      %v540 = vunpack.c.l.b16 %v398
      %v541 = vunpack.c.h.b16 %v398
      %v542 = vunpack.c.l.b16 %v399
      %v543 = vunpack.c.h.b16 %v399
      %v544 = vunpack.c.l.b16 %v400
      %v545 = vunpack.c.h.b16 %v400
      %v546 = vunpack.c.l.b16 %v401
      %v547 = vunpack.c.h.b16 %v401
      %v548 = vunpack.c.l.b16 %v402
      %v549 = vunpack.c.h.b16 %v402
      %v550 = vunpack.c.l.b16 %v403
      %v551 = vunpack.c.h.b16 %v403
      %v552 = vunpack.c.l.b16 %v404
      %v553 = vunpack.c.h.b16 %v404
      %v554 = vunpack.c.l.b16 %v405
      %v555 = vunpack.c.h.b16 %v405
      %v556 = vunpack.c.l.b16 %v406
      %v557 = vunpack.c.h.b16 %v406
      %v558 = vunpack.c.l.b16 %v407
      %v559 = vunpack.c.h.b16 %v407
      %v560 = vunpack.c.l.b16 %v408
      %v561 = vunpack.c.h.b16 %v408
      %v562 = vunpack.c.l.b16 %v409
      %v563 = vunpack.c.h.b16 %v409
      %v564 = vunpack.c.l.b16 %v410
      %v565 = vunpack.c.h.b16 %v410
      %v566 = vunpack.c.l.b16 %v411
      %v567 = vunpack.c.h.b16 %v411
      %v568 = vunpack.c.l.b16 %v412
      %v569 = vunpack.c.h.b16 %v412
      %v570 = vunpack.c.l.b16 %v413
      %v571 = vunpack.c.h.b16 %v413
      %v572 = vunpack.c.l.b16 %v414
      %v573 = vunpack.c.h.b16 %v414
      %v574 = vunpack.c.l.b16 %v415
      %v575 = vunpack.c.h.b16 %v415
      %v576 = vpack.c.b16 %v516, %v512
      %v577 = vpack.c.b16 %v517, %v513
      %v578 = vpack.c.b16 %v518, %v514
      %v579 = vpack.c.b16 %v519, %v515
      %v580 = vpack.c.b16 %v524, %v520
      %v581 = vpack.c.b16 %v525, %v521
      %v582 = vpack.c.b16 %v526, %v522
      %v583 = vpack.c.b16 %v527, %v523
      %v584 = vpack.c.b16 %v532, %v528
      %v585 = vpack.c.b16 %v533, %v529
      %v586 = vpack.c.b16 %v534, %v530
      %v587 = vpack.c.b16 %v535, %v531
      %v588 = vpack.c.b16 %v540, %v536
      %v589 = vpack.c.b16 %v541, %v537
      %v590 = vpack.c.b16 %v542, %v538
      %v591 = vpack.c.b16 %v543, %v539
      %v592 = vpack.c.b16 %v548, %v544
      %v593 = vpack.c.b16 %v549, %v545
      %v594 = vpack.c.b16 %v550, %v546
      %v595 = vpack.c.b16 %v551, %v547
      %v596 = vpack.c.b16 %v556, %v552
      %v597 = vpack.c.b16 %v557, %v553
      %v598 = vpack.c.b16 %v558, %v554
      %v599 = vpack.c.b16 %v559, %v555
      %v600 = vpack.c.b16 %v564, %v560
      %v601 = vpack.c.b16 %v565, %v561
      %v602 = vpack.c.b16 %v566, %v562
      %v603 = vpack.c.b16 %v567, %v563
      %v604 = vpack.c.b16 %v572, %v568
      %v605 = vpack.c.b16 %v573, %v569
      %v606 = vpack.c.b16 %v574, %v570
      %v607 = vpack.c.b16 %v575, %v571
      %v704 = vunpack.c.l.b16 %v416
      %v705 = vunpack.c.l.b16 %v417
      %v706 = vunpack.c.l.b16 %v418
      %v707 = vunpack.c.l.b16 %v419
      %v708 = vunpack.c.l.b16 %v420
      %v709 = vunpack.c.l.b16 %v421
      %v710 = vunpack.c.l.b16 %v422
      %v711 = vunpack.c.l.b16 %v423
      %v712 = vunpack.c.l.b16 %v424
      %v713 = vunpack.c.l.b16 %v425
      %v714 = vunpack.c.l.b16 %v426
      %v715 = vunpack.c.l.b16 %v427
      %v716 = vunpack.c.l.b16 %v428
      %v717 = vunpack.c.l.b16 %v429
      %v718 = vunpack.c.l.b16 %v430
      %v719 = vunpack.c.l.b16 %v431
      %v720 = vunpack.c.l.b16 %v432
      %v721 = vunpack.c.l.b16 %v433
      %v722 = vunpack.c.l.b16 %v434
      %v723 = vunpack.c.l.b16 %v435
      %v724 = vunpack.c.l.b16 %v436
      %v725 = vunpack.c.l.b16 %v437
      %v726 = vunpack.c.l.b16 %v438
      %v727 = vunpack.c.l.b16 %v439
      %v728 = vunpack.c.l.b16 %v440
      %v729 = vunpack.c.l.b16 %v441
      %v730 = vunpack.c.l.b16 %v442
      %v731 = vunpack.c.l.b16 %v443
      %v732 = vunpack.c.l.b16 %v444
      %v733 = vunpack.c.l.b16 %v445
      %v734 = vunpack.c.l.b16 %v446
      %v735 = vunpack.c.l.b16 %v447
      %v736 = vunpack.c.l.b16 %v448
      %v737 = vunpack.c.l.b16 %v449
      %v738 = vunpack.c.l.b16 %v450
      %v739 = vunpack.c.l.b16 %v451
      %v740 = vunpack.c.l.b16 %v452
      %v741 = vunpack.c.l.b16 %v453
      %v742 = vunpack.c.l.b16 %v454
      %v743 = vunpack.c.l.b16 %v455
      %v744 = vunpack.c.l.b16 %v456
      %v745 = vunpack.c.l.b16 %v457
      %v746 = vunpack.c.l.b16 %v458
      %v747 = vunpack.c.l.b16 %v459
      %v748 = vunpack.c.l.b16 %v460
      %v749 = vunpack.c.l.b16 %v461
      %v750 = vunpack.c.l.b16 %v462
      %v751 = vunpack.c.l.b16 %v463
      %v752 = vunpack.c.l.b16 %v464
      %v753 = vunpack.c.l.b16 %v465
      %v754 = vunpack.c.l.b16 %v466
      %v755 = vunpack.c.l.b16 %v467
      %v756 = vunpack.c.l.b16 %v468
      %v757 = vunpack.c.l.b16 %v469
      %v758 = vunpack.c.l.b16 %v470
      %v759 = vunpack.c.l.b16 %v471
      %v760 = vunpack.c.l.b16 %v472
      %v761 = vunpack.c.l.b16 %v473
      %v762 = vunpack.c.l.b16 %v474
      %v763 = vunpack.c.l.b16 %v475
      %v764 = vunpack.c.l.b16 %v476
      %v765 = vunpack.c.l.b16 %v477
      %v766 = vunpack.c.l.b16 %v478
      %v767 = vunpack.c.l.b16 %v479
      %v768 = vpack.c.b16 %v705, %v704
      %v769 = vpack.c.b16 %v707, %v706
      %v770 = vpack.c.b16 %v709, %v708
      %v771 = vpack.c.b16 %v711, %v710
      %v772 = vpack.c.b16 %v713, %v712
      %v773 = vpack.c.b16 %v715, %v714
      %v774 = vpack.c.b16 %v717, %v716
      %v775 = vpack.c.b16 %v719, %v718
      %v776 = vpack.c.b16 %v721, %v720
      %v777 = vpack.c.b16 %v723, %v722
      %v778 = vpack.c.b16 %v725, %v724
      %v779 = vpack.c.b16 %v727, %v726
      %v780 = vpack.c.b16 %v729, %v728
      %v781 = vpack.c.b16 %v731, %v730
      %v782 = vpack.c.b16 %v733, %v732
      %v783 = vpack.c.b16 %v735, %v734
      %v784 = vpack.c.b16 %v737, %v736
      %v785 = vpack.c.b16 %v739, %v738
      %v786 = vpack.c.b16 %v741, %v740
      %v787 = vpack.c.b16 %v743, %v742
      %v788 = vpack.c.b16 %v745, %v744
      %v789 = vpack.c.b16 %v747, %v746
      %v790 = vpack.c.b16 %v749, %v748
      %v791 = vpack.c.b16 %v751, %v750
      %v792 = vpack.c.b16 %v753, %v752
      %v793 = vpack.c.b16 %v755, %v754
      %v794 = vpack.c.b16 %v757, %v756
      %v795 = vpack.c.b16 %v759, %v758
      %v796 = vpack.c.b16 %v761, %v760
      %v797 = vpack.c.b16 %v763, %v762
      %v798 = vpack.c.b16 %v765, %v764
      %v799 = vpack.c.b16 %v767, %v766
      %832 = vmatprep.subr.bf16.mxu0 0
      %833 = vmatpush1.bf16.msra.mxu0 %v775
      %834 = vmatprep.subr.bf16.mxu0 0
      %835 = vmatpush1.bf16.msra.mxu0 %v774
      %836 = vmatprep.subr.bf16.mxu0 0
      %837 = vmatpush1.bf16.msra.mxu0 %v773
      %838 = vmatprep.subr.bf16.mxu0 0
      %839 = vmatpush1.bf16.msra.mxu0 %v772
      %840 = vmatprep.subr.bf16.mxu0 0
      %841 = vmatpush1.bf16.msra.mxu0 %v771
      %842 = vmatprep.subr.bf16.mxu0 0
      %843 = vmatpush1.bf16.msra.mxu0 %v770
      %844 = vmatprep.subr.bf16.mxu0 0
      %845 = vmatpush1.bf16.msra.mxu0 %v769
      %846 = vmatprep.subr.bf16.mxu0 0
      %847 = vmatpush1.bf16.msra.mxu0 %v768
      %848 = vmatprep.subr.bf16.mxu0 0
      %849 = vmatpush2.bf16.msra.mxu0 %v783
      %850 = vmatprep.subr.bf16.mxu0 0
      %851 = vmatpush2.bf16.msra.mxu0 %v782
      %852 = vmatprep.subr.bf16.mxu0 0
      %853 = vmatpush2.bf16.msra.mxu0 %v781
      %854 = vmatprep.subr.bf16.mxu0 0
      %855 = vmatpush2.bf16.msra.mxu0 %v780
      %856 = vmatprep.subr.bf16.mxu0 0
      %857 = vmatpush2.bf16.msra.mxu0 %v779
      %858 = vmatprep.subr.bf16.mxu0 0
      %859 = vmatpush2.bf16.msra.mxu0 %v778
      %860 = vmatprep.subr.bf16.mxu0 0
      %861 = vmatpush2.bf16.msra.mxu0 %v777
      %862 = vmatprep.subr.bf16.mxu0 0
      %863 = vmatpush2.bf16.msra.mxu0 %v776
      %864 = vmatprep.mubr.bf16.mxu0 %v577
      %865 = vmatmul.mubr.bf16.gmra.mxu0 %v576
      %v866 = vpop.f32.mrf.mxu0
      %v867 = vadd.f32 0.0, %v866
      %v868 = vpop.f32.mrf.mxu0
      %v869 = vpop.f32.mrf.mxu0
      %v870 = vadd.f32 0.0, %v869
      %v871 = vpop.f32.mrf.mxu0
      %872 = vmatprep.mubr.bf16.mxu0 %v581
      %873 = vmatmul.mubr.bf16.gmra.mxu0 %v580
      %v874 = vpop.f32.mrf.mxu0
      %v875 = vadd.f32 0.0, %v874
      %v876 = vpop.f32.mrf.mxu0
      %v877 = vpop.f32.mrf.mxu0
      %v878 = vadd.f32 0.0, %v877
      %v879 = vpop.f32.mrf.mxu0
      %880 = vmatprep.mubr.bf16.mxu0 %v585
      %881 = vmatmul.mubr.bf16.gmra.mxu0 %v584
      %v882 = vpop.f32.mrf.mxu0
      %v883 = vadd.f32 0.0, %v882
      %v884 = vpop.f32.mrf.mxu0
      %v885 = vpop.f32.mrf.mxu0
      %v886 = vadd.f32 0.0, %v885
      %v887 = vpop.f32.mrf.mxu0
      %888 = vmatprep.mubr.bf16.mxu0 %v589
      %889 = vmatmul.mubr.bf16.gmra.mxu0 %v588
      %v890 = vpop.f32.mrf.mxu0
      %v891 = vadd.f32 0.0, %v890
      %v892 = vpop.f32.mrf.mxu0
      %v893 = vpop.f32.mrf.mxu0
      %v894 = vadd.f32 0.0, %v893
      %v895 = vpop.f32.mrf.mxu0
      %896 = vmatprep.mubr.bf16.mxu0 %v593
      %897 = vmatmul.mubr.bf16.gmra.mxu0 %v592
      %v898 = vpop.f32.mrf.mxu0
      %v899 = vadd.f32 0.0, %v898
      %v900 = vpop.f32.mrf.mxu0
      %v901 = vpop.f32.mrf.mxu0
      %v902 = vadd.f32 0.0, %v901
      %v903 = vpop.f32.mrf.mxu0
      %904 = vmatprep.mubr.bf16.mxu0 %v597
      %905 = vmatmul.mubr.bf16.gmra.mxu0 %v596
      %v906 = vpop.f32.mrf.mxu0
      %v907 = vadd.f32 0.0, %v906
      %v908 = vpop.f32.mrf.mxu0
      %v909 = vpop.f32.mrf.mxu0
      %v910 = vadd.f32 0.0, %v909
      %v911 = vpop.f32.mrf.mxu0
      %912 = vmatprep.mubr.bf16.mxu0 %v601
      %913 = vmatmul.mubr.bf16.gmra.mxu0 %v600
      %v914 = vpop.f32.mrf.mxu0
      %v915 = vadd.f32 0.0, %v914
      %v916 = vpop.f32.mrf.mxu0
      %v917 = vpop.f32.mrf.mxu0
      %v918 = vadd.f32 0.0, %v917
      %v919 = vpop.f32.mrf.mxu0
      %920 = vmatprep.mubr.bf16.mxu0 %v605
      %921 = vmatmul.mubr.bf16.gmra.mxu0 %v604
      %v922 = vpop.f32.mrf.mxu0
      %v923 = vadd.f32 0.0, %v922
      %v924 = vpop.f32.mrf.mxu0
      %v925 = vpop.f32.mrf.mxu0
      %v926 = vadd.f32 0.0, %v925
      %v927 = vpop.f32.mrf.mxu0
      %928 = vdwg.mxu0
      %929 = vmatprep.subr.bf16.mxu0 0
      %930 = vmatpush1.bf16.msra.mxu0 %v791
      %931 = vmatprep.subr.bf16.mxu0 0
      %932 = vmatpush1.bf16.msra.mxu0 %v790
      %933 = vmatprep.subr.bf16.mxu0 0
      %934 = vmatpush1.bf16.msra.mxu0 %v789
      %935 = vmatprep.subr.bf16.mxu0 0
      %936 = vmatpush1.bf16.msra.mxu0 %v788
      %937 = vmatprep.subr.bf16.mxu0 0
      %938 = vmatpush1.bf16.msra.mxu0 %v787
      %939 = vmatprep.subr.bf16.mxu0 0
      %940 = vmatpush1.bf16.msra.mxu0 %v786
      %941 = vmatprep.subr.bf16.mxu0 0
      %942 = vmatpush1.bf16.msra.mxu0 %v785
      %943 = vmatprep.subr.bf16.mxu0 0
      %944 = vmatpush1.bf16.msra.mxu0 %v784
      %945 = vmatprep.subr.bf16.mxu0 0
      %946 = vmatpush2.bf16.msra.mxu0 %v799
      %947 = vmatprep.subr.bf16.mxu0 0
      %948 = vmatpush2.bf16.msra.mxu0 %v798
      %949 = vmatprep.subr.bf16.mxu0 0
      %950 = vmatpush2.bf16.msra.mxu0 %v797
      %951 = vmatprep.subr.bf16.mxu0 0
      %952 = vmatpush2.bf16.msra.mxu0 %v796
      %953 = vmatprep.subr.bf16.mxu0 0
      %954 = vmatpush2.bf16.msra.mxu0 %v795
      %955 = vmatprep.subr.bf16.mxu0 0
      %956 = vmatpush2.bf16.msra.mxu0 %v794
      %957 = vmatprep.subr.bf16.mxu0 0
      %958 = vmatpush2.bf16.msra.mxu0 %v793
      %959 = vmatprep.subr.bf16.mxu0 0
      %960 = vmatpush2.bf16.msra.mxu0 %v792
      %961 = vmatprep.mubr.bf16.mxu0 %v579
      %962 = vmatmul.mubr.bf16.gmra.mxu0 %v578
      %v963 = vpop.f32.mrf.mxu0
      %v964 = vadd.f32 %v867, %v963
      %v965 = vpop.f32.mrf.mxu0
      %v966 = vpop.f32.mrf.mxu0
      %v967 = vadd.f32 %v870, %v966
      %v968 = vpop.f32.mrf.mxu0
      %969 = vmatprep.mubr.bf16.mxu0 %v583
      %970 = vmatmul.mubr.bf16.gmra.mxu0 %v582
      %v971 = vpop.f32.mrf.mxu0
      %v972 = vadd.f32 %v875, %v971
      %v973 = vpop.f32.mrf.mxu0
      %v974 = vpop.f32.mrf.mxu0
      %v975 = vadd.f32 %v878, %v974
      %v976 = vpop.f32.mrf.mxu0
      %977 = vmatprep.mubr.bf16.mxu0 %v587
      %978 = vmatmul.mubr.bf16.gmra.mxu0 %v586
      %v979 = vpop.f32.mrf.mxu0
      %v980 = vadd.f32 %v883, %v979
      %v981 = vpop.f32.mrf.mxu0
      %v982 = vpop.f32.mrf.mxu0
      %v983 = vadd.f32 %v886, %v982
      %v984 = vpop.f32.mrf.mxu0
      %985 = vmatprep.mubr.bf16.mxu0 %v591
      %986 = vmatmul.mubr.bf16.gmra.mxu0 %v590
      %v987 = vpop.f32.mrf.mxu0
      %v988 = vadd.f32 %v891, %v987
      %v989 = vpop.f32.mrf.mxu0
      %v990 = vpop.f32.mrf.mxu0
      %v991 = vadd.f32 %v894, %v990
      %v992 = vpop.f32.mrf.mxu0
      %993 = vmatprep.mubr.bf16.mxu0 %v595
      %994 = vmatmul.mubr.bf16.gmra.mxu0 %v594
      %v995 = vpop.f32.mrf.mxu0
      %v996 = vadd.f32 %v899, %v995
      %v997 = vpop.f32.mrf.mxu0
      %v998 = vpop.f32.mrf.mxu0
      %v999 = vadd.f32 %v902, %v998
      %v1000 = vpop.f32.mrf.mxu0
      %1001 = vmatprep.mubr.bf16.mxu0 %v599
      %1002 = vmatmul.mubr.bf16.gmra.mxu0 %v598
      %v1003 = vpop.f32.mrf.mxu0
      %v1004 = vadd.f32 %v907, %v1003
      %v1005 = vpop.f32.mrf.mxu0
      %v1006 = vpop.f32.mrf.mxu0
      %v1007 = vadd.f32 %v910, %v1006
      %v1008 = vpop.f32.mrf.mxu0
      %1009 = vmatprep.mubr.bf16.mxu0 %v603
      %1010 = vmatmul.mubr.bf16.gmra.mxu0 %v602
      %v1011 = vpop.f32.mrf.mxu0
      %v1012 = vadd.f32 %v915, %v1011
      %v1013 = vpop.f32.mrf.mxu0
      %v1014 = vpop.f32.mrf.mxu0
      %v1015 = vadd.f32 %v918, %v1014
      %v1016 = vpop.f32.mrf.mxu0
      %1017 = vmatprep.mubr.bf16.mxu0 %v607
      %1018 = vmatmul.mubr.bf16.gmra.mxu0 %v606
      %v1019 = vpop.f32.mrf.mxu0
      %v1020 = vadd.f32 %v923, %v1019
      %v1021 = vpop.f32.mrf.mxu0
      %v1022 = vpop.f32.mrf.mxu0
      %v1023 = vadd.f32 %v926, %v1022
      %v1024 = vpop.f32.mrf.mxu0
      %1025 = vdwg.mxu0
      %v1026 = vadd.f32 %v368, %v964
      %v1027 = vadd.f32 %v369, %v967
      %v1028 = vadd.f32 %v370, %v972
      %v1029 = vadd.f32 %v371, %v975
      %v1030 = vadd.f32 %v372, %v980
      %v1031 = vadd.f32 %v373, %v983
      %v1032 = vadd.f32 %v374, %v988
      %v1033 = vadd.f32 %v375, %v991
      %v1034 = vadd.f32 %v376, %v996
      %v1035 = vadd.f32 %v377, %v999
      %v1036 = vadd.f32 %v378, %v1004
      %v1037 = vadd.f32 %v379, %v1007
      %v1038 = vadd.f32 %v380, %v1012
      %v1039 = vadd.f32 %v381, %v1015
      %v1040 = vadd.f32 %v382, %v1020
      %v1041 = vadd.f32 %v383, %v1023
      %1042 = vst [vmem:[#allocation2] sm:$0xff] %v1026
      %1043 = vst [vmem:[#allocation2 + $0x8] sm:$0xff] %v1027
      %1044 = vst [vmem:[#allocation2 + $0x10] sm:$0xff] %v1028
      %1045 = vst [vmem:[#allocation2 + $0x18] sm:$0xff] %v1029
      %1046 = vst [vmem:[#allocation2 + $0x20] sm:$0xff] %v1030
      %1047 = vst [vmem:[#allocation2 + $0x28] sm:$0xff] %v1031
      %1048 = vst [vmem:[#allocation2 + $0x30] sm:$0xff] %v1032
      %1049 = vst [vmem:[#allocation2 + $0x38] sm:$0xff] %v1033
      %1050 = vst [vmem:[#allocation2 + $0x40] sm:$0xff] %v1034
      %1051 = vst [vmem:[#allocation2 + $0x48] sm:$0xff] %v1035
      %1052 = vst [vmem:[#allocation2 + $0x50] sm:$0xff] %v1036
      %1053 = vst [vmem:[#allocation2 + $0x58] sm:$0xff] %v1037
      %1054 = vst [vmem:[#allocation2 + $0x60] sm:$0xff] %v1038
      %1055 = vst [vmem:[#allocation2 + $0x68] sm:$0xff] %v1039
      %1056 = vst [vmem:[#allocation2 + $0x70] sm:$0xff] %v1040
      %1057 = vst [vmem:[#allocation2 + $0x78] sm:$0xff] %v1041
      // Predicated region
      $region45: #{bpr_forward.11} parent=39 // pred_check
        %p1058 = pneg %p348
      $region46: #{bpr_forward.11} parent=39 // pred_check_branch
        %1060 = sbr.rel (%p1058) target = $region48
      $region47: #{bpr_forward.11} parent=39 // pred_region
        %v1061 = vld [vmem:[%s327] sm:$0xff]
        %v1062 = vld [vmem:[%s327 + $0x8] sm:$0xff]
        %v1063 = vld [vmem:[%s327 + $0x10] sm:$0xff]
        %v1064 = vld [vmem:[%s327 + $0x18] sm:$0xff]
        %v1065 = vld [vmem:[%s327 + $0x20] sm:$0xff]
        %v1066 = vld [vmem:[%s327 + $0x28] sm:$0xff]
        %v1067 = vld [vmem:[%s327 + $0x30] sm:$0xff]
        %v1068 = vld [vmem:[%s327 + $0x38] sm:$0xff]
        %v1069 = vld [vmem:[%s327 + $0x40] sm:$0xff]
        %v1070 = vld [vmem:[%s327 + $0x48] sm:$0xff]
        %v1071 = vld [vmem:[%s327 + $0x50] sm:$0xff]
        %v1072 = vld [vmem:[%s327 + $0x58] sm:$0xff]
        %v1073 = vld [vmem:[%s327 + $0x60] sm:$0xff]
        %v1074 = vld [vmem:[%s327 + $0x68] sm:$0xff]
        %v1075 = vld [vmem:[%s327 + $0x70] sm:$0xff]
        %v1076 = vld [vmem:[%s327 + $0x78] sm:$0xff]
        %v1077 = vld [vmem:[%s333] sm:$0xf]
        %v1078 = vld [vmem:[%s333 + $0x4] sm:$0xf]
        %v1079 = vld [vmem:[%s333 + $0x8] sm:$0xf]
        %v1080 = vld [vmem:[%s333 + $0xc] sm:$0xf]
        %v1081 = vld [vmem:[%s333 + $0x10] sm:$0xf]
        %v1082 = vld [vmem:[%s333 + $0x14] sm:$0xf]
        %v1083 = vld [vmem:[%s333 + $0x18] sm:$0xf]
        %v1084 = vld [vmem:[%s333 + $0x1c] sm:$0xf]
        %v1085 = vld [vmem:[%s333 + $0x20] sm:$0xf]
        %v1086 = vld [vmem:[%s333 + $0x24] sm:$0xf]
        %v1087 = vld [vmem:[%s333 + $0x28] sm:$0xf]
        %v1088 = vld [vmem:[%s333 + $0x2c] sm:$0xf]
        %v1089 = vld [vmem:[%s333 + $0x30] sm:$0xf]
        %v1090 = vld [vmem:[%s333 + $0x34] sm:$0xf]
        %v1091 = vld [vmem:[%s333 + $0x38] sm:$0xf]
        %v1092 = vld [vmem:[%s333 + $0x3c] sm:$0xf]
        %v1093 = vunpack.c.l.bf16 %v1077
        %v1094 = vunpack.c.l.bf16 %v1078
        %v1095 = vunpack.c.l.bf16 %v1079
        %v1096 = vunpack.c.l.bf16 %v1080
        %v1097 = vunpack.c.l.bf16 %v1081
        %v1098 = vunpack.c.l.bf16 %v1082
        %v1099 = vunpack.c.l.bf16 %v1083
        %v1100 = vunpack.c.l.bf16 %v1084
        %v1101 = vunpack.c.l.bf16 %v1085
        %v1102 = vunpack.c.l.bf16 %v1086
        %v1103 = vunpack.c.l.bf16 %v1087
        %v1104 = vunpack.c.l.bf16 %v1088
        %v1105 = vunpack.c.l.bf16 %v1089
        %v1106 = vunpack.c.l.bf16 %v1090
        %v1107 = vunpack.c.l.bf16 %v1091
        %v1108 = vunpack.c.l.bf16 %v1092
        %v1109 = vmul.f32 %v1093, 0.5
        %v1110 = vmul.f32 %v1094, 0.5
        %v1111 = vmul.f32 %v1095, 0.5
        %v1112 = vmul.f32 %v1096, 0.5
        %v1113 = vmul.f32 %v1097, 0.5
        %v1114 = vmul.f32 %v1098, 0.5
        %v1115 = vmul.f32 %v1099, 0.5
        %v1116 = vmul.f32 %v1100, 0.5
        %v1117 = vmul.f32 %v1101, 0.5
        %v1118 = vmul.f32 %v1102, 0.5
        %v1119 = vmul.f32 %v1103, 0.5
        %v1120 = vmul.f32 %v1104, 0.5
        %v1121 = vmul.f32 %v1105, 0.5
        %v1122 = vmul.f32 %v1106, 0.5
        %v1123 = vmul.f32 %v1107, 0.5
        %v1124 = vmul.f32 %v1108, 0.5
        %v1125 = vadd.f32 %v1061, %v1109
        %v1126 = vadd.f32 %v1062, %v1110
        %v1127 = vadd.f32 %v1063, %v1111
        %v1128 = vadd.f32 %v1064, %v1112
        %v1129 = vadd.f32 %v1065, %v1113
        %v1130 = vadd.f32 %v1066, %v1114
        %v1131 = vadd.f32 %v1067, %v1115
        %v1132 = vadd.f32 %v1068, %v1116
        %v1133 = vadd.f32 %v1069, %v1117
        %v1134 = vadd.f32 %v1070, %v1118
        %v1135 = vadd.f32 %v1071, %v1119
        %v1136 = vadd.f32 %v1072, %v1120
        %v1137 = vadd.f32 %v1073, %v1121
        %v1138 = vadd.f32 %v1074, %v1122
        %v1139 = vadd.f32 %v1075, %v1123
        %v1140 = vadd.f32 %v1076, %v1124
        %v1141 = vld [vmem:[%s339] sm:$0xf]
        %v1142 = vld [vmem:[%s339 + $0x4] sm:$0xf]
        %v1143 = vld [vmem:[%s339 + $0x8] sm:$0xf]
        %v1144 = vld [vmem:[%s339 + $0xc] sm:$0xf]
        %v1145 = vld [vmem:[%s339 + $0x10] sm:$0xf]
        %v1146 = vld [vmem:[%s339 + $0x14] sm:$0xf]
        %v1147 = vld [vmem:[%s339 + $0x18] sm:$0xf]
        %v1148 = vld [vmem:[%s339 + $0x1c] sm:$0xf]
        %v1149 = vld [vmem:[%s339 + $0x20] sm:$0xf]
        %v1150 = vld [vmem:[%s339 + $0x24] sm:$0xf]
        %v1151 = vld [vmem:[%s339 + $0x28] sm:$0xf]
        %v1152 = vld [vmem:[%s339 + $0x2c] sm:$0xf]
        %v1153 = vld [vmem:[%s339 + $0x30] sm:$0xf]
        %v1154 = vld [vmem:[%s339 + $0x34] sm:$0xf]
        %v1155 = vld [vmem:[%s339 + $0x38] sm:$0xf]
        %v1156 = vld [vmem:[%s339 + $0x3c] sm:$0xf]
        %v1157 = vunpack.c.l.bf16 %v1141
        %v1158 = vunpack.c.l.bf16 %v1142
        %v1159 = vunpack.c.l.bf16 %v1143
        %v1160 = vunpack.c.l.bf16 %v1144
        %v1161 = vunpack.c.l.bf16 %v1145
        %v1162 = vunpack.c.l.bf16 %v1146
        %v1163 = vunpack.c.l.bf16 %v1147
        %v1164 = vunpack.c.l.bf16 %v1148
        %v1165 = vunpack.c.l.bf16 %v1149
        %v1166 = vunpack.c.l.bf16 %v1150
        %v1167 = vunpack.c.l.bf16 %v1151
        %v1168 = vunpack.c.l.bf16 %v1152
        %v1169 = vunpack.c.l.bf16 %v1153
        %v1170 = vunpack.c.l.bf16 %v1154
        %v1171 = vunpack.c.l.bf16 %v1155
        %v1172 = vunpack.c.l.bf16 %v1156
        %v1173 = vmul.f32 %v1157, 0.33333334
        %v1174 = vmul.f32 %v1158, 0.33333334
        %v1175 = vmul.f32 %v1159, 0.33333334
        %v1176 = vmul.f32 %v1160, 0.33333334
        %v1177 = vmul.f32 %v1161, 0.33333334
        %v1178 = vmul.f32 %v1162, 0.33333334
        %v1179 = vmul.f32 %v1163, 0.33333334
        %v1180 = vmul.f32 %v1164, 0.33333334
        %v1181 = vmul.f32 %v1165, 0.33333334
        %v1182 = vmul.f32 %v1166, 0.33333334
        %v1183 = vmul.f32 %v1167, 0.33333334
        %v1184 = vmul.f32 %v1168, 0.33333334
        %v1185 = vmul.f32 %v1169, 0.33333334
        %v1186 = vmul.f32 %v1170, 0.33333334
        %v1187 = vmul.f32 %v1171, 0.33333334
        %v1188 = vmul.f32 %v1172, 0.33333334
        %v1189 = vadd.f32 %v1125, %v1173
        %v1190 = vadd.f32 %v1126, %v1174
        %v1191 = vadd.f32 %v1127, %v1175
        %v1192 = vadd.f32 %v1128, %v1176
        %v1193 = vadd.f32 %v1129, %v1177
        %v1194 = vadd.f32 %v1130, %v1178
        %v1195 = vadd.f32 %v1131, %v1179
        %v1196 = vadd.f32 %v1132, %v1180
        %v1197 = vadd.f32 %v1133, %v1181
        %v1198 = vadd.f32 %v1134, %v1182
        %v1199 = vadd.f32 %v1135, %v1183
        %v1200 = vadd.f32 %v1136, %v1184
        %v1201 = vadd.f32 %v1137, %v1185
        %v1202 = vadd.f32 %v1138, %v1186
        %v1203 = vadd.f32 %v1139, %v1187
        %v1204 = vadd.f32 %v1140, %v1188
        %v1205 = vld [vmem:[#allocation2] sm:$0xff]
        %v1206 = vld [vmem:[#allocation2 + $0x8] sm:$0xff]
        %v1207 = vld [vmem:[#allocation2 + $0x10] sm:$0xff]
        %v1208 = vld [vmem:[#allocation2 + $0x18] sm:$0xff]
        %v1209 = vld [vmem:[#allocation2 + $0x20] sm:$0xff]
        %v1210 = vld [vmem:[#allocation2 + $0x28] sm:$0xff]
        %v1211 = vld [vmem:[#allocation2 + $0x30] sm:$0xff]
        %v1212 = vld [vmem:[#allocation2 + $0x38] sm:$0xff]
        %v1213 = vld [vmem:[#allocation2 + $0x40] sm:$0xff]
        %v1214 = vld [vmem:[#allocation2 + $0x48] sm:$0xff]
        %v1215 = vld [vmem:[#allocation2 + $0x50] sm:$0xff]
        %v1216 = vld [vmem:[#allocation2 + $0x58] sm:$0xff]
        %v1217 = vld [vmem:[#allocation2 + $0x60] sm:$0xff]
        %v1218 = vld [vmem:[#allocation2 + $0x68] sm:$0xff]
        %v1219 = vld [vmem:[#allocation2 + $0x70] sm:$0xff]
        %v1220 = vld [vmem:[#allocation2 + $0x78] sm:$0xff]
        %v1221 = vmul.f32 %v1205, 0.25
        %v1222 = vmul.f32 %v1206, 0.25
        %v1223 = vmul.f32 %v1207, 0.25
        %v1224 = vmul.f32 %v1208, 0.25
        %v1225 = vmul.f32 %v1209, 0.25
        %v1226 = vmul.f32 %v1210, 0.25
        %v1227 = vmul.f32 %v1211, 0.25
        %v1228 = vmul.f32 %v1212, 0.25
        %v1229 = vmul.f32 %v1213, 0.25
        %v1230 = vmul.f32 %v1214, 0.25
        %v1231 = vmul.f32 %v1215, 0.25
        %v1232 = vmul.f32 %v1216, 0.25
        %v1233 = vmul.f32 %v1217, 0.25
        %v1234 = vmul.f32 %v1218, 0.25
        %v1235 = vmul.f32 %v1219, 0.25
        %v1236 = vmul.f32 %v1220, 0.25
        %v1237 = vadd.f32 %v1189, %v1221
        %v1238 = vadd.f32 %v1190, %v1222
        %v1239 = vadd.f32 %v1191, %v1223
        %v1240 = vadd.f32 %v1192, %v1224
        %v1241 = vadd.f32 %v1193, %v1225
        %v1242 = vadd.f32 %v1194, %v1226
        %v1243 = vadd.f32 %v1195, %v1227
        %v1244 = vadd.f32 %v1196, %v1228
        %v1245 = vadd.f32 %v1197, %v1229
        %v1246 = vadd.f32 %v1198, %v1230
        %v1247 = vadd.f32 %v1199, %v1231
        %v1248 = vadd.f32 %v1200, %v1232
        %v1249 = vadd.f32 %v1201, %v1233
        %v1250 = vadd.f32 %v1202, %v1234
        %v1251 = vadd.f32 %v1203, %v1235
        %v1252 = vadd.f32 %v1204, %v1236
        %1253 = vst [vmem:[%s345] sm:$0xff] %v1237
        %1254 = vst [vmem:[%s345 + $0x8] sm:$0xff] %v1238
        %1255 = vst [vmem:[%s345 + $0x10] sm:$0xff] %v1239
        %1256 = vst [vmem:[%s345 + $0x18] sm:$0xff] %v1240
        %1257 = vst [vmem:[%s345 + $0x20] sm:$0xff] %v1241
        %1258 = vst [vmem:[%s345 + $0x28] sm:$0xff] %v1242
        %1259 = vst [vmem:[%s345 + $0x30] sm:$0xff] %v1243
        %1260 = vst [vmem:[%s345 + $0x38] sm:$0xff] %v1244
        %1261 = vst [vmem:[%s345 + $0x40] sm:$0xff] %v1245
        %1262 = vst [vmem:[%s345 + $0x48] sm:$0xff] %v1246
        %1263 = vst [vmem:[%s345 + $0x50] sm:$0xff] %v1247
        %1264 = vst [vmem:[%s345 + $0x58] sm:$0xff] %v1248
        %1265 = vst [vmem:[%s345 + $0x60] sm:$0xff] %v1249
        %1266 = vst [vmem:[%s345 + $0x68] sm:$0xff] %v1250
        %1267 = vst [vmem:[%s345 + $0x70] sm:$0xff] %v1251
        %1268 = vst [vmem:[%s345 + $0x78] sm:$0xff] %v1252
      $region48: #{bpr_forward.11} parent=39 // pred_fallthru
        _
      %s1269 = smul.u32 16, %s20
      %p1270 = scmp.lt.s32.totalorder %s1269, 127
      %s1271 = scalar_select %p1270, %s1269, 127
      %s1272 = smul.addr %s1271, 8
      %s1273 = scalar_lea.vmem %s5, %s1272
      // Predicated region
      $region49: #{bpr_forward.11} parent=39 // pred_check
        %p1274 = pneg %p178
      $region50: #{bpr_forward.11} parent=39 // pred_check_branch
        %1276 = sbr.rel (%p1274) target = $region52
      $region51: #{bpr_forward.11} parent=39 // pred_region
        %s1277 = smul.u32 16, %s20
      $region52: #{bpr_forward.11} parent=39 // pred_fallthru
        _
    $region40: #{bpr_forward.11} parent=5 // pred_fallthru
      _
    %p1278 = scmp.le.s32.totalorder 2, %s11
    // Predicated region
    $region53: #{bpr_forward.11} parent=5 // pred_check
      %p1279 = pneg %p1278
    $region54: #{bpr_forward.11} parent=5 // pred_check_branch
      %1281 = sbr.rel (%p1279) target = $region56
    $region55: #{bpr_forward.11} parent=5 // pred_region
      %s1282 = ssub.s32 %s11, 2
      // Predicated region
      $region57: #{bpr_forward.11} parent=55 // pred_check
        %p1283 = pneg %p184
      $region58: #{bpr_forward.11} parent=55 // pred_check_branch
        %1285 = sbr.rel (%p1283) target = $region60
      $region59: #{bpr_forward.11} parent=55 // pred_region
        %s1286 = smul.u32 16, %s22
        %p1287 = scmp.lt.s32.totalorder %s1286, 127
        %s1288 = scalar_select %p1287, %s1286, 127
        %s1289 = smul.addr %s1288, 8
        %s1290 = scalar_lea.vmem %s5, %s1289
      $region60: #{bpr_forward.11} parent=55 // pred_fallthru
        _
    $region56: #{bpr_forward.11} parent=5 // pred_fallthru
      _
  $region6: #{bpr_forward.11} parent=0 // loop_footer
    %s15 = sadd.s32 1, %s11
  $region7: #{bpr_forward.11} parent=0 // loop_footer_branch
    %10 = sbr.rel target = $region3
  $region8: #{bpr_forward.11} parent=0 // loop_exit
    _

// kernel: bpr_forward.10
$region0: #{bpr_forward.10}
  #allocation0 [shape = 'u32[]', space=smem, size = 0x4, offset = 0x4, fixed_abs, tag = 'smem constant byte address 0x4 - core index']
  #allocation1 [shape = 'u32[144,128]{1,0:T(1,128)}', space=vmem, size = 0x12000, scoped, tag = 'internal scratch']
  #allocation2 [shape = 'f32[128,128]{1,0:T(8,128)}', space=vmem, size = 0x10000, scoped, tag = 'scratch operand']
  %s0 = inlined_call_operand.vmem [shape: bf16[512,1024], index: 0, kind: input, shape index: {}]
  %s1 = inlined_call_operand.vmem [shape: bf16[1024,128], index: 1, kind: input, shape index: {}]
  %s2 = inlined_call_operand.vmem [shape: f32[512,128], index: 2, kind: input, shape index: {}]
  %s3 = inlined_call_operand.vmem [shape: bf16[512,128], index: 3, kind: input, shape index: {}]
  %s4 = inlined_call_operand.vmem [shape: bf16[512,128], index: 4, kind: input, shape index: {}]
  %s5 = inlined_call_operand.vmem [shape: f32[512,128], index: 5, kind: output, shape index: {}]
  %s6 = sld [smem:[#allocation0]]
  $region61: #{bpr_forward.10} parent=0
    _
  %s8 = ssub.s32 1, %s6
  %s9 = scalar_select 0, %s8, %s6
  loop: start=0, step=1, limit=6
  $region2: #{bpr_forward.10} parent=0 // loop_pre_header
    _
  $region3: #{bpr_forward.10} parent=0 // loop_header
    %s11 = sphi 0, %s15
    %p12 = scmp.ge.s32.totalorder %s11, 6
    %s18 = sphi 0, %s30
    %s19 = sphi 0, %s26
    %s20 = sphi 0, %s18
    %s21 = sphi 0, %s19
    %s22 = sphi 0, %s20
    %s23 = sphi 0, %s21
    %s35 = sphi 0, %s37
    %s38 = sphi 0, %s35
    %s39 = sphi 0, %s38
    %s55 = sphi 0, %s39
    %s61 = sphi 0, %s63
    %s64 = sphi 0, %s61
    %s65 = sphi 0, %s64
    %s81 = sphi 0, %s65
    %s87 = sphi 0, %s89
    %s90 = sphi 0, %s87
    %s91 = sphi 0, %s90
    %s107 = sphi 0, %s91
    %s113 = sphi 0, %s115
    %s116 = sphi 0, %s113
    %s117 = sphi 0, %s116
    %s133 = sphi 0, %s117
    %s139 = sphi 0, %s141
    %s142 = sphi 0, %s139
    %s143 = sphi 0, %s142
    %s159 = sphi 0, %s143
    %s165 = sphi 0, %s167
    %s168 = sphi 0, %s165
    %s169 = sphi 0, %s168
    %s185 = sphi 0, %s169
  $region4: #{bpr_forward.10} parent=0 // loop_header_branch
    %14 = sbr.rel (%p12) target = $region8
  $region5: #{bpr_forward.10} parent=0 // loop_body
    %s16 = ssub.s32 %s11, 1
    %s17 = ssub.s32 %s11, 2
    %s24 = sadd.s32 1, %s19
    %p25 = scmp.ge.s32.totalorder %s24, 1
    %s26 = scalar_select %p25, 0, %s24
    %s27 = sadd.s32 1, %s18
    %s28 = scalar_select %p25, %s27, %s18
    %p29 = scmp.ge.s32.totalorder %s28, 4
    %s30 = scalar_select %p29, 0, %s28
    %s31 = ssub.s32 %s18, %s30
    %s32 = ssub.s32 %s19, %s26
    %s33 = sor.u32 %s31, %s32
    %p34 = scmp.eq.s32.totalorder %s33, 0
    %s36 = sadd.s32 %s35, 1
    %s37 = scalar_select %p34, %s35, %s36
    %p40 = pneg %p34
    %p41 = scmp.eq.s32.totalorder %s11, 3
    %p42 = por %p40, %p41
    %p43 = scmp.ne.s32.totalorder %s35, %s38
    %p44 = scmp.eq.s32.totalorder %s11, 0
    %p45 = por %p43, %p44
    %p46 = scmp.ne.s32.totalorder %s35, %s38
    %p47 = scmp.eq.s32.totalorder %s16, 3
    %p48 = por %p46, %p47
    %p49 = scmp.ne.s32.totalorder %s38, %s39
    %p50 = scmp.eq.s32.totalorder %s16, 0
    %p51 = por %p49, %p50
    %p52 = scmp.ne.s32.totalorder %s38, %s39
    %p53 = scmp.eq.s32.totalorder %s17, 3
    %p54 = por %p52, %p53
    %p56 = scmp.ne.s32.totalorder %s39, %s55
    %p57 = scmp.eq.s32.totalorder %s17, 0
    %p58 = por %p56, %p57
    %s59 = ssub.s32 %s19, %s26
    %p60 = scmp.eq.s32.totalorder %s59, 0
    %s62 = sadd.s32 %s61, 1
    %s63 = scalar_select %p60, %s61, %s62
    %p66 = pneg %p60
    %p67 = scmp.eq.s32.totalorder %s11, 3
    %p68 = por %p66, %p67
    %p69 = scmp.ne.s32.totalorder %s61, %s64
    %p70 = scmp.eq.s32.totalorder %s11, 0
    %p71 = por %p69, %p70
    %p72 = scmp.ne.s32.totalorder %s61, %s64
    %p73 = scmp.eq.s32.totalorder %s16, 3
    %p74 = por %p72, %p73
    %p75 = scmp.ne.s32.totalorder %s64, %s65
    %p76 = scmp.eq.s32.totalorder %s16, 0
    %p77 = por %p75, %p76
    %p78 = scmp.ne.s32.totalorder %s64, %s65
    %p79 = scmp.eq.s32.totalorder %s17, 3
    %p80 = por %p78, %p79
    %p82 = scmp.ne.s32.totalorder %s65, %s81
    %p83 = scmp.eq.s32.totalorder %s17, 0
    %p84 = por %p82, %p83
    %s85 = ssub.s32 %s18, %s30
    %p86 = scmp.eq.s32.totalorder %s85, 0
    %s88 = sadd.s32 %s87, 1
    %s89 = scalar_select %p86, %s87, %s88
    %p92 = pneg %p86
    %p93 = scmp.eq.s32.totalorder %s11, 3
    %p94 = por %p92, %p93
    %p95 = scmp.ne.s32.totalorder %s87, %s90
    %p96 = scmp.eq.s32.totalorder %s11, 0
    %p97 = por %p95, %p96
    %p98 = scmp.ne.s32.totalorder %s87, %s90
    %p99 = scmp.eq.s32.totalorder %s16, 3
    %p100 = por %p98, %p99
    %p101 = scmp.ne.s32.totalorder %s90, %s91
    %p102 = scmp.eq.s32.totalorder %s16, 0
    %p103 = por %p101, %p102
    %p104 = scmp.ne.s32.totalorder %s90, %s91
    %p105 = scmp.eq.s32.totalorder %s17, 3
    %p106 = por %p104, %p105
    %p108 = scmp.ne.s32.totalorder %s91, %s107
    %p109 = scmp.eq.s32.totalorder %s17, 0
    %p110 = por %p108, %p109
    %s111 = ssub.s32 %s18, %s30
    %p112 = scmp.eq.s32.totalorder %s111, 0
    %s114 = sadd.s32 %s113, 1
    %s115 = scalar_select %p112, %s113, %s114
    %p118 = pneg %p112
    %p119 = scmp.eq.s32.totalorder %s11, 3
    %p120 = por %p118, %p119
    %p121 = scmp.ne.s32.totalorder %s113, %s116
    %p122 = scmp.eq.s32.totalorder %s11, 0
    %p123 = por %p121, %p122
    %p124 = scmp.ne.s32.totalorder %s113, %s116
    %p125 = scmp.eq.s32.totalorder %s16, 3
    %p126 = por %p124, %p125
    %p127 = scmp.ne.s32.totalorder %s116, %s117
    %p128 = scmp.eq.s32.totalorder %s16, 0
    %p129 = por %p127, %p128
    %p130 = scmp.ne.s32.totalorder %s116, %s117
    %p131 = scmp.eq.s32.totalorder %s17, 3
    %p132 = por %p130, %p131
    %p134 = scmp.ne.s32.totalorder %s117, %s133
    %p135 = scmp.eq.s32.totalorder %s17, 0
    %p136 = por %p134, %p135
    %s137 = ssub.s32 %s18, %s30
    %p138 = scmp.eq.s32.totalorder %s137, 0
    %s140 = sadd.s32 %s139, 1
    %s141 = scalar_select %p138, %s139, %s140
    %p144 = pneg %p138
    %p145 = scmp.eq.s32.totalorder %s11, 3
    %p146 = por %p144, %p145
    %p147 = scmp.ne.s32.totalorder %s139, %s142
    %p148 = scmp.eq.s32.totalorder %s11, 0
    %p149 = por %p147, %p148
    %p150 = scmp.ne.s32.totalorder %s139, %s142
    %p151 = scmp.eq.s32.totalorder %s16, 3
    %p152 = por %p150, %p151
    %p153 = scmp.ne.s32.totalorder %s142, %s143
    %p154 = scmp.eq.s32.totalorder %s16, 0
    %p155 = por %p153, %p154
    %p156 = scmp.ne.s32.totalorder %s142, %s143
    %p157 = scmp.eq.s32.totalorder %s17, 3
    %p158 = por %p156, %p157
    %p160 = scmp.ne.s32.totalorder %s143, %s159
    %p161 = scmp.eq.s32.totalorder %s17, 0
    %p162 = por %p160, %p161
    %s163 = ssub.s32 %s18, %s30
    %p164 = scmp.eq.s32.totalorder %s163, 0
    %s166 = sadd.s32 %s165, 1
    %s167 = scalar_select %p164, %s165, %s166
    %p170 = pneg %p164
    %p171 = scmp.eq.s32.totalorder %s11, 3
    %p172 = por %p170, %p171
    %p173 = scmp.ne.s32.totalorder %s165, %s168
    %p174 = scmp.eq.s32.totalorder %s11, 0
    %p175 = por %p173, %p174
    %p176 = scmp.ne.s32.totalorder %s165, %s168
    %p177 = scmp.eq.s32.totalorder %s16, 3
    %p178 = por %p176, %p177
    %p179 = scmp.ne.s32.totalorder %s168, %s169
    %p180 = scmp.eq.s32.totalorder %s16, 0
    %p181 = por %p179, %p180
    %p182 = scmp.ne.s32.totalorder %s168, %s169
    %p183 = scmp.eq.s32.totalorder %s17, 3
    %p184 = por %p182, %p183
    %p186 = scmp.ne.s32.totalorder %s169, %s185
    %p187 = scmp.eq.s32.totalorder %s17, 0
    %p188 = por %p186, %p187
    %p189 = scmp.le.s32.totalorder 1, %s11
    %p190 = scmp.lt.s32.totalorder %s11, 5
    %p191 = pnand %p189, %p190
    %p192 = pneg %p191
    // Predicated region
    $region9: #{bpr_forward.10} parent=5 // pred_check
      _
    $region10: #{bpr_forward.10} parent=5 // pred_check_branch
      %194 = sbr.rel (%p191) target = $region12
    $region11: #{bpr_forward.10} parent=5 // pred_region
      %s195 = ssub.s32 %s11, 1
      // Predicated region
      $region13: #{bpr_forward.10} parent=11 // pred_check
        %p196 = pneg %p77
      $region14: #{bpr_forward.10} parent=11 // pred_check_branch
        %198 = sbr.rel (%p196) target = $region16
      $region15: #{bpr_forward.10} parent=11 // pred_region
        %s199 = smul.u32 128, %s21
        %p200 = scmp.lt.s32.totalorder %s199, 127
        %s201 = scalar_select %p200, %s199, 127
        %s202 = smul.addr %s201, 4
        %s203 = scalar_lea.vmem %s1, %s202
        %s204 = smul.u32 128, %s21
      $region16: #{bpr_forward.10} parent=11 // pred_fallthru
        _
    $region12: #{bpr_forward.10} parent=5 // pred_fallthru
      _
    %p205 = scmp.lt.s32.totalorder %s11, 4
    // Predicated region
    $region17: #{bpr_forward.10} parent=5 // pred_check
      %p206 = pneg %p205
    $region18: #{bpr_forward.10} parent=5 // pred_check_branch
      %208 = sbr.rel (%p206) target = $region20
    $region19: #{bpr_forward.10} parent=5 // pred_region
      // Predicated region
      $region21: #{bpr_forward.10} parent=19 // pred_check
        %p209 = pneg %p45
      $region22: #{bpr_forward.10} parent=19 // pred_check_branch
        %211 = sbr.rel (%p209) target = $region24
      $region23: #{bpr_forward.10} parent=19 // pred_region
        %s212 = smul.u32 16, %s18
        %s213 = smul.u32 8, %s19
        %p214 = scmp.lt.s32.totalorder %s212, 63
        %s215 = scalar_select %p214, %s212, 63
        %p216 = scmp.lt.s32.totalorder %s213, 7
        %s217 = scalar_select %p216, %s213, 7
        %s218 = smul.addr %s215, 8
        %s219 = sadd.s32 %s217, %s218
        %s220 = smul.addr %s219, 4
        %s221 = scalar_lea.vmem %s0, %s220
        %s222 = smul.u32 16, %s18
        %s223 = smul.u32 8, %s19
      $region24: #{bpr_forward.10} parent=19 // pred_fallthru
        _
      // Predicated region
      $region25: #{bpr_forward.10} parent=19 // pred_check
        %p224 = pneg %p97
      $region26: #{bpr_forward.10} parent=19 // pred_check_branch
        %226 = sbr.rel (%p224) target = $region28
      $region27: #{bpr_forward.10} parent=19 // pred_region
        %s227 = smul.u32 16, %s18
        %p228 = scmp.lt.s32.totalorder %s227, 63
        %s229 = scalar_select %p228, %s227, 63
        %s230 = smul.addr %s229, 8
        %s231 = scalar_lea.vmem %s2, %s230
        %s232 = smul.u32 16, %s18
      $region28: #{bpr_forward.10} parent=19 // pred_fallthru
        _
      // Predicated region
      $region29: #{bpr_forward.10} parent=19 // pred_check
        %p233 = pneg %p123
      $region30: #{bpr_forward.10} parent=19 // pred_check_branch
        %235 = sbr.rel (%p233) target = $region32
      $region31: #{bpr_forward.10} parent=19 // pred_region
        %s236 = smul.u32 16, %s18
        %p237 = scmp.lt.s32.totalorder %s236, 63
        %s238 = scalar_select %p237, %s236, 63
        %s239 = smul.addr %s238, 4
        %s240 = scalar_lea.vmem %s3, %s239
        %s241 = smul.u32 16, %s18
      $region32: #{bpr_forward.10} parent=19 // pred_fallthru
        _
      // Predicated region
      $region33: #{bpr_forward.10} parent=19 // pred_check
        %p242 = pneg %p149
      $region34: #{bpr_forward.10} parent=19 // pred_check_branch
        %244 = sbr.rel (%p242) target = $region36
      $region35: #{bpr_forward.10} parent=19 // pred_region
        %s245 = smul.u32 16, %s18
        %p246 = scmp.lt.s32.totalorder %s245, 63
        %s247 = scalar_select %p246, %s245, 63
        %s248 = smul.addr %s247, 4
        %s249 = scalar_lea.vmem %s4, %s248
        %s250 = smul.u32 16, %s18
      $region36: #{bpr_forward.10} parent=19 // pred_fallthru
        _
    $region20: #{bpr_forward.10} parent=5 // pred_fallthru
      _
    %p251 = scmp.le.s32.totalorder 1, %s11
    %p252 = scmp.lt.s32.totalorder %s11, 5
    %p253 = pnand %p251, %p252
    %p254 = pneg %p253
    // Predicated region
    $region37: #{bpr_forward.10} parent=5 // pred_check
      _
    $region38: #{bpr_forward.10} parent=5 // pred_check_branch
      %256 = sbr.rel (%p253) target = $region40
    $region39: #{bpr_forward.10} parent=5 // pred_region
      %s257 = ssub.s32 %s11, 1
      %s258 = smul.u32 16, %s20
      %s259 = smul.u32 8, %s21
      %p260 = scmp.lt.s32.totalorder %s258, 63
      %s261 = scalar_select %p260, %s258, 63
      %p262 = scmp.lt.s32.totalorder %s259, 7
      %s263 = scalar_select %p262, %s259, 7
      %s264 = smul.addr %s261, 8
      %s265 = sadd.s32 %s263, %s264
      %s266 = smul.addr %s265, 4
      %s267 = scalar_lea.vmem %s0, %s266
      %p268 = pneg %p51
      %p269 = pneg %p48
      %s270 = smul.u32 128, %s21
      %p271 = scmp.lt.s32.totalorder %s270, 127
      %s272 = scalar_select %p271, %s270, 127
      %s273 = smul.addr %s272, 4
      %s274 = scalar_lea.vmem %s1, %s273
      %p275 = pneg %p77
      %p276 = pneg %p74
      %s277 = smul.u32 16, %s20
      %p278 = scmp.lt.s32.totalorder %s277, 63
      %s279 = scalar_select %p278, %s277, 63
      %s280 = smul.addr %s279, 8
      %s281 = scalar_lea.vmem %s2, %s280
      %p282 = pneg %p103
      %p283 = pneg %p100
      %s284 = smul.u32 16, %s20
      %p285 = scmp.lt.s32.totalorder %s284, 63
      %s286 = scalar_select %p285, %s284, 63
      %s287 = smul.addr %s286, 4
      %s288 = scalar_lea.vmem %s3, %s287
      %p289 = pneg %p129
      %p290 = pneg %p126
      %s291 = smul.u32 16, %s20
      %p292 = scmp.lt.s32.totalorder %s291, 63
      %s293 = scalar_select %p292, %s291, 63
      %s294 = smul.addr %s293, 4
      %s295 = scalar_lea.vmem %s4, %s294
      %p296 = pneg %p155
      %p297 = pneg %p152
      %p298 = pneg %p181
      %p299 = pneg %p178
      %s300 = smul.u32 16, %s20
      %p301 = scmp.lt.s32.totalorder %s300, 63
      %s302 = scalar_select %p301, %s300, 63
      %s303 = smul.addr %s302, 8
      %s304 = scalar_lea.vmem %s5, %s303
      %s305 = smul.u32 16, %s20
      %s306 = smul.u32 8, %s21
      %p307 = scmp.lt.s32.totalorder %s305, 63
      %s308 = scalar_select %p307, %s305, 63
      %p309 = scmp.lt.s32.totalorder %s306, 7
      %s310 = scalar_select %p309, %s306, 7
      %s311 = smul.addr %s308, 8
      %s312 = sadd.s32 %s310, %s311
      %s313 = smul.addr %s312, 4
      %s314 = scalar_lea.vmem %s0, %s313
      %s315 = smul.u32 16, %s20
      %s316 = smul.u32 8, %s21
      %s317 = smul.u32 128, %s21
      %p318 = scmp.lt.s32.totalorder %s317, 127
      %s319 = scalar_select %p318, %s317, 127
      %s320 = smul.addr %s319, 4
      %s321 = scalar_lea.vmem %s1, %s320
      %s322 = smul.u32 128, %s21
      %s323 = smul.u32 16, %s20
      %p324 = scmp.lt.s32.totalorder %s323, 63
      %s325 = scalar_select %p324, %s323, 63
      %s326 = smul.addr %s325, 8
      %s327 = scalar_lea.vmem %s2, %s326
      %s328 = smul.u32 16, %s20
      %s329 = smul.u32 16, %s20
      %p330 = scmp.lt.s32.totalorder %s329, 63
      %s331 = scalar_select %p330, %s329, 63
      %s332 = smul.addr %s331, 4
      %s333 = scalar_lea.vmem %s3, %s332
      %s334 = smul.u32 16, %s20
      %s335 = smul.u32 16, %s20
      %p336 = scmp.lt.s32.totalorder %s335, 63
      %s337 = scalar_select %p336, %s335, 63
      %s338 = smul.addr %s337, 4
      %s339 = scalar_lea.vmem %s4, %s338
      %s340 = smul.u32 16, %s20
      %s341 = smul.u32 16, %s20
      %p342 = scmp.lt.s32.totalorder %s341, 63
      %s343 = scalar_select %p342, %s341, 63
      %s344 = smul.addr %s343, 8
      %s345 = scalar_lea.vmem %s5, %s344
      %s346 = smul.u32 16, %s20
      %p348 = scmp.eq.s32.totalorder %s21, 0
      // Predicated region
      $region41: #{bpr_forward.10} parent=39 // pred_check
        %p349 = pneg %p348
      $region42: #{bpr_forward.10} parent=39 // pred_check_branch
        %351 = sbr.rel (%p349) target = $region44
      $region43: #{bpr_forward.10} parent=39 // pred_region
        %352 = vst [vmem:[#allocation2] sm:$0xff] 0.0
        %353 = vst [vmem:[#allocation2 + $0x8] sm:$0xff] 0.0
        %354 = vst [vmem:[#allocation2 + $0x10] sm:$0xff] 0.0
        %355 = vst [vmem:[#allocation2 + $0x18] sm:$0xff] 0.0
        %356 = vst [vmem:[#allocation2 + $0x20] sm:$0xff] 0.0
        %357 = vst [vmem:[#allocation2 + $0x28] sm:$0xff] 0.0
        %358 = vst [vmem:[#allocation2 + $0x30] sm:$0xff] 0.0
        %359 = vst [vmem:[#allocation2 + $0x38] sm:$0xff] 0.0
        %360 = vst [vmem:[#allocation2 + $0x40] sm:$0xff] 0.0
        %361 = vst [vmem:[#allocation2 + $0x48] sm:$0xff] 0.0
        %362 = vst [vmem:[#allocation2 + $0x50] sm:$0xff] 0.0
        %363 = vst [vmem:[#allocation2 + $0x58] sm:$0xff] 0.0
        %364 = vst [vmem:[#allocation2 + $0x60] sm:$0xff] 0.0
        %365 = vst [vmem:[#allocation2 + $0x68] sm:$0xff] 0.0
        %366 = vst [vmem:[#allocation2 + $0x70] sm:$0xff] 0.0
        %367 = vst [vmem:[#allocation2 + $0x78] sm:$0xff] 0.0
      $region44: #{bpr_forward.10} parent=39 // pred_fallthru
        _
      %v368 = vld [vmem:[#allocation2] sm:$0xff]
      %v369 = vld [vmem:[#allocation2 + $0x8] sm:$0xff]
      %v370 = vld [vmem:[#allocation2 + $0x10] sm:$0xff]
      %v371 = vld [vmem:[#allocation2 + $0x18] sm:$0xff]
      %v372 = vld [vmem:[#allocation2 + $0x20] sm:$0xff]
      %v373 = vld [vmem:[#allocation2 + $0x28] sm:$0xff]
      %v374 = vld [vmem:[#allocation2 + $0x30] sm:$0xff]
      %v375 = vld [vmem:[#allocation2 + $0x38] sm:$0xff]
      %v376 = vld [vmem:[#allocation2 + $0x40] sm:$0xff]
      %v377 = vld [vmem:[#allocation2 + $0x48] sm:$0xff]
      %v378 = vld [vmem:[#allocation2 + $0x50] sm:$0xff]
      %v379 = vld [vmem:[#allocation2 + $0x58] sm:$0xff]
      %v380 = vld [vmem:[#allocation2 + $0x60] sm:$0xff]
      %v381 = vld [vmem:[#allocation2 + $0x68] sm:$0xff]
      %v382 = vld [vmem:[#allocation2 + $0x70] sm:$0xff]
      %v383 = vld [vmem:[#allocation2 + $0x78] sm:$0xff]
      %v384 = vld [vmem:[%s314] sm:$0xff]
      %v385 = vld [vmem:[%s314 + $0x8] sm:$0xff]
      %v386 = vld [vmem:[%s314 + $0x10] sm:$0xff]
      %v387 = vld [vmem:[%s314 + $0x18] sm:$0xff]
      %v388 = vld [vmem:[%s314 + $0x20] sm:$0xff]
      %v389 = vld [vmem:[%s314 + $0x28] sm:$0xff]
      %v390 = vld [vmem:[%s314 + $0x30] sm:$0xff]
      %v391 = vld [vmem:[%s314 + $0x38] sm:$0xff]
      %v392 = vld [vmem:[%s314 + $0x40] sm:$0xff]
      %v393 = vld [vmem:[%s314 + $0x48] sm:$0xff]
      %v394 = vld [vmem:[%s314 + $0x50] sm:$0xff]
      %v395 = vld [vmem:[%s314 + $0x58] sm:$0xff]
      %v396 = vld [vmem:[%s314 + $0x60] sm:$0xff]
      %v397 = vld [vmem:[%s314 + $0x68] sm:$0xff]
      %v398 = vld [vmem:[%s314 + $0x70] sm:$0xff]
      %v399 = vld [vmem:[%s314 + $0x78] sm:$0xff]
      %v400 = vld [vmem:[%s314 + $0x80] sm:$0xff]
      %v401 = vld [vmem:[%s314 + $0x88] sm:$0xff]
      %v402 = vld [vmem:[%s314 + $0x90] sm:$0xff]
      %v403 = vld [vmem:[%s314 + $0x98] sm:$0xff]
      %v404 = vld [vmem:[%s314 + $0xa0] sm:$0xff]
      %v405 = vld [vmem:[%s314 + $0xa8] sm:$0xff]
      %v406 = vld [vmem:[%s314 + $0xb0] sm:$0xff]
      %v407 = vld [vmem:[%s314 + $0xb8] sm:$0xff]
      %v408 = vld [vmem:[%s314 + $0xc0] sm:$0xff]
      %v409 = vld [vmem:[%s314 + $0xc8] sm:$0xff]
      %v410 = vld [vmem:[%s314 + $0xd0] sm:$0xff]
      %v411 = vld [vmem:[%s314 + $0xd8] sm:$0xff]
      %v412 = vld [vmem:[%s314 + $0xe0] sm:$0xff]
      %v413 = vld [vmem:[%s314 + $0xe8] sm:$0xff]
      %v414 = vld [vmem:[%s314 + $0xf0] sm:$0xff]
      %v415 = vld [vmem:[%s314 + $0xf8] sm:$0xff]
      %v416 = vld [vmem:[%s314 + $0x100] sm:$0xff]
      %v417 = vld [vmem:[%s314 + $0x108] sm:$0xff]
      %v418 = vld [vmem:[%s314 + $0x110] sm:$0xff]
      %v419 = vld [vmem:[%s314 + $0x118] sm:$0xff]
      %v420 = vld [vmem:[%s314 + $0x120] sm:$0xff]
      %v421 = vld [vmem:[%s314 + $0x128] sm:$0xff]
      %v422 = vld [vmem:[%s314 + $0x130] sm:$0xff]
      %v423 = vld [vmem:[%s314 + $0x138] sm:$0xff]
      %v424 = vld [vmem:[%s314 + $0x140] sm:$0xff]
      %v425 = vld [vmem:[%s314 + $0x148] sm:$0xff]
      %v426 = vld [vmem:[%s314 + $0x150] sm:$0xff]
      %v427 = vld [vmem:[%s314 + $0x158] sm:$0xff]
      %v428 = vld [vmem:[%s314 + $0x160] sm:$0xff]
      %v429 = vld [vmem:[%s314 + $0x168] sm:$0xff]
      %v430 = vld [vmem:[%s314 + $0x170] sm:$0xff]
      %v431 = vld [vmem:[%s314 + $0x178] sm:$0xff]
      %v432 = vld [vmem:[%s314 + $0x180] sm:$0xff]
      %v433 = vld [vmem:[%s314 + $0x188] sm:$0xff]
      %v434 = vld [vmem:[%s314 + $0x190] sm:$0xff]
      %v435 = vld [vmem:[%s314 + $0x198] sm:$0xff]
      %v436 = vld [vmem:[%s314 + $0x1a0] sm:$0xff]
      %v437 = vld [vmem:[%s314 + $0x1a8] sm:$0xff]
      %v438 = vld [vmem:[%s314 + $0x1b0] sm:$0xff]
      %v439 = vld [vmem:[%s314 + $0x1b8] sm:$0xff]
      %v440 = vld [vmem:[%s314 + $0x1c0] sm:$0xff]
      %v441 = vld [vmem:[%s314 + $0x1c8] sm:$0xff]
      %v442 = vld [vmem:[%s314 + $0x1d0] sm:$0xff]
      %v443 = vld [vmem:[%s314 + $0x1d8] sm:$0xff]
      %v444 = vld [vmem:[%s314 + $0x1e0] sm:$0xff]
      %v445 = vld [vmem:[%s314 + $0x1e8] sm:$0xff]
      %v446 = vld [vmem:[%s314 + $0x1f0] sm:$0xff]
      %v447 = vld [vmem:[%s314 + $0x1f8] sm:$0xff]
      %v448 = vld [vmem:[%s321] sm:$0xf]
      %v449 = vld [vmem:[%s321 + $0x4] sm:$0xf]
      %v450 = vld [vmem:[%s321 + $0x8] sm:$0xf]
      %v451 = vld [vmem:[%s321 + $0xc] sm:$0xf]
      %v452 = vld [vmem:[%s321 + $0x10] sm:$0xf]
      %v453 = vld [vmem:[%s321 + $0x14] sm:$0xf]
      %v454 = vld [vmem:[%s321 + $0x18] sm:$0xf]
      %v455 = vld [vmem:[%s321 + $0x1c] sm:$0xf]
      %v456 = vld [vmem:[%s321 + $0x20] sm:$0xf]
      %v457 = vld [vmem:[%s321 + $0x24] sm:$0xf]
      %v458 = vld [vmem:[%s321 + $0x28] sm:$0xf]
      %v459 = vld [vmem:[%s321 + $0x2c] sm:$0xf]
      %v460 = vld [vmem:[%s321 + $0x30] sm:$0xf]
      %v461 = vld [vmem:[%s321 + $0x34] sm:$0xf]
      %v462 = vld [vmem:[%s321 + $0x38] sm:$0xf]
      %v463 = vld [vmem:[%s321 + $0x3c] sm:$0xf]
      %v464 = vld [vmem:[%s321 + $0x40] sm:$0xf]
      %v465 = vld [vmem:[%s321 + $0x44] sm:$0xf]
      %v466 = vld [vmem:[%s321 + $0x48] sm:$0xf]
      %v467 = vld [vmem:[%s321 + $0x4c] sm:$0xf]
      %v468 = vld [vmem:[%s321 + $0x50] sm:$0xf]
      %v469 = vld [vmem:[%s321 + $0x54] sm:$0xf]
      %v470 = vld [vmem:[%s321 + $0x58] sm:$0xf]
      %v471 = vld [vmem:[%s321 + $0x5c] sm:$0xf]
      %v472 = vld [vmem:[%s321 + $0x60] sm:$0xf]
      %v473 = vld [vmem:[%s321 + $0x64] sm:$0xf]
      %v474 = vld [vmem:[%s321 + $0x68] sm:$0xf]
      %v475 = vld [vmem:[%s321 + $0x6c] sm:$0xf]
      %v476 = vld [vmem:[%s321 + $0x70] sm:$0xf]
      %v477 = vld [vmem:[%s321 + $0x74] sm:$0xf]
      %v478 = vld [vmem:[%s321 + $0x78] sm:$0xf]
      %v479 = vld [vmem:[%s321 + $0x7c] sm:$0xf]
      %v480 = vld [vmem:[%s321 + $0x80] sm:$0xf]
      %v481 = vld [vmem:[%s321 + $0x84] sm:$0xf]
      %v482 = vld [vmem:[%s321 + $0x88] sm:$0xf]
      %v483 = vld [vmem:[%s321 + $0x8c] sm:$0xf]
      %v484 = vld [vmem:[%s321 + $0x90] sm:$0xf]
      %v485 = vld [vmem:[%s321 + $0x94] sm:$0xf]
      %v486 = vld [vmem:[%s321 + $0x98] sm:$0xf]
      %v487 = vld [vmem:[%s321 + $0x9c] sm:$0xf]
      %v488 = vld [vmem:[%s321 + $0xa0] sm:$0xf]
      %v489 = vld [vmem:[%s321 + $0xa4] sm:$0xf]
      %v490 = vld [vmem:[%s321 + $0xa8] sm:$0xf]
      %v491 = vld [vmem:[%s321 + $0xac] sm:$0xf]
      %v492 = vld [vmem:[%s321 + $0xb0] sm:$0xf]
      %v493 = vld [vmem:[%s321 + $0xb4] sm:$0xf]
      %v494 = vld [vmem:[%s321 + $0xb8] sm:$0xf]
      %v495 = vld [vmem:[%s321 + $0xbc] sm:$0xf]
      %v496 = vld [vmem:[%s321 + $0xc0] sm:$0xf]
      %v497 = vld [vmem:[%s321 + $0xc4] sm:$0xf]
      %v498 = vld [vmem:[%s321 + $0xc8] sm:$0xf]
      %v499 = vld [vmem:[%s321 + $0xcc] sm:$0xf]
      %v500 = vld [vmem:[%s321 + $0xd0] sm:$0xf]
      %v501 = vld [vmem:[%s321 + $0xd4] sm:$0xf]
      %v502 = vld [vmem:[%s321 + $0xd8] sm:$0xf]
      %v503 = vld [vmem:[%s321 + $0xdc] sm:$0xf]
      %v504 = vld [vmem:[%s321 + $0xe0] sm:$0xf]
      %v505 = vld [vmem:[%s321 + $0xe4] sm:$0xf]
      %v506 = vld [vmem:[%s321 + $0xe8] sm:$0xf]
      %v507 = vld [vmem:[%s321 + $0xec] sm:$0xf]
      %v508 = vld [vmem:[%s321 + $0xf0] sm:$0xf]
      %v509 = vld [vmem:[%s321 + $0xf4] sm:$0xf]
      %v510 = vld [vmem:[%s321 + $0xf8] sm:$0xf]
      %v511 = vld [vmem:[%s321 + $0xfc] sm:$0xf]
      %v512 = vld [vmem:[%s321 + $0x100] sm:$0xf]
      %v513 = vld [vmem:[%s321 + $0x104] sm:$0xf]
      %v514 = vld [vmem:[%s321 + $0x108] sm:$0xf]
      %v515 = vld [vmem:[%s321 + $0x10c] sm:$0xf]
      %v516 = vld [vmem:[%s321 + $0x110] sm:$0xf]
      %v517 = vld [vmem:[%s321 + $0x114] sm:$0xf]
      %v518 = vld [vmem:[%s321 + $0x118] sm:$0xf]
      %v519 = vld [vmem:[%s321 + $0x11c] sm:$0xf]
      %v520 = vld [vmem:[%s321 + $0x120] sm:$0xf]
      %v521 = vld [vmem:[%s321 + $0x124] sm:$0xf]
      %v522 = vld [vmem:[%s321 + $0x128] sm:$0xf]
      %v523 = vld [vmem:[%s321 + $0x12c] sm:$0xf]
      %v524 = vld [vmem:[%s321 + $0x130] sm:$0xf]
      %v525 = vld [vmem:[%s321 + $0x134] sm:$0xf]
      %v526 = vld [vmem:[%s321 + $0x138] sm:$0xf]
      %v527 = vld [vmem:[%s321 + $0x13c] sm:$0xf]
      %v528 = vld [vmem:[%s321 + $0x140] sm:$0xf]
      %v529 = vld [vmem:[%s321 + $0x144] sm:$0xf]
      %v530 = vld [vmem:[%s321 + $0x148] sm:$0xf]
      %v531 = vld [vmem:[%s321 + $0x14c] sm:$0xf]
      %v532 = vld [vmem:[%s321 + $0x150] sm:$0xf]
      %v533 = vld [vmem:[%s321 + $0x154] sm:$0xf]
      %v534 = vld [vmem:[%s321 + $0x158] sm:$0xf]
      %v535 = vld [vmem:[%s321 + $0x15c] sm:$0xf]
      %v536 = vld [vmem:[%s321 + $0x160] sm:$0xf]
      %v537 = vld [vmem:[%s321 + $0x164] sm:$0xf]
      %v538 = vld [vmem:[%s321 + $0x168] sm:$0xf]
      %v539 = vld [vmem:[%s321 + $0x16c] sm:$0xf]
      %v540 = vld [vmem:[%s321 + $0x170] sm:$0xf]
      %v541 = vld [vmem:[%s321 + $0x174] sm:$0xf]
      %v542 = vld [vmem:[%s321 + $0x178] sm:$0xf]
      %v543 = vld [vmem:[%s321 + $0x17c] sm:$0xf]
      %v544 = vld [vmem:[%s321 + $0x180] sm:$0xf]
      %v545 = vld [vmem:[%s321 + $0x184] sm:$0xf]
      %v546 = vld [vmem:[%s321 + $0x188] sm:$0xf]
      %v547 = vld [vmem:[%s321 + $0x18c] sm:$0xf]
      %v548 = vld [vmem:[%s321 + $0x190] sm:$0xf]
      %v549 = vld [vmem:[%s321 + $0x194] sm:$0xf]
      %v550 = vld [vmem:[%s321 + $0x198] sm:$0xf]
      %v551 = vld [vmem:[%s321 + $0x19c] sm:$0xf]
      %v552 = vld [vmem:[%s321 + $0x1a0] sm:$0xf]
      %v553 = vld [vmem:[%s321 + $0x1a4] sm:$0xf]
      %v554 = vld [vmem:[%s321 + $0x1a8] sm:$0xf]
      %v555 = vld [vmem:[%s321 + $0x1ac] sm:$0xf]
      %v556 = vld [vmem:[%s321 + $0x1b0] sm:$0xf]
      %v557 = vld [vmem:[%s321 + $0x1b4] sm:$0xf]
      %v558 = vld [vmem:[%s321 + $0x1b8] sm:$0xf]
      %v559 = vld [vmem:[%s321 + $0x1bc] sm:$0xf]
      %v560 = vld [vmem:[%s321 + $0x1c0] sm:$0xf]
      %v561 = vld [vmem:[%s321 + $0x1c4] sm:$0xf]
      %v562 = vld [vmem:[%s321 + $0x1c8] sm:$0xf]
      %v563 = vld [vmem:[%s321 + $0x1cc] sm:$0xf]
      %v564 = vld [vmem:[%s321 + $0x1d0] sm:$0xf]
      %v565 = vld [vmem:[%s321 + $0x1d4] sm:$0xf]
      %v566 = vld [vmem:[%s321 + $0x1d8] sm:$0xf]
      %v567 = vld [vmem:[%s321 + $0x1dc] sm:$0xf]
      %v568 = vld [vmem:[%s321 + $0x1e0] sm:$0xf]
      %v569 = vld [vmem:[%s321 + $0x1e4] sm:$0xf]
      %v570 = vld [vmem:[%s321 + $0x1e8] sm:$0xf]
      %v571 = vld [vmem:[%s321 + $0x1ec] sm:$0xf]
      %v572 = vld [vmem:[%s321 + $0x1f0] sm:$0xf]
      %v573 = vld [vmem:[%s321 + $0x1f4] sm:$0xf]
      %v574 = vld [vmem:[%s321 + $0x1f8] sm:$0xf]
      %v575 = vld [vmem:[%s321 + $0x1fc] sm:$0xf]
      %v640 = vunpack.c.l.b16 %v384
      %v641 = vunpack.c.h.b16 %v384
      %v642 = vunpack.c.l.b16 %v385
      %v643 = vunpack.c.h.b16 %v385
      %v644 = vunpack.c.l.b16 %v386
      %v645 = vunpack.c.h.b16 %v386
      %v646 = vunpack.c.l.b16 %v387
      %v647 = vunpack.c.h.b16 %v387
      %v648 = vunpack.c.l.b16 %v388
      %v649 = vunpack.c.h.b16 %v388
      %v650 = vunpack.c.l.b16 %v389
      %v651 = vunpack.c.h.b16 %v389
      %v652 = vunpack.c.l.b16 %v390
      %v653 = vunpack.c.h.b16 %v390
      %v654 = vunpack.c.l.b16 %v391
      %v655 = vunpack.c.h.b16 %v391
      %v656 = vunpack.c.l.b16 %v392
      %v657 = vunpack.c.h.b16 %v392
      %v658 = vunpack.c.l.b16 %v393
      %v659 = vunpack.c.h.b16 %v393
      %v660 = vunpack.c.l.b16 %v394
      %v661 = vunpack.c.h.b16 %v394
      %v662 = vunpack.c.l.b16 %v395
      %v663 = vunpack.c.h.b16 %v395
      %v664 = vunpack.c.l.b16 %v396
      %v665 = vunpack.c.h.b16 %v396
      %v666 = vunpack.c.l.b16 %v397
      %v667 = vunpack.c.h.b16 %v397
      %v668 = vunpack.c.l.b16 %v398
      %v669 = vunpack.c.h.b16 %v398
      %v670 = vunpack.c.l.b16 %v399
      %v671 = vunpack.c.h.b16 %v399
      %v672 = vunpack.c.l.b16 %v400
      %v673 = vunpack.c.h.b16 %v400
      %v674 = vunpack.c.l.b16 %v401
      %v675 = vunpack.c.h.b16 %v401
      %v676 = vunpack.c.l.b16 %v402
      %v677 = vunpack.c.h.b16 %v402
      %v678 = vunpack.c.l.b16 %v403
      %v679 = vunpack.c.h.b16 %v403
      %v680 = vunpack.c.l.b16 %v404
      %v681 = vunpack.c.h.b16 %v404
      %v682 = vunpack.c.l.b16 %v405
      %v683 = vunpack.c.h.b16 %v405
      %v684 = vunpack.c.l.b16 %v406
      %v685 = vunpack.c.h.b16 %v406
      %v686 = vunpack.c.l.b16 %v407
      %v687 = vunpack.c.h.b16 %v407
      %v688 = vunpack.c.l.b16 %v408
      %v689 = vunpack.c.h.b16 %v408
      %v690 = vunpack.c.l.b16 %v409
      %v691 = vunpack.c.h.b16 %v409
      %v692 = vunpack.c.l.b16 %v410
      %v693 = vunpack.c.h.b16 %v410
      %v694 = vunpack.c.l.b16 %v411
      %v695 = vunpack.c.h.b16 %v411
      %v696 = vunpack.c.l.b16 %v412
      %v697 = vunpack.c.h.b16 %v412
      %v698 = vunpack.c.l.b16 %v413
      %v699 = vunpack.c.h.b16 %v413
      %v700 = vunpack.c.l.b16 %v414
      %v701 = vunpack.c.h.b16 %v414
      %v702 = vunpack.c.l.b16 %v415
      %v703 = vunpack.c.h.b16 %v415
      %v704 = vunpack.c.l.b16 %v416
      %v705 = vunpack.c.h.b16 %v416
      %v706 = vunpack.c.l.b16 %v417
      %v707 = vunpack.c.h.b16 %v417
      %v708 = vunpack.c.l.b16 %v418
      %v709 = vunpack.c.h.b16 %v418
      %v710 = vunpack.c.l.b16 %v419
      %v711 = vunpack.c.h.b16 %v419
      %v712 = vunpack.c.l.b16 %v420
      %v713 = vunpack.c.h.b16 %v420
      %v714 = vunpack.c.l.b16 %v421
      %v715 = vunpack.c.h.b16 %v421
      %v716 = vunpack.c.l.b16 %v422
      %v717 = vunpack.c.h.b16 %v422
      %v718 = vunpack.c.l.b16 %v423
      %v719 = vunpack.c.h.b16 %v423
      %v720 = vunpack.c.l.b16 %v424
      %v721 = vunpack.c.h.b16 %v424
      %v722 = vunpack.c.l.b16 %v425
      %v723 = vunpack.c.h.b16 %v425
      %v724 = vunpack.c.l.b16 %v426
      %v725 = vunpack.c.h.b16 %v426
      %v726 = vunpack.c.l.b16 %v427
      %v727 = vunpack.c.h.b16 %v427
      %v728 = vunpack.c.l.b16 %v428
      %v729 = vunpack.c.h.b16 %v428
      %v730 = vunpack.c.l.b16 %v429
      %v731 = vunpack.c.h.b16 %v429
      %v732 = vunpack.c.l.b16 %v430
      %v733 = vunpack.c.h.b16 %v430
      %v734 = vunpack.c.l.b16 %v431
      %v735 = vunpack.c.h.b16 %v431
      %v736 = vunpack.c.l.b16 %v432
      %v737 = vunpack.c.h.b16 %v432
      %v738 = vunpack.c.l.b16 %v433
      %v739 = vunpack.c.h.b16 %v433
      %v740 = vunpack.c.l.b16 %v434
      %v741 = vunpack.c.h.b16 %v434
      %v742 = vunpack.c.l.b16 %v435
      %v743 = vunpack.c.h.b16 %v435
      %v744 = vunpack.c.l.b16 %v436
      %v745 = vunpack.c.h.b16 %v436
      %v746 = vunpack.c.l.b16 %v437
      %v747 = vunpack.c.h.b16 %v437
      %v748 = vunpack.c.l.b16 %v438
      %v749 = vunpack.c.h.b16 %v438
      %v750 = vunpack.c.l.b16 %v439
      %v751 = vunpack.c.h.b16 %v439
      %v752 = vunpack.c.l.b16 %v440
      %v753 = vunpack.c.h.b16 %v440
      %v754 = vunpack.c.l.b16 %v441
      %v755 = vunpack.c.h.b16 %v441
      %v756 = vunpack.c.l.b16 %v442
      %v757 = vunpack.c.h.b16 %v442
      %v758 = vunpack.c.l.b16 %v443
      %v759 = vunpack.c.h.b16 %v443
      %v760 = vunpack.c.l.b16 %v444
      %v761 = vunpack.c.h.b16 %v444
      %v762 = vunpack.c.l.b16 %v445
      %v763 = vunpack.c.h.b16 %v445
      %v764 = vunpack.c.l.b16 %v446
      %v765 = vunpack.c.h.b16 %v446
      %v766 = vunpack.c.l.b16 %v447
      %v767 = vunpack.c.h.b16 %v447
      %v768 = vpack.c.b16 %v648, %v640
      %v769 = vpack.c.b16 %v649, %v641
      %v770 = vpack.c.b16 %v650, %v642
      %v771 = vpack.c.b16 %v651, %v643
      %v772 = vpack.c.b16 %v652, %v644
      %v773 = vpack.c.b16 %v653, %v645
      %v774 = vpack.c.b16 %v654, %v646
      %v775 = vpack.c.b16 %v655, %v647
      %v776 = vpack.c.b16 %v664, %v656
      %v777 = vpack.c.b16 %v665, %v657
      %v778 = vpack.c.b16 %v666, %v658
      %v779 = vpack.c.b16 %v667, %v659
      %v780 = vpack.c.b16 %v668, %v660
      %v781 = vpack.c.b16 %v669, %v661
      %v782 = vpack.c.b16 %v670, %v662
      %v783 = vpack.c.b16 %v671, %v663
      %v784 = vpack.c.b16 %v680, %v672
      %v785 = vpack.c.b16 %v681, %v673
      %v786 = vpack.c.b16 %v682, %v674
      %v787 = vpack.c.b16 %v683, %v675
      %v788 = vpack.c.b16 %v684, %v676
      %v789 = vpack.c.b16 %v685, %v677
      %v790 = vpack.c.b16 %v686, %v678
      %v791 = vpack.c.b16 %v687, %v679
      %v792 = vpack.c.b16 %v696, %v688
      %v793 = vpack.c.b16 %v697, %v689
      %v794 = vpack.c.b16 %v698, %v690
      %v795 = vpack.c.b16 %v699, %v691
      %v796 = vpack.c.b16 %v700, %v692
      %v797 = vpack.c.b16 %v701, %v693
      %v798 = vpack.c.b16 %v702, %v694
      %v799 = vpack.c.b16 %v703, %v695
      %v800 = vpack.c.b16 %v712, %v704
      %v801 = vpack.c.b16 %v713, %v705
      %v802 = vpack.c.b16 %v714, %v706
      %v803 = vpack.c.b16 %v715, %v707
      %v804 = vpack.c.b16 %v716, %v708
      %v805 = vpack.c.b16 %v717, %v709
      %v806 = vpack.c.b16 %v718, %v710
      %v807 = vpack.c.b16 %v719, %v711
      %v808 = vpack.c.b16 %v728, %v720
      %v809 = vpack.c.b16 %v729, %v721
      %v810 = vpack.c.b16 %v730, %v722
      %v811 = vpack.c.b16 %v731, %v723
      %v812 = vpack.c.b16 %v732, %v724
      %v813 = vpack.c.b16 %v733, %v725
      %v814 = vpack.c.b16 %v734, %v726
      %v815 = vpack.c.b16 %v735, %v727
      %v816 = vpack.c.b16 %v744, %v736
      %v817 = vpack.c.b16 %v745, %v737
      %v818 = vpack.c.b16 %v746, %v738
      %v819 = vpack.c.b16 %v747, %v739
      %v820 = vpack.c.b16 %v748, %v740
      %v821 = vpack.c.b16 %v749, %v741
      %v822 = vpack.c.b16 %v750, %v742
      %v823 = vpack.c.b16 %v751, %v743
      %v824 = vpack.c.b16 %v760, %v752
      %v825 = vpack.c.b16 %v761, %v753
      %v826 = vpack.c.b16 %v762, %v754
      %v827 = vpack.c.b16 %v763, %v755
      %v828 = vpack.c.b16 %v764, %v756
      %v829 = vpack.c.b16 %v765, %v757
      %v830 = vpack.c.b16 %v766, %v758
      %v831 = vpack.c.b16 %v767, %v759
      %v1024 = vunpack.c.l.b16 %v448
      %v1025 = vunpack.c.l.b16 %v449
      %v1026 = vunpack.c.l.b16 %v450
      %v1027 = vunpack.c.l.b16 %v451
      %v1028 = vunpack.c.l.b16 %v452
      %v1029 = vunpack.c.l.b16 %v453
      %v1030 = vunpack.c.l.b16 %v454
      %v1031 = vunpack.c.l.b16 %v455
      %v1032 = vunpack.c.l.b16 %v456
      %v1033 = vunpack.c.l.b16 %v457
      %v1034 = vunpack.c.l.b16 %v458
      %v1035 = vunpack.c.l.b16 %v459
      %v1036 = vunpack.c.l.b16 %v460
      %v1037 = vunpack.c.l.b16 %v461
      %v1038 = vunpack.c.l.b16 %v462
      %v1039 = vunpack.c.l.b16 %v463
      %v1040 = vunpack.c.l.b16 %v464
      %v1041 = vunpack.c.l.b16 %v465
      %v1042 = vunpack.c.l.b16 %v466
      %v1043 = vunpack.c.l.b16 %v467
      %v1044 = vunpack.c.l.b16 %v468
      %v1045 = vunpack.c.l.b16 %v469
      %v1046 = vunpack.c.l.b16 %v470
      %v1047 = vunpack.c.l.b16 %v471
      %v1048 = vunpack.c.l.b16 %v472
      %v1049 = vunpack.c.l.b16 %v473
      %v1050 = vunpack.c.l.b16 %v474
      %v1051 = vunpack.c.l.b16 %v475
      %v1052 = vunpack.c.l.b16 %v476
      %v1053 = vunpack.c.l.b16 %v477
      %v1054 = vunpack.c.l.b16 %v478
      %v1055 = vunpack.c.l.b16 %v479
      %v1056 = vunpack.c.l.b16 %v480
      %v1057 = vunpack.c.l.b16 %v481
      %v1058 = vunpack.c.l.b16 %v482
      %v1059 = vunpack.c.l.b16 %v483
      %v1060 = vunpack.c.l.b16 %v484
      %v1061 = vunpack.c.l.b16 %v485
      %v1062 = vunpack.c.l.b16 %v486
      %v1063 = vunpack.c.l.b16 %v487
      %v1064 = vunpack.c.l.b16 %v488
      %v1065 = vunpack.c.l.b16 %v489
      %v1066 = vunpack.c.l.b16 %v490
      %v1067 = vunpack.c.l.b16 %v491
      %v1068 = vunpack.c.l.b16 %v492
      %v1069 = vunpack.c.l.b16 %v493
      %v1070 = vunpack.c.l.b16 %v494
      %v1071 = vunpack.c.l.b16 %v495
      %v1072 = vunpack.c.l.b16 %v496
      %v1073 = vunpack.c.l.b16 %v497
      %v1074 = vunpack.c.l.b16 %v498
      %v1075 = vunpack.c.l.b16 %v499
      %v1076 = vunpack.c.l.b16 %v500
      %v1077 = vunpack.c.l.b16 %v501
      %v1078 = vunpack.c.l.b16 %v502
      %v1079 = vunpack.c.l.b16 %v503
      %v1080 = vunpack.c.l.b16 %v504
      %v1081 = vunpack.c.l.b16 %v505
      %v1082 = vunpack.c.l.b16 %v506
      %v1083 = vunpack.c.l.b16 %v507
      %v1084 = vunpack.c.l.b16 %v508
      %v1085 = vunpack.c.l.b16 %v509
      %v1086 = vunpack.c.l.b16 %v510
      %v1087 = vunpack.c.l.b16 %v511
      %v1088 = vunpack.c.l.b16 %v512
      %v1089 = vunpack.c.l.b16 %v513
      %v1090 = vunpack.c.l.b16 %v514
      %v1091 = vunpack.c.l.b16 %v515
      %v1092 = vunpack.c.l.b16 %v516
      %v1093 = vunpack.c.l.b16 %v517
      %v1094 = vunpack.c.l.b16 %v518
      %v1095 = vunpack.c.l.b16 %v519
      %v1096 = vunpack.c.l.b16 %v520
      %v1097 = vunpack.c.l.b16 %v521
      %v1098 = vunpack.c.l.b16 %v522
      %v1099 = vunpack.c.l.b16 %v523
      %v1100 = vunpack.c.l.b16 %v524
      %v1101 = vunpack.c.l.b16 %v525
      %v1102 = vunpack.c.l.b16 %v526
      %v1103 = vunpack.c.l.b16 %v527
      %v1104 = vunpack.c.l.b16 %v528
      %v1105 = vunpack.c.l.b16 %v529
      %v1106 = vunpack.c.l.b16 %v530
      %v1107 = vunpack.c.l.b16 %v531
      %v1108 = vunpack.c.l.b16 %v532
      %v1109 = vunpack.c.l.b16 %v533
      %v1110 = vunpack.c.l.b16 %v534
      %v1111 = vunpack.c.l.b16 %v535
      %v1112 = vunpack.c.l.b16 %v536
      %v1113 = vunpack.c.l.b16 %v537
      %v1114 = vunpack.c.l.b16 %v538
      %v1115 = vunpack.c.l.b16 %v539
      %v1116 = vunpack.c.l.b16 %v540
      %v1117 = vunpack.c.l.b16 %v541
      %v1118 = vunpack.c.l.b16 %v542
      %v1119 = vunpack.c.l.b16 %v543
      %v1120 = vunpack.c.l.b16 %v544
      %v1121 = vunpack.c.l.b16 %v545
      %v1122 = vunpack.c.l.b16 %v546
      %v1123 = vunpack.c.l.b16 %v547
      %v1124 = vunpack.c.l.b16 %v548
      %v1125 = vunpack.c.l.b16 %v549
      %v1126 = vunpack.c.l.b16 %v550
      %v1127 = vunpack.c.l.b16 %v551
      %v1128 = vunpack.c.l.b16 %v552
      %v1129 = vunpack.c.l.b16 %v553
      %v1130 = vunpack.c.l.b16 %v554
      %v1131 = vunpack.c.l.b16 %v555
      %v1132 = vunpack.c.l.b16 %v556
      %v1133 = vunpack.c.l.b16 %v557
      %v1134 = vunpack.c.l.b16 %v558
      %v1135 = vunpack.c.l.b16 %v559
      %v1136 = vunpack.c.l.b16 %v560
      %v1137 = vunpack.c.l.b16 %v561
      %v1138 = vunpack.c.l.b16 %v562
      %v1139 = vunpack.c.l.b16 %v563
      %v1140 = vunpack.c.l.b16 %v564
      %v1141 = vunpack.c.l.b16 %v565
      %v1142 = vunpack.c.l.b16 %v566
      %v1143 = vunpack.c.l.b16 %v567
      %v1144 = vunpack.c.l.b16 %v568
      %v1145 = vunpack.c.l.b16 %v569
      %v1146 = vunpack.c.l.b16 %v570
      %v1147 = vunpack.c.l.b16 %v571
      %v1148 = vunpack.c.l.b16 %v572
      %v1149 = vunpack.c.l.b16 %v573
      %v1150 = vunpack.c.l.b16 %v574
      %v1151 = vunpack.c.l.b16 %v575
      %v1152 = vpack.c.b16 %v1025, %v1024
      %v1153 = vpack.c.b16 %v1027, %v1026
      %v1154 = vpack.c.b16 %v1029, %v1028
      %v1155 = vpack.c.b16 %v1031, %v1030
      %v1156 = vpack.c.b16 %v1033, %v1032
      %v1157 = vpack.c.b16 %v1035, %v1034
      %v1158 = vpack.c.b16 %v1037, %v1036
      %v1159 = vpack.c.b16 %v1039, %v1038
      %v1160 = vpack.c.b16 %v1041, %v1040
      %v1161 = vpack.c.b16 %v1043, %v1042
      %v1162 = vpack.c.b16 %v1045, %v1044
      %v1163 = vpack.c.b16 %v1047, %v1046
      %v1164 = vpack.c.b16 %v1049, %v1048
      %v1165 = vpack.c.b16 %v1051, %v1050
      %v1166 = vpack.c.b16 %v1053, %v1052
      %v1167 = vpack.c.b16 %v1055, %v1054
      %v1168 = vpack.c.b16 %v1057, %v1056
      %v1169 = vpack.c.b16 %v1059, %v1058
      %v1170 = vpack.c.b16 %v1061, %v1060
      %v1171 = vpack.c.b16 %v1063, %v1062
      %v1172 = vpack.c.b16 %v1065, %v1064
      %v1173 = vpack.c.b16 %v1067, %v1066
      %v1174 = vpack.c.b16 %v1069, %v1068
      %v1175 = vpack.c.b16 %v1071, %v1070
      %v1176 = vpack.c.b16 %v1073, %v1072
      %v1177 = vpack.c.b16 %v1075, %v1074
      %v1178 = vpack.c.b16 %v1077, %v1076
      %v1179 = vpack.c.b16 %v1079, %v1078
      %v1180 = vpack.c.b16 %v1081, %v1080
      %v1181 = vpack.c.b16 %v1083, %v1082
      %v1182 = vpack.c.b16 %v1085, %v1084
      %v1183 = vpack.c.b16 %v1087, %v1086
      %v1184 = vpack.c.b16 %v1089, %v1088
      %v1185 = vpack.c.b16 %v1091, %v1090
      %v1186 = vpack.c.b16 %v1093, %v1092
      %v1187 = vpack.c.b16 %v1095, %v1094
      %v1188 = vpack.c.b16 %v1097, %v1096
      %v1189 = vpack.c.b16 %v1099, %v1098
      %v1190 = vpack.c.b16 %v1101, %v1100
      %v1191 = vpack.c.b16 %v1103, %v1102
      %v1192 = vpack.c.b16 %v1105, %v1104
      %v1193 = vpack.c.b16 %v1107, %v1106
      %v1194 = vpack.c.b16 %v1109, %v1108
      %v1195 = vpack.c.b16 %v1111, %v1110
      %v1196 = vpack.c.b16 %v1113, %v1112
      %v1197 = vpack.c.b16 %v1115, %v1114
      %v1198 = vpack.c.b16 %v1117, %v1116
      %v1199 = vpack.c.b16 %v1119, %v1118
      %v1200 = vpack.c.b16 %v1121, %v1120
      %v1201 = vpack.c.b16 %v1123, %v1122
      %v1202 = vpack.c.b16 %v1125, %v1124
      %v1203 = vpack.c.b16 %v1127, %v1126
      %v1204 = vpack.c.b16 %v1129, %v1128
      %v1205 = vpack.c.b16 %v1131, %v1130
      %v1206 = vpack.c.b16 %v1133, %v1132
      %v1207 = vpack.c.b16 %v1135, %v1134
      %v1208 = vpack.c.b16 %v1137, %v1136
      %v1209 = vpack.c.b16 %v1139, %v1138
      %v1210 = vpack.c.b16 %v1141, %v1140
      %v1211 = vpack.c.b16 %v1143, %v1142
      %v1212 = vpack.c.b16 %v1145, %v1144
      %v1213 = vpack.c.b16 %v1147, %v1146
      %v1214 = vpack.c.b16 %v1149, %v1148
      %v1215 = vpack.c.b16 %v1151, %v1150
      %1280 = vmatprep.subr.bf16.mxu0 0
      %1281 = vmatpush1.bf16.msra.mxu0 %v1159
      %1282 = vmatprep.subr.bf16.mxu0 0
      %1283 = vmatpush1.bf16.msra.mxu0 %v1158
      %1284 = vmatprep.subr.bf16.mxu0 0
      %1285 = vmatpush1.bf16.msra.mxu0 %v1157
      %1286 = vmatprep.subr.bf16.mxu0 0
      %1287 = vmatpush1.bf16.msra.mxu0 %v1156
      %1288 = vmatprep.subr.bf16.mxu0 0
      %1289 = vmatpush1.bf16.msra.mxu0 %v1155
      %1290 = vmatprep.subr.bf16.mxu0 0
      %1291 = vmatpush1.bf16.msra.mxu0 %v1154
      %1292 = vmatprep.subr.bf16.mxu0 0
      %1293 = vmatpush1.bf16.msra.mxu0 %v1153
      %1294 = vmatprep.subr.bf16.mxu0 0
      %1295 = vmatpush1.bf16.msra.mxu0 %v1152
      %1296 = vmatprep.subr.bf16.mxu0 0
      %1297 = vmatpush2.bf16.msra.mxu0 %v1167
      %1298 = vmatprep.subr.bf16.mxu0 0
      %1299 = vmatpush2.bf16.msra.mxu0 %v1166
      %1300 = vmatprep.subr.bf16.mxu0 0
      %1301 = vmatpush2.bf16.msra.mxu0 %v1165
      %1302 = vmatprep.subr.bf16.mxu0 0
      %1303 = vmatpush2.bf16.msra.mxu0 %v1164
      %1304 = vmatprep.subr.bf16.mxu0 0
      %1305 = vmatpush2.bf16.msra.mxu0 %v1163
      %1306 = vmatprep.subr.bf16.mxu0 0
      %1307 = vmatpush2.bf16.msra.mxu0 %v1162
      %1308 = vmatprep.subr.bf16.mxu0 0
      %1309 = vmatpush2.bf16.msra.mxu0 %v1161
      %1310 = vmatprep.subr.bf16.mxu0 0
      %1311 = vmatpush2.bf16.msra.mxu0 %v1160
      %1312 = vmatprep.mubr.bf16.mxu0 %v769
      %1313 = vmatmul.mubr.bf16.gmra.mxu0 %v768
      %v1314 = vpop.f32.mrf.mxu0
      %v1315 = vadd.f32 0.0, %v1314
      %v1316 = vpop.f32.mrf.mxu0
      %v1317 = vpop.f32.mrf.mxu0
      %v1318 = vadd.f32 0.0, %v1317
      %v1319 = vpop.f32.mrf.mxu0
      %1320 = vmatprep.mubr.bf16.mxu0 %v777
      %1321 = vmatmul.mubr.bf16.gmra.mxu0 %v776
      %v1322 = vpop.f32.mrf.mxu0
      %v1323 = vadd.f32 0.0, %v1322
      %v1324 = vpop.f32.mrf.mxu0
      %v1325 = vpop.f32.mrf.mxu0
      %v1326 = vadd.f32 0.0, %v1325
      %v1327 = vpop.f32.mrf.mxu0
      %1328 = vmatprep.mubr.bf16.mxu0 %v785
      %1329 = vmatmul.mubr.bf16.gmra.mxu0 %v784
      %v1330 = vpop.f32.mrf.mxu0
      %v1331 = vadd.f32 0.0, %v1330
      %v1332 = vpop.f32.mrf.mxu0
      %v1333 = vpop.f32.mrf.mxu0
      %v1334 = vadd.f32 0.0, %v1333
      %v1335 = vpop.f32.mrf.mxu0
      %1336 = vmatprep.mubr.bf16.mxu0 %v793
      %1337 = vmatmul.mubr.bf16.gmra.mxu0 %v792
      %v1338 = vpop.f32.mrf.mxu0
      %v1339 = vadd.f32 0.0, %v1338
      %v1340 = vpop.f32.mrf.mxu0
      %v1341 = vpop.f32.mrf.mxu0
      %v1342 = vadd.f32 0.0, %v1341
      %v1343 = vpop.f32.mrf.mxu0
      %1344 = vmatprep.mubr.bf16.mxu0 %v801
      %1345 = vmatmul.mubr.bf16.gmra.mxu0 %v800
      %v1346 = vpop.f32.mrf.mxu0
      %v1347 = vadd.f32 0.0, %v1346
      %v1348 = vpop.f32.mrf.mxu0
      %v1349 = vpop.f32.mrf.mxu0
      %v1350 = vadd.f32 0.0, %v1349
      %v1351 = vpop.f32.mrf.mxu0
      %1352 = vmatprep.mubr.bf16.mxu0 %v809
      %1353 = vmatmul.mubr.bf16.gmra.mxu0 %v808
      %v1354 = vpop.f32.mrf.mxu0
      %v1355 = vadd.f32 0.0, %v1354
      %v1356 = vpop.f32.mrf.mxu0
      %v1357 = vpop.f32.mrf.mxu0
      %v1358 = vadd.f32 0.0, %v1357
      %v1359 = vpop.f32.mrf.mxu0
      %1360 = vmatprep.mubr.bf16.mxu0 %v817
      %1361 = vmatmul.mubr.bf16.gmra.mxu0 %v816
      %v1362 = vpop.f32.mrf.mxu0
      %v1363 = vadd.f32 0.0, %v1362
      %v1364 = vpop.f32.mrf.mxu0
      %v1365 = vpop.f32.mrf.mxu0
      %v1366 = vadd.f32 0.0, %v1365
      %v1367 = vpop.f32.mrf.mxu0
      %1368 = vmatprep.mubr.bf16.mxu0 %v825
      %1369 = vmatmul.mubr.bf16.gmra.mxu0 %v824
      %v1370 = vpop.f32.mrf.mxu0
      %v1371 = vadd.f32 0.0, %v1370
      %v1372 = vpop.f32.mrf.mxu0
      %v1373 = vpop.f32.mrf.mxu0
      %v1374 = vadd.f32 0.0, %v1373
      %v1375 = vpop.f32.mrf.mxu0
      %1376 = vdwg.mxu0
      %1377 = vmatprep.subr.bf16.mxu0 0
      %1378 = vmatpush1.bf16.msra.mxu0 %v1175
      %1379 = vmatprep.subr.bf16.mxu0 0
      %1380 = vmatpush1.bf16.msra.mxu0 %v1174
      %1381 = vmatprep.subr.bf16.mxu0 0
      %1382 = vmatpush1.bf16.msra.mxu0 %v1173
      %1383 = vmatprep.subr.bf16.mxu0 0
      %1384 = vmatpush1.bf16.msra.mxu0 %v1172
      %1385 = vmatprep.subr.bf16.mxu0 0
      %1386 = vmatpush1.bf16.msra.mxu0 %v1171
      %1387 = vmatprep.subr.bf16.mxu0 0
      %1388 = vmatpush1.bf16.msra.mxu0 %v1170
      %1389 = vmatprep.subr.bf16.mxu0 0
      %1390 = vmatpush1.bf16.msra.mxu0 %v1169
      %1391 = vmatprep.subr.bf16.mxu0 0
      %1392 = vmatpush1.bf16.msra.mxu0 %v1168
      %1393 = vmatprep.subr.bf16.mxu0 0
      %1394 = vmatpush2.bf16.msra.mxu0 %v1183
      %1395 = vmatprep.subr.bf16.mxu0 0
      %1396 = vmatpush2.bf16.msra.mxu0 %v1182
      %1397 = vmatprep.subr.bf16.mxu0 0
      %1398 = vmatpush2.bf16.msra.mxu0 %v1181
      %1399 = vmatprep.subr.bf16.mxu0 0
      %1400 = vmatpush2.bf16.msra.mxu0 %v1180
      %1401 = vmatprep.subr.bf16.mxu0 0
      %1402 = vmatpush2.bf16.msra.mxu0 %v1179
      %1403 = vmatprep.subr.bf16.mxu0 0
      %1404 = vmatpush2.bf16.msra.mxu0 %v1178
      %1405 = vmatprep.subr.bf16.mxu0 0
      %1406 = vmatpush2.bf16.msra.mxu0 %v1177
      %1407 = vmatprep.subr.bf16.mxu0 0
      %1408 = vmatpush2.bf16.msra.mxu0 %v1176
      %1409 = vmatprep.mubr.bf16.mxu0 %v771
      %1410 = vmatmul.mubr.bf16.gmra.mxu0 %v770
      %v1411 = vpop.f32.mrf.mxu0
      %v1412 = vadd.f32 %v1315, %v1411
      %v1413 = vpop.f32.mrf.mxu0
      %v1414 = vpop.f32.mrf.mxu0
      %v1415 = vadd.f32 %v1318, %v1414
      %v1416 = vpop.f32.mrf.mxu0
      %1417 = vmatprep.mubr.bf16.mxu0 %v779
      %1418 = vmatmul.mubr.bf16.gmra.mxu0 %v778
      %v1419 = vpop.f32.mrf.mxu0
      %v1420 = vadd.f32 %v1323, %v1419
      %v1421 = vpop.f32.mrf.mxu0
      %v1422 = vpop.f32.mrf.mxu0
      %v1423 = vadd.f32 %v1326, %v1422
      %v1424 = vpop.f32.mrf.mxu0
      %1425 = vmatprep.mubr.bf16.mxu0 %v787
      %1426 = vmatmul.mubr.bf16.gmra.mxu0 %v786
      %v1427 = vpop.f32.mrf.mxu0
      %v1428 = vadd.f32 %v1331, %v1427
      %v1429 = vpop.f32.mrf.mxu0
      %v1430 = vpop.f32.mrf.mxu0
      %v1431 = vadd.f32 %v1334, %v1430
      %v1432 = vpop.f32.mrf.mxu0
      %1433 = vmatprep.mubr.bf16.mxu0 %v795
      %1434 = vmatmul.mubr.bf16.gmra.mxu0 %v794
      %v1435 = vpop.f32.mrf.mxu0
      %v1436 = vadd.f32 %v1339, %v1435
      %v1437 = vpop.f32.mrf.mxu0
      %v1438 = vpop.f32.mrf.mxu0
      %v1439 = vadd.f32 %v1342, %v1438
      %v1440 = vpop.f32.mrf.mxu0
      %1441 = vmatprep.mubr.bf16.mxu0 %v803
      %1442 = vmatmul.mubr.bf16.gmra.mxu0 %v802
      %v1443 = vpop.f32.mrf.mxu0
      %v1444 = vadd.f32 %v1347, %v1443
      %v1445 = vpop.f32.mrf.mxu0
      %v1446 = vpop.f32.mrf.mxu0
      %v1447 = vadd.f32 %v1350, %v1446
      %v1448 = vpop.f32.mrf.mxu0
      %1449 = vmatprep.mubr.bf16.mxu0 %v811
      %1450 = vmatmul.mubr.bf16.gmra.mxu0 %v810
      %v1451 = vpop.f32.mrf.mxu0
      %v1452 = vadd.f32 %v1355, %v1451
      %v1453 = vpop.f32.mrf.mxu0
      %v1454 = vpop.f32.mrf.mxu0
      %v1455 = vadd.f32 %v1358, %v1454
      %v1456 = vpop.f32.mrf.mxu0
      %1457 = vmatprep.mubr.bf16.mxu0 %v819
      %1458 = vmatmul.mubr.bf16.gmra.mxu0 %v818
      %v1459 = vpop.f32.mrf.mxu0
      %v1460 = vadd.f32 %v1363, %v1459
      %v1461 = vpop.f32.mrf.mxu0
      %v1462 = vpop.f32.mrf.mxu0
      %v1463 = vadd.f32 %v1366, %v1462
      %v1464 = vpop.f32.mrf.mxu0
      %1465 = vmatprep.mubr.bf16.mxu0 %v827
      %1466 = vmatmul.mubr.bf16.gmra.mxu0 %v826
      %v1467 = vpop.f32.mrf.mxu0
      %v1468 = vadd.f32 %v1371, %v1467
      %v1469 = vpop.f32.mrf.mxu0
      %v1470 = vpop.f32.mrf.mxu0
      %v1471 = vadd.f32 %v1374, %v1470
      %v1472 = vpop.f32.mrf.mxu0
      %1473 = vdwg.mxu0
      %1474 = vmatprep.subr.bf16.mxu0 0
      %1475 = vmatpush1.bf16.msra.mxu0 %v1191
      %1476 = vmatprep.subr.bf16.mxu0 0
      %1477 = vmatpush1.bf16.msra.mxu0 %v1190
      %1478 = vmatprep.subr.bf16.mxu0 0
      %1479 = vmatpush1.bf16.msra.mxu0 %v1189
      %1480 = vmatprep.subr.bf16.mxu0 0
      %1481 = vmatpush1.bf16.msra.mxu0 %v1188
      %1482 = vmatprep.subr.bf16.mxu0 0
      %1483 = vmatpush1.bf16.msra.mxu0 %v1187
      %1484 = vmatprep.subr.bf16.mxu0 0
      %1485 = vmatpush1.bf16.msra.mxu0 %v1186
      %1486 = vmatprep.subr.bf16.mxu0 0
      %1487 = vmatpush1.bf16.msra.mxu0 %v1185
      %1488 = vmatprep.subr.bf16.mxu0 0
      %1489 = vmatpush1.bf16.msra.mxu0 %v1184
      %1490 = vmatprep.subr.bf16.mxu0 0
      %1491 = vmatpush2.bf16.msra.mxu0 %v1199
      %1492 = vmatprep.subr.bf16.mxu0 0
      %1493 = vmatpush2.bf16.msra.mxu0 %v1198
      %1494 = vmatprep.subr.bf16.mxu0 0
      %1495 = vmatpush2.bf16.msra.mxu0 %v1197
      %1496 = vmatprep.subr.bf16.mxu0 0
      %1497 = vmatpush2.bf16.msra.mxu0 %v1196
      %1498 = vmatprep.subr.bf16.mxu0 0
      %1499 = vmatpush2.bf16.msra.mxu0 %v1195
      %1500 = vmatprep.subr.bf16.mxu0 0
      %1501 = vmatpush2.bf16.msra.mxu0 %v1194
      %1502 = vmatprep.subr.bf16.mxu0 0
      %1503 = vmatpush2.bf16.msra.mxu0 %v1193
      %1504 = vmatprep.subr.bf16.mxu0 0
      %1505 = vmatpush2.bf16.msra.mxu0 %v1192
      %1506 = vmatprep.mubr.bf16.mxu0 %v773
      %1507 = vmatmul.mubr.bf16.gmra.mxu0 %v772
      %v1508 = vpop.f32.mrf.mxu0
      %v1509 = vadd.f32 %v1412, %v1508
      %v1510 = vpop.f32.mrf.mxu0
      %v1511 = vpop.f32.mrf.mxu0
      %v1512 = vadd.f32 %v1415, %v1511
      %v1513 = vpop.f32.mrf.mxu0
      %1514 = vmatprep.mubr.bf16.mxu0 %v781
      %1515 = vmatmul.mubr.bf16.gmra.mxu0 %v780
      %v1516 = vpop.f32.mrf.mxu0
      %v1517 = vadd.f32 %v1420, %v1516
      %v1518 = vpop.f32.mrf.mxu0
      %v1519 = vpop.f32.mrf.mxu0
      %v1520 = vadd.f32 %v1423, %v1519
      %v1521 = vpop.f32.mrf.mxu0
      %1522 = vmatprep.mubr.bf16.mxu0 %v789
      %1523 = vmatmul.mubr.bf16.gmra.mxu0 %v788
      %v1524 = vpop.f32.mrf.mxu0
      %v1525 = vadd.f32 %v1428, %v1524
      %v1526 = vpop.f32.mrf.mxu0
      %v1527 = vpop.f32.mrf.mxu0
      %v1528 = vadd.f32 %v1431, %v1527
      %v1529 = vpop.f32.mrf.mxu0
      %1530 = vmatprep.mubr.bf16.mxu0 %v797
      %1531 = vmatmul.mubr.bf16.gmra.mxu0 %v796
      %v1532 = vpop.f32.mrf.mxu0
      %v1533 = vadd.f32 %v1436, %v1532
      %v1534 = vpop.f32.mrf.mxu0
      %v1535 = vpop.f32.mrf.mxu0
      %v1536 = vadd.f32 %v1439, %v1535
      %v1537 = vpop.f32.mrf.mxu0
      %1538 = vmatprep.mubr.bf16.mxu0 %v805
      %1539 = vmatmul.mubr.bf16.gmra.mxu0 %v804
      %v1540 = vpop.f32.mrf.mxu0
      %v1541 = vadd.f32 %v1444, %v1540
      %v1542 = vpop.f32.mrf.mxu0
      %v1543 = vpop.f32.mrf.mxu0
      %v1544 = vadd.f32 %v1447, %v1543
      %v1545 = vpop.f32.mrf.mxu0
      %1546 = vmatprep.mubr.bf16.mxu0 %v813
      %1547 = vmatmul.mubr.bf16.gmra.mxu0 %v812
      %v1548 = vpop.f32.mrf.mxu0
      %v1549 = vadd.f32 %v1452, %v1548
      %v1550 = vpop.f32.mrf.mxu0
      %v1551 = vpop.f32.mrf.mxu0
      %v1552 = vadd.f32 %v1455, %v1551
      %v1553 = vpop.f32.mrf.mxu0
      %1554 = vmatprep.mubr.bf16.mxu0 %v821
      %1555 = vmatmul.mubr.bf16.gmra.mxu0 %v820
      %v1556 = vpop.f32.mrf.mxu0
      %v1557 = vadd.f32 %v1460, %v1556
      %v1558 = vpop.f32.mrf.mxu0
      %v1559 = vpop.f32.mrf.mxu0
      %v1560 = vadd.f32 %v1463, %v1559
      %v1561 = vpop.f32.mrf.mxu0
      %1562 = vmatprep.mubr.bf16.mxu0 %v829
      %1563 = vmatmul.mubr.bf16.gmra.mxu0 %v828
      %v1564 = vpop.f32.mrf.mxu0
      %v1565 = vadd.f32 %v1468, %v1564
      %v1566 = vpop.f32.mrf.mxu0
      %v1567 = vpop.f32.mrf.mxu0
      %v1568 = vadd.f32 %v1471, %v1567
      %v1569 = vpop.f32.mrf.mxu0
      %1570 = vdwg.mxu0
      %1571 = vmatprep.subr.bf16.mxu0 0
      %1572 = vmatpush1.bf16.msra.mxu0 %v1207
      %1573 = vmatprep.subr.bf16.mxu0 0
      %1574 = vmatpush1.bf16.msra.mxu0 %v1206
      %1575 = vmatprep.subr.bf16.mxu0 0
      %1576 = vmatpush1.bf16.msra.mxu0 %v1205
      %1577 = vmatprep.subr.bf16.mxu0 0
      %1578 = vmatpush1.bf16.msra.mxu0 %v1204
      %1579 = vmatprep.subr.bf16.mxu0 0
      %1580 = vmatpush1.bf16.msra.mxu0 %v1203
      %1581 = vmatprep.subr.bf16.mxu0 0
      %1582 = vmatpush1.bf16.msra.mxu0 %v1202
      %1583 = vmatprep.subr.bf16.mxu0 0
      %1584 = vmatpush1.bf16.msra.mxu0 %v1201
      %1585 = vmatprep.subr.bf16.mxu0 0
      %1586 = vmatpush1.bf16.msra.mxu0 %v1200
      %1587 = vmatprep.subr.bf16.mxu0 0
      %1588 = vmatpush2.bf16.msra.mxu0 %v1215
      %1589 = vmatprep.subr.bf16.mxu0 0
      %1590 = vmatpush2.bf16.msra.mxu0 %v1214
      %1591 = vmatprep.subr.bf16.mxu0 0
      %1592 = vmatpush2.bf16.msra.mxu0 %v1213
      %1593 = vmatprep.subr.bf16.mxu0 0
      %1594 = vmatpush2.bf16.msra.mxu0 %v1212
      %1595 = vmatprep.subr.bf16.mxu0 0
      %1596 = vmatpush2.bf16.msra.mxu0 %v1211
      %1597 = vmatprep.subr.bf16.mxu0 0
      %1598 = vmatpush2.bf16.msra.mxu0 %v1210
      %1599 = vmatprep.subr.bf16.mxu0 0
      %1600 = vmatpush2.bf16.msra.mxu0 %v1209
      %1601 = vmatprep.subr.bf16.mxu0 0
      %1602 = vmatpush2.bf16.msra.mxu0 %v1208
      %1603 = vmatprep.mubr.bf16.mxu0 %v775
      %1604 = vmatmul.mubr.bf16.gmra.mxu0 %v774
      %v1605 = vpop.f32.mrf.mxu0
      %v1606 = vadd.f32 %v1509, %v1605
      %v1607 = vpop.f32.mrf.mxu0
      %v1608 = vpop.f32.mrf.mxu0
      %v1609 = vadd.f32 %v1512, %v1608
      %v1610 = vpop.f32.mrf.mxu0
      %1611 = vmatprep.mubr.bf16.mxu0 %v783
      %1612 = vmatmul.mubr.bf16.gmra.mxu0 %v782
      %v1613 = vpop.f32.mrf.mxu0
      %v1614 = vadd.f32 %v1517, %v1613
      %v1615 = vpop.f32.mrf.mxu0
      %v1616 = vpop.f32.mrf.mxu0
      %v1617 = vadd.f32 %v1520, %v1616
      %v1618 = vpop.f32.mrf.mxu0
      %1619 = vmatprep.mubr.bf16.mxu0 %v791
      %1620 = vmatmul.mubr.bf16.gmra.mxu0 %v790
      %v1621 = vpop.f32.mrf.mxu0
      %v1622 = vadd.f32 %v1525, %v1621
      %v1623 = vpop.f32.mrf.mxu0
      %v1624 = vpop.f32.mrf.mxu0
      %v1625 = vadd.f32 %v1528, %v1624
      %v1626 = vpop.f32.mrf.mxu0
      %1627 = vmatprep.mubr.bf16.mxu0 %v799
      %1628 = vmatmul.mubr.bf16.gmra.mxu0 %v798
      %v1629 = vpop.f32.mrf.mxu0
      %v1630 = vadd.f32 %v1533, %v1629
      %v1631 = vpop.f32.mrf.mxu0
      %v1632 = vpop.f32.mrf.mxu0
      %v1633 = vadd.f32 %v1536, %v1632
      %v1634 = vpop.f32.mrf.mxu0
      %1635 = vmatprep.mubr.bf16.mxu0 %v807
      %1636 = vmatmul.mubr.bf16.gmra.mxu0 %v806
      %v1637 = vpop.f32.mrf.mxu0
      %v1638 = vadd.f32 %v1541, %v1637
      %v1639 = vpop.f32.mrf.mxu0
      %v1640 = vpop.f32.mrf.mxu0
      %v1641 = vadd.f32 %v1544, %v1640
      %v1642 = vpop.f32.mrf.mxu0
      %1643 = vmatprep.mubr.bf16.mxu0 %v815
      %1644 = vmatmul.mubr.bf16.gmra.mxu0 %v814
      %v1645 = vpop.f32.mrf.mxu0
      %v1646 = vadd.f32 %v1549, %v1645
      %v1647 = vpop.f32.mrf.mxu0
      %v1648 = vpop.f32.mrf.mxu0
      %v1649 = vadd.f32 %v1552, %v1648
      %v1650 = vpop.f32.mrf.mxu0
      %1651 = vmatprep.mubr.bf16.mxu0 %v823
      %1652 = vmatmul.mubr.bf16.gmra.mxu0 %v822
      %v1653 = vpop.f32.mrf.mxu0
      %v1654 = vadd.f32 %v1557, %v1653
      %v1655 = vpop.f32.mrf.mxu0
      %v1656 = vpop.f32.mrf.mxu0
      %v1657 = vadd.f32 %v1560, %v1656
      %v1658 = vpop.f32.mrf.mxu0
      %1659 = vmatprep.mubr.bf16.mxu0 %v831
      %1660 = vmatmul.mubr.bf16.gmra.mxu0 %v830
      %v1661 = vpop.f32.mrf.mxu0
      %v1662 = vadd.f32 %v1565, %v1661
      %v1663 = vpop.f32.mrf.mxu0
      %v1664 = vpop.f32.mrf.mxu0
      %v1665 = vadd.f32 %v1568, %v1664
      %v1666 = vpop.f32.mrf.mxu0
      %1667 = vdwg.mxu0
      %v1668 = vadd.f32 %v368, %v1606
      %v1669 = vadd.f32 %v369, %v1609
      %v1670 = vadd.f32 %v370, %v1614
      %v1671 = vadd.f32 %v371, %v1617
      %v1672 = vadd.f32 %v372, %v1622
      %v1673 = vadd.f32 %v373, %v1625
      %v1674 = vadd.f32 %v374, %v1630
      %v1675 = vadd.f32 %v375, %v1633
      %v1676 = vadd.f32 %v376, %v1638
      %v1677 = vadd.f32 %v377, %v1641
      %v1678 = vadd.f32 %v378, %v1646
      %v1679 = vadd.f32 %v379, %v1649
      %v1680 = vadd.f32 %v380, %v1654
      %v1681 = vadd.f32 %v381, %v1657
      %v1682 = vadd.f32 %v382, %v1662
      %v1683 = vadd.f32 %v383, %v1665
      %1684 = vst [vmem:[#allocation2] sm:$0xff] %v1668
      %1685 = vst [vmem:[#allocation2 + $0x8] sm:$0xff] %v1669
      %1686 = vst [vmem:[#allocation2 + $0x10] sm:$0xff] %v1670
      %1687 = vst [vmem:[#allocation2 + $0x18] sm:$0xff] %v1671
      %1688 = vst [vmem:[#allocation2 + $0x20] sm:$0xff] %v1672
      %1689 = vst [vmem:[#allocation2 + $0x28] sm:$0xff] %v1673
      %1690 = vst [vmem:[#allocation2 + $0x30] sm:$0xff] %v1674
      %1691 = vst [vmem:[#allocation2 + $0x38] sm:$0xff] %v1675
      %1692 = vst [vmem:[#allocation2 + $0x40] sm:$0xff] %v1676
      %1693 = vst [vmem:[#allocation2 + $0x48] sm:$0xff] %v1677
      %1694 = vst [vmem:[#allocation2 + $0x50] sm:$0xff] %v1678
      %1695 = vst [vmem:[#allocation2 + $0x58] sm:$0xff] %v1679
      %1696 = vst [vmem:[#allocation2 + $0x60] sm:$0xff] %v1680
      %1697 = vst [vmem:[#allocation2 + $0x68] sm:$0xff] %v1681
      %1698 = vst [vmem:[#allocation2 + $0x70] sm:$0xff] %v1682
      %1699 = vst [vmem:[#allocation2 + $0x78] sm:$0xff] %v1683
      // Predicated region
      $region45: #{bpr_forward.10} parent=39 // pred_check
        %p1700 = pneg %p348
      $region46: #{bpr_forward.10} parent=39 // pred_check_branch
        %1702 = sbr.rel (%p1700) target = $region48
      $region47: #{bpr_forward.10} parent=39 // pred_region
        %v1703 = vld [vmem:[%s327] sm:$0xff]
        %v1704 = vld [vmem:[%s327 + $0x8] sm:$0xff]
        %v1705 = vld [vmem:[%s327 + $0x10] sm:$0xff]
        %v1706 = vld [vmem:[%s327 + $0x18] sm:$0xff]
        %v1707 = vld [vmem:[%s327 + $0x20] sm:$0xff]
        %v1708 = vld [vmem:[%s327 + $0x28] sm:$0xff]
        %v1709 = vld [vmem:[%s327 + $0x30] sm:$0xff]
        %v1710 = vld [vmem:[%s327 + $0x38] sm:$0xff]
        %v1711 = vld [vmem:[%s327 + $0x40] sm:$0xff]
        %v1712 = vld [vmem:[%s327 + $0x48] sm:$0xff]
        %v1713 = vld [vmem:[%s327 + $0x50] sm:$0xff]
        %v1714 = vld [vmem:[%s327 + $0x58] sm:$0xff]
        %v1715 = vld [vmem:[%s327 + $0x60] sm:$0xff]
        %v1716 = vld [vmem:[%s327 + $0x68] sm:$0xff]
        %v1717 = vld [vmem:[%s327 + $0x70] sm:$0xff]
        %v1718 = vld [vmem:[%s327 + $0x78] sm:$0xff]
        %v1719 = vld [vmem:[%s333] sm:$0xf]
        %v1720 = vld [vmem:[%s333 + $0x4] sm:$0xf]
        %v1721 = vld [vmem:[%s333 + $0x8] sm:$0xf]
        %v1722 = vld [vmem:[%s333 + $0xc] sm:$0xf]
        %v1723 = vld [vmem:[%s333 + $0x10] sm:$0xf]
        %v1724 = vld [vmem:[%s333 + $0x14] sm:$0xf]
        %v1725 = vld [vmem:[%s333 + $0x18] sm:$0xf]
        %v1726 = vld [vmem:[%s333 + $0x1c] sm:$0xf]
        %v1727 = vld [vmem:[%s333 + $0x20] sm:$0xf]
        %v1728 = vld [vmem:[%s333 + $0x24] sm:$0xf]
        %v1729 = vld [vmem:[%s333 + $0x28] sm:$0xf]
        %v1730 = vld [vmem:[%s333 + $0x2c] sm:$0xf]
        %v1731 = vld [vmem:[%s333 + $0x30] sm:$0xf]
        %v1732 = vld [vmem:[%s333 + $0x34] sm:$0xf]
        %v1733 = vld [vmem:[%s333 + $0x38] sm:$0xf]
        %v1734 = vld [vmem:[%s333 + $0x3c] sm:$0xf]
        %v1735 = vunpack.c.l.bf16 %v1719
        %v1736 = vunpack.c.l.bf16 %v1720
        %v1737 = vunpack.c.l.bf16 %v1721
        %v1738 = vunpack.c.l.bf16 %v1722
        %v1739 = vunpack.c.l.bf16 %v1723
        %v1740 = vunpack.c.l.bf16 %v1724
        %v1741 = vunpack.c.l.bf16 %v1725
        %v1742 = vunpack.c.l.bf16 %v1726
        %v1743 = vunpack.c.l.bf16 %v1727
        %v1744 = vunpack.c.l.bf16 %v1728
        %v1745 = vunpack.c.l.bf16 %v1729
        %v1746 = vunpack.c.l.bf16 %v1730
        %v1747 = vunpack.c.l.bf16 %v1731
        %v1748 = vunpack.c.l.bf16 %v1732
        %v1749 = vunpack.c.l.bf16 %v1733
        %v1750 = vunpack.c.l.bf16 %v1734
        %v1751 = vmul.f32 %v1735, 0.5
        %v1752 = vmul.f32 %v1736, 0.5
        %v1753 = vmul.f32 %v1737, 0.5
        %v1754 = vmul.f32 %v1738, 0.5
        %v1755 = vmul.f32 %v1739, 0.5
        %v1756 = vmul.f32 %v1740, 0.5
        %v1757 = vmul.f32 %v1741, 0.5
        %v1758 = vmul.f32 %v1742, 0.5
        %v1759 = vmul.f32 %v1743, 0.5
        %v1760 = vmul.f32 %v1744, 0.5
        %v1761 = vmul.f32 %v1745, 0.5
        %v1762 = vmul.f32 %v1746, 0.5
        %v1763 = vmul.f32 %v1747, 0.5
        %v1764 = vmul.f32 %v1748, 0.5
        %v1765 = vmul.f32 %v1749, 0.5
        %v1766 = vmul.f32 %v1750, 0.5
        %v1767 = vadd.f32 %v1703, %v1751
        %v1768 = vadd.f32 %v1704, %v1752
        %v1769 = vadd.f32 %v1705, %v1753
        %v1770 = vadd.f32 %v1706, %v1754
        %v1771 = vadd.f32 %v1707, %v1755
        %v1772 = vadd.f32 %v1708, %v1756
        %v1773 = vadd.f32 %v1709, %v1757
        %v1774 = vadd.f32 %v1710, %v1758
        %v1775 = vadd.f32 %v1711, %v1759
        %v1776 = vadd.f32 %v1712, %v1760
        %v1777 = vadd.f32 %v1713, %v1761
        %v1778 = vadd.f32 %v1714, %v1762
        %v1779 = vadd.f32 %v1715, %v1763
        %v1780 = vadd.f32 %v1716, %v1764
        %v1781 = vadd.f32 %v1717, %v1765
        %v1782 = vadd.f32 %v1718, %v1766
        %v1783 = vld [vmem:[%s339] sm:$0xf]
        %v1784 = vld [vmem:[%s339 + $0x4] sm:$0xf]
        %v1785 = vld [vmem:[%s339 + $0x8] sm:$0xf]
        %v1786 = vld [vmem:[%s339 + $0xc] sm:$0xf]
        %v1787 = vld [vmem:[%s339 + $0x10] sm:$0xf]
        %v1788 = vld [vmem:[%s339 + $0x14] sm:$0xf]
        %v1789 = vld [vmem:[%s339 + $0x18] sm:$0xf]
        %v1790 = vld [vmem:[%s339 + $0x1c] sm:$0xf]
        %v1791 = vld [vmem:[%s339 + $0x20] sm:$0xf]
        %v1792 = vld [vmem:[%s339 + $0x24] sm:$0xf]
        %v1793 = vld [vmem:[%s339 + $0x28] sm:$0xf]
        %v1794 = vld [vmem:[%s339 + $0x2c] sm:$0xf]
        %v1795 = vld [vmem:[%s339 + $0x30] sm:$0xf]
        %v1796 = vld [vmem:[%s339 + $0x34] sm:$0xf]
        %v1797 = vld [vmem:[%s339 + $0x38] sm:$0xf]
        %v1798 = vld [vmem:[%s339 + $0x3c] sm:$0xf]
        %v1799 = vunpack.c.l.bf16 %v1783
        %v1800 = vunpack.c.l.bf16 %v1784
        %v1801 = vunpack.c.l.bf16 %v1785
        %v1802 = vunpack.c.l.bf16 %v1786
        %v1803 = vunpack.c.l.bf16 %v1787
        %v1804 = vunpack.c.l.bf16 %v1788
        %v1805 = vunpack.c.l.bf16 %v1789
        %v1806 = vunpack.c.l.bf16 %v1790
        %v1807 = vunpack.c.l.bf16 %v1791
        %v1808 = vunpack.c.l.bf16 %v1792
        %v1809 = vunpack.c.l.bf16 %v1793
        %v1810 = vunpack.c.l.bf16 %v1794
        %v1811 = vunpack.c.l.bf16 %v1795
        %v1812 = vunpack.c.l.bf16 %v1796
        %v1813 = vunpack.c.l.bf16 %v1797
        %v1814 = vunpack.c.l.bf16 %v1798
        %v1815 = vmul.f32 %v1799, 0.33333334
        %v1816 = vmul.f32 %v1800, 0.33333334
        %v1817 = vmul.f32 %v1801, 0.33333334
        %v1818 = vmul.f32 %v1802, 0.33333334
        %v1819 = vmul.f32 %v1803, 0.33333334
        %v1820 = vmul.f32 %v1804, 0.33333334
        %v1821 = vmul.f32 %v1805, 0.33333334
        %v1822 = vmul.f32 %v1806, 0.33333334
        %v1823 = vmul.f32 %v1807, 0.33333334
        %v1824 = vmul.f32 %v1808, 0.33333334
        %v1825 = vmul.f32 %v1809, 0.33333334
        %v1826 = vmul.f32 %v1810, 0.33333334
        %v1827 = vmul.f32 %v1811, 0.33333334
        %v1828 = vmul.f32 %v1812, 0.33333334
        %v1829 = vmul.f32 %v1813, 0.33333334
        %v1830 = vmul.f32 %v1814, 0.33333334
        %v1831 = vadd.f32 %v1767, %v1815
        %v1832 = vadd.f32 %v1768, %v1816
        %v1833 = vadd.f32 %v1769, %v1817
        %v1834 = vadd.f32 %v1770, %v1818
        %v1835 = vadd.f32 %v1771, %v1819
        %v1836 = vadd.f32 %v1772, %v1820
        %v1837 = vadd.f32 %v1773, %v1821
        %v1838 = vadd.f32 %v1774, %v1822
        %v1839 = vadd.f32 %v1775, %v1823
        %v1840 = vadd.f32 %v1776, %v1824
        %v1841 = vadd.f32 %v1777, %v1825
        %v1842 = vadd.f32 %v1778, %v1826
        %v1843 = vadd.f32 %v1779, %v1827
        %v1844 = vadd.f32 %v1780, %v1828
        %v1845 = vadd.f32 %v1781, %v1829
        %v1846 = vadd.f32 %v1782, %v1830
        %v1847 = vld [vmem:[#allocation2] sm:$0xff]
        %v1848 = vld [vmem:[#allocation2 + $0x8] sm:$0xff]
        %v1849 = vld [vmem:[#allocation2 + $0x10] sm:$0xff]
        %v1850 = vld [vmem:[#allocation2 + $0x18] sm:$0xff]
        %v1851 = vld [vmem:[#allocation2 + $0x20] sm:$0xff]
        %v1852 = vld [vmem:[#allocation2 + $0x28] sm:$0xff]
        %v1853 = vld [vmem:[#allocation2 + $0x30] sm:$0xff]
        %v1854 = vld [vmem:[#allocation2 + $0x38] sm:$0xff]
        %v1855 = vld [vmem:[#allocation2 + $0x40] sm:$0xff]
        %v1856 = vld [vmem:[#allocation2 + $0x48] sm:$0xff]
        %v1857 = vld [vmem:[#allocation2 + $0x50] sm:$0xff]
        %v1858 = vld [vmem:[#allocation2 + $0x58] sm:$0xff]
        %v1859 = vld [vmem:[#allocation2 + $0x60] sm:$0xff]
        %v1860 = vld [vmem:[#allocation2 + $0x68] sm:$0xff]
        %v1861 = vld [vmem:[#allocation2 + $0x70] sm:$0xff]
        %v1862 = vld [vmem:[#allocation2 + $0x78] sm:$0xff]
        %v1863 = vmul.f32 %v1847, 0.25
        %v1864 = vmul.f32 %v1848, 0.25
        %v1865 = vmul.f32 %v1849, 0.25
        %v1866 = vmul.f32 %v1850, 0.25
        %v1867 = vmul.f32 %v1851, 0.25
        %v1868 = vmul.f32 %v1852, 0.25
        %v1869 = vmul.f32 %v1853, 0.25
        %v1870 = vmul.f32 %v1854, 0.25
        %v1871 = vmul.f32 %v1855, 0.25
        %v1872 = vmul.f32 %v1856, 0.25
        %v1873 = vmul.f32 %v1857, 0.25
        %v1874 = vmul.f32 %v1858, 0.25
        %v1875 = vmul.f32 %v1859, 0.25
        %v1876 = vmul.f32 %v1860, 0.25
        %v1877 = vmul.f32 %v1861, 0.25
        %v1878 = vmul.f32 %v1862, 0.25
        %v1879 = vadd.f32 %v1831, %v1863
        %v1880 = vadd.f32 %v1832, %v1864
        %v1881 = vadd.f32 %v1833, %v1865
        %v1882 = vadd.f32 %v1834, %v1866
        %v1883 = vadd.f32 %v1835, %v1867
        %v1884 = vadd.f32 %v1836, %v1868
        %v1885 = vadd.f32 %v1837, %v1869
        %v1886 = vadd.f32 %v1838, %v1870
        %v1887 = vadd.f32 %v1839, %v1871
        %v1888 = vadd.f32 %v1840, %v1872
        %v1889 = vadd.f32 %v1841, %v1873
        %v1890 = vadd.f32 %v1842, %v1874
        %v1891 = vadd.f32 %v1843, %v1875
        %v1892 = vadd.f32 %v1844, %v1876
        %v1893 = vadd.f32 %v1845, %v1877
        %v1894 = vadd.f32 %v1846, %v1878
        %1895 = vst [vmem:[%s345] sm:$0xff] %v1879
        %1896 = vst [vmem:[%s345 + $0x8] sm:$0xff] %v1880
        %1897 = vst [vmem:[%s345 + $0x10] sm:$0xff] %v1881
        %1898 = vst [vmem:[%s345 + $0x18] sm:$0xff] %v1882
        %1899 = vst [vmem:[%s345 + $0x20] sm:$0xff] %v1883
        %1900 = vst [vmem:[%s345 + $0x28] sm:$0xff] %v1884
        %1901 = vst [vmem:[%s345 + $0x30] sm:$0xff] %v1885
        %1902 = vst [vmem:[%s345 + $0x38] sm:$0xff] %v1886
        %1903 = vst [vmem:[%s345 + $0x40] sm:$0xff] %v1887
        %1904 = vst [vmem:[%s345 + $0x48] sm:$0xff] %v1888
        %1905 = vst [vmem:[%s345 + $0x50] sm:$0xff] %v1889
        %1906 = vst [vmem:[%s345 + $0x58] sm:$0xff] %v1890
        %1907 = vst [vmem:[%s345 + $0x60] sm:$0xff] %v1891
        %1908 = vst [vmem:[%s345 + $0x68] sm:$0xff] %v1892
        %1909 = vst [vmem:[%s345 + $0x70] sm:$0xff] %v1893
        %1910 = vst [vmem:[%s345 + $0x78] sm:$0xff] %v1894
      $region48: #{bpr_forward.10} parent=39 // pred_fallthru
        _
      %s1911 = smul.u32 16, %s20
      %p1912 = scmp.lt.s32.totalorder %s1911, 63
      %s1913 = scalar_select %p1912, %s1911, 63
      %s1914 = smul.addr %s1913, 8
      %s1915 = scalar_lea.vmem %s5, %s1914
      // Predicated region
      $region49: #{bpr_forward.10} parent=39 // pred_check
        %p1916 = pneg %p178
      $region50: #{bpr_forward.10} parent=39 // pred_check_branch
        %1918 = sbr.rel (%p1916) target = $region52
      $region51: #{bpr_forward.10} parent=39 // pred_region
        %s1919 = smul.u32 16, %s20
      $region52: #{bpr_forward.10} parent=39 // pred_fallthru
        _
    $region40: #{bpr_forward.10} parent=5 // pred_fallthru
      _
    %p1920 = scmp.le.s32.totalorder 2, %s11
    // Predicated region
    $region53: #{bpr_forward.10} parent=5 // pred_check
      %p1921 = pneg %p1920
    $region54: #{bpr_forward.10} parent=5 // pred_check_branch
      %1923 = sbr.rel (%p1921) target = $region56
    $region55: #{bpr_forward.10} parent=5 // pred_region
      %s1924 = ssub.s32 %s11, 2
      // Predicated region
      $region57: #{bpr_forward.10} parent=55 // pred_check
        %p1925 = pneg %p184
      $region58: #{bpr_forward.10} parent=55 // pred_check_branch
        %1927 = sbr.rel (%p1925) target = $region60
      $region59: #{bpr_forward.10} parent=55 // pred_region
        %s1928 = smul.u32 16, %s22
        %p1929 = scmp.lt.s32.totalorder %s1928, 63
        %s1930 = scalar_select %p1929, %s1928, 63
        %s1931 = smul.addr %s1930, 8
        %s1932 = scalar_lea.vmem %s5, %s1931
      $region60: #{bpr_forward.10} parent=55 // pred_fallthru
        _
    $region56: #{bpr_forward.10} parent=5 // pred_fallthru
      _
  $region6: #{bpr_forward.10} parent=0 // loop_footer
    %s15 = sadd.s32 1, %s11
  $region7: #{bpr_forward.10} parent=0 // loop_footer_branch
    %10 = sbr.rel target = $region3
  $region8: #{bpr_forward.10} parent=0 // loop_exit
    _

</llo_original>
